<compile_context>
chip_gen: v7x
topology: tpu7x:2x2x1
jax: 0.10.0
libtpu: 0.0.40
codegen_flags: <defaults>
</compile_context>

<pallas_src>
import math
import functools

import jax
import jax.numpy as jnp
from jax import lax
from jax.experimental import pallas as pl
from jax.experimental.pallas import tpu as pltpu


# ---------------------------------------------------------------------------
# Helpers
# ---------------------------------------------------------------------------

def _pick_tile(dim, target, step):
    """Largest tile <= target that divides dim and is a multiple of `step`;
    falls back to the full dim (always a legal block shape)."""
    if dim <= target:
        return dim
    cand = (target // step) * step
    while cand >= step:
        if dim % cand == 0:
            return cand
        cand -= step
    return dim


@functools.lru_cache(maxsize=None)
def _vmem_limit_bytes():
    """~3/4 of this generation's physical VMEM (96 MiB on v5e/v6e, 48 MiB on
    v7x), capped at 100 MiB; conservative fallback if the query fails."""
    try:
        cap = int(pltpu.get_tpu_info().vmem_capacity_bytes)
    except Exception:
        cap = 64 * 1024 * 1024
    return int(max(32 * 1024 * 1024, min(cap * 3 // 4, 100 * 1024 * 1024)))


# ---------------------------------------------------------------------------
# Tiled linear: y = x @ w + b, with w pre-transposed to (K, N) at prep time
# ---------------------------------------------------------------------------

def _linear_kernel(x_ref, w_ref, b_ref, o_ref, acc_ref):
    k = pl.program_id(2)

    @pl.when(k == 0)
    def _():
        acc_ref[...] = jnp.zeros(acc_ref.shape, acc_ref.dtype)

    # MXU operands in the weight dtype (bf16 on the fast path), f32 accumulate.
    acc_ref[...] += jnp.dot(
        x_ref[...].astype(w_ref.dtype), w_ref[...],
        preferred_element_type=jnp.float32)

    @pl.when(k == pl.num_programs(2) - 1)
    def _():
        o_ref[...] = (acc_ref[...] + b_ref[...]).astype(o_ref.dtype)


def pallas_linear(x, w_kn, b):
    """y = x @ w_kn + b.  x: (M, K) f32, w_kn: (K, N) f32/bf16, b: (N,) f32."""
    M, K = x.shape
    K2, N = w_kn.shape
    assert K == K2
    b2 = b.reshape(1, N).astype(jnp.float32)

    tm = _pick_tile(M, 512, 8)
    tn = _pick_tile(N, 512, 128)
    tk = _pick_tile(K, 1024, 128)

    return pl.pallas_call(
        _linear_kernel,
        out_shape=jax.ShapeDtypeStruct((M, N), x.dtype),
        grid=(M // tm, N // tn, K // tk),
        in_specs=[
            pl.BlockSpec((tm, tk), lambda i, j, k: (i, k)),
            pl.BlockSpec((tk, tn), lambda i, j, k: (k, j)),
            pl.BlockSpec((1, tn), lambda i, j, k: (0, j)),
        ],
        out_specs=pl.BlockSpec((tm, tn), lambda i, j, k: (i, j)),
        scratch_shapes=[pltpu.VMEM((tm, tn), jnp.float32)],
        compiler_params=pltpu.CompilerParams(
            dimension_semantics=("parallel", "parallel", "arbitrary"),
            vmem_limit_bytes=_vmem_limit_bytes()),
    )(x, w_kn, b2)


# ---------------------------------------------------------------------------
# Attention, flash variant (need_weights=False): online softmax, kv-tiled
# ---------------------------------------------------------------------------

def _flash_attn_kernel(q_ref, k_ref, v_ref, o_ref, m_ref, l_ref, acc_ref,
                       *, num_heads, head_dim, mxu_dtype):
    # q_ref : (tq , H, Dh)   (q already scaled via folded weights)
    # k_ref : (tkv, H, Dh)
    # v_ref : (tkv, H, Dh)
    # o_ref : (tq , E)       lane-dense output block of the (B, T, E) array
    # m_ref : (tq , H) f32   running row max per head
    # l_ref : (tq , H) f32   running softmax denominator per head
    # acc_ref:(tq , E) f32   unnormalized output accumulator
    kv = pl.program_id(2)

    @pl.when(kv == 0)
    def _():
        m_ref[...] = jnp.full(m_ref.shape, -1e30, m_ref.dtype)
        l_ref[...] = jnp.zeros(l_ref.shape, l_ref.dtype)
        acc_ref[...] = jnp.zeros(acc_ref.shape, acc_ref.dtype)

    q = q_ref[...]
    k = k_ref[...]
    v = v_ref[...]

    # TODO(synk): static head unroll kept for lowering robustness; with kv
    # tiling the per-head temporaries are only (tq, tkv), so live-range
    # pressure is bounded.  A head grid axis would shrink this further.
    for h in range(num_heads):
        lo = h * head_dim
        hi = lo + head_dim
        qh = q[:, h, :].astype(mxu_dtype)               # (tq , Dh)
        kh = k[:, h, :].astype(mxu_dtype)               # (tkv, Dh)
        vh = v[:, h, :].astype(mxu_dtype)               # (tkv, Dh)

        s = lax.dot_general(                            # (tq, tkv) f32
            qh, kh, dimension_numbers=(((1,), (1,)), ((), ())),
            preferred_element_type=jnp.float32)

        m_prev = m_ref[:, h:h + 1]                      # (tq, 1)
        m_new = jnp.maximum(m_prev, jnp.max(s, axis=-1, keepdims=True))
        alpha = jnp.exp(m_prev - m_new)                 # (tq, 1)
        p = jnp.exp(s - m_new)                          # (tq, tkv) f32

        l_ref[:, h:h + 1] = alpha * l_ref[:, h:h + 1] + jnp.sum(
            p, axis=-1, keepdims=True)
        m_ref[:, h:h + 1] = m_new

        pv = lax.dot_general(                           # (tq, Dh) f32
            p.astype(mxu_dtype), vh,
            dimension_numbers=(((1,), (0,)), ((), ())),
            preferred_element_type=jnp.float32)
        acc_ref[:, lo:hi] = alpha * acc_ref[:, lo:hi] + pv

    @pl.when(kv == pl.num_programs(2) - 1)
    def _():
        for h in range(num_heads):
            lo = h * head_dim
            hi = lo + head_dim
            inv = pl.reciprocal(l_ref[:, h:h + 1], approx=True)   # (tq, 1)
            acc_ref[:, lo:hi] = acc_ref[:, lo:hi] * inv
        # single unmasked lane-dense (tq, E) store
        o_ref[...] = acc_ref[...].astype(o_ref.dtype)


def pallas_attention_flash(qkv, num_heads, mxu_dtype, q_block=None, kv_block=None):
    """qkv: (T, B, 3, H, Dh) fused projection output (q already scaled).

    Returns attn: (B, T, E) -- lane-dense layout, reshape-only path into the
    out-projection GEMM.
    """
    T, B, three, H, Dh = qkv.shape
    assert three == 3 and H == num_heads
    E = H * Dh

    tq = q_block if q_block is not None else _pick_tile(T, 256, 8)
    tkv = kv_block if kv_block is not None else _pick_tile(T, 512, 128)
    assert T % tq == 0 and T % tkv == 0

    kernel = functools.partial(_flash_attn_kernel, num_heads=H, head_dim=Dh,
                               mxu_dtype=mxu_dtype)
    return pl.pallas_call(
        kernel,
        grid=(B, T // tq, T // tkv),
        out_shape=jax.ShapeDtypeStruct((B, T, E), qkv.dtype),
        in_specs=[
            pl.BlockSpec((tq, None, None, H, Dh),
                         lambda b, qi, kv: (qi, b, 0, 0, 0)),
            pl.BlockSpec((tkv, None, None, H, Dh),
                         lambda b, qi, kv: (kv, b, 1, 0, 0)),
            pl.BlockSpec((tkv, None, None, H, Dh),
                         lambda b, qi, kv: (kv, b, 2, 0, 0)),
        ],
        out_specs=pl.BlockSpec((None, tq, E), lambda b, qi, kv: (b, qi, 0)),
        scratch_shapes=[
            pltpu.VMEM((tq, H), jnp.float32),   # running max
            pltpu.VMEM((tq, H), jnp.float32),   # running denominator
            pltpu.VMEM((tq, E), jnp.float32),   # output accumulator
        ],
        compiler_params=pltpu.CompilerParams(
            dimension_semantics=("parallel", "parallel", "arbitrary"),
            vmem_limit_bytes=_vmem_limit_bytes()),
    )(qkv, qkv, qkv)


# ---------------------------------------------------------------------------
# Attention, weights variant (need_weights=True): full-S softmax per q tile
# ---------------------------------------------------------------------------

def _attn_weights_kernel(q_ref, k_ref, v_ref, o_ref, w_ref, acc_ref,
                         *, num_heads, head_dim, mxu_dtype):
    # q_ref : (tq, H, Dh), k_ref/v_ref : (S, H, Dh)
    # o_ref : (tq, E)      lane-dense output block of the (B, T, E) array
    # w_ref : (tq, S) f32  head-averaged softmax weights
    # acc_ref:(tq, E) f32  per-head output staging (one lane-dense store)
    q = q_ref[...]
    k = k_ref[...]
    v = v_ref[...]
    w_acc = jnp.zeros(w_ref.shape, jnp.float32)

    # TODO(synk): static head unroll kept for lowering robustness (see flash
    # kernel); this variant is inherently O(T*S) in HBM via the weights output.
    for h in range(num_heads):
        lo = h * head_dim
        hi = lo + head_dim
        qh = q[:, h, :].astype(mxu_dtype)
        kh = k[:, h, :].astype(mxu_dtype)
        vh = v[:, h, :].astype(mxu_dtype)

        s = lax.dot_general(                                  # (tq, S) f32
            qh, kh, dimension_numbers=(((1,), (1,)), ((), ())),
            preferred_element_type=jnp.float32)
        m = jnp.max(s, axis=-1, keepdims=True)
        e = jnp.exp(s - m)
        p = e * pl.reciprocal(jnp.sum(e, axis=-1, keepdims=True), approx=True)
        w_acc = w_acc + p

        pv = lax.dot_general(                                 # (tq, Dh) f32
            p.astype(mxu_dtype), vh,
            dimension_numbers=(((1,), (0,)), ((), ())),
            preferred_element_type=jnp.float32)
        acc_ref[:, lo:hi] = pv

    o_ref[...] = acc_ref[...].astype(o_ref.dtype)
    w_ref[...] = (w_acc * (1.0 / num_heads)).astype(w_ref.dtype)


def pallas_attention_with_weights(qkv, num_heads, mxu_dtype, q_block=None):
    """Returns (attn (B, T, E), head-averaged weights (B, T, S) f32)."""
    T, B, three, H, Dh = qkv.shape
    assert three == 3 and H == num_heads
    E = H * Dh
    S = T
    tq = q_block if q_block is not None else _pick_tile(T, 256, 8)
    assert T % tq == 0

    kernel = functools.partial(_attn_weights_kernel, num_heads=H, head_dim=Dh,
                               mxu_dtype=mxu_dtype)
    # TODO(synk): the full-S K/V blocks are constant over the inner q axis;
    # pipeline_mode=pl.Buffered(1) would halve their VMEM residency.
    return pl.pallas_call(
        kernel,
        grid=(B, T // tq),
        out_shape=(
            jax.ShapeDtypeStruct((B, T, E), qkv.dtype),
            jax.ShapeDtypeStruct((B, T, S), jnp.float32),
        ),
        in_specs=[
            pl.BlockSpec((tq, None, None, H, Dh),
                         lambda b, qi: (qi, b, 0, 0, 0)),
            pl.BlockSpec((T, None, None, H, Dh),
                         lambda b, qi: (0, b, 1, 0, 0)),
            pl.BlockSpec((T, None, None, H, Dh),
                         lambda b, qi: (0, b, 2, 0, 0)),
        ],
        out_specs=(
            pl.BlockSpec((None, tq, E), lambda b, qi: (b, qi, 0)),
            pl.BlockSpec((None, tq, S), lambda b, qi: (b, qi, 0)),
        ),
        scratch_shapes=[pltpu.VMEM((tq, E), jnp.float32)],
        compiler_params=pltpu.CompilerParams(
            dimension_semantics=("parallel", "parallel"),
            vmem_limit_bytes=_vmem_limit_bytes()),
    )(qkv, qkv, qkv)


# ---------------------------------------------------------------------------
# Parameter prep (done once, outside the forward) and module wrapper
# ---------------------------------------------------------------------------

def xavier_uniform(key, shape, gain=1.0):
    fan_out, fan_in = shape
    a = gain * math.sqrt(6.0 / (fan_in + fan_out))
    return jax.random.uniform(key, shape, jnp.float32, -a, a)


def init_multihead_attention_params(key, embed_dim):
    ks = jax.random.split(key, 8)
    g = 1.0 / math.sqrt(2.0)            # qkv_same_dim => gain 1/sqrt(2)
    bound = 1.0 / math.sqrt(embed_dim)  # nn.Linear default bias init range
    return {
        "k_w": xavier_uniform(ks[0], (embed_dim, embed_dim), g),
        "v_w": xavier_uniform(ks[1], (embed_dim, embed_dim), g),
        "q_w": xavier_uniform(ks[2], (embed_dim, embed_dim), g),
        "out_w": xavier_uniform(ks[3], (embed_dim, embed_dim), 1.0),
        "k_b": jax.random.uniform(ks[4], (embed_dim,), jnp.float32, -bound, bound),
        "v_b": jax.random.uniform(ks[5], (embed_dim,), jnp.float32, -bound, bound),
        "q_b": jax.random.uniform(ks[6], (embed_dim,), jnp.float32, -bound, bound),
        "out_b": jnp.zeros((embed_dim,), jnp.float32),   # init.constant_(0.0)
    }


def prepare_mha_params(params, num_heads, mxu_dtype=jnp.float32):
    """One-time prep: fuse q/k/v, fold the 1/sqrt(head_dim) scale into q,
    transpose weights to (K, N) layout and optionally store them in bf16."""
    embed_dim = params["q_w"].shape[0]
    head_dim = embed_dim // num_heads
    scaling = head_dim ** (-0.5)
    qkv_w = jnp.concatenate(
        [params["q_w"] * scaling, params["k_w"], params["v_w"]], axis=0)  # (3E, E)
    qkv_b = jnp.concatenate(
        [params["q_b"] * scaling, params["k_b"], params["v_b"]], axis=0)  # (3E,)
    return {
        "qkv_w": qkv_w.T.astype(mxu_dtype),           # (E, 3E)  (K, N)
        "qkv_b": qkv_b.astype(jnp.float32),
        "out_w": params["out_w"].T.astype(mxu_dtype),  # (E, E)   (K, N)
        "out_b": params["out_b"].astype(jnp.float32),
    }


@functools.partial(
    jax.jit,
    static_argnames=("num_heads", "need_weights", "q_block", "kv_block"))
def multihead_self_attention(prep, query, num_heads, need_weights=True,
                             q_block=None, kv_block=None):
    """Self-attention forward.

    query: (tgt_len, bsz, embed_dim)
    returns:
      attn:         (tgt_len, bsz, embed_dim)
      attn_weights: (bsz, tgt_len, src_len) f32 (head-averaged) or None
    """
    tgt_len, bsz, embed_dim = query.shape
    assert embed_dim % num_heads == 0, "embed_dim must be divisible by num_heads"
    head_dim = embed_dim // num_heads
    mxu_dtype = prep["qkv_w"].dtype      # f32 or bf16 compute for MXU operands

    # Fused QKV projection (x read once, N extent 3E); scale already folded.
    x2d = query.reshape(tgt_len * bsz, embed_dim)
    qkv = pallas_linear(x2d, prep["qkv_w"], prep["qkv_b"])       # (T*B, 3E)
    qkv = qkv.reshape(tgt_len, bsz, 3, num_heads, head_dim)      # free reshape

    if need_weights:
        attn_bte, attn_weights = pallas_attention_with_weights(
            qkv, num_heads, mxu_dtype, q_block=q_block)
    else:
        attn_bte = pallas_attention_flash(
            qkv, num_heads, mxu_dtype, q_block=q_block, kv_block=kv_block)
        attn_weights = None

    # (B, T, E) -> (B*T, E) is a free reshape; out-projection; one final
    # transpose back to the fairseq (T, B, E) layout.
    y2d = pallas_linear(attn_bte.reshape(bsz * tgt_len, embed_dim),
                        prep["out_w"], prep["out_b"])
    attn = jnp.transpose(y2d.reshape(bsz, tgt_len, embed_dim), (1, 0, 2))
    return attn, attn_weights


# ---------------------------------------------------------------------------
# Reference (pure JAX) for a correctness check
# ---------------------------------------------------------------------------

def reference_mha(params, query, num_heads):
    tgt_len, bsz, embed_dim = query.shape
    head_dim = embed_dim // num_heads
    scaling = head_dim ** (-0.5)
    x2d = query.reshape(tgt_len * bsz, embed_dim)
    q = (x2d @ params["q_w"].T + params["q_b"]) * scaling
    k = x2d @ params["k_w"].T + params["k_b"]
    v = x2d @ params["v_w"].T + params["v_b"]
    sh = lambda t: t.reshape(tgt_len, bsz * num_heads, head_dim).transpose(1, 0, 2)
    qh, kh, vh = sh(q), sh(k), sh(v)
    s = jnp.einsum("btd,bsd->bts", qh, kh)
    p = jax.nn.softmax(s.astype(jnp.float32), axis=-1)
    o = jnp.einsum("bts,bsd->btd", p, vh.astype(jnp.float32)).astype(query.dtype)
    attn = o.transpose(1, 0, 2).reshape(tgt_len * bsz, embed_dim)
    attn = attn @ params["out_w"].T + params["out_b"]
    attn = attn.reshape(tgt_len, bsz, embed_dim)
    w = p.reshape(bsz, num_heads, tgt_len, -1).mean(axis=1)
    return attn, w


# ---------------------------------------------------------------------------

if __name__ == "__main__":
    key = jax.random.PRNGKey(0)
    k_param, k_x = jax.random.split(key)

    tgt_len, bsz, embed_dim, num_heads = 128, 2, 64, 4

    raw_params = init_multihead_attention_params(k_param, embed_dim)
    query = jax.random.normal(k_x, (tgt_len, bsz, embed_dim), jnp.float32)
    ref_attn, ref_w = reference_mha(raw_params, query, num_heads)

    # 1) f32-MXU path, need_weights=True (full-softmax variant + averaged weights)
    prep_f32 = prepare_mha_params(raw_params, num_heads, mxu_dtype=jnp.float32)
    attn, attn_w = multihead_self_attention(prep_f32, query, num_heads,
                                            need_weights=True)
    attn, attn_w = jax.block_until_ready((attn, attn_w))
    assert attn.shape == (tgt_len, bsz, embed_dim)
    assert attn_w.shape == (bsz, tgt_len, tgt_len)
    # tolerance accounts for the EUP approximate reciprocal in the softmax
    assert jnp.allclose(attn, ref_attn, atol=5e-3, rtol=5e-3)
    assert jnp.allclose(attn_w, ref_w, atol=5e-3, rtol=5e-3)

    # 2) f32-MXU path, need_weights=False (flash / online-softmax, kv-tiled so
    #    multiple kv grid steps are exercised)
    attn_f, w_none = multihead_self_attention(prep_f32, query, num_heads,
                                              need_weights=False,
                                              q_block=64, kv_block=64)
    attn_f = jax.block_until_ready(attn_f)
    assert w_none is None
    assert jnp.allclose(attn_f, ref_attn, atol=5e-3, rtol=5e-3)

    # 3) bf16-MXU fast path (v6e/v7x): bf16 matmul operands, f32 softmax/accum.
    prep_bf16 = prepare_mha_params(raw_params, num_heads, mxu_dtype=jnp.bfloat16)
    attn_b, _ = multihead_self_attention(prep_bf16, query, num_heads,
                                         need_weights=True)
    attn_b = jax.block_until_ready(attn_b)
    assert bool(jnp.all(jnp.isfinite(attn_b)))
    assert float(jnp.max(jnp.abs(attn_b - ref_attn))) < 0.25  # bf16 quantization

    print("KERNEL_OK")
</pallas_src>

<mosaic_0001>
module attributes {stable_mosaic.version = 11 : i64} {
  func.func @_linear_kernel(%arg0: i32, %arg1: i32, %arg2: i32, %arg3: memref<256x64xf32, #tpu.memory_space<vmem>>, %arg4: memref<64x192xf32, #tpu.memory_space<vmem>>, %arg5: memref<1x192xf32, #tpu.memory_space<vmem>>, %arg6: memref<256x192xf32, #tpu.memory_space<vmem>>, %arg7: memref<256x192xf32, #tpu.memory_space<vmem>>) attributes {dimension_semantics = [#tpu.dimension_semantics<parallel>, #tpu.dimension_semantics<parallel>, #tpu.dimension_semantics<arbitrary>], iteration_bounds = array<i64: 1, 1, 1>, scalar_prefetch = 0 : i64, scratch_operands = 1 : i64, tpu.core_type = #tpu.core_type<tc>, window_params = [{transform_indices = @transform_0, window_bounds = array<i64: 256, 64>}, {transform_indices = @transform_1, window_bounds = array<i64: 64, 192>}, {transform_indices = @transform_2, window_bounds = array<i64: 1, 192>}, {transform_indices = @transform_3, window_bounds = array<i64: 256, 192>}]} {
    %c0_i32 = arith.constant 0 : i32
    %0 = arith.cmpi eq, %arg2, %c0_i32 : i32
    %1 = arith.extui %0 : i1 to i32
    %c0_i32_0 = arith.constant 0 : i32
    %2 = arith.cmpi ne, %1, %c0_i32_0 : i32
    scf.if %2 {
      %cst_10 = arith.constant 0.000000e+00 : f32
      %12 = vector.broadcast %cst_10 : f32 to vector<256x192xf32>
      %c0_11 = arith.constant 0 : index
      %c0_12 = arith.constant 0 : index
      %13 = vector.load %arg7[%c0_11, %c0_12] : memref<256x192xf32, #tpu.memory_space<vmem>>, vector<256x192xf32>
      tpu.vector_store %arg7[%c0_11, %c0_12], %12 {strides = array<i32>} : memref<256x192xf32, #tpu.memory_space<vmem>>, vector<256x192xf32>,
    } else {
    }
    %c0 = arith.constant 0 : index
    %c0_1 = arith.constant 0 : index
    %3 = vector.load %arg7[%c0, %c0_1] : memref<256x192xf32, #tpu.memory_space<vmem>>, vector<256x192xf32>
    %c0_2 = arith.constant 0 : index
    %c0_3 = arith.constant 0 : index
    %4 = vector.load %arg3[%c0_2, %c0_3] : memref<256x64xf32, #tpu.memory_space<vmem>>, vector<256x64xf32>
    %c0_4 = arith.constant 0 : index
    %c0_5 = arith.constant 0 : index
    %5 = vector.load %arg4[%c0_4, %c0_5] : memref<64x192xf32, #tpu.memory_space<vmem>>, vector<64x192xf32>
    %cst = arith.constant dense<0.000000e+00> : vector<256x192xf32>
    %6 = tpu.matmul %4, %5, %cst {dimension_numbers = #tpu.dot_dimension_numbers<[1], [0], [0], [1], [0, 0, 1, 1], [], []>} : vector<256x64xf32>, vector<64x192xf32>, vector<256x192xf32> -> vector<256x192xf32>
    %7 = arith.addf %3, %6 : vector<256x192xf32>
    %c0_6 = arith.constant 0 : index
    %c0_7 = arith.constant 0 : index
    %8 = vector.load %arg7[%c0_6, %c0_7] : memref<256x192xf32, #tpu.memory_space<vmem>>, vector<256x192xf32>
    tpu.vector_store %arg7[%c0_6, %c0_7], %7 {strides = array<i32>} : memref<256x192xf32, #tpu.memory_space<vmem>>, vector<256x192xf32>,
    %c0_i32_8 = arith.constant 0 : i32
    %9 = arith.cmpi eq, %arg2, %c0_i32_8 : i32
    %10 = arith.extui %9 : i1 to i32
    %c0_i32_9 = arith.constant 0 : i32
    %11 = arith.cmpi ne, %10, %c0_i32_9 : i32
    scf.if %11 {
      %c0_10 = arith.constant 0 : index
      %c0_11 = arith.constant 0 : index
      %12 = vector.load %arg7[%c0_10, %c0_11] : memref<256x192xf32, #tpu.memory_space<vmem>>, vector<256x192xf32>
      %c0_12 = arith.constant 0 : index
      %c0_13 = arith.constant 0 : index
      %13 = vector.load %arg5[%c0_12, %c0_13] : memref<1x192xf32, #tpu.memory_space<vmem>>, vector<1x192xf32>
      %14 = vector.broadcast %13 : vector<1x192xf32> to vector<256x192xf32>
      %15 = arith.addf %12, %14 : vector<256x192xf32>
      %c0_14 = arith.constant 0 : index
      %c0_15 = arith.constant 0 : index
      %16 = vector.load %arg6[%c0_14, %c0_15] : memref<256x192xf32, #tpu.memory_space<vmem>>, vector<256x192xf32>
      tpu.vector_store %arg6[%c0_14, %c0_15], %15 {strides = array<i32>} : memref<256x192xf32, #tpu.memory_space<vmem>>, vector<256x192xf32>,
    } else {
    }
    return
  }
  func.func @transform_0(%arg0: i32, %arg1: i32, %arg2: i32) -> (i32, i32) {
    %c0_i32 = arith.constant 0 : i32
    return %arg0, %arg2 : i32, i32
  }
  func.func @transform_1(%arg0: i32, %arg1: i32, %arg2: i32) -> (i32, i32) {
    %c0_i32 = arith.constant 0 : i32
    return %arg2, %arg1 : i32, i32
  }
  func.func @transform_2(%arg0: i32, %arg1: i32, %arg2: i32) -> (i32, i32) {
    %c0_i32 = arith.constant 0 : i32
    %c0_i32_0 = arith.constant 0 : i32
    return %c0_i32, %arg1 : i32, i32
  }
  func.func @transform_3(%arg0: i32, %arg1: i32, %arg2: i32) -> (i32, i32) {
    %c0_i32 = arith.constant 0 : i32
    return %arg0, %arg1 : i32, i32
  }
}

module attributes {stable_mosaic.version = 11 : i64} {
  func.func @_attn_weights_kernel(%arg0: i32, %arg1: i32, %arg2: memref<128x1x1x4x16xf32, #tpu.memory_space<vmem>>, %arg3: memref<128x1x1x4x16xf32, #tpu.memory_space<vmem>>, %arg4: memref<128x1x1x4x16xf32, #tpu.memory_space<vmem>>, %arg5: memref<1x128x64xf32, #tpu.memory_space<vmem>>, %arg6: memref<1x128x128xf32, #tpu.memory_space<vmem>>, %arg7: memref<128x64xf32, #tpu.memory_space<vmem>>) attributes {dimension_semantics = [#tpu.dimension_semantics<parallel>, #tpu.dimension_semantics<parallel>], iteration_bounds = array<i64: 2, 1>, scalar_prefetch = 0 : i64, scratch_operands = 1 : i64, tpu.core_type = #tpu.core_type<tc>, window_params = [{transform_indices = @transform_0, window_bounds = array<i64: 128, 1, 1, 4, 16>}, {transform_indices = @transform_1, window_bounds = array<i64: 128, 1, 1, 4, 16>}, {transform_indices = @transform_2, window_bounds = array<i64: 128, 1, 1, 4, 16>}, {transform_indices = @transform_3, window_bounds = array<i64: 1, 128, 64>}, {transform_indices = @transform_4, window_bounds = array<i64: 1, 128, 128>}]} {
    %c0 = arith.constant 0 : index
    %c0_0 = arith.constant 0 : index
    %c0_1 = arith.constant 0 : index
    %c0_2 = arith.constant 0 : index
    %c0_3 = arith.constant 0 : index
    %0 = vector.load %arg2[%c0, %c0_0, %c0_1, %c0_2, %c0_3] : memref<128x1x1x4x16xf32, #tpu.memory_space<vmem>>, vector<128x1x1x4x16xf32>
    %1 = vector.shape_cast %0 : vector<128x1x1x4x16xf32> to vector<128x4x16xf32>
    %c0_4 = arith.constant 0 : index
    %c0_5 = arith.constant 0 : index
    %c0_6 = arith.constant 0 : index
    %c0_7 = arith.constant 0 : index
    %c0_8 = arith.constant 0 : index
    %2 = vector.load %arg3[%c0_4, %c0_5, %c0_6, %c0_7, %c0_8] : memref<128x1x1x4x16xf32, #tpu.memory_space<vmem>>, vector<128x1x1x4x16xf32>
    %3 = vector.shape_cast %2 : vector<128x1x1x4x16xf32> to vector<128x4x16xf32>
    %c0_9 = arith.constant 0 : index
    %c0_10 = arith.constant 0 : index
    %c0_11 = arith.constant 0 : index
    %c0_12 = arith.constant 0 : index
    %c0_13 = arith.constant 0 : index
    %4 = vector.load %arg4[%c0_9, %c0_10, %c0_11, %c0_12, %c0_13] : memref<128x1x1x4x16xf32, #tpu.memory_space<vmem>>, vector<128x1x1x4x16xf32>
    %5 = vector.shape_cast %4 : vector<128x1x1x4x16xf32> to vector<128x4x16xf32>
    %cst = arith.constant 0.000000e+00 : f32
    %6 = vector.broadcast %cst : f32 to vector<128x128xf32>
    %7 = vector.extract_strided_slice %1 {offsets = [0, 0, 0], sizes = [128, 1, 16], strides = [1, 1, 1]} : vector<128x4x16xf32> to vector<128x1x16xf32>
    %8 = vector.shape_cast %7 : vector<128x1x16xf32> to vector<128x16xf32>
    %9 = vector.extract_strided_slice %3 {offsets = [0, 0, 0], sizes = [128, 1, 16], strides = [1, 1, 1]} : vector<128x4x16xf32> to vector<128x1x16xf32>
    %10 = vector.shape_cast %9 : vector<128x1x16xf32> to vector<128x16xf32>
    %11 = vector.extract_strided_slice %5 {offsets = [0, 0, 0], sizes = [128, 1, 16], strides = [1, 1, 1]} : vector<128x4x16xf32> to vector<128x1x16xf32>
    %12 = vector.shape_cast %11 : vector<128x1x16xf32> to vector<128x16xf32>
    %cst_14 = arith.constant dense<0.000000e+00> : vector<128x128xf32>
    %13 = tpu.matmul %8, %10, %cst_14 {dimension_numbers = #tpu.dot_dimension_numbers<[1], [1], [0], [0], [0, 0, 1, 0], [], []>} : vector<128x16xf32>, vector<128x16xf32>, vector<128x128xf32> -> vector<128x128xf32>
    %cst_15 = arith.constant dense<0xFF800000> : vector<128xf32>
    %14 = vector.multi_reduction <maximumf>, %13, %cst_15 [1] : vector<128x128xf32> to vector<128xf32>
    %15 = vector.shape_cast %14 : vector<128xf32> to vector<128x1xf32>
    %16 = vector.broadcast %15 : vector<128x1xf32> to vector<128x128xf32>
    %17 = arith.subf %13, %16 : vector<128x128xf32>
    %18 = math.exp %17 : vector<128x128xf32>
    %cst_16 = arith.constant dense<0.000000e+00> : vector<128xf32>
    %19 = vector.multi_reduction <add>, %18, %cst_16 [1] : vector<128x128xf32> to vector<128xf32>
    %20 = vector.shape_cast %19 : vector<128xf32> to vector<128x1xf32>
    %21 = tpu.reciprocal %20 {approx = true} : vector<128x1xf32> -> vector<128x1xf32>
    %22 = vector.broadcast %21 : vector<128x1xf32> to vector<128x128xf32>
    %23 = arith.mulf %18, %22 : vector<128x128xf32>
    %24 = arith.addf %6, %23 : vector<128x128xf32>
    %cst_17 = arith.constant dense<0.000000e+00> : vector<128x16xf32>
    %25 = tpu.matmul %23, %12, %cst_17 {dimension_numbers = #tpu.dot_dimension_numbers<[1], [0], [0], [1], [0, 0, 1, 1], [], []>} : vector<128x128xf32>, vector<128x16xf32>, vector<128x16xf32> -> vector<128x16xf32>
    %c0_18 = arith.constant 0 : index
    %c0_19 = arith.constant 0 : index
    %26 = vector.load %arg7[%c0_18, %c0_19] : memref<128x64xf32, #tpu.memory_space<vmem>>, vector<128x16xf32>
    tpu.vector_store %arg7[%c0_18, %c0_19], %25 {strides = array<i32>} : memref<128x64xf32, #tpu.memory_space<vmem>>, vector<128x16xf32>,
    %27 = vector.extract_strided_slice %1 {offsets = [0, 1, 0], sizes = [128, 1, 16], strides = [1, 1, 1]} : vector<128x4x16xf32> to vector<128x1x16xf32>
    %28 = vector.shape_cast %27 : vector<128x1x16xf32> to vector<128x16xf32>
    %29 = vector.extract_strided_slice %3 {offsets = [0, 1, 0], sizes = [128, 1, 16], strides = [1, 1, 1]} : vector<128x4x16xf32> to vector<128x1x16xf32>
    %30 = vector.shape_cast %29 : vector<128x1x16xf32> to vector<128x16xf32>
    %31 = vector.extract_strided_slice %5 {offsets = [0, 1, 0], sizes = [128, 1, 16], strides = [1, 1, 1]} : vector<128x4x16xf32> to vector<128x1x16xf32>
    %32 = vector.shape_cast %31 : vector<128x1x16xf32> to vector<128x16xf32>
    %cst_20 = arith.constant dense<0.000000e+00> : vector<128x128xf32>
    %33 = tpu.matmul %28, %30, %cst_20 {dimension_numbers = #tpu.dot_dimension_numbers<[1], [1], [0], [0], [0, 0, 1, 0], [], []>} : vector<128x16xf32>, vector<128x16xf32>, vector<128x128xf32> -> vector<128x128xf32>
    %cst_21 = arith.constant dense<0xFF800000> : vector<128xf32>
    %34 = vector.multi_reduction <maximumf>, %33, %cst_21 [1] : vector<128x128xf32> to vector<128xf32>
    %35 = vector.shape_cast %34 : vector<128xf32> to vector<128x1xf32>
    %36 = vector.broadcast %35 : vector<128x1xf32> to vector<128x128xf32>
    %37 = arith.subf %33, %36 : vector<128x128xf32>
    %38 = math.exp %37 : vector<128x128xf32>
    %cst_22 = arith.constant dense<0.000000e+00> : vector<128xf32>
    %39 = vector.multi_reduction <add>, %38, %cst_22 [1] : vector<128x128xf32> to vector<128xf32>
    %40 = vector.shape_cast %39 : vector<128xf32> to vector<128x1xf32>
    %41 = tpu.reciprocal %40 {approx = true} : vector<128x1xf32> -> vector<128x1xf32>
    %42 = vector.broadcast %41 : vector<128x1xf32> to vector<128x128xf32>
    %43 = arith.mulf %38, %42 : vector<128x128xf32>
    %44 = arith.addf %24, %43 : vector<128x128xf32>
    %cst_23 = arith.constant dense<0.000000e+00> : vector<128x16xf32>
    %45 = tpu.matmul %43, %32, %cst_23 {dimension_numbers = #tpu.dot_dimension_numbers<[1], [0], [0], [1], [0, 0, 1, 1], [], []>} : vector<128x128xf32>, vector<128x16xf32>, vector<128x16xf32> -> vector<128x16xf32>
    %c0_24 = arith.constant 0 : index
    %c16 = arith.constant 16 : index
    %46 = vector.load %arg7[%c0_24, %c16] : memref<128x64xf32, #tpu.memory_space<vmem>>, vector<128x16xf32>
    tpu.vector_store %arg7[%c0_24, %c16], %45 {strides = array<i32>} : memref<128x64xf32, #tpu.memory_space<vmem>>, vector<128x16xf32>,
    %47 = vector.extract_strided_slice %1 {offsets = [0, 2, 0], sizes = [128, 1, 16], strides = [1, 1, 1]} : vector<128x4x16xf32> to vector<128x1x16xf32>
    %48 = vector.shape_cast %47 : vector<128x1x16xf32> to vector<128x16xf32>
    %49 = vector.extract_strided_slice %3 {offsets = [0, 2, 0], sizes = [128, 1, 16], strides = [1, 1, 1]} : vector<128x4x16xf32> to vector<128x1x16xf32>
    %50 = vector.shape_cast %49 : vector<128x1x16xf32> to vector<128x16xf32>
    %51 = vector.extract_strided_slice %5 {offsets = [0, 2, 0], sizes = [128, 1, 16], strides = [1, 1, 1]} : vector<128x4x16xf32> to vector<128x1x16xf32>
    %52 = vector.shape_cast %51 : vector<128x1x16xf32> to vector<128x16xf32>
    %cst_25 = arith.constant dense<0.000000e+00> : vector<128x128xf32>
    %53 = tpu.matmul %48, %50, %cst_25 {dimension_numbers = #tpu.dot_dimension_numbers<[1], [1], [0], [0], [0, 0, 1, 0], [], []>} : vector<128x16xf32>, vector<128x16xf32>, vector<128x128xf32> -> vector<128x128xf32>
    %cst_26 = arith.constant dense<0xFF800000> : vector<128xf32>
    %54 = vector.multi_reduction <maximumf>, %53, %cst_26 [1] : vector<128x128xf32> to vector<128xf32>
    %55 = vector.shape_cast %54 : vector<128xf32> to vector<128x1xf32>
    %56 = vector.broadcast %55 : vector<128x1xf32> to vector<128x128xf32>
    %57 = arith.subf %53, %56 : vector<128x128xf32>
    %58 = math.exp %57 : vector<128x128xf32>
    %cst_27 = arith.constant dense<0.000000e+00> : vector<128xf32>
    %59 = vector.multi_reduction <add>, %58, %cst_27 [1] : vector<128x128xf32> to vector<128xf32>
    %60 = vector.shape_cast %59 : vector<128xf32> to vector<128x1xf32>
    %61 = tpu.reciprocal %60 {approx = true} : vector<128x1xf32> -> vector<128x1xf32>
    %62 = vector.broadcast %61 : vector<128x1xf32> to vector<128x128xf32>
    %63 = arith.mulf %58, %62 : vector<128x128xf32>
    %64 = arith.addf %44, %63 : vector<128x128xf32>
    %cst_28 = arith.constant dense<0.000000e+00> : vector<128x16xf32>
    %65 = tpu.matmul %63, %52, %cst_28 {dimension_numbers = #tpu.dot_dimension_numbers<[1], [0], [0], [1], [0, 0, 1, 1], [], []>} : vector<128x128xf32>, vector<128x16xf32>, vector<128x16xf32> -> vector<128x16xf32>
    %c0_29 = arith.constant 0 : index
    %c32 = arith.constant 32 : index
    %66 = vector.load %arg7[%c0_29, %c32] : memref<128x64xf32, #tpu.memory_space<vmem>>, vector<128x16xf32>
    tpu.vector_store %arg7[%c0_29, %c32], %65 {strides = array<i32>} : memref<128x64xf32, #tpu.memory_space<vmem>>, vector<128x16xf32>,
    %67 = vector.extract_strided_slice %1 {offsets = [0, 3, 0], sizes = [128, 1, 16], strides = [1, 1, 1]} : vector<128x4x16xf32> to vector<128x1x16xf32>
    %68 = vector.shape_cast %67 : vector<128x1x16xf32> to vector<128x16xf32>
    %69 = vector.extract_strided_slice %3 {offsets = [0, 3, 0], sizes = [128, 1, 16], strides = [1, 1, 1]} : vector<128x4x16xf32> to vector<128x1x16xf32>
    %70 = vector.shape_cast %69 : vector<128x1x16xf32> to vector<128x16xf32>
    %71 = vector.extract_strided_slice %5 {offsets = [0, 3, 0], sizes = [128, 1, 16], strides = [1, 1, 1]} : vector<128x4x16xf32> to vector<128x1x16xf32>
    %72 = vector.shape_cast %71 : vector<128x1x16xf32> to vector<128x16xf32>
    %cst_30 = arith.constant dense<0.000000e+00> : vector<128x128xf32>
    %73 = tpu.matmul %68, %70, %cst_30 {dimension_numbers = #tpu.dot_dimension_numbers<[1], [1], [0], [0], [0, 0, 1, 0], [], []>} : vector<128x16xf32>, vector<128x16xf32>, vector<128x128xf32> -> vector<128x128xf32>
    %cst_31 = arith.constant dense<0xFF800000> : vector<128xf32>
    %74 = vector.multi_reduction <maximumf>, %73, %cst_31 [1] : vector<128x128xf32> to vector<128xf32>
    %75 = vector.shape_cast %74 : vector<128xf32> to vector<128x1xf32>
    %76 = vector.broadcast %75 : vector<128x1xf32> to vector<128x128xf32>
    %77 = arith.subf %73, %76 : vector<128x128xf32>
    %78 = math.exp %77 : vector<128x128xf32>
    %cst_32 = arith.constant dense<0.000000e+00> : vector<128xf32>
    %79 = vector.multi_reduction <add>, %78, %cst_32 [1] : vector<128x128xf32> to vector<128xf32>
    %80 = vector.shape_cast %79 : vector<128xf32> to vector<128x1xf32>
    %81 = tpu.reciprocal %80 {approx = true} : vector<128x1xf32> -> vector<128x1xf32>
    %82 = vector.broadcast %81 : vector<128x1xf32> to vector<128x128xf32>
    %83 = arith.mulf %78, %82 : vector<128x128xf32>
    %84 = arith.addf %64, %83 : vector<128x128xf32>
    %cst_33 = arith.constant dense<0.000000e+00> : vector<128x16xf32>
    %85 = tpu.matmul %83, %72, %cst_33 {dimension_numbers = #tpu.dot_dimension_numbers<[1], [0], [0], [1], [0, 0, 1, 1], [], []>} : vector<128x128xf32>, vector<128x16xf32>, vector<128x16xf32> -> vector<128x16xf32>
    %c0_34 = arith.constant 0 : index
    %c48 = arith.constant 48 : index
    %86 = vector.load %arg7[%c0_34, %c48] : memref<128x64xf32, #tpu.memory_space<vmem>>, vector<128x16xf32>
    tpu.vector_store %arg7[%c0_34, %c48], %85 {strides = array<i32>} : memref<128x64xf32, #tpu.memory_space<vmem>>, vector<128x16xf32>,
    %c0_35 = arith.constant 0 : index
    %c0_36 = arith.constant 0 : index
    %87 = vector.load %arg7[%c0_35, %c0_36] : memref<128x64xf32, #tpu.memory_space<vmem>>, vector<128x64xf32>
    %c0_37 = arith.constant 0 : index
    %c0_38 = arith.constant 0 : index
    %c0_39 = arith.constant 0 : index
    %88 = vector.load %arg5[%c0_37, %c0_38, %c0_39] : memref<1x128x64xf32, #tpu.memory_space<vmem>>, vector<1x128x64xf32>
    %89 = vector.shape_cast %88 : vector<1x128x64xf32> to vector<128x64xf32>
    %90 = vector.shape_cast %87 : vector<128x64xf32> to vector<1x128x64xf32>
    tpu.vector_store %arg5[%c0_37, %c0_38, %c0_39], %90 {strides = array<i32>} : memref<1x128x64xf32, #tpu.memory_space<vmem>>, vector<1x128x64xf32>,
    %cst_40 = arith.constant 2.500000e-01 : f32
    %91 = vector.broadcast %cst_40 : f32 to vector<128x128xf32>
    %92 = arith.mulf %84, %91 : vector<128x128xf32>
    %c0_41 = arith.constant 0 : index
    %c0_42 = arith.constant 0 : index
    %c0_43 = arith.constant 0 : index
    %93 = vector.load %arg6[%c0_41, %c0_42, %c0_43] : memref<1x128x128xf32, #tpu.memory_space<vmem>>, vector<1x128x128xf32>
    %94 = vector.shape_cast %93 : vector<1x128x128xf32> to vector<128x128xf32>
    %95 = vector.shape_cast %92 : vector<128x128xf32> to vector<1x128x128xf32>
    tpu.vector_store %arg6[%c0_41, %c0_42, %c0_43], %95 {strides = array<i32>} : memref<1x128x128xf32, #tpu.memory_space<vmem>>, vector<1x128x128xf32>,
    return
  }
  func.func @transform_0(%arg0: i32, %arg1: i32) -> (i32, i32, i32, i32, i32) {
    %c0_i32 = arith.constant 0 : i32
    %c0_i32_0 = arith.constant 0 : i32
    %c0_i32_1 = arith.constant 0 : i32
    %c0_i32_2 = arith.constant 0 : i32
    return %arg1, %arg0, %c0_i32, %c0_i32_0, %c0_i32_1 : i32, i32, i32, i32, i32
  }
  func.func @transform_1(%arg0: i32, %arg1: i32) -> (i32, i32, i32, i32, i32) {
    %c0_i32 = arith.constant 0 : i32
    %c1_i32 = arith.constant 1 : i32
    %c0_i32_0 = arith.constant 0 : i32
    %c0_i32_1 = arith.constant 0 : i32
    %c0_i32_2 = arith.constant 0 : i32
    return %c0_i32, %arg0, %c1_i32, %c0_i32_0, %c0_i32_1 : i32, i32, i32, i32, i32
  }
  func.func @transform_2(%arg0: i32, %arg1: i32) -> (i32, i32, i32, i32, i32) {
    %c0_i32 = arith.constant 0 : i32
    %c2_i32 = arith.constant 2 : i32
    %c0_i32_0 = arith.constant 0 : i32
    %c0_i32_1 = arith.constant 0 : i32
    %c0_i32_2 = arith.constant 0 : i32
    return %c0_i32, %arg0, %c2_i32, %c0_i32_0, %c0_i32_1 : i32, i32, i32, i32, i32
  }
  func.func @transform_3(%arg0: i32, %arg1: i32) -> (i32, i32, i32) {
    %c0_i32 = arith.constant 0 : i32
    %c0_i32_0 = arith.constant 0 : i32
    return %arg0, %arg1, %c0_i32 : i32, i32, i32
  }
  func.func @transform_4(%arg0: i32, %arg1: i32) -> (i32, i32, i32) {
    %c0_i32 = arith.constant 0 : i32
    %c0_i32_0 = arith.constant 0 : i32
    return %arg0, %arg1, %c0_i32 : i32, i32, i32
  }
}

module attributes {stable_mosaic.version = 11 : i64} {
  func.func @_linear_kernel(%arg0: i32, %arg1: i32, %arg2: i32, %arg3: memref<256x64xf32, #tpu.memory_space<vmem>>, %arg4: memref<64x64xf32, #tpu.memory_space<vmem>>, %arg5: memref<1x64xf32, #tpu.memory_space<vmem>>, %arg6: memref<256x64xf32, #tpu.memory_space<vmem>>, %arg7: memref<256x64xf32, #tpu.memory_space<vmem>>) attributes {dimension_semantics = [#tpu.dimension_semantics<parallel>, #tpu.dimension_semantics<parallel>, #tpu.dimension_semantics<arbitrary>], iteration_bounds = array<i64: 1, 1, 1>, scalar_prefetch = 0 : i64, scratch_operands = 1 : i64, tpu.core_type = #tpu.core_type<tc>, window_params = [{transform_indices = @transform_0, window_bounds = array<i64: 256, 64>}, {transform_indices = @transform_1, window_bounds = array<i64: 64, 64>}, {transform_indices = @transform_2, window_bounds = array<i64: 1, 64>}, {transform_indices = @transform_3, window_bounds = array<i64: 256, 64>}]} {
    %c0_i32 = arith.constant 0 : i32
    %0 = arith.cmpi eq, %arg2, %c0_i32 : i32
    %1 = arith.extui %0 : i1 to i32
    %c0_i32_0 = arith.constant 0 : i32
    %2 = arith.cmpi ne, %1, %c0_i32_0 : i32
    scf.if %2 {
      %cst_10 = arith.constant 0.000000e+00 : f32
      %12 = vector.broadcast %cst_10 : f32 to vector<256x64xf32>
      %c0_11 = arith.constant 0 : index
      %c0_12 = arith.constant 0 : index
      %13 = vector.load %arg7[%c0_11, %c0_12] : memref<256x64xf32, #tpu.memory_space<vmem>>, vector<256x64xf32>
      tpu.vector_store %arg7[%c0_11, %c0_12], %12 {strides = array<i32>} : memref<256x64xf32, #tpu.memory_space<vmem>>, vector<256x64xf32>,
    } else {
    }
    %c0 = arith.constant 0 : index
    %c0_1 = arith.constant 0 : index
    %3 = vector.load %arg7[%c0, %c0_1] : memref<256x64xf32, #tpu.memory_space<vmem>>, vector<256x64xf32>
    %c0_2 = arith.constant 0 : index
    %c0_3 = arith.constant 0 : index
    %4 = vector.load %arg3[%c0_2, %c0_3] : memref<256x64xf32, #tpu.memory_space<vmem>>, vector<256x64xf32>
    %c0_4 = arith.constant 0 : index
    %c0_5 = arith.constant 0 : index
    %5 = vector.load %arg4[%c0_4, %c0_5] : memref<64x64xf32, #tpu.memory_space<vmem>>, vector<64x64xf32>
    %cst = arith.constant dense<0.000000e+00> : vector<256x64xf32>
    %6 = tpu.matmul %4, %5, %cst {dimension_numbers = #tpu.dot_dimension_numbers<[1], [0], [0], [1], [0, 0, 1, 1], [], []>} : vector<256x64xf32>, vector<64x64xf32>, vector<256x64xf32> -> vector<256x64xf32>
    %7 = arith.addf %3, %6 : vector<256x64xf32>
    %c0_6 = arith.constant 0 : index
    %c0_7 = arith.constant 0 : index
    %8 = vector.load %arg7[%c0_6, %c0_7] : memref<256x64xf32, #tpu.memory_space<vmem>>, vector<256x64xf32>
    tpu.vector_store %arg7[%c0_6, %c0_7], %7 {strides = array<i32>} : memref<256x64xf32, #tpu.memory_space<vmem>>, vector<256x64xf32>,
    %c0_i32_8 = arith.constant 0 : i32
    %9 = arith.cmpi eq, %arg2, %c0_i32_8 : i32
    %10 = arith.extui %9 : i1 to i32
    %c0_i32_9 = arith.constant 0 : i32
    %11 = arith.cmpi ne, %10, %c0_i32_9 : i32
    scf.if %11 {
      %c0_10 = arith.constant 0 : index
      %c0_11 = arith.constant 0 : index
      %12 = vector.load %arg7[%c0_10, %c0_11] : memref<256x64xf32, #tpu.memory_space<vmem>>, vector<256x64xf32>
      %c0_12 = arith.constant 0 : index
      %c0_13 = arith.constant 0 : index
      %13 = vector.load %arg5[%c0_12, %c0_13] : memref<1x64xf32, #tpu.memory_space<vmem>>, vector<1x64xf32>
      %14 = vector.broadcast %13 : vector<1x64xf32> to vector<256x64xf32>
      %15 = arith.addf %12, %14 : vector<256x64xf32>
      %c0_14 = arith.constant 0 : index
      %c0_15 = arith.constant 0 : index
      %16 = vector.load %arg6[%c0_14, %c0_15] : memref<256x64xf32, #tpu.memory_space<vmem>>, vector<256x64xf32>
      tpu.vector_store %arg6[%c0_14, %c0_15], %15 {strides = array<i32>} : memref<256x64xf32, #tpu.memory_space<vmem>>, vector<256x64xf32>,
    } else {
    }
    return
  }
  func.func @transform_0(%arg0: i32, %arg1: i32, %arg2: i32) -> (i32, i32) {
    %c0_i32 = arith.constant 0 : i32
    return %arg0, %arg2 : i32, i32
  }
  func.func @transform_1(%arg0: i32, %arg1: i32, %arg2: i32) -> (i32, i32) {
    %c0_i32 = arith.constant 0 : i32
    return %arg2, %arg1 : i32, i32
  }
  func.func @transform_2(%arg0: i32, %arg1: i32, %arg2: i32) -> (i32, i32) {
    %c0_i32 = arith.constant 0 : i32
    %c0_i32_0 = arith.constant 0 : i32
    return %c0_i32, %arg1 : i32, i32
  }
  func.func @transform_3(%arg0: i32, %arg1: i32, %arg2: i32) -> (i32, i32) {
    %c0_i32 = arith.constant 0 : i32
    return %arg0, %arg1 : i32, i32
  }
}

</mosaic_0001>

<llo_original>
// kernel: multihead_self_attention.5
$region0: #{multihead_self_attention.5}
  #allocation0 [shape = 'u32[]', space=smem, size = 0x4, offset = 0x4, fixed_abs, tag = 'smem constant byte address 0x4 - core index']
  #allocation1 [shape = 'u32[144,128]{1,0:T(1,128)}', space=vmem, size = 0x12000, scoped, tag = 'internal scratch']
  #allocation2 [shape = 'f32[256,64]{1,0:T(8,128)}', space=vmem, size = 0x20000, scoped, tag = 'scratch operand']
  %s0 = inlined_call_operand.vmem [shape: f32[256,64], index: 0, kind: input, shape index: {}]
  %s1 = inlined_call_operand.vmem [shape: f32[64,64], index: 1, kind: input, shape index: {}]
  %s2 = inlined_call_operand.vmem [shape: f32[1,64], index: 2, kind: input, shape index: {}]
  %s3 = inlined_call_operand.vmem [shape: f32[256,64], index: 3, kind: output, shape index: {}]
  %s4 = sld [smem:[#allocation0]]
  $region30: #{multihead_self_attention.5} parent=0
    _
  %s6 = ssub.s32 1, %s4
  %s7 = scalar_select 0, %s6, %s4
  // Predicated region
  $region2: #{multihead_self_attention.5} parent=0 // pred_check
    _
  $region3: #{multihead_self_attention.5} parent=0 // pred_check_branch
    %9 = sbr.rel (0) target = $region5
  $region4: #{multihead_self_attention.5} parent=0 // pred_region
    _
  $region5: #{multihead_self_attention.5} parent=0 // pred_fallthru
    _
  // Predicated region
  $region6: #{multihead_self_attention.5} parent=0 // pred_check
    _
  $region7: #{multihead_self_attention.5} parent=0 // pred_check_branch
    %11 = sbr.rel (0) target = $region9
  $region8: #{multihead_self_attention.5} parent=0 // pred_region
    _
  $region9: #{multihead_self_attention.5} parent=0 // pred_fallthru
    _
  // Predicated region
  $region10: #{multihead_self_attention.5} parent=0 // pred_check
    _
  $region11: #{multihead_self_attention.5} parent=0 // pred_check_branch
    %13 = sbr.rel (0) target = $region13
  $region12: #{multihead_self_attention.5} parent=0 // pred_region
    _
  $region13: #{multihead_self_attention.5} parent=0 // pred_fallthru
    _
  %p14 = scmp.eq.s32.totalorder 0, 0
  // Predicated region
  $region14: #{multihead_self_attention.5} parent=0 // pred_check
    %p15 = pneg %p14
  $region15: #{multihead_self_attention.5} parent=0 // pred_check_branch
    %17 = sbr.rel (%p15) target = $region17
  $region16: #{multihead_self_attention.5} parent=0 // pred_region
    %vm18 = vcmask 523264
    %19 = vst.msk [vmem:[#allocation2] sm:$0xff] %vm18, 0.0
    %20 = vst.msk [vmem:[#allocation2 + $0x8] sm:$0xff] %vm18, 0.0
    %21 = vst.msk [vmem:[#allocation2 + $0x10] sm:$0xff] %vm18, 0.0
    %22 = vst.msk [vmem:[#allocation2 + $0x18] sm:$0xff] %vm18, 0.0
    %23 = vst.msk [vmem:[#allocation2 + $0x20] sm:$0xff] %vm18, 0.0
    %24 = vst.msk [vmem:[#allocation2 + $0x28] sm:$0xff] %vm18, 0.0
    %25 = vst.msk [vmem:[#allocation2 + $0x30] sm:$0xff] %vm18, 0.0
    %26 = vst.msk [vmem:[#allocation2 + $0x38] sm:$0xff] %vm18, 0.0
    %27 = vst.msk [vmem:[#allocation2 + $0x40] sm:$0xff] %vm18, 0.0
    %28 = vst.msk [vmem:[#allocation2 + $0x48] sm:$0xff] %vm18, 0.0
    %29 = vst.msk [vmem:[#allocation2 + $0x50] sm:$0xff] %vm18, 0.0
    %30 = vst.msk [vmem:[#allocation2 + $0x58] sm:$0xff] %vm18, 0.0
    %31 = vst.msk [vmem:[#allocation2 + $0x60] sm:$0xff] %vm18, 0.0
    %32 = vst.msk [vmem:[#allocation2 + $0x68] sm:$0xff] %vm18, 0.0
    %33 = vst.msk [vmem:[#allocation2 + $0x70] sm:$0xff] %vm18, 0.0
    %34 = vst.msk [vmem:[#allocation2 + $0x78] sm:$0xff] %vm18, 0.0
    %35 = vst.msk [vmem:[#allocation2 + $0x80] sm:$0xff] %vm18, 0.0
    %36 = vst.msk [vmem:[#allocation2 + $0x88] sm:$0xff] %vm18, 0.0
    %37 = vst.msk [vmem:[#allocation2 + $0x90] sm:$0xff] %vm18, 0.0
    %38 = vst.msk [vmem:[#allocation2 + $0x98] sm:$0xff] %vm18, 0.0
    %39 = vst.msk [vmem:[#allocation2 + $0xa0] sm:$0xff] %vm18, 0.0
    %40 = vst.msk [vmem:[#allocation2 + $0xa8] sm:$0xff] %vm18, 0.0
    %41 = vst.msk [vmem:[#allocation2 + $0xb0] sm:$0xff] %vm18, 0.0
    %42 = vst.msk [vmem:[#allocation2 + $0xb8] sm:$0xff] %vm18, 0.0
    %43 = vst.msk [vmem:[#allocation2 + $0xc0] sm:$0xff] %vm18, 0.0
    %44 = vst.msk [vmem:[#allocation2 + $0xc8] sm:$0xff] %vm18, 0.0
    %45 = vst.msk [vmem:[#allocation2 + $0xd0] sm:$0xff] %vm18, 0.0
    %46 = vst.msk [vmem:[#allocation2 + $0xd8] sm:$0xff] %vm18, 0.0
    %47 = vst.msk [vmem:[#allocation2 + $0xe0] sm:$0xff] %vm18, 0.0
    %48 = vst.msk [vmem:[#allocation2 + $0xe8] sm:$0xff] %vm18, 0.0
    %49 = vst.msk [vmem:[#allocation2 + $0xf0] sm:$0xff] %vm18, 0.0
    %50 = vst.msk [vmem:[#allocation2 + $0xf8] sm:$0xff] %vm18, 0.0
  $region17: #{multihead_self_attention.5} parent=0 // pred_fallthru
    _
  %v51 = vld [vmem:[#allocation2] sm:$0xff]
  %v52 = vld [vmem:[#allocation2 + $0x8] sm:$0xff]
  %v53 = vld [vmem:[#allocation2 + $0x10] sm:$0xff]
  %v54 = vld [vmem:[#allocation2 + $0x18] sm:$0xff]
  %v55 = vld [vmem:[#allocation2 + $0x20] sm:$0xff]
  %v56 = vld [vmem:[#allocation2 + $0x28] sm:$0xff]
  %v57 = vld [vmem:[#allocation2 + $0x30] sm:$0xff]
  %v58 = vld [vmem:[#allocation2 + $0x38] sm:$0xff]
  %v59 = vld [vmem:[#allocation2 + $0x40] sm:$0xff]
  %v60 = vld [vmem:[#allocation2 + $0x48] sm:$0xff]
  %v61 = vld [vmem:[#allocation2 + $0x50] sm:$0xff]
  %v62 = vld [vmem:[#allocation2 + $0x58] sm:$0xff]
  %v63 = vld [vmem:[#allocation2 + $0x60] sm:$0xff]
  %v64 = vld [vmem:[#allocation2 + $0x68] sm:$0xff]
  %v65 = vld [vmem:[#allocation2 + $0x70] sm:$0xff]
  %v66 = vld [vmem:[#allocation2 + $0x78] sm:$0xff]
  %v67 = vld [vmem:[#allocation2 + $0x80] sm:$0xff]
  %v68 = vld [vmem:[#allocation2 + $0x88] sm:$0xff]
  %v69 = vld [vmem:[#allocation2 + $0x90] sm:$0xff]
  %v70 = vld [vmem:[#allocation2 + $0x98] sm:$0xff]
  %v71 = vld [vmem:[#allocation2 + $0xa0] sm:$0xff]
  %v72 = vld [vmem:[#allocation2 + $0xa8] sm:$0xff]
  %v73 = vld [vmem:[#allocation2 + $0xb0] sm:$0xff]
  %v74 = vld [vmem:[#allocation2 + $0xb8] sm:$0xff]
  %v75 = vld [vmem:[#allocation2 + $0xc0] sm:$0xff]
  %v76 = vld [vmem:[#allocation2 + $0xc8] sm:$0xff]
  %v77 = vld [vmem:[#allocation2 + $0xd0] sm:$0xff]
  %v78 = vld [vmem:[#allocation2 + $0xd8] sm:$0xff]
  %v79 = vld [vmem:[#allocation2 + $0xe0] sm:$0xff]
  %v80 = vld [vmem:[#allocation2 + $0xe8] sm:$0xff]
  %v81 = vld [vmem:[#allocation2 + $0xf0] sm:$0xff]
  %v82 = vld [vmem:[#allocation2 + $0xf8] sm:$0xff]
  %v83 = vld [vmem:[%s0] sm:$0xff]
  %v84 = vld [vmem:[%s0 + $0x8] sm:$0xff]
  %v85 = vld [vmem:[%s0 + $0x10] sm:$0xff]
  %v86 = vld [vmem:[%s0 + $0x18] sm:$0xff]
  %v87 = vld [vmem:[%s0 + $0x20] sm:$0xff]
  %v88 = vld [vmem:[%s0 + $0x28] sm:$0xff]
  %v89 = vld [vmem:[%s0 + $0x30] sm:$0xff]
  %v90 = vld [vmem:[%s0 + $0x38] sm:$0xff]
  %v91 = vld [vmem:[%s0 + $0x40] sm:$0xff]
  %v92 = vld [vmem:[%s0 + $0x48] sm:$0xff]
  %v93 = vld [vmem:[%s0 + $0x50] sm:$0xff]
  %v94 = vld [vmem:[%s0 + $0x58] sm:$0xff]
  %v95 = vld [vmem:[%s0 + $0x60] sm:$0xff]
  %v96 = vld [vmem:[%s0 + $0x68] sm:$0xff]
  %v97 = vld [vmem:[%s0 + $0x70] sm:$0xff]
  %v98 = vld [vmem:[%s0 + $0x78] sm:$0xff]
  %v99 = vld [vmem:[%s0 + $0x80] sm:$0xff]
  %v100 = vld [vmem:[%s0 + $0x88] sm:$0xff]
  %v101 = vld [vmem:[%s0 + $0x90] sm:$0xff]
  %v102 = vld [vmem:[%s0 + $0x98] sm:$0xff]
  %v103 = vld [vmem:[%s0 + $0xa0] sm:$0xff]
  %v104 = vld [vmem:[%s0 + $0xa8] sm:$0xff]
  %v105 = vld [vmem:[%s0 + $0xb0] sm:$0xff]
  %v106 = vld [vmem:[%s0 + $0xb8] sm:$0xff]
  %v107 = vld [vmem:[%s0 + $0xc0] sm:$0xff]
  %v108 = vld [vmem:[%s0 + $0xc8] sm:$0xff]
  %v109 = vld [vmem:[%s0 + $0xd0] sm:$0xff]
  %v110 = vld [vmem:[%s0 + $0xd8] sm:$0xff]
  %v111 = vld [vmem:[%s0 + $0xe0] sm:$0xff]
  %v112 = vld [vmem:[%s0 + $0xe8] sm:$0xff]
  %v113 = vld [vmem:[%s0 + $0xf0] sm:$0xff]
  %v114 = vld [vmem:[%s0 + $0xf8] sm:$0xff]
  %v115 = vld [vmem:[%s1] sm:$0xff]
  %v116 = vld [vmem:[%s1 + $0x8] sm:$0xff]
  %v117 = vld [vmem:[%s1 + $0x10] sm:$0xff]
  %v118 = vld [vmem:[%s1 + $0x18] sm:$0xff]
  %v119 = vld [vmem:[%s1 + $0x20] sm:$0xff]
  %v120 = vld [vmem:[%s1 + $0x28] sm:$0xff]
  %v121 = vld [vmem:[%s1 + $0x30] sm:$0xff]
  %v122 = vld [vmem:[%s1 + $0x38] sm:$0xff]
  %vm123 = vcmask 523264
  %v125 = vsel %vm123, %v83, 0
  %v128 = vsel %vm123, %v84, 0
  %v131 = vsel %vm123, %v85, 0
  %v134 = vsel %vm123, %v86, 0
  %v137 = vsel %vm123, %v87, 0
  %v140 = vsel %vm123, %v88, 0
  %v143 = vsel %vm123, %v89, 0
  %v146 = vsel %vm123, %v90, 0
  %v149 = vsel %vm123, %v91, 0
  %v152 = vsel %vm123, %v92, 0
  %v155 = vsel %vm123, %v93, 0
  %v158 = vsel %vm123, %v94, 0
  %v161 = vsel %vm123, %v95, 0
  %v164 = vsel %vm123, %v96, 0
  %v167 = vsel %vm123, %v97, 0
  %v170 = vsel %vm123, %v98, 0
  %v173 = vsel %vm123, %v99, 0
  %v176 = vsel %vm123, %v100, 0
  %v179 = vsel %vm123, %v101, 0
  %v182 = vsel %vm123, %v102, 0
  %v185 = vsel %vm123, %v103, 0
  %v188 = vsel %vm123, %v104, 0
  %v191 = vsel %vm123, %v105, 0
  %v194 = vsel %vm123, %v106, 0
  %v197 = vsel %vm123, %v107, 0
  %v200 = vsel %vm123, %v108, 0
  %v203 = vsel %vm123, %v109, 0
  %v206 = vsel %vm123, %v110, 0
  %v209 = vsel %vm123, %v111, 0
  %v212 = vsel %vm123, %v112, 0
  %v215 = vsel %vm123, %v113, 0
  %v218 = vsel %vm123, %v114, 0
  %220 = vmatprep.subr.mxu0 0.0
  %221 = vmatpush1.msra.mxu0 %v115
  %222 = vmatprep.subr.mxu0 0.0
  %223 = vmatpush1.msra.mxu0 %v116
  %224 = vmatprep.subr.mxu0 0.0
  %225 = vmatpush1.msra.mxu0 %v117
  %226 = vmatprep.subr.mxu0 0.0
  %227 = vmatpush1.msra.mxu0 %v118
  %228 = vmatprep.subr.mxu0 0.0
  %229 = vmatpush1.msra.mxu0 %v119
  %230 = vmatprep.subr.mxu0 0.0
  %231 = vmatpush1.msra.mxu0 %v120
  %232 = vmatprep.subr.mxu0 0.0
  %233 = vmatpush1.msra.mxu0 %v121
  %234 = vmatprep.subr.mxu0 0.0
  %235 = vmatpush1.msra.mxu0 %v122
  %236 = vmatprep.subr.mxu0 0.0
  %237 = vmatpush1.msra.mxu0 0.0
  %238 = vmatprep.subr.mxu0 0.0
  %239 = vmatpush1.msra.mxu0 0.0
  %240 = vmatprep.subr.mxu0 0.0
  %241 = vmatpush1.msra.mxu0 0.0
  %242 = vmatprep.subr.mxu0 0.0
  %243 = vmatpush1.msra.mxu0 0.0
  %244 = vmatprep.subr.mxu0 0.0
  %245 = vmatpush1.msra.mxu0 0.0
  %246 = vmatprep.subr.mxu0 0.0
  %247 = vmatpush1.msra.mxu0 0.0
  %248 = vmatprep.subr.mxu0 0.0
  %249 = vmatpush1.msra.mxu0 0.0
  %250 = vmatprep.subr.mxu0 0.0
  %251 = vmatpush1.msra.mxu0 0.0
  %252 = vmatprep.subr.mxu0 0.0
  %253 = vmatpush1.msra.mxu0 0.0
  %254 = vmatprep.subr.mxu0 0.0
  %255 = vmatpush1.msra.mxu0 0.0
  %256 = vmatprep.subr.mxu0 0.0
  %257 = vmatpush1.msra.mxu0 0.0
  %258 = vmatprep.subr.mxu0 0.0
  %259 = vmatpush1.msra.mxu0 0.0
  %260 = vmatprep.subr.mxu0 0.0
  %261 = vmatpush1.msra.mxu0 0.0
  %262 = vmatprep.subr.mxu0 0.0
  %263 = vmatpush1.msra.mxu0 0.0
  %264 = vmatprep.subr.mxu0 0.0
  %265 = vmatpush1.msra.mxu0 0.0
  %266 = vmatprep.subr.mxu0 0.0
  %267 = vmatpush1.msra.mxu0 0.0
  %268 = vmatprep.subr.mxu0 0.0
  %269 = vmatpush1.msra.mxu0 0.0
  %270 = vmatprep.subr.mxu0 0.0
  %271 = vmatpush1.msra.mxu0 0.0
  %272 = vmatprep.subr.mxu0 0.0
  %273 = vmatpush1.msra.mxu0 0.0
  %274 = vmatprep.subr.mxu0 0.0
  %275 = vmatpush1.msra.mxu0 0.0
  %276 = vmatprep.subr.mxu0 0.0
  %277 = vmatpush1.msra.mxu0 0.0
  %278 = vmatprep.subr.mxu0 0.0
  %279 = vmatpush1.msra.mxu0 0.0
  %280 = vmatprep.subr.mxu0 0.0
  %281 = vmatpush1.msra.mxu0 0.0
  %282 = vmatprep.subr.mxu0 0.0
  %283 = vmatpush1.msra.mxu0 0.0
  %284 = vmatprep.mubr.f32.mxu0 0.0
  %285 = vmatmul.mubr.f32.gmra.mrb[0].mxu0 %v125
  %v286 = vpop.f32.mrb[0].mxu0
  %v287 = vadd.f32 0.0, %v286
  %v288 = vpop.f32.mrb[0].mxu0
  %289 = vmatprep.mubr.f32.mxu0 0.0
  %290 = vmatmul.mubr.f32.gmra.mrb[0].mxu0 %v128
  %v291 = vpop.f32.mrb[0].mxu0
  %v292 = vadd.f32 0.0, %v291
  %v293 = vpop.f32.mrb[0].mxu0
  %294 = vmatprep.mubr.f32.mxu0 0.0
  %295 = vmatmul.mubr.f32.gmra.mrb[0].mxu0 %v131
  %v296 = vpop.f32.mrb[0].mxu0
  %v297 = vadd.f32 0.0, %v296
  %v298 = vpop.f32.mrb[0].mxu0
  %299 = vmatprep.mubr.f32.mxu0 0.0
  %300 = vmatmul.mubr.f32.gmra.mrb[0].mxu0 %v134
  %v301 = vpop.f32.mrb[0].mxu0
  %v302 = vadd.f32 0.0, %v301
  %v303 = vpop.f32.mrb[0].mxu0
  %304 = vmatprep.mubr.f32.mxu0 0.0
  %305 = vmatmul.mubr.f32.gmra.mrb[0].mxu0 %v137
  %v306 = vpop.f32.mrb[0].mxu0
  %v307 = vadd.f32 0.0, %v306
  %v308 = vpop.f32.mrb[0].mxu0
  %309 = vmatprep.mubr.f32.mxu0 0.0
  %310 = vmatmul.mubr.f32.gmra.mrb[0].mxu0 %v140
  %v311 = vpop.f32.mrb[0].mxu0
  %v312 = vadd.f32 0.0, %v311
  %v313 = vpop.f32.mrb[0].mxu0
  %314 = vmatprep.mubr.f32.mxu0 0.0
  %315 = vmatmul.mubr.f32.gmra.mrb[0].mxu0 %v143
  %v316 = vpop.f32.mrb[0].mxu0
  %v317 = vadd.f32 0.0, %v316
  %v318 = vpop.f32.mrb[0].mxu0
  %319 = vmatprep.mubr.f32.mxu0 0.0
  %320 = vmatmul.mubr.f32.gmra.mrb[0].mxu0 %v146
  %v321 = vpop.f32.mrb[0].mxu0
  %v322 = vadd.f32 0.0, %v321
  %v323 = vpop.f32.mrb[0].mxu0
  %324 = vmatprep.mubr.f32.mxu0 0.0
  %325 = vmatmul.mubr.f32.gmra.mrb[0].mxu0 %v149
  %v326 = vpop.f32.mrb[0].mxu0
  %v327 = vadd.f32 0.0, %v326
  %v328 = vpop.f32.mrb[0].mxu0
  %329 = vmatprep.mubr.f32.mxu0 0.0
  %330 = vmatmul.mubr.f32.gmra.mrb[0].mxu0 %v152
  %v331 = vpop.f32.mrb[0].mxu0
  %v332 = vadd.f32 0.0, %v331
  %v333 = vpop.f32.mrb[0].mxu0
  %334 = vmatprep.mubr.f32.mxu0 0.0
  %335 = vmatmul.mubr.f32.gmra.mrb[0].mxu0 %v155
  %v336 = vpop.f32.mrb[0].mxu0
  %v337 = vadd.f32 0.0, %v336
  %v338 = vpop.f32.mrb[0].mxu0
  %339 = vmatprep.mubr.f32.mxu0 0.0
  %340 = vmatmul.mubr.f32.gmra.mrb[0].mxu0 %v158
  %v341 = vpop.f32.mrb[0].mxu0
  %v342 = vadd.f32 0.0, %v341
  %v343 = vpop.f32.mrb[0].mxu0
  %344 = vmatprep.mubr.f32.mxu0 0.0
  %345 = vmatmul.mubr.f32.gmra.mrb[0].mxu0 %v161
  %v346 = vpop.f32.mrb[0].mxu0
  %v347 = vadd.f32 0.0, %v346
  %v348 = vpop.f32.mrb[0].mxu0
  %349 = vmatprep.mubr.f32.mxu0 0.0
  %350 = vmatmul.mubr.f32.gmra.mrb[0].mxu0 %v164
  %v351 = vpop.f32.mrb[0].mxu0
  %v352 = vadd.f32 0.0, %v351
  %v353 = vpop.f32.mrb[0].mxu0
  %354 = vmatprep.mubr.f32.mxu0 0.0
  %355 = vmatmul.mubr.f32.gmra.mrb[0].mxu0 %v167
  %v356 = vpop.f32.mrb[0].mxu0
  %v357 = vadd.f32 0.0, %v356
  %v358 = vpop.f32.mrb[0].mxu0
  %359 = vmatprep.mubr.f32.mxu0 0.0
  %360 = vmatmul.mubr.f32.gmra.mrb[0].mxu0 %v170
  %v361 = vpop.f32.mrb[0].mxu0
  %v362 = vadd.f32 0.0, %v361
  %v363 = vpop.f32.mrb[0].mxu0
  %364 = vmatprep.mubr.f32.mxu0 0.0
  %365 = vmatmul.mubr.f32.gmra.mrb[0].mxu0 %v173
  %v366 = vpop.f32.mrb[0].mxu0
  %v367 = vadd.f32 0.0, %v366
  %v368 = vpop.f32.mrb[0].mxu0
  %369 = vmatprep.mubr.f32.mxu0 0.0
  %370 = vmatmul.mubr.f32.gmra.mrb[0].mxu0 %v176
  %v371 = vpop.f32.mrb[0].mxu0
  %v372 = vadd.f32 0.0, %v371
  %v373 = vpop.f32.mrb[0].mxu0
  %374 = vmatprep.mubr.f32.mxu0 0.0
  %375 = vmatmul.mubr.f32.gmra.mrb[0].mxu0 %v179
  %v376 = vpop.f32.mrb[0].mxu0
  %v377 = vadd.f32 0.0, %v376
  %v378 = vpop.f32.mrb[0].mxu0
  %379 = vmatprep.mubr.f32.mxu0 0.0
  %380 = vmatmul.mubr.f32.gmra.mrb[0].mxu0 %v182
  %v381 = vpop.f32.mrb[0].mxu0
  %v382 = vadd.f32 0.0, %v381
  %v383 = vpop.f32.mrb[0].mxu0
  %384 = vmatprep.mubr.f32.mxu0 0.0
  %385 = vmatmul.mubr.f32.gmra.mrb[0].mxu0 %v185
  %v386 = vpop.f32.mrb[0].mxu0
  %v387 = vadd.f32 0.0, %v386
  %v388 = vpop.f32.mrb[0].mxu0
  %389 = vmatprep.mubr.f32.mxu0 0.0
  %390 = vmatmul.mubr.f32.gmra.mrb[0].mxu0 %v188
  %v391 = vpop.f32.mrb[0].mxu0
  %v392 = vadd.f32 0.0, %v391
  %v393 = vpop.f32.mrb[0].mxu0
  %394 = vmatprep.mubr.f32.mxu0 0.0
  %395 = vmatmul.mubr.f32.gmra.mrb[0].mxu0 %v191
  %v396 = vpop.f32.mrb[0].mxu0
  %v397 = vadd.f32 0.0, %v396
  %v398 = vpop.f32.mrb[0].mxu0
  %399 = vmatprep.mubr.f32.mxu0 0.0
  %400 = vmatmul.mubr.f32.gmra.mrb[0].mxu0 %v194
  %v401 = vpop.f32.mrb[0].mxu0
  %v402 = vadd.f32 0.0, %v401
  %v403 = vpop.f32.mrb[0].mxu0
  %404 = vmatprep.mubr.f32.mxu0 0.0
  %405 = vmatmul.mubr.f32.gmra.mrb[0].mxu0 %v197
  %v406 = vpop.f32.mrb[0].mxu0
  %v407 = vadd.f32 0.0, %v406
  %v408 = vpop.f32.mrb[0].mxu0
  %409 = vmatprep.mubr.f32.mxu0 0.0
  %410 = vmatmul.mubr.f32.gmra.mrb[0].mxu0 %v200
  %v411 = vpop.f32.mrb[0].mxu0
  %v412 = vadd.f32 0.0, %v411
  %v413 = vpop.f32.mrb[0].mxu0
  %414 = vmatprep.mubr.f32.mxu0 0.0
  %415 = vmatmul.mubr.f32.gmra.mrb[0].mxu0 %v203
  %v416 = vpop.f32.mrb[0].mxu0
  %v417 = vadd.f32 0.0, %v416
  %v418 = vpop.f32.mrb[0].mxu0
  %419 = vmatprep.mubr.f32.mxu0 0.0
  %420 = vmatmul.mubr.f32.gmra.mrb[0].mxu0 %v206
  %v421 = vpop.f32.mrb[0].mxu0
  %v422 = vadd.f32 0.0, %v421
  %v423 = vpop.f32.mrb[0].mxu0
  %424 = vmatprep.mubr.f32.mxu0 0.0
  %425 = vmatmul.mubr.f32.gmra.mrb[0].mxu0 %v209
  %v426 = vpop.f32.mrb[0].mxu0
  %v427 = vadd.f32 0.0, %v426
  %v428 = vpop.f32.mrb[0].mxu0
  %429 = vmatprep.mubr.f32.mxu0 0.0
  %430 = vmatmul.mubr.f32.gmra.mrb[0].mxu0 %v212
  %v431 = vpop.f32.mrb[0].mxu0
  %v432 = vadd.f32 0.0, %v431
  %v433 = vpop.f32.mrb[0].mxu0
  %434 = vmatprep.mubr.f32.mxu0 0.0
  %435 = vmatmul.mubr.f32.gmra.mrb[0].mxu0 %v215
  %v436 = vpop.f32.mrb[0].mxu0
  %v437 = vadd.f32 0.0, %v436
  %v438 = vpop.f32.mrb[0].mxu0
  %439 = vmatprep.mubr.f32.mxu0 0.0
  %440 = vmatmul.mubr.f32.gmra.mrb[0].mxu0 %v218
  %v441 = vpop.f32.mrb[0].mxu0
  %v442 = vadd.f32 0.0, %v441
  %v443 = vpop.f32.mrb[0].mxu0
  %444 = vdwg.mxu0
  %v445 = vadd.f32 %v51, %v287
  %v446 = vadd.f32 %v52, %v292
  %v447 = vadd.f32 %v53, %v297
  %v448 = vadd.f32 %v54, %v302
  %v449 = vadd.f32 %v55, %v307
  %v450 = vadd.f32 %v56, %v312
  %v451 = vadd.f32 %v57, %v317
  %v452 = vadd.f32 %v58, %v322
  %v453 = vadd.f32 %v59, %v327
  %v454 = vadd.f32 %v60, %v332
  %v455 = vadd.f32 %v61, %v337
  %v456 = vadd.f32 %v62, %v342
  %v457 = vadd.f32 %v63, %v347
  %v458 = vadd.f32 %v64, %v352
  %v459 = vadd.f32 %v65, %v357
  %v460 = vadd.f32 %v66, %v362
  %v461 = vadd.f32 %v67, %v367
  %v462 = vadd.f32 %v68, %v372
  %v463 = vadd.f32 %v69, %v377
  %v464 = vadd.f32 %v70, %v382
  %v465 = vadd.f32 %v71, %v387
  %v466 = vadd.f32 %v72, %v392
  %v467 = vadd.f32 %v73, %v397
  %v468 = vadd.f32 %v74, %v402
  %v469 = vadd.f32 %v75, %v407
  %v470 = vadd.f32 %v76, %v412
  %v471 = vadd.f32 %v77, %v417
  %v472 = vadd.f32 %v78, %v422
  %v473 = vadd.f32 %v79, %v427
  %v474 = vadd.f32 %v80, %v432
  %v475 = vadd.f32 %v81, %v437
  %v476 = vadd.f32 %v82, %v442
  %477 = vst.msk [vmem:[#allocation2] sm:$0xff] %vm123, %v445
  %478 = vst.msk [vmem:[#allocation2 + $0x8] sm:$0xff] %vm123, %v446
  %479 = vst.msk [vmem:[#allocation2 + $0x10] sm:$0xff] %vm123, %v447
  %480 = vst.msk [vmem:[#allocation2 + $0x18] sm:$0xff] %vm123, %v448
  %481 = vst.msk [vmem:[#allocation2 + $0x20] sm:$0xff] %vm123, %v449
  %482 = vst.msk [vmem:[#allocation2 + $0x28] sm:$0xff] %vm123, %v450
  %483 = vst.msk [vmem:[#allocation2 + $0x30] sm:$0xff] %vm123, %v451
  %484 = vst.msk [vmem:[#allocation2 + $0x38] sm:$0xff] %vm123, %v452
  %485 = vst.msk [vmem:[#allocation2 + $0x40] sm:$0xff] %vm123, %v453
  %486 = vst.msk [vmem:[#allocation2 + $0x48] sm:$0xff] %vm123, %v454
  %487 = vst.msk [vmem:[#allocation2 + $0x50] sm:$0xff] %vm123, %v455
  %488 = vst.msk [vmem:[#allocation2 + $0x58] sm:$0xff] %vm123, %v456
  %489 = vst.msk [vmem:[#allocation2 + $0x60] sm:$0xff] %vm123, %v457
  %490 = vst.msk [vmem:[#allocation2 + $0x68] sm:$0xff] %vm123, %v458
  %491 = vst.msk [vmem:[#allocation2 + $0x70] sm:$0xff] %vm123, %v459
  %492 = vst.msk [vmem:[#allocation2 + $0x78] sm:$0xff] %vm123, %v460
  %493 = vst.msk [vmem:[#allocation2 + $0x80] sm:$0xff] %vm123, %v461
  %494 = vst.msk [vmem:[#allocation2 + $0x88] sm:$0xff] %vm123, %v462
  %495 = vst.msk [vmem:[#allocation2 + $0x90] sm:$0xff] %vm123, %v463
  %496 = vst.msk [vmem:[#allocation2 + $0x98] sm:$0xff] %vm123, %v464
  %497 = vst.msk [vmem:[#allocation2 + $0xa0] sm:$0xff] %vm123, %v465
  %498 = vst.msk [vmem:[#allocation2 + $0xa8] sm:$0xff] %vm123, %v466
  %499 = vst.msk [vmem:[#allocation2 + $0xb0] sm:$0xff] %vm123, %v467
  %500 = vst.msk [vmem:[#allocation2 + $0xb8] sm:$0xff] %vm123, %v468
  %501 = vst.msk [vmem:[#allocation2 + $0xc0] sm:$0xff] %vm123, %v469
  %502 = vst.msk [vmem:[#allocation2 + $0xc8] sm:$0xff] %vm123, %v470
  %503 = vst.msk [vmem:[#allocation2 + $0xd0] sm:$0xff] %vm123, %v471
  %504 = vst.msk [vmem:[#allocation2 + $0xd8] sm:$0xff] %vm123, %v472
  %505 = vst.msk [vmem:[#allocation2 + $0xe0] sm:$0xff] %vm123, %v473
  %506 = vst.msk [vmem:[#allocation2 + $0xe8] sm:$0xff] %vm123, %v474
  %507 = vst.msk [vmem:[#allocation2 + $0xf0] sm:$0xff] %vm123, %v475
  %508 = vst.msk [vmem:[#allocation2 + $0xf8] sm:$0xff] %vm123, %v476
  // Predicated region
  $region18: #{multihead_self_attention.5} parent=0 // pred_check
    %p509 = pneg %p14
  $region19: #{multihead_self_attention.5} parent=0 // pred_check_branch
    %511 = sbr.rel (%p509) target = $region21
  $region20: #{multihead_self_attention.5} parent=0 // pred_region
    %v512 = vld [vmem:[#allocation2] sm:$0xff]
    %v513 = vld [vmem:[#allocation2 + $0x8] sm:$0xff]
    %v514 = vld [vmem:[#allocation2 + $0x10] sm:$0xff]
    %v515 = vld [vmem:[#allocation2 + $0x18] sm:$0xff]
    %v516 = vld [vmem:[#allocation2 + $0x20] sm:$0xff]
    %v517 = vld [vmem:[#allocation2 + $0x28] sm:$0xff]
    %v518 = vld [vmem:[#allocation2 + $0x30] sm:$0xff]
    %v519 = vld [vmem:[#allocation2 + $0x38] sm:$0xff]
    %v520 = vld [vmem:[#allocation2 + $0x40] sm:$0xff]
    %v521 = vld [vmem:[#allocation2 + $0x48] sm:$0xff]
    %v522 = vld [vmem:[#allocation2 + $0x50] sm:$0xff]
    %v523 = vld [vmem:[#allocation2 + $0x58] sm:$0xff]
    %v524 = vld [vmem:[#allocation2 + $0x60] sm:$0xff]
    %v525 = vld [vmem:[#allocation2 + $0x68] sm:$0xff]
    %v526 = vld [vmem:[#allocation2 + $0x70] sm:$0xff]
    %v527 = vld [vmem:[#allocation2 + $0x78] sm:$0xff]
    %v528 = vld [vmem:[#allocation2 + $0x80] sm:$0xff]
    %v529 = vld [vmem:[#allocation2 + $0x88] sm:$0xff]
    %v530 = vld [vmem:[#allocation2 + $0x90] sm:$0xff]
    %v531 = vld [vmem:[#allocation2 + $0x98] sm:$0xff]
    %v532 = vld [vmem:[#allocation2 + $0xa0] sm:$0xff]
    %v533 = vld [vmem:[#allocation2 + $0xa8] sm:$0xff]
    %v534 = vld [vmem:[#allocation2 + $0xb0] sm:$0xff]
    %v535 = vld [vmem:[#allocation2 + $0xb8] sm:$0xff]
    %v536 = vld [vmem:[#allocation2 + $0xc0] sm:$0xff]
    %v537 = vld [vmem:[#allocation2 + $0xc8] sm:$0xff]
    %v538 = vld [vmem:[#allocation2 + $0xd0] sm:$0xff]
    %v539 = vld [vmem:[#allocation2 + $0xd8] sm:$0xff]
    %v540 = vld [vmem:[#allocation2 + $0xe0] sm:$0xff]
    %v541 = vld [vmem:[#allocation2 + $0xe8] sm:$0xff]
    %v542 = vld [vmem:[#allocation2 + $0xf0] sm:$0xff]
    %v543 = vld [vmem:[#allocation2 + $0xf8] sm:$0xff]
    %v544 = vld [vmem:[%s2] sm:$0x1]
    %v546 = vlaneseq
    %v547 = vshrl.u32 %v546, 7
    %v548 = vsub.s32 0, %v547
    %v549 = vrot.slane %v544, %v548
    %v551 = vadd.f32 %v512, %v549
    %v552 = vadd.f32 %v513, %v549
    %v553 = vadd.f32 %v514, %v549
    %v554 = vadd.f32 %v515, %v549
    %v555 = vadd.f32 %v516, %v549
    %v556 = vadd.f32 %v517, %v549
    %v557 = vadd.f32 %v518, %v549
    %v558 = vadd.f32 %v519, %v549
    %v559 = vadd.f32 %v520, %v549
    %v560 = vadd.f32 %v521, %v549
    %v561 = vadd.f32 %v522, %v549
    %v562 = vadd.f32 %v523, %v549
    %v563 = vadd.f32 %v524, %v549
    %v564 = vadd.f32 %v525, %v549
    %v565 = vadd.f32 %v526, %v549
    %v566 = vadd.f32 %v527, %v549
    %v567 = vadd.f32 %v528, %v549
    %v568 = vadd.f32 %v529, %v549
    %v569 = vadd.f32 %v530, %v549
    %v570 = vadd.f32 %v531, %v549
    %v571 = vadd.f32 %v532, %v549
    %v572 = vadd.f32 %v533, %v549
    %v573 = vadd.f32 %v534, %v549
    %v574 = vadd.f32 %v535, %v549
    %v575 = vadd.f32 %v536, %v549
    %v576 = vadd.f32 %v537, %v549
    %v577 = vadd.f32 %v538, %v549
    %v578 = vadd.f32 %v539, %v549
    %v579 = vadd.f32 %v540, %v549
    %v580 = vadd.f32 %v541, %v549
    %v581 = vadd.f32 %v542, %v549
    %v582 = vadd.f32 %v543, %v549
    %583 = vst.msk [vmem:[%s3] sm:$0xff] %vm123, %v551
    %584 = vst.msk [vmem:[%s3 + $0x8] sm:$0xff] %vm123, %v552
    %585 = vst.msk [vmem:[%s3 + $0x10] sm:$0xff] %vm123, %v553
    %586 = vst.msk [vmem:[%s3 + $0x18] sm:$0xff] %vm123, %v554
    %587 = vst.msk [vmem:[%s3 + $0x20] sm:$0xff] %vm123, %v555
    %588 = vst.msk [vmem:[%s3 + $0x28] sm:$0xff] %vm123, %v556
    %589 = vst.msk [vmem:[%s3 + $0x30] sm:$0xff] %vm123, %v557
    %590 = vst.msk [vmem:[%s3 + $0x38] sm:$0xff] %vm123, %v558
    %591 = vst.msk [vmem:[%s3 + $0x40] sm:$0xff] %vm123, %v559
    %592 = vst.msk [vmem:[%s3 + $0x48] sm:$0xff] %vm123, %v560
    %593 = vst.msk [vmem:[%s3 + $0x50] sm:$0xff] %vm123, %v561
    %594 = vst.msk [vmem:[%s3 + $0x58] sm:$0xff] %vm123, %v562
    %595 = vst.msk [vmem:[%s3 + $0x60] sm:$0xff] %vm123, %v563
    %596 = vst.msk [vmem:[%s3 + $0x68] sm:$0xff] %vm123, %v564
    %597 = vst.msk [vmem:[%s3 + $0x70] sm:$0xff] %vm123, %v565
    %598 = vst.msk [vmem:[%s3 + $0x78] sm:$0xff] %vm123, %v566
    %599 = vst.msk [vmem:[%s3 + $0x80] sm:$0xff] %vm123, %v567
    %600 = vst.msk [vmem:[%s3 + $0x88] sm:$0xff] %vm123, %v568
    %601 = vst.msk [vmem:[%s3 + $0x90] sm:$0xff] %vm123, %v569
    %602 = vst.msk [vmem:[%s3 + $0x98] sm:$0xff] %vm123, %v570
    %603 = vst.msk [vmem:[%s3 + $0xa0] sm:$0xff] %vm123, %v571
    %604 = vst.msk [vmem:[%s3 + $0xa8] sm:$0xff] %vm123, %v572
    %605 = vst.msk [vmem:[%s3 + $0xb0] sm:$0xff] %vm123, %v573
    %606 = vst.msk [vmem:[%s3 + $0xb8] sm:$0xff] %vm123, %v574
    %607 = vst.msk [vmem:[%s3 + $0xc0] sm:$0xff] %vm123, %v575
    %608 = vst.msk [vmem:[%s3 + $0xc8] sm:$0xff] %vm123, %v576
    %609 = vst.msk [vmem:[%s3 + $0xd0] sm:$0xff] %vm123, %v577
    %610 = vst.msk [vmem:[%s3 + $0xd8] sm:$0xff] %vm123, %v578
    %611 = vst.msk [vmem:[%s3 + $0xe0] sm:$0xff] %vm123, %v579
    %612 = vst.msk [vmem:[%s3 + $0xe8] sm:$0xff] %vm123, %v580
    %613 = vst.msk [vmem:[%s3 + $0xf0] sm:$0xff] %vm123, %v581
    %614 = vst.msk [vmem:[%s3 + $0xf8] sm:$0xff] %vm123, %v582
  $region21: #{multihead_self_attention.5} parent=0 // pred_fallthru
    _
  // Predicated region
  $region22: #{multihead_self_attention.5} parent=0 // pred_check
    _
  $region23: #{multihead_self_attention.5} parent=0 // pred_check_branch
    %616 = sbr.rel (0) target = $region25
  $region24: #{multihead_self_attention.5} parent=0 // pred_region
    _
  $region25: #{multihead_self_attention.5} parent=0 // pred_fallthru
    _
  // Predicated region
  $region26: #{multihead_self_attention.5} parent=0 // pred_check
    _
  $region27: #{multihead_self_attention.5} parent=0 // pred_check_branch
    %618 = sbr.rel (0) target = $region29
  $region28: #{multihead_self_attention.5} parent=0 // pred_region
    _
  $region29: #{multihead_self_attention.5} parent=0 // pred_fallthru
    _

// kernel: multihead_self_attention.3
$region0: #{multihead_self_attention.3}
  #allocation0 [shape = 'u32[]', space=smem, size = 0x4, offset = 0x4, fixed_abs, tag = 'smem constant byte address 0x4 - core index']
  #allocation1 [shape = 'u32[144,128]{1,0:T(1,128)}', space=vmem, size = 0x12000, scoped, tag = 'internal scratch']
  #allocation2 [shape = 'f32[256,192]{1,0:T(8,128)}', space=vmem, size = 0x40000, scoped, tag = 'scratch operand']
  %s0 = inlined_call_operand.vmem [shape: f32[256,64], index: 0, kind: input, shape index: {}]
  %s1 = inlined_call_operand.hbm [shape: f32[64,192], index: 1, kind: input, shape index: {}]
  %s2 = inlined_call_operand.hbm [shape: f32[1,192], index: 2, kind: input, shape index: {}]
  %s3 = inlined_call_operand.vmem [shape: f32[256,192], index: 3, kind: output, shape index: {}]
  %s4 = sld [smem:[#allocation0]]
  $region38: #{multihead_self_attention.3} parent=0
    _
  %s6 = ssub.s32 1, %s4
  %s7 = scalar_select 0, %s6, %s4
  $region1: #{multihead_self_attention.3} parent=0
    #allocation3 [shape = 'u8[65536]{0}', space=vmem, size = 0x10000, scoped, tag = 'input window, operand 1, single buffered']
    #allocation4 [shape = 's32[1]{0}', space=sflag, size = 0x4, scoped, tag = 'scoped memory for multihead_self_attention.3']
    #allocation5 [shape = 'u8[1024]{0}', space=vmem, size = 0x400, scoped, tag = 'input window, operand 2, single buffered']
    #allocation6 [shape = 's32[1]{0}', space=sflag, size = 0x4, scoped, tag = 'scoped memory for multihead_self_attention.3']
    %8 = vsyncpa [#allocation4], 0
    %9 = vsyncpa [#allocation6], 0
    // Predicated region
    $region2: #{multihead_self_attention.3} parent=1 // pred_check
      _
    $region3: #{multihead_self_attention.3} parent=1 // pred_check_branch
      %11 = sbr.rel (0) target = $region5
    $region4: #{multihead_self_attention.3} parent=1 // pred_region
      _
    $region5: #{multihead_self_attention.3} parent=1 // pred_fallthru
      _
    // Predicated region
    $region6: #{multihead_self_attention.3} parent=1 // pred_check
      _
    $region7: #{multihead_self_attention.3} parent=1 // pred_check_branch
      %13 = sbr.rel (0) target = $region9
    $region8: #{multihead_self_attention.3} parent=1 // pred_region
      %s15 = ssub.s32 2048, 2048
      %16 = vsyncadd [#allocation4], %s15
      %s17 = sshll.u32 [#allocation3], 4
      %s18 = int_to_ptr.vmem [resolvable:$true] %s17
      %23 = dma.hbm_to_vmem [thread:$0]  %s1, 2048, %s18, [#allocation4], 256, 256, 16
    $region9: #{multihead_self_attention.3} parent=1 // pred_fallthru
      _
    // Predicated region
    $region10: #{multihead_self_attention.3} parent=1 // pred_check
      _
    $region11: #{multihead_self_attention.3} parent=1 // pred_check_branch
      %25 = sbr.rel (0) target = $region13
    $region12: #{multihead_self_attention.3} parent=1 // pred_region
      %s27 = ssub.s32 32, 32
      %28 = vsyncadd [#allocation6], %s27
      %s30 = sshll.u32 [#allocation5], 4
      %s31 = int_to_ptr.vmem [resolvable:$true] %s30
      %33 = dma.hbm_to_vmem [thread:$0]  %s2, 32, %s31, [#allocation6]
    $region13: #{multihead_self_attention.3} parent=1 // pred_fallthru
      _
    // Predicated region
    $region14: #{multihead_self_attention.3} parent=1 // pred_check
      _
    $region15: #{multihead_self_attention.3} parent=1 // pred_check_branch
      %35 = sbr.rel (0) target = $region17
    $region16: #{multihead_self_attention.3} parent=1 // pred_region
      %36 = dma.done [#allocation4], 2048
    $region17: #{multihead_self_attention.3} parent=1 // pred_fallthru
      _
    // Predicated region
    $region18: #{multihead_self_attention.3} parent=1 // pred_check
      _
    $region19: #{multihead_self_attention.3} parent=1 // pred_check_branch
      %38 = sbr.rel (0) target = $region21
    $region20: #{multihead_self_attention.3} parent=1 // pred_region
      %39 = dma.done [#allocation6], 32
    $region21: #{multihead_self_attention.3} parent=1 // pred_fallthru
      _
    %p40 = scmp.eq.s32.totalorder 0, 0
    // Predicated region
    $region22: #{multihead_self_attention.3} parent=1 // pred_check
      %p41 = pneg %p40
    $region23: #{multihead_self_attention.3} parent=1 // pred_check_branch
      %43 = sbr.rel (%p41) target = $region25
    $region24: #{multihead_self_attention.3} parent=1 // pred_region
      %44 = vst [vmem:[#allocation2] sm:$0xff] 0.0
      %vm45 = vcmask 523264
      %46 = vst.msk [vmem:[#allocation2 + $0x8] sm:$0xff] %vm45, 0.0
      %47 = vst [vmem:[#allocation2 + $0x10] sm:$0xff] 0.0
      %48 = vst.msk [vmem:[#allocation2 + $0x18] sm:$0xff] %vm45, 0.0
      %49 = vst [vmem:[#allocation2 + $0x20] sm:$0xff] 0.0
      %50 = vst.msk [vmem:[#allocation2 + $0x28] sm:$0xff] %vm45, 0.0
      %51 = vst [vmem:[#allocation2 + $0x30] sm:$0xff] 0.0
      %52 = vst.msk [vmem:[#allocation2 + $0x38] sm:$0xff] %vm45, 0.0
      %53 = vst [vmem:[#allocation2 + $0x40] sm:$0xff] 0.0
      %54 = vst.msk [vmem:[#allocation2 + $0x48] sm:$0xff] %vm45, 0.0
      %55 = vst [vmem:[#allocation2 + $0x50] sm:$0xff] 0.0
      %56 = vst.msk [vmem:[#allocation2 + $0x58] sm:$0xff] %vm45, 0.0
      %57 = vst [vmem:[#allocation2 + $0x60] sm:$0xff] 0.0
      %58 = vst.msk [vmem:[#allocation2 + $0x68] sm:$0xff] %vm45, 0.0
      %59 = vst [vmem:[#allocation2 + $0x70] sm:$0xff] 0.0
      %60 = vst.msk [vmem:[#allocation2 + $0x78] sm:$0xff] %vm45, 0.0
      %61 = vst [vmem:[#allocation2 + $0x80] sm:$0xff] 0.0
      %62 = vst.msk [vmem:[#allocation2 + $0x88] sm:$0xff] %vm45, 0.0
      %63 = vst [vmem:[#allocation2 + $0x90] sm:$0xff] 0.0
      %64 = vst.msk [vmem:[#allocation2 + $0x98] sm:$0xff] %vm45, 0.0
      %65 = vst [vmem:[#allocation2 + $0xa0] sm:$0xff] 0.0
      %66 = vst.msk [vmem:[#allocation2 + $0xa8] sm:$0xff] %vm45, 0.0
      %67 = vst [vmem:[#allocation2 + $0xb0] sm:$0xff] 0.0
      %68 = vst.msk [vmem:[#allocation2 + $0xb8] sm:$0xff] %vm45, 0.0
      %69 = vst [vmem:[#allocation2 + $0xc0] sm:$0xff] 0.0
      %70 = vst.msk [vmem:[#allocation2 + $0xc8] sm:$0xff] %vm45, 0.0
      %71 = vst [vmem:[#allocation2 + $0xd0] sm:$0xff] 0.0
      %72 = vst.msk [vmem:[#allocation2 + $0xd8] sm:$0xff] %vm45, 0.0
      %73 = vst [vmem:[#allocation2 + $0xe0] sm:$0xff] 0.0
      %74 = vst.msk [vmem:[#allocation2 + $0xe8] sm:$0xff] %vm45, 0.0
      %75 = vst [vmem:[#allocation2 + $0xf0] sm:$0xff] 0.0
      %76 = vst.msk [vmem:[#allocation2 + $0xf8] sm:$0xff] %vm45, 0.0
      %77 = vst [vmem:[#allocation2 + $0x100] sm:$0xff] 0.0
      %78 = vst.msk [vmem:[#allocation2 + $0x108] sm:$0xff] %vm45, 0.0
      %79 = vst [vmem:[#allocation2 + $0x110] sm:$0xff] 0.0
      %80 = vst.msk [vmem:[#allocation2 + $0x118] sm:$0xff] %vm45, 0.0
      %81 = vst [vmem:[#allocation2 + $0x120] sm:$0xff] 0.0
      %82 = vst.msk [vmem:[#allocation2 + $0x128] sm:$0xff] %vm45, 0.0
      %83 = vst [vmem:[#allocation2 + $0x130] sm:$0xff] 0.0
      %84 = vst.msk [vmem:[#allocation2 + $0x138] sm:$0xff] %vm45, 0.0
      %85 = vst [vmem:[#allocation2 + $0x140] sm:$0xff] 0.0
      %86 = vst.msk [vmem:[#allocation2 + $0x148] sm:$0xff] %vm45, 0.0
      %87 = vst [vmem:[#allocation2 + $0x150] sm:$0xff] 0.0
      %88 = vst.msk [vmem:[#allocation2 + $0x158] sm:$0xff] %vm45, 0.0
      %89 = vst [vmem:[#allocation2 + $0x160] sm:$0xff] 0.0
      %90 = vst.msk [vmem:[#allocation2 + $0x168] sm:$0xff] %vm45, 0.0
      %91 = vst [vmem:[#allocation2 + $0x170] sm:$0xff] 0.0
      %92 = vst.msk [vmem:[#allocation2 + $0x178] sm:$0xff] %vm45, 0.0
      %93 = vst [vmem:[#allocation2 + $0x180] sm:$0xff] 0.0
      %94 = vst.msk [vmem:[#allocation2 + $0x188] sm:$0xff] %vm45, 0.0
      %95 = vst [vmem:[#allocation2 + $0x190] sm:$0xff] 0.0
      %96 = vst.msk [vmem:[#allocation2 + $0x198] sm:$0xff] %vm45, 0.0
      %97 = vst [vmem:[#allocation2 + $0x1a0] sm:$0xff] 0.0
      %98 = vst.msk [vmem:[#allocation2 + $0x1a8] sm:$0xff] %vm45, 0.0
      %99 = vst [vmem:[#allocation2 + $0x1b0] sm:$0xff] 0.0
      %100 = vst.msk [vmem:[#allocation2 + $0x1b8] sm:$0xff] %vm45, 0.0
      %101 = vst [vmem:[#allocation2 + $0x1c0] sm:$0xff] 0.0
      %102 = vst.msk [vmem:[#allocation2 + $0x1c8] sm:$0xff] %vm45, 0.0
      %103 = vst [vmem:[#allocation2 + $0x1d0] sm:$0xff] 0.0
      %104 = vst.msk [vmem:[#allocation2 + $0x1d8] sm:$0xff] %vm45, 0.0
      %105 = vst [vmem:[#allocation2 + $0x1e0] sm:$0xff] 0.0
      %106 = vst.msk [vmem:[#allocation2 + $0x1e8] sm:$0xff] %vm45, 0.0
      %107 = vst [vmem:[#allocation2 + $0x1f0] sm:$0xff] 0.0
      %108 = vst.msk [vmem:[#allocation2 + $0x1f8] sm:$0xff] %vm45, 0.0
    $region25: #{multihead_self_attention.3} parent=1 // pred_fallthru
      _
    %v109 = vld [vmem:[#allocation2] sm:$0xff]
    %v110 = vld [vmem:[#allocation2 + $0x8] sm:$0xff]
    %v111 = vld [vmem:[#allocation2 + $0x10] sm:$0xff]
    %v112 = vld [vmem:[#allocation2 + $0x18] sm:$0xff]
    %v113 = vld [vmem:[#allocation2 + $0x20] sm:$0xff]
    %v114 = vld [vmem:[#allocation2 + $0x28] sm:$0xff]
    %v115 = vld [vmem:[#allocation2 + $0x30] sm:$0xff]
    %v116 = vld [vmem:[#allocation2 + $0x38] sm:$0xff]
    %v117 = vld [vmem:[#allocation2 + $0x40] sm:$0xff]
    %v118 = vld [vmem:[#allocation2 + $0x48] sm:$0xff]
    %v119 = vld [vmem:[#allocation2 + $0x50] sm:$0xff]
    %v120 = vld [vmem:[#allocation2 + $0x58] sm:$0xff]
    %v121 = vld [vmem:[#allocation2 + $0x60] sm:$0xff]
    %v122 = vld [vmem:[#allocation2 + $0x68] sm:$0xff]
    %v123 = vld [vmem:[#allocation2 + $0x70] sm:$0xff]
    %v124 = vld [vmem:[#allocation2 + $0x78] sm:$0xff]
    %v125 = vld [vmem:[#allocation2 + $0x80] sm:$0xff]
    %v126 = vld [vmem:[#allocation2 + $0x88] sm:$0xff]
    %v127 = vld [vmem:[#allocation2 + $0x90] sm:$0xff]
    %v128 = vld [vmem:[#allocation2 + $0x98] sm:$0xff]
    %v129 = vld [vmem:[#allocation2 + $0xa0] sm:$0xff]
    %v130 = vld [vmem:[#allocation2 + $0xa8] sm:$0xff]
    %v131 = vld [vmem:[#allocation2 + $0xb0] sm:$0xff]
    %v132 = vld [vmem:[#allocation2 + $0xb8] sm:$0xff]
    %v133 = vld [vmem:[#allocation2 + $0xc0] sm:$0xff]
    %v134 = vld [vmem:[#allocation2 + $0xc8] sm:$0xff]
    %v135 = vld [vmem:[#allocation2 + $0xd0] sm:$0xff]
    %v136 = vld [vmem:[#allocation2 + $0xd8] sm:$0xff]
    %v137 = vld [vmem:[#allocation2 + $0xe0] sm:$0xff]
    %v138 = vld [vmem:[#allocation2 + $0xe8] sm:$0xff]
    %v139 = vld [vmem:[#allocation2 + $0xf0] sm:$0xff]
    %v140 = vld [vmem:[#allocation2 + $0xf8] sm:$0xff]
    %v141 = vld [vmem:[#allocation2 + $0x100] sm:$0xff]
    %v142 = vld [vmem:[#allocation2 + $0x108] sm:$0xff]
    %v143 = vld [vmem:[#allocation2 + $0x110] sm:$0xff]
    %v144 = vld [vmem:[#allocation2 + $0x118] sm:$0xff]
    %v145 = vld [vmem:[#allocation2 + $0x120] sm:$0xff]
    %v146 = vld [vmem:[#allocation2 + $0x128] sm:$0xff]
    %v147 = vld [vmem:[#allocation2 + $0x130] sm:$0xff]
    %v148 = vld [vmem:[#allocation2 + $0x138] sm:$0xff]
    %v149 = vld [vmem:[#allocation2 + $0x140] sm:$0xff]
    %v150 = vld [vmem:[#allocation2 + $0x148] sm:$0xff]
    %v151 = vld [vmem:[#allocation2 + $0x150] sm:$0xff]
    %v152 = vld [vmem:[#allocation2 + $0x158] sm:$0xff]
    %v153 = vld [vmem:[#allocation2 + $0x160] sm:$0xff]
    %v154 = vld [vmem:[#allocation2 + $0x168] sm:$0xff]
    %v155 = vld [vmem:[#allocation2 + $0x170] sm:$0xff]
    %v156 = vld [vmem:[#allocation2 + $0x178] sm:$0xff]
    %v157 = vld [vmem:[#allocation2 + $0x180] sm:$0xff]
    %v158 = vld [vmem:[#allocation2 + $0x188] sm:$0xff]
    %v159 = vld [vmem:[#allocation2 + $0x190] sm:$0xff]
    %v160 = vld [vmem:[#allocation2 + $0x198] sm:$0xff]
    %v161 = vld [vmem:[#allocation2 + $0x1a0] sm:$0xff]
    %v162 = vld [vmem:[#allocation2 + $0x1a8] sm:$0xff]
    %v163 = vld [vmem:[#allocation2 + $0x1b0] sm:$0xff]
    %v164 = vld [vmem:[#allocation2 + $0x1b8] sm:$0xff]
    %v165 = vld [vmem:[#allocation2 + $0x1c0] sm:$0xff]
    %v166 = vld [vmem:[#allocation2 + $0x1c8] sm:$0xff]
    %v167 = vld [vmem:[#allocation2 + $0x1d0] sm:$0xff]
    %v168 = vld [vmem:[#allocation2 + $0x1d8] sm:$0xff]
    %v169 = vld [vmem:[#allocation2 + $0x1e0] sm:$0xff]
    %v170 = vld [vmem:[#allocation2 + $0x1e8] sm:$0xff]
    %v171 = vld [vmem:[#allocation2 + $0x1f0] sm:$0xff]
    %v172 = vld [vmem:[#allocation2 + $0x1f8] sm:$0xff]
    %v173 = vld [vmem:[%s0] sm:$0xff]
    %v174 = vld [vmem:[%s0 + $0x8] sm:$0xff]
    %v175 = vld [vmem:[%s0 + $0x10] sm:$0xff]
    %v176 = vld [vmem:[%s0 + $0x18] sm:$0xff]
    %v177 = vld [vmem:[%s0 + $0x20] sm:$0xff]
    %v178 = vld [vmem:[%s0 + $0x28] sm:$0xff]
    %v179 = vld [vmem:[%s0 + $0x30] sm:$0xff]
    %v180 = vld [vmem:[%s0 + $0x38] sm:$0xff]
    %v181 = vld [vmem:[%s0 + $0x40] sm:$0xff]
    %v182 = vld [vmem:[%s0 + $0x48] sm:$0xff]
    %v183 = vld [vmem:[%s0 + $0x50] sm:$0xff]
    %v184 = vld [vmem:[%s0 + $0x58] sm:$0xff]
    %v185 = vld [vmem:[%s0 + $0x60] sm:$0xff]
    %v186 = vld [vmem:[%s0 + $0x68] sm:$0xff]
    %v187 = vld [vmem:[%s0 + $0x70] sm:$0xff]
    %v188 = vld [vmem:[%s0 + $0x78] sm:$0xff]
    %v189 = vld [vmem:[%s0 + $0x80] sm:$0xff]
    %v190 = vld [vmem:[%s0 + $0x88] sm:$0xff]
    %v191 = vld [vmem:[%s0 + $0x90] sm:$0xff]
    %v192 = vld [vmem:[%s0 + $0x98] sm:$0xff]
    %v193 = vld [vmem:[%s0 + $0xa0] sm:$0xff]
    %v194 = vld [vmem:[%s0 + $0xa8] sm:$0xff]
    %v195 = vld [vmem:[%s0 + $0xb0] sm:$0xff]
    %v196 = vld [vmem:[%s0 + $0xb8] sm:$0xff]
    %v197 = vld [vmem:[%s0 + $0xc0] sm:$0xff]
    %v198 = vld [vmem:[%s0 + $0xc8] sm:$0xff]
    %v199 = vld [vmem:[%s0 + $0xd0] sm:$0xff]
    %v200 = vld [vmem:[%s0 + $0xd8] sm:$0xff]
    %v201 = vld [vmem:[%s0 + $0xe0] sm:$0xff]
    %v202 = vld [vmem:[%s0 + $0xe8] sm:$0xff]
    %v203 = vld [vmem:[%s0 + $0xf0] sm:$0xff]
    %v204 = vld [vmem:[%s0 + $0xf8] sm:$0xff]
    %v205 = vld [vmem:[#allocation3] sm:$0xff]
    %v206 = vld [vmem:[#allocation3 + $0x8] sm:$0xff]
    %v207 = vld [vmem:[#allocation3 + $0x10] sm:$0xff]
    %v208 = vld [vmem:[#allocation3 + $0x18] sm:$0xff]
    %v209 = vld [vmem:[#allocation3 + $0x20] sm:$0xff]
    %v210 = vld [vmem:[#allocation3 + $0x28] sm:$0xff]
    %v211 = vld [vmem:[#allocation3 + $0x30] sm:$0xff]
    %v212 = vld [vmem:[#allocation3 + $0x38] sm:$0xff]
    %v213 = vld [vmem:[#allocation3 + $0x40] sm:$0xff]
    %v214 = vld [vmem:[#allocation3 + $0x48] sm:$0xff]
    %v215 = vld [vmem:[#allocation3 + $0x50] sm:$0xff]
    %v216 = vld [vmem:[#allocation3 + $0x58] sm:$0xff]
    %v217 = vld [vmem:[#allocation3 + $0x60] sm:$0xff]
    %v218 = vld [vmem:[#allocation3 + $0x68] sm:$0xff]
    %v219 = vld [vmem:[#allocation3 + $0x70] sm:$0xff]
    %v220 = vld [vmem:[#allocation3 + $0x78] sm:$0xff]
    %vm221 = vcmask 523264
    %v223 = vsel %vm221, %v173, 0
    %v226 = vsel %vm221, %v174, 0
    %v229 = vsel %vm221, %v175, 0
    %v232 = vsel %vm221, %v176, 0
    %v235 = vsel %vm221, %v177, 0
    %v238 = vsel %vm221, %v178, 0
    %v241 = vsel %vm221, %v179, 0
    %v244 = vsel %vm221, %v180, 0
    %v247 = vsel %vm221, %v181, 0
    %v250 = vsel %vm221, %v182, 0
    %v253 = vsel %vm221, %v183, 0
    %v256 = vsel %vm221, %v184, 0
    %v259 = vsel %vm221, %v185, 0
    %v262 = vsel %vm221, %v186, 0
    %v265 = vsel %vm221, %v187, 0
    %v268 = vsel %vm221, %v188, 0
    %v271 = vsel %vm221, %v189, 0
    %v274 = vsel %vm221, %v190, 0
    %v277 = vsel %vm221, %v191, 0
    %v280 = vsel %vm221, %v192, 0
    %v283 = vsel %vm221, %v193, 0
    %v286 = vsel %vm221, %v194, 0
    %v289 = vsel %vm221, %v195, 0
    %v292 = vsel %vm221, %v196, 0
    %v295 = vsel %vm221, %v197, 0
    %v298 = vsel %vm221, %v198, 0
    %v301 = vsel %vm221, %v199, 0
    %v304 = vsel %vm221, %v200, 0
    %v307 = vsel %vm221, %v201, 0
    %v310 = vsel %vm221, %v202, 0
    %v313 = vsel %vm221, %v203, 0
    %v316 = vsel %vm221, %v204, 0
    %318 = vmatprep.subr.mxu0 %v206
    %319 = vmatpush1.msra.mxu0 %v205
    %320 = vmatprep.subr.mxu0 %v208
    %321 = vmatpush1.msra.mxu0 %v207
    %322 = vmatprep.subr.mxu0 %v210
    %323 = vmatpush1.msra.mxu0 %v209
    %324 = vmatprep.subr.mxu0 %v212
    %325 = vmatpush1.msra.mxu0 %v211
    %326 = vmatprep.subr.mxu0 %v214
    %327 = vmatpush1.msra.mxu0 %v213
    %328 = vmatprep.subr.mxu0 %v216
    %329 = vmatpush1.msra.mxu0 %v215
    %330 = vmatprep.subr.mxu0 %v218
    %331 = vmatpush1.msra.mxu0 %v217
    %332 = vmatprep.subr.mxu0 %v220
    %333 = vmatpush1.msra.mxu0 %v219
    %334 = vmatprep.subr.mxu0 0.0
    %335 = vmatpush1.msra.mxu0 0.0
    %336 = vmatprep.subr.mxu0 0.0
    %337 = vmatpush1.msra.mxu0 0.0
    %338 = vmatprep.subr.mxu0 0.0
    %339 = vmatpush1.msra.mxu0 0.0
    %340 = vmatprep.subr.mxu0 0.0
    %341 = vmatpush1.msra.mxu0 0.0
    %342 = vmatprep.subr.mxu0 0.0
    %343 = vmatpush1.msra.mxu0 0.0
    %344 = vmatprep.subr.mxu0 0.0
    %345 = vmatpush1.msra.mxu0 0.0
    %346 = vmatprep.subr.mxu0 0.0
    %347 = vmatpush1.msra.mxu0 0.0
    %348 = vmatprep.subr.mxu0 0.0
    %349 = vmatpush1.msra.mxu0 0.0
    %350 = vmatprep.subr.mxu0 0.0
    %351 = vmatpush1.msra.mxu0 0.0
    %352 = vmatprep.subr.mxu0 0.0
    %353 = vmatpush1.msra.mxu0 0.0
    %354 = vmatprep.subr.mxu0 0.0
    %355 = vmatpush1.msra.mxu0 0.0
    %356 = vmatprep.subr.mxu0 0.0
    %357 = vmatpush1.msra.mxu0 0.0
    %358 = vmatprep.subr.mxu0 0.0
    %359 = vmatpush1.msra.mxu0 0.0
    %360 = vmatprep.subr.mxu0 0.0
    %361 = vmatpush1.msra.mxu0 0.0
    %362 = vmatprep.subr.mxu0 0.0
    %363 = vmatpush1.msra.mxu0 0.0
    %364 = vmatprep.subr.mxu0 0.0
    %365 = vmatpush1.msra.mxu0 0.0
    %366 = vmatprep.subr.mxu0 0.0
    %367 = vmatpush1.msra.mxu0 0.0
    %368 = vmatprep.subr.mxu0 0.0
    %369 = vmatpush1.msra.mxu0 0.0
    %370 = vmatprep.subr.mxu0 0.0
    %371 = vmatpush1.msra.mxu0 0.0
    %372 = vmatprep.subr.mxu0 0.0
    %373 = vmatpush1.msra.mxu0 0.0
    %374 = vmatprep.subr.mxu0 0.0
    %375 = vmatpush1.msra.mxu0 0.0
    %376 = vmatprep.subr.mxu0 0.0
    %377 = vmatpush1.msra.mxu0 0.0
    %378 = vmatprep.subr.mxu0 0.0
    %379 = vmatpush1.msra.mxu0 0.0
    %380 = vmatprep.subr.mxu0 0.0
    %381 = vmatpush1.msra.mxu0 0.0
    %382 = vmatprep.mubr.f32.mxu0 0.0
    %383 = vmatmul.mubr.f32.gmra.mrb[0].mxu0 %v223
    %v384 = vpop.f32.mrb[0].mxu0
    %v385 = vadd.f32 0.0, %v384
    %v386 = vpop.f32.mrb[0].mxu0
    %v387 = vadd.f32 0.0, %v386
    %388 = vmatprep.mubr.f32.mxu0 0.0
    %389 = vmatmul.mubr.f32.gmra.mrb[0].mxu0 %v226
    %v390 = vpop.f32.mrb[0].mxu0
    %v391 = vadd.f32 0.0, %v390
    %v392 = vpop.f32.mrb[0].mxu0
    %v393 = vadd.f32 0.0, %v392
    %394 = vmatprep.mubr.f32.mxu0 0.0
    %395 = vmatmul.mubr.f32.gmra.mrb[0].mxu0 %v229
    %v396 = vpop.f32.mrb[0].mxu0
    %v397 = vadd.f32 0.0, %v396
    %v398 = vpop.f32.mrb[0].mxu0
    %v399 = vadd.f32 0.0, %v398
    %400 = vmatprep.mubr.f32.mxu0 0.0
    %401 = vmatmul.mubr.f32.gmra.mrb[0].mxu0 %v232
    %v402 = vpop.f32.mrb[0].mxu0
    %v403 = vadd.f32 0.0, %v402
    %v404 = vpop.f32.mrb[0].mxu0
    %v405 = vadd.f32 0.0, %v404
    %406 = vmatprep.mubr.f32.mxu0 0.0
    %407 = vmatmul.mubr.f32.gmra.mrb[0].mxu0 %v235
    %v408 = vpop.f32.mrb[0].mxu0
    %v409 = vadd.f32 0.0, %v408
    %v410 = vpop.f32.mrb[0].mxu0
    %v411 = vadd.f32 0.0, %v410
    %412 = vmatprep.mubr.f32.mxu0 0.0
    %413 = vmatmul.mubr.f32.gmra.mrb[0].mxu0 %v238
    %v414 = vpop.f32.mrb[0].mxu0
    %v415 = vadd.f32 0.0, %v414
    %v416 = vpop.f32.mrb[0].mxu0
    %v417 = vadd.f32 0.0, %v416
    %418 = vmatprep.mubr.f32.mxu0 0.0
    %419 = vmatmul.mubr.f32.gmra.mrb[0].mxu0 %v241
    %v420 = vpop.f32.mrb[0].mxu0
    %v421 = vadd.f32 0.0, %v420
    %v422 = vpop.f32.mrb[0].mxu0
    %v423 = vadd.f32 0.0, %v422
    %424 = vmatprep.mubr.f32.mxu0 0.0
    %425 = vmatmul.mubr.f32.gmra.mrb[0].mxu0 %v244
    %v426 = vpop.f32.mrb[0].mxu0
    %v427 = vadd.f32 0.0, %v426
    %v428 = vpop.f32.mrb[0].mxu0
    %v429 = vadd.f32 0.0, %v428
    %430 = vmatprep.mubr.f32.mxu0 0.0
    %431 = vmatmul.mubr.f32.gmra.mrb[0].mxu0 %v247
    %v432 = vpop.f32.mrb[0].mxu0
    %v433 = vadd.f32 0.0, %v432
    %v434 = vpop.f32.mrb[0].mxu0
    %v435 = vadd.f32 0.0, %v434
    %436 = vmatprep.mubr.f32.mxu0 0.0
    %437 = vmatmul.mubr.f32.gmra.mrb[0].mxu0 %v250
    %v438 = vpop.f32.mrb[0].mxu0
    %v439 = vadd.f32 0.0, %v438
    %v440 = vpop.f32.mrb[0].mxu0
    %v441 = vadd.f32 0.0, %v440
    %442 = vmatprep.mubr.f32.mxu0 0.0
    %443 = vmatmul.mubr.f32.gmra.mrb[0].mxu0 %v253
    %v444 = vpop.f32.mrb[0].mxu0
    %v445 = vadd.f32 0.0, %v444
    %v446 = vpop.f32.mrb[0].mxu0
    %v447 = vadd.f32 0.0, %v446
    %448 = vmatprep.mubr.f32.mxu0 0.0
    %449 = vmatmul.mubr.f32.gmra.mrb[0].mxu0 %v256
    %v450 = vpop.f32.mrb[0].mxu0
    %v451 = vadd.f32 0.0, %v450
    %v452 = vpop.f32.mrb[0].mxu0
    %v453 = vadd.f32 0.0, %v452
    %454 = vmatprep.mubr.f32.mxu0 0.0
    %455 = vmatmul.mubr.f32.gmra.mrb[0].mxu0 %v259
    %v456 = vpop.f32.mrb[0].mxu0
    %v457 = vadd.f32 0.0, %v456
    %v458 = vpop.f32.mrb[0].mxu0
    %v459 = vadd.f32 0.0, %v458
    %460 = vmatprep.mubr.f32.mxu0 0.0
    %461 = vmatmul.mubr.f32.gmra.mrb[0].mxu0 %v262
    %v462 = vpop.f32.mrb[0].mxu0
    %v463 = vadd.f32 0.0, %v462
    %v464 = vpop.f32.mrb[0].mxu0
    %v465 = vadd.f32 0.0, %v464
    %466 = vmatprep.mubr.f32.mxu0 0.0
    %467 = vmatmul.mubr.f32.gmra.mrb[0].mxu0 %v265
    %v468 = vpop.f32.mrb[0].mxu0
    %v469 = vadd.f32 0.0, %v468
    %v470 = vpop.f32.mrb[0].mxu0
    %v471 = vadd.f32 0.0, %v470
    %472 = vmatprep.mubr.f32.mxu0 0.0
    %473 = vmatmul.mubr.f32.gmra.mrb[0].mxu0 %v268
    %v474 = vpop.f32.mrb[0].mxu0
    %v475 = vadd.f32 0.0, %v474
    %v476 = vpop.f32.mrb[0].mxu0
    %v477 = vadd.f32 0.0, %v476
    %478 = vmatprep.mubr.f32.mxu0 0.0
    %479 = vmatmul.mubr.f32.gmra.mrb[0].mxu0 %v271
    %v480 = vpop.f32.mrb[0].mxu0
    %v481 = vadd.f32 0.0, %v480
    %v482 = vpop.f32.mrb[0].mxu0
    %v483 = vadd.f32 0.0, %v482
    %484 = vmatprep.mubr.f32.mxu0 0.0
    %485 = vmatmul.mubr.f32.gmra.mrb[0].mxu0 %v274
    %v486 = vpop.f32.mrb[0].mxu0
    %v487 = vadd.f32 0.0, %v486
    %v488 = vpop.f32.mrb[0].mxu0
    %v489 = vadd.f32 0.0, %v488
    %490 = vmatprep.mubr.f32.mxu0 0.0
    %491 = vmatmul.mubr.f32.gmra.mrb[0].mxu0 %v277
    %v492 = vpop.f32.mrb[0].mxu0
    %v493 = vadd.f32 0.0, %v492
    %v494 = vpop.f32.mrb[0].mxu0
    %v495 = vadd.f32 0.0, %v494
    %496 = vmatprep.mubr.f32.mxu0 0.0
    %497 = vmatmul.mubr.f32.gmra.mrb[0].mxu0 %v280
    %v498 = vpop.f32.mrb[0].mxu0
    %v499 = vadd.f32 0.0, %v498
    %v500 = vpop.f32.mrb[0].mxu0
    %v501 = vadd.f32 0.0, %v500
    %502 = vmatprep.mubr.f32.mxu0 0.0
    %503 = vmatmul.mubr.f32.gmra.mrb[0].mxu0 %v283
    %v504 = vpop.f32.mrb[0].mxu0
    %v505 = vadd.f32 0.0, %v504
    %v506 = vpop.f32.mrb[0].mxu0
    %v507 = vadd.f32 0.0, %v506
    %508 = vmatprep.mubr.f32.mxu0 0.0
    %509 = vmatmul.mubr.f32.gmra.mrb[0].mxu0 %v286
    %v510 = vpop.f32.mrb[0].mxu0
    %v511 = vadd.f32 0.0, %v510
    %v512 = vpop.f32.mrb[0].mxu0
    %v513 = vadd.f32 0.0, %v512
    %514 = vmatprep.mubr.f32.mxu0 0.0
    %515 = vmatmul.mubr.f32.gmra.mrb[0].mxu0 %v289
    %v516 = vpop.f32.mrb[0].mxu0
    %v517 = vadd.f32 0.0, %v516
    %v518 = vpop.f32.mrb[0].mxu0
    %v519 = vadd.f32 0.0, %v518
    %520 = vmatprep.mubr.f32.mxu0 0.0
    %521 = vmatmul.mubr.f32.gmra.mrb[0].mxu0 %v292
    %v522 = vpop.f32.mrb[0].mxu0
    %v523 = vadd.f32 0.0, %v522
    %v524 = vpop.f32.mrb[0].mxu0
    %v525 = vadd.f32 0.0, %v524
    %526 = vmatprep.mubr.f32.mxu0 0.0
    %527 = vmatmul.mubr.f32.gmra.mrb[0].mxu0 %v295
    %v528 = vpop.f32.mrb[0].mxu0
    %v529 = vadd.f32 0.0, %v528
    %v530 = vpop.f32.mrb[0].mxu0
    %v531 = vadd.f32 0.0, %v530
    %532 = vmatprep.mubr.f32.mxu0 0.0
    %533 = vmatmul.mubr.f32.gmra.mrb[0].mxu0 %v298
    %v534 = vpop.f32.mrb[0].mxu0
    %v535 = vadd.f32 0.0, %v534
    %v536 = vpop.f32.mrb[0].mxu0
    %v537 = vadd.f32 0.0, %v536
    %538 = vmatprep.mubr.f32.mxu0 0.0
    %539 = vmatmul.mubr.f32.gmra.mrb[0].mxu0 %v301
    %v540 = vpop.f32.mrb[0].mxu0
    %v541 = vadd.f32 0.0, %v540
    %v542 = vpop.f32.mrb[0].mxu0
    %v543 = vadd.f32 0.0, %v542
    %544 = vmatprep.mubr.f32.mxu0 0.0
    %545 = vmatmul.mubr.f32.gmra.mrb[0].mxu0 %v304
    %v546 = vpop.f32.mrb[0].mxu0
    %v547 = vadd.f32 0.0, %v546
    %v548 = vpop.f32.mrb[0].mxu0
    %v549 = vadd.f32 0.0, %v548
    %550 = vmatprep.mubr.f32.mxu0 0.0
    %551 = vmatmul.mubr.f32.gmra.mrb[0].mxu0 %v307
    %v552 = vpop.f32.mrb[0].mxu0
    %v553 = vadd.f32 0.0, %v552
    %v554 = vpop.f32.mrb[0].mxu0
    %v555 = vadd.f32 0.0, %v554
    %556 = vmatprep.mubr.f32.mxu0 0.0
    %557 = vmatmul.mubr.f32.gmra.mrb[0].mxu0 %v310
    %v558 = vpop.f32.mrb[0].mxu0
    %v559 = vadd.f32 0.0, %v558
    %v560 = vpop.f32.mrb[0].mxu0
    %v561 = vadd.f32 0.0, %v560
    %562 = vmatprep.mubr.f32.mxu0 0.0
    %563 = vmatmul.mubr.f32.gmra.mrb[0].mxu0 %v313
    %v564 = vpop.f32.mrb[0].mxu0
    %v565 = vadd.f32 0.0, %v564
    %v566 = vpop.f32.mrb[0].mxu0
    %v567 = vadd.f32 0.0, %v566
    %568 = vmatprep.mubr.f32.mxu0 0.0
    %569 = vmatmul.mubr.f32.gmra.mrb[0].mxu0 %v316
    %v570 = vpop.f32.mrb[0].mxu0
    %v571 = vadd.f32 0.0, %v570
    %v572 = vpop.f32.mrb[0].mxu0
    %v573 = vadd.f32 0.0, %v572
    %574 = vdwg.mxu0
    %v575 = vadd.f32 %v109, %v385
    %v576 = vadd.f32 %v110, %v387
    %v577 = vadd.f32 %v111, %v391
    %v578 = vadd.f32 %v112, %v393
    %v579 = vadd.f32 %v113, %v397
    %v580 = vadd.f32 %v114, %v399
    %v581 = vadd.f32 %v115, %v403
    %v582 = vadd.f32 %v116, %v405
    %v583 = vadd.f32 %v117, %v409
    %v584 = vadd.f32 %v118, %v411
    %v585 = vadd.f32 %v119, %v415
    %v586 = vadd.f32 %v120, %v417
    %v587 = vadd.f32 %v121, %v421
    %v588 = vadd.f32 %v122, %v423
    %v589 = vadd.f32 %v123, %v427
    %v590 = vadd.f32 %v124, %v429
    %v591 = vadd.f32 %v125, %v433
    %v592 = vadd.f32 %v126, %v435
    %v593 = vadd.f32 %v127, %v439
    %v594 = vadd.f32 %v128, %v441
    %v595 = vadd.f32 %v129, %v445
    %v596 = vadd.f32 %v130, %v447
    %v597 = vadd.f32 %v131, %v451
    %v598 = vadd.f32 %v132, %v453
    %v599 = vadd.f32 %v133, %v457
    %v600 = vadd.f32 %v134, %v459
    %v601 = vadd.f32 %v135, %v463
    %v602 = vadd.f32 %v136, %v465
    %v603 = vadd.f32 %v137, %v469
    %v604 = vadd.f32 %v138, %v471
    %v605 = vadd.f32 %v139, %v475
    %v606 = vadd.f32 %v140, %v477
    %v607 = vadd.f32 %v141, %v481
    %v608 = vadd.f32 %v142, %v483
    %v609 = vadd.f32 %v143, %v487
    %v610 = vadd.f32 %v144, %v489
    %v611 = vadd.f32 %v145, %v493
    %v612 = vadd.f32 %v146, %v495
    %v613 = vadd.f32 %v147, %v499
    %v614 = vadd.f32 %v148, %v501
    %v615 = vadd.f32 %v149, %v505
    %v616 = vadd.f32 %v150, %v507
    %v617 = vadd.f32 %v151, %v511
    %v618 = vadd.f32 %v152, %v513
    %v619 = vadd.f32 %v153, %v517
    %v620 = vadd.f32 %v154, %v519
    %v621 = vadd.f32 %v155, %v523
    %v622 = vadd.f32 %v156, %v525
    %v623 = vadd.f32 %v157, %v529
    %v624 = vadd.f32 %v158, %v531
    %v625 = vadd.f32 %v159, %v535
    %v626 = vadd.f32 %v160, %v537
    %v627 = vadd.f32 %v161, %v541
    %v628 = vadd.f32 %v162, %v543
    %v629 = vadd.f32 %v163, %v547
    %v630 = vadd.f32 %v164, %v549
    %v631 = vadd.f32 %v165, %v553
    %v632 = vadd.f32 %v166, %v555
    %v633 = vadd.f32 %v167, %v559
    %v634 = vadd.f32 %v168, %v561
    %v635 = vadd.f32 %v169, %v565
    %v636 = vadd.f32 %v170, %v567
    %v637 = vadd.f32 %v171, %v571
    %v638 = vadd.f32 %v172, %v573
    %639 = vst [vmem:[#allocation2] sm:$0xff] %v575
    %640 = vst.msk [vmem:[#allocation2 + $0x8] sm:$0xff] %vm221, %v576
    %641 = vst [vmem:[#allocation2 + $0x10] sm:$0xff] %v577
    %642 = vst.msk [vmem:[#allocation2 + $0x18] sm:$0xff] %vm221, %v578
    %643 = vst [vmem:[#allocation2 + $0x20] sm:$0xff] %v579
    %644 = vst.msk [vmem:[#allocation2 + $0x28] sm:$0xff] %vm221, %v580
    %645 = vst [vmem:[#allocation2 + $0x30] sm:$0xff] %v581
    %646 = vst.msk [vmem:[#allocation2 + $0x38] sm:$0xff] %vm221, %v582
    %647 = vst [vmem:[#allocation2 + $0x40] sm:$0xff] %v583
    %648 = vst.msk [vmem:[#allocation2 + $0x48] sm:$0xff] %vm221, %v584
    %649 = vst [vmem:[#allocation2 + $0x50] sm:$0xff] %v585
    %650 = vst.msk [vmem:[#allocation2 + $0x58] sm:$0xff] %vm221, %v586
    %651 = vst [vmem:[#allocation2 + $0x60] sm:$0xff] %v587
    %652 = vst.msk [vmem:[#allocation2 + $0x68] sm:$0xff] %vm221, %v588
    %653 = vst [vmem:[#allocation2 + $0x70] sm:$0xff] %v589
    %654 = vst.msk [vmem:[#allocation2 + $0x78] sm:$0xff] %vm221, %v590
    %655 = vst [vmem:[#allocation2 + $0x80] sm:$0xff] %v591
    %656 = vst.msk [vmem:[#allocation2 + $0x88] sm:$0xff] %vm221, %v592
    %657 = vst [vmem:[#allocation2 + $0x90] sm:$0xff] %v593
    %658 = vst.msk [vmem:[#allocation2 + $0x98] sm:$0xff] %vm221, %v594
    %659 = vst [vmem:[#allocation2 + $0xa0] sm:$0xff] %v595
    %660 = vst.msk [vmem:[#allocation2 + $0xa8] sm:$0xff] %vm221, %v596
    %661 = vst [vmem:[#allocation2 + $0xb0] sm:$0xff] %v597
    %662 = vst.msk [vmem:[#allocation2 + $0xb8] sm:$0xff] %vm221, %v598
    %663 = vst [vmem:[#allocation2 + $0xc0] sm:$0xff] %v599
    %664 = vst.msk [vmem:[#allocation2 + $0xc8] sm:$0xff] %vm221, %v600
    %665 = vst [vmem:[#allocation2 + $0xd0] sm:$0xff] %v601
    %666 = vst.msk [vmem:[#allocation2 + $0xd8] sm:$0xff] %vm221, %v602
    %667 = vst [vmem:[#allocation2 + $0xe0] sm:$0xff] %v603
    %668 = vst.msk [vmem:[#allocation2 + $0xe8] sm:$0xff] %vm221, %v604
    %669 = vst [vmem:[#allocation2 + $0xf0] sm:$0xff] %v605
    %670 = vst.msk [vmem:[#allocation2 + $0xf8] sm:$0xff] %vm221, %v606
    %671 = vst [vmem:[#allocation2 + $0x100] sm:$0xff] %v607
    %672 = vst.msk [vmem:[#allocation2 + $0x108] sm:$0xff] %vm221, %v608
    %673 = vst [vmem:[#allocation2 + $0x110] sm:$0xff] %v609
    %674 = vst.msk [vmem:[#allocation2 + $0x118] sm:$0xff] %vm221, %v610
    %675 = vst [vmem:[#allocation2 + $0x120] sm:$0xff] %v611
    %676 = vst.msk [vmem:[#allocation2 + $0x128] sm:$0xff] %vm221, %v612
    %677 = vst [vmem:[#allocation2 + $0x130] sm:$0xff] %v613
    %678 = vst.msk [vmem:[#allocation2 + $0x138] sm:$0xff] %vm221, %v614
    %679 = vst [vmem:[#allocation2 + $0x140] sm:$0xff] %v615
    %680 = vst.msk [vmem:[#allocation2 + $0x148] sm:$0xff] %vm221, %v616
    %681 = vst [vmem:[#allocation2 + $0x150] sm:$0xff] %v617
    %682 = vst.msk [vmem:[#allocation2 + $0x158] sm:$0xff] %vm221, %v618
    %683 = vst [vmem:[#allocation2 + $0x160] sm:$0xff] %v619
    %684 = vst.msk [vmem:[#allocation2 + $0x168] sm:$0xff] %vm221, %v620
    %685 = vst [vmem:[#allocation2 + $0x170] sm:$0xff] %v621
    %686 = vst.msk [vmem:[#allocation2 + $0x178] sm:$0xff] %vm221, %v622
    %687 = vst [vmem:[#allocation2 + $0x180] sm:$0xff] %v623
    %688 = vst.msk [vmem:[#allocation2 + $0x188] sm:$0xff] %vm221, %v624
    %689 = vst [vmem:[#allocation2 + $0x190] sm:$0xff] %v625
    %690 = vst.msk [vmem:[#allocation2 + $0x198] sm:$0xff] %vm221, %v626
    %691 = vst [vmem:[#allocation2 + $0x1a0] sm:$0xff] %v627
    %692 = vst.msk [vmem:[#allocation2 + $0x1a8] sm:$0xff] %vm221, %v628
    %693 = vst [vmem:[#allocation2 + $0x1b0] sm:$0xff] %v629
    %694 = vst.msk [vmem:[#allocation2 + $0x1b8] sm:$0xff] %vm221, %v630
    %695 = vst [vmem:[#allocation2 + $0x1c0] sm:$0xff] %v631
    %696 = vst.msk [vmem:[#allocation2 + $0x1c8] sm:$0xff] %vm221, %v632
    %697 = vst [vmem:[#allocation2 + $0x1d0] sm:$0xff] %v633
    %698 = vst.msk [vmem:[#allocation2 + $0x1d8] sm:$0xff] %vm221, %v634
    %699 = vst [vmem:[#allocation2 + $0x1e0] sm:$0xff] %v635
    %700 = vst.msk [vmem:[#allocation2 + $0x1e8] sm:$0xff] %vm221, %v636
    %701 = vst [vmem:[#allocation2 + $0x1f0] sm:$0xff] %v637
    %702 = vst.msk [vmem:[#allocation2 + $0x1f8] sm:$0xff] %vm221, %v638
    // Predicated region
    $region26: #{multihead_self_attention.3} parent=1 // pred_check
      %p703 = pneg %p40
    $region27: #{multihead_self_attention.3} parent=1 // pred_check_branch
      %705 = sbr.rel (%p703) target = $region29
    $region28: #{multihead_self_attention.3} parent=1 // pred_region
      %v706 = vld [vmem:[#allocation2] sm:$0xff]
      %v707 = vld [vmem:[#allocation2 + $0x8] sm:$0xff]
      %v708 = vld [vmem:[#allocation2 + $0x10] sm:$0xff]
      %v709 = vld [vmem:[#allocation2 + $0x18] sm:$0xff]
      %v710 = vld [vmem:[#allocation2 + $0x20] sm:$0xff]
      %v711 = vld [vmem:[#allocation2 + $0x28] sm:$0xff]
      %v712 = vld [vmem:[#allocation2 + $0x30] sm:$0xff]
      %v713 = vld [vmem:[#allocation2 + $0x38] sm:$0xff]
      %v714 = vld [vmem:[#allocation2 + $0x40] sm:$0xff]
      %v715 = vld [vmem:[#allocation2 + $0x48] sm:$0xff]
      %v716 = vld [vmem:[#allocation2 + $0x50] sm:$0xff]
      %v717 = vld [vmem:[#allocation2 + $0x58] sm:$0xff]
      %v718 = vld [vmem:[#allocation2 + $0x60] sm:$0xff]
      %v719 = vld [vmem:[#allocation2 + $0x68] sm:$0xff]
      %v720 = vld [vmem:[#allocation2 + $0x70] sm:$0xff]
      %v721 = vld [vmem:[#allocation2 + $0x78] sm:$0xff]
      %v722 = vld [vmem:[#allocation2 + $0x80] sm:$0xff]
      %v723 = vld [vmem:[#allocation2 + $0x88] sm:$0xff]
      %v724 = vld [vmem:[#allocation2 + $0x90] sm:$0xff]
      %v725 = vld [vmem:[#allocation2 + $0x98] sm:$0xff]
      %v726 = vld [vmem:[#allocation2 + $0xa0] sm:$0xff]
      %v727 = vld [vmem:[#allocation2 + $0xa8] sm:$0xff]
      %v728 = vld [vmem:[#allocation2 + $0xb0] sm:$0xff]
      %v729 = vld [vmem:[#allocation2 + $0xb8] sm:$0xff]
      %v730 = vld [vmem:[#allocation2 + $0xc0] sm:$0xff]
      %v731 = vld [vmem:[#allocation2 + $0xc8] sm:$0xff]
      %v732 = vld [vmem:[#allocation2 + $0xd0] sm:$0xff]
      %v733 = vld [vmem:[#allocation2 + $0xd8] sm:$0xff]
      %v734 = vld [vmem:[#allocation2 + $0xe0] sm:$0xff]
      %v735 = vld [vmem:[#allocation2 + $0xe8] sm:$0xff]
      %v736 = vld [vmem:[#allocation2 + $0xf0] sm:$0xff]
      %v737 = vld [vmem:[#allocation2 + $0xf8] sm:$0xff]
      %v738 = vld [vmem:[#allocation2 + $0x100] sm:$0xff]
      %v739 = vld [vmem:[#allocation2 + $0x108] sm:$0xff]
      %v740 = vld [vmem:[#allocation2 + $0x110] sm:$0xff]
      %v741 = vld [vmem:[#allocation2 + $0x118] sm:$0xff]
      %v742 = vld [vmem:[#allocation2 + $0x120] sm:$0xff]
      %v743 = vld [vmem:[#allocation2 + $0x128] sm:$0xff]
      %v744 = vld [vmem:[#allocation2 + $0x130] sm:$0xff]
      %v745 = vld [vmem:[#allocation2 + $0x138] sm:$0xff]
      %v746 = vld [vmem:[#allocation2 + $0x140] sm:$0xff]
      %v747 = vld [vmem:[#allocation2 + $0x148] sm:$0xff]
      %v748 = vld [vmem:[#allocation2 + $0x150] sm:$0xff]
      %v749 = vld [vmem:[#allocation2 + $0x158] sm:$0xff]
      %v750 = vld [vmem:[#allocation2 + $0x160] sm:$0xff]
      %v751 = vld [vmem:[#allocation2 + $0x168] sm:$0xff]
      %v752 = vld [vmem:[#allocation2 + $0x170] sm:$0xff]
      %v753 = vld [vmem:[#allocation2 + $0x178] sm:$0xff]
      %v754 = vld [vmem:[#allocation2 + $0x180] sm:$0xff]
      %v755 = vld [vmem:[#allocation2 + $0x188] sm:$0xff]
      %v756 = vld [vmem:[#allocation2 + $0x190] sm:$0xff]
      %v757 = vld [vmem:[#allocation2 + $0x198] sm:$0xff]
      %v758 = vld [vmem:[#allocation2 + $0x1a0] sm:$0xff]
      %v759 = vld [vmem:[#allocation2 + $0x1a8] sm:$0xff]
      %v760 = vld [vmem:[#allocation2 + $0x1b0] sm:$0xff]
      %v761 = vld [vmem:[#allocation2 + $0x1b8] sm:$0xff]
      %v762 = vld [vmem:[#allocation2 + $0x1c0] sm:$0xff]
      %v763 = vld [vmem:[#allocation2 + $0x1c8] sm:$0xff]
      %v764 = vld [vmem:[#allocation2 + $0x1d0] sm:$0xff]
      %v765 = vld [vmem:[#allocation2 + $0x1d8] sm:$0xff]
      %v766 = vld [vmem:[#allocation2 + $0x1e0] sm:$0xff]
      %v767 = vld [vmem:[#allocation2 + $0x1e8] sm:$0xff]
      %v768 = vld [vmem:[#allocation2 + $0x1f0] sm:$0xff]
      %v769 = vld [vmem:[#allocation2 + $0x1f8] sm:$0xff]
      %v770 = vld [vmem:[#allocation5] sm:$0x3]
      %v772 = vlaneseq
      %v773 = vshrl.u32 %v772, 7
      %v774 = vsub.s32 0, %v773
      %v775 = vrot.slane %v770, %v774
      %v776 = vlaneseq
      %v777 = vshrl.u32 %v776, 7
      %v778 = vsub.s32 1, %v777
      %v779 = vrot.slane %v770, %v778
      %v782 = vadd.f32 %v706, %v775
      %v783 = vadd.f32 %v707, %v779
      %v784 = vadd.f32 %v708, %v775
      %v785 = vadd.f32 %v709, %v779
      %v786 = vadd.f32 %v710, %v775
      %v787 = vadd.f32 %v711, %v779
      %v788 = vadd.f32 %v712, %v775
      %v789 = vadd.f32 %v713, %v779
      %v790 = vadd.f32 %v714, %v775
      %v791 = vadd.f32 %v715, %v779
      %v792 = vadd.f32 %v716, %v775
      %v793 = vadd.f32 %v717, %v779
      %v794 = vadd.f32 %v718, %v775
      %v795 = vadd.f32 %v719, %v779
      %v796 = vadd.f32 %v720, %v775
      %v797 = vadd.f32 %v721, %v779
      %v798 = vadd.f32 %v722, %v775
      %v799 = vadd.f32 %v723, %v779
      %v800 = vadd.f32 %v724, %v775
      %v801 = vadd.f32 %v725, %v779
      %v802 = vadd.f32 %v726, %v775
      %v803 = vadd.f32 %v727, %v779
      %v804 = vadd.f32 %v728, %v775
      %v805 = vadd.f32 %v729, %v779
      %v806 = vadd.f32 %v730, %v775
      %v807 = vadd.f32 %v731, %v779
      %v808 = vadd.f32 %v732, %v775
      %v809 = vadd.f32 %v733, %v779
      %v810 = vadd.f32 %v734, %v775
      %v811 = vadd.f32 %v735, %v779
      %v812 = vadd.f32 %v736, %v775
      %v813 = vadd.f32 %v737, %v779
      %v814 = vadd.f32 %v738, %v775
      %v815 = vadd.f32 %v739, %v779
      %v816 = vadd.f32 %v740, %v775
      %v817 = vadd.f32 %v741, %v779
      %v818 = vadd.f32 %v742, %v775
      %v819 = vadd.f32 %v743, %v779
      %v820 = vadd.f32 %v744, %v775
      %v821 = vadd.f32 %v745, %v779
      %v822 = vadd.f32 %v746, %v775
      %v823 = vadd.f32 %v747, %v779
      %v824 = vadd.f32 %v748, %v775
      %v825 = vadd.f32 %v749, %v779
      %v826 = vadd.f32 %v750, %v775
      %v827 = vadd.f32 %v751, %v779
      %v828 = vadd.f32 %v752, %v775
      %v829 = vadd.f32 %v753, %v779
      %v830 = vadd.f32 %v754, %v775
      %v831 = vadd.f32 %v755, %v779
      %v832 = vadd.f32 %v756, %v775
      %v833 = vadd.f32 %v757, %v779
      %v834 = vadd.f32 %v758, %v775
      %v835 = vadd.f32 %v759, %v779
      %v836 = vadd.f32 %v760, %v775
      %v837 = vadd.f32 %v761, %v779
      %v838 = vadd.f32 %v762, %v775
      %v839 = vadd.f32 %v763, %v779
      %v840 = vadd.f32 %v764, %v775
      %v841 = vadd.f32 %v765, %v779
      %v842 = vadd.f32 %v766, %v775
      %v843 = vadd.f32 %v767, %v779
      %v844 = vadd.f32 %v768, %v775
      %v845 = vadd.f32 %v769, %v779
      %846 = vst [vmem:[%s3] sm:$0xff] %v782
      %847 = vst.msk [vmem:[%s3 + $0x8] sm:$0xff] %vm221, %v783
      %848 = vst [vmem:[%s3 + $0x10] sm:$0xff] %v784
      %849 = vst.msk [vmem:[%s3 + $0x18] sm:$0xff] %vm221, %v785
      %850 = vst [vmem:[%s3 + $0x20] sm:$0xff] %v786
      %851 = vst.msk [vmem:[%s3 + $0x28] sm:$0xff] %vm221, %v787
      %852 = vst [vmem:[%s3 + $0x30] sm:$0xff] %v788
      %853 = vst.msk [vmem:[%s3 + $0x38] sm:$0xff] %vm221, %v789
      %854 = vst [vmem:[%s3 + $0x40] sm:$0xff] %v790
      %855 = vst.msk [vmem:[%s3 + $0x48] sm:$0xff] %vm221, %v791
      %856 = vst [vmem:[%s3 + $0x50] sm:$0xff] %v792
      %857 = vst.msk [vmem:[%s3 + $0x58] sm:$0xff] %vm221, %v793
      %858 = vst [vmem:[%s3 + $0x60] sm:$0xff] %v794
      %859 = vst.msk [vmem:[%s3 + $0x68] sm:$0xff] %vm221, %v795
      %860 = vst [vmem:[%s3 + $0x70] sm:$0xff] %v796
      %861 = vst.msk [vmem:[%s3 + $0x78] sm:$0xff] %vm221, %v797
      %862 = vst [vmem:[%s3 + $0x80] sm:$0xff] %v798
      %863 = vst.msk [vmem:[%s3 + $0x88] sm:$0xff] %vm221, %v799
      %864 = vst [vmem:[%s3 + $0x90] sm:$0xff] %v800
      %865 = vst.msk [vmem:[%s3 + $0x98] sm:$0xff] %vm221, %v801
      %866 = vst [vmem:[%s3 + $0xa0] sm:$0xff] %v802
      %867 = vst.msk [vmem:[%s3 + $0xa8] sm:$0xff] %vm221, %v803
      %868 = vst [vmem:[%s3 + $0xb0] sm:$0xff] %v804
      %869 = vst.msk [vmem:[%s3 + $0xb8] sm:$0xff] %vm221, %v805
      %870 = vst [vmem:[%s3 + $0xc0] sm:$0xff] %v806
      %871 = vst.msk [vmem:[%s3 + $0xc8] sm:$0xff] %vm221, %v807
      %872 = vst [vmem:[%s3 + $0xd0] sm:$0xff] %v808
      %873 = vst.msk [vmem:[%s3 + $0xd8] sm:$0xff] %vm221, %v809
      %874 = vst [vmem:[%s3 + $0xe0] sm:$0xff] %v810
      %875 = vst.msk [vmem:[%s3 + $0xe8] sm:$0xff] %vm221, %v811
      %876 = vst [vmem:[%s3 + $0xf0] sm:$0xff] %v812
      %877 = vst.msk [vmem:[%s3 + $0xf8] sm:$0xff] %vm221, %v813
      %878 = vst [vmem:[%s3 + $0x100] sm:$0xff] %v814
      %879 = vst.msk [vmem:[%s3 + $0x108] sm:$0xff] %vm221, %v815
      %880 = vst [vmem:[%s3 + $0x110] sm:$0xff] %v816
      %881 = vst.msk [vmem:[%s3 + $0x118] sm:$0xff] %vm221, %v817
      %882 = vst [vmem:[%s3 + $0x120] sm:$0xff] %v818
      %883 = vst.msk [vmem:[%s3 + $0x128] sm:$0xff] %vm221, %v819
      %884 = vst [vmem:[%s3 + $0x130] sm:$0xff] %v820
      %885 = vst.msk [vmem:[%s3 + $0x138] sm:$0xff] %vm221, %v821
      %886 = vst [vmem:[%s3 + $0x140] sm:$0xff] %v822
      %887 = vst.msk [vmem:[%s3 + $0x148] sm:$0xff] %vm221, %v823
      %888 = vst [vmem:[%s3 + $0x150] sm:$0xff] %v824
      %889 = vst.msk [vmem:[%s3 + $0x158] sm:$0xff] %vm221, %v825
      %890 = vst [vmem:[%s3 + $0x160] sm:$0xff] %v826
      %891 = vst.msk [vmem:[%s3 + $0x168] sm:$0xff] %vm221, %v827
      %892 = vst [vmem:[%s3 + $0x170] sm:$0xff] %v828
      %893 = vst.msk [vmem:[%s3 + $0x178] sm:$0xff] %vm221, %v829
      %894 = vst [vmem:[%s3 + $0x180] sm:$0xff] %v830
      %895 = vst.msk [vmem:[%s3 + $0x188] sm:$0xff] %vm221, %v831
      %896 = vst [vmem:[%s3 + $0x190] sm:$0xff] %v832
      %897 = vst.msk [vmem:[%s3 + $0x198] sm:$0xff] %vm221, %v833
      %898 = vst [vmem:[%s3 + $0x1a0] sm:$0xff] %v834
      %899 = vst.msk [vmem:[%s3 + $0x1a8] sm:$0xff] %vm221, %v835
      %900 = vst [vmem:[%s3 + $0x1b0] sm:$0xff] %v836
      %901 = vst.msk [vmem:[%s3 + $0x1b8] sm:$0xff] %vm221, %v837
      %902 = vst [vmem:[%s3 + $0x1c0] sm:$0xff] %v838
      %903 = vst.msk [vmem:[%s3 + $0x1c8] sm:$0xff] %vm221, %v839
      %904 = vst [vmem:[%s3 + $0x1d0] sm:$0xff] %v840
      %905 = vst.msk [vmem:[%s3 + $0x1d8] sm:$0xff] %vm221, %v841
      %906 = vst [vmem:[%s3 + $0x1e0] sm:$0xff] %v842
      %907 = vst.msk [vmem:[%s3 + $0x1e8] sm:$0xff] %vm221, %v843
      %908 = vst [vmem:[%s3 + $0x1f0] sm:$0xff] %v844
      %909 = vst.msk [vmem:[%s3 + $0x1f8] sm:$0xff] %vm221, %v845
    $region29: #{multihead_self_attention.3} parent=1 // pred_fallthru
      _
    // Predicated region
    $region30: #{multihead_self_attention.3} parent=1 // pred_check
      _
    $region31: #{multihead_self_attention.3} parent=1 // pred_check_branch
      %911 = sbr.rel (0) target = $region33
    $region32: #{multihead_self_attention.3} parent=1 // pred_region
      _
    $region33: #{multihead_self_attention.3} parent=1 // pred_fallthru
      _
    // Predicated region
    $region34: #{multihead_self_attention.3} parent=1 // pred_check
      _
    $region35: #{multihead_self_attention.3} parent=1 // pred_check_branch
      %913 = sbr.rel (0) target = $region37
    $region36: #{multihead_self_attention.3} parent=1 // pred_region
      _
    $region37: #{multihead_self_attention.3} parent=1 // pred_fallthru
      _
    %914 = vsyncpa [#allocation4], 1
    %915 = vsyncpa [#allocation6], 1

// kernel: multihead_self_attention.4
$region0: #{multihead_self_attention.4}
  #allocation0 [shape = 'u32[]', space=smem, size = 0x4, offset = 0x4, fixed_abs, tag = 'smem constant byte address 0x4 - core index']
  #allocation1 [shape = 'u32[144,128]{1,0:T(1,128)}', space=vmem, size = 0x12000, scoped, tag = 'internal scratch']
  #allocation2 [shape = 'f32[128,64]{1,0:T(8,128)}', space=vmem, size = 0x10000, scoped, tag = 'scratch operand']
  %s0 = inlined_call_operand.vmem [shape: f32[128,2,3,4,16], index: 0, kind: input, shape index: {}, may-alias: {0,1,2}]
  %s1 = inlined_call_operand.vmem [shape: f32[128,2,3,4,16], index: 1, kind: input, shape index: {}, may-alias: {0,1,2}]
  %s2 = inlined_call_operand.vmem [shape: f32[128,2,3,4,16], index: 2, kind: input, shape index: {}, may-alias: {0,1,2}]
  %s3 = inlined_call_operand.vmem [shape: f32[2,128,64], index: 3, kind: output, shape index: {0}]
  %s4 = inlined_call_operand.hbm [shape: f32[2,128,128], index: 4, kind: output, shape index: {1}]
  %5 = xla_tuple %s3, %s4
  %s6 = sld [smem:[#allocation0]]
  $region176: #{multihead_self_attention.4} parent=0
    _
  %s8 = ssub.s32 1, %s6
  %s9 = scalar_select 0, %s8, %s6
  $region1: #{multihead_self_attention.4} parent=0
    #allocation3 [shape = 'u8[524288]{0}', space=vmem, size = 0x80000, scoped, tag = 'input window, operand 0']
    #allocation4 [shape = 'u8[524288]{0}', space=vmem, size = 0x80000, scoped, tag = 'input window, operand 1']
    #allocation5 [shape = 'u8[524288]{0}', space=vmem, size = 0x80000, scoped, tag = 'input window, operand 2']
    #allocation6 [shape = 'u8[131072]{0}', space=vmem, size = 0x20000, scoped, tag = 'output window, operand 1']
    #allocation7 [shape = 's32[2]{0}', space=sflag, size = 0x8, scoped, tag = 'scoped memory for multihead_self_attention.4']
    %10 = vsyncpa [#allocation7], 0
    %s11 = scalar_lea.sflag [#allocation7], 1
    %12 = vsyncpa %s11, 0
    loop: start=0, step=1, limit=4
    $region2: #{multihead_self_attention.4} parent=1 // loop_pre_header
      _
    $region3: #{multihead_self_attention.4} parent=1 // loop_header
      %s14 = sphi 0, %s18
      %p15 = scmp.ge.s32.totalorder %s14, 4
      %s21 = sphi 0, %s33
      %s22 = sphi 0, %s29
      %s23 = sphi 0, %s21
      %s24 = sphi 0, %s22
      %s25 = sphi 0, %s23
      %s26 = sphi 0, %s24
      %s38 = sphi 0, %s40
      %s41 = sphi 0, %s38
      %s42 = sphi 0, %s41
      %s58 = sphi 0, %s42
      %s64 = sphi 0, %s66
      %s67 = sphi 0, %s64
      %s68 = sphi 0, %s67
      %s84 = sphi 0, %s68
      %s90 = sphi 0, %s92
      %s93 = sphi 0, %s90
      %s94 = sphi 0, %s93
      %s110 = sphi 0, %s94
      %s118 = sphi 0, %s120
      %s121 = sphi 0, %s118
      %s122 = sphi 0, %s121
      %s138 = sphi 0, %s122
      %s146 = sphi 0, %s148
      %s149 = sphi 0, %s146
      %s150 = sphi 0, %s149
      %s166 = sphi 0, %s150
    $region4: #{multihead_self_attention.4} parent=1 // loop_header_branch
      %17 = sbr.rel (%p15) target = $region8
    $region5: #{multihead_self_attention.4} parent=1 // loop_body
      %s19 = ssub.s32 %s14, 1
      %s20 = ssub.s32 %s14, 2
      %s27 = sadd.s32 1, %s22
      %p28 = scmp.ge.s32.totalorder %s27, 1
      %s29 = scalar_select %p28, 0, %s27
      %s30 = sadd.s32 1, %s21
      %s31 = scalar_select %p28, %s30, %s21
      %p32 = scmp.ge.s32.totalorder %s31, 2
      %s33 = scalar_select %p32, 0, %s31
      %s34 = ssub.s32 %s22, %s29
      %s35 = ssub.s32 %s21, %s33
      %s36 = sor.u32 %s34, %s35
      %p37 = scmp.eq.s32.totalorder %s36, 0
      %s39 = sadd.s32 %s38, 1
      %s40 = scalar_select %p37, %s38, %s39
      %p43 = pneg %p37
      %p44 = scmp.eq.s32.totalorder %s14, 1
      %p45 = por %p43, %p44
      %p46 = scmp.ne.s32.totalorder %s38, %s41
      %p47 = scmp.eq.s32.totalorder %s14, 0
      %p48 = por %p46, %p47
      %p49 = scmp.ne.s32.totalorder %s38, %s41
      %p50 = scmp.eq.s32.totalorder %s19, 1
      %p51 = por %p49, %p50
      %p52 = scmp.ne.s32.totalorder %s41, %s42
      %p53 = scmp.eq.s32.totalorder %s19, 0
      %p54 = por %p52, %p53
      %p55 = scmp.ne.s32.totalorder %s41, %s42
      %p56 = scmp.eq.s32.totalorder %s20, 1
      %p57 = por %p55, %p56
      %p59 = scmp.ne.s32.totalorder %s42, %s58
      %p60 = scmp.eq.s32.totalorder %s20, 0
      %p61 = por %p59, %p60
      %s62 = ssub.s32 %s21, %s33
      %p63 = scmp.eq.s32.totalorder %s62, 0
      %s65 = sadd.s32 %s64, 1
      %s66 = scalar_select %p63, %s64, %s65
      %p69 = pneg %p63
      %p70 = scmp.eq.s32.totalorder %s14, 1
      %p71 = por %p69, %p70
      %p72 = scmp.ne.s32.totalorder %s64, %s67
      %p73 = scmp.eq.s32.totalorder %s14, 0
      %p74 = por %p72, %p73
      %p75 = scmp.ne.s32.totalorder %s64, %s67
      %p76 = scmp.eq.s32.totalorder %s19, 1
      %p77 = por %p75, %p76
      %p78 = scmp.ne.s32.totalorder %s67, %s68
      %p79 = scmp.eq.s32.totalorder %s19, 0
      %p80 = por %p78, %p79
      %p81 = scmp.ne.s32.totalorder %s67, %s68
      %p82 = scmp.eq.s32.totalorder %s20, 1
      %p83 = por %p81, %p82
      %p85 = scmp.ne.s32.totalorder %s68, %s84
      %p86 = scmp.eq.s32.totalorder %s20, 0
      %p87 = por %p85, %p86
      %s88 = ssub.s32 %s21, %s33
      %p89 = scmp.eq.s32.totalorder %s88, 0
      %s91 = sadd.s32 %s90, 1
      %s92 = scalar_select %p89, %s90, %s91
      %p95 = pneg %p89
      %p96 = scmp.eq.s32.totalorder %s14, 1
      %p97 = por %p95, %p96
      %p98 = scmp.ne.s32.totalorder %s90, %s93
      %p99 = scmp.eq.s32.totalorder %s14, 0
      %p100 = por %p98, %p99
      %p101 = scmp.ne.s32.totalorder %s90, %s93
      %p102 = scmp.eq.s32.totalorder %s19, 1
      %p103 = por %p101, %p102
      %p104 = scmp.ne.s32.totalorder %s93, %s94
      %p105 = scmp.eq.s32.totalorder %s19, 0
      %p106 = por %p104, %p105
      %p107 = scmp.ne.s32.totalorder %s93, %s94
      %p108 = scmp.eq.s32.totalorder %s20, 1
      %p109 = por %p107, %p108
      %p111 = scmp.ne.s32.totalorder %s94, %s110
      %p112 = scmp.eq.s32.totalorder %s20, 0
      %p113 = por %p111, %p112
      %s114 = ssub.s32 %s21, %s33
      %s115 = ssub.s32 %s22, %s29
      %s116 = sor.u32 %s114, %s115
      %p117 = scmp.eq.s32.totalorder %s116, 0
      %s119 = sadd.s32 %s118, 1
      %s120 = scalar_select %p117, %s118, %s119
      %p123 = pneg %p117
      %p124 = scmp.eq.s32.totalorder %s14, 1
      %p125 = por %p123, %p124
      %p126 = scmp.ne.s32.totalorder %s118, %s121
      %p127 = scmp.eq.s32.totalorder %s14, 0
      %p128 = por %p126, %p127
      %p129 = scmp.ne.s32.totalorder %s118, %s121
      %p130 = scmp.eq.s32.totalorder %s19, 1
      %p131 = por %p129, %p130
      %p132 = scmp.ne.s32.totalorder %s121, %s122
      %p133 = scmp.eq.s32.totalorder %s19, 0
      %p134 = por %p132, %p133
      %p135 = scmp.ne.s32.totalorder %s121, %s122
      %p136 = scmp.eq.s32.totalorder %s20, 1
      %p137 = por %p135, %p136
      %p139 = scmp.ne.s32.totalorder %s122, %s138
      %p140 = scmp.eq.s32.totalorder %s20, 0
      %p141 = por %p139, %p140
      %s142 = ssub.s32 %s21, %s33
      %s143 = ssub.s32 %s22, %s29
      %s144 = sor.u32 %s142, %s143
      %p145 = scmp.eq.s32.totalorder %s144, 0
      %s147 = sadd.s32 %s146, 1
      %s148 = scalar_select %p145, %s146, %s147
      %p151 = pneg %p145
      %p152 = scmp.eq.s32.totalorder %s14, 1
      %p153 = por %p151, %p152
      %p154 = scmp.ne.s32.totalorder %s146, %s149
      %p155 = scmp.eq.s32.totalorder %s14, 0
      %p156 = por %p154, %p155
      %p157 = scmp.ne.s32.totalorder %s146, %s149
      %p158 = scmp.eq.s32.totalorder %s19, 1
      %p159 = por %p157, %p158
      %p160 = scmp.ne.s32.totalorder %s149, %s150
      %p161 = scmp.eq.s32.totalorder %s19, 0
      %p162 = por %p160, %p161
      %p163 = scmp.ne.s32.totalorder %s149, %s150
      %p164 = scmp.eq.s32.totalorder %s20, 1
      %p165 = por %p163, %p164
      %p167 = scmp.ne.s32.totalorder %s150, %s166
      %p168 = scmp.eq.s32.totalorder %s20, 0
      %p169 = por %p167, %p168
      %p170 = scmp.le.s32.totalorder 1, %s14
      %p171 = scmp.lt.s32.totalorder %s14, 3
      %p172 = pnand %p170, %p171
      %p173 = pneg %p172
      // Predicated region
      $region9: #{multihead_self_attention.4} parent=5 // pred_check
        _
      $region10: #{multihead_self_attention.4} parent=5 // pred_check_branch
        %175 = sbr.rel (%p172) target = $region12
      $region11: #{multihead_self_attention.4} parent=5 // pred_region
        %s176 = ssub.s32 %s14, 1
      $region12: #{multihead_self_attention.4} parent=5 // pred_fallthru
        _
      %p177 = scmp.lt.s32.totalorder %s14, 2
      // Predicated region
      $region13: #{multihead_self_attention.4} parent=5 // pred_check
        %p178 = pneg %p177
      $region14: #{multihead_self_attention.4} parent=5 // pred_check_branch
        %180 = sbr.rel (%p178) target = $region16
      $region15: #{multihead_self_attention.4} parent=5 // pred_region
        // Predicated region
        $region17: #{multihead_self_attention.4} parent=15 // pred_check
          %p181 = pneg %p48
        $region18: #{multihead_self_attention.4} parent=15 // pred_check_branch
          %183 = sbr.rel (%p181) target = $region20
        $region19: #{multihead_self_attention.4} parent=15 // pred_region
          %s184 = sand.u32 %s38, 1
          %s185 = sand.u32 %s38, 1
          %s186 = smul.addr %s185, 512
          %s187 = scalar_lea.vmem [#allocation3], %s186
          %s188 = smul.u32 128, %s22
          %s189 = smul.addr %s21, 3
          %s190 = smul.addr %s188, 6
          %s191 = sadd.s32 %s189, %s190
          %s192 = smul.addr %s191, 4
          %s193 = scalar_lea.vmem %s0, %s192
          // Predicated region
          $region21: #{multihead_self_attention.4} parent=19 // pred_check
            _
          $region22: #{multihead_self_attention.4} parent=19 // pred_check_branch
            %195 = sbr.rel (0) target = $region24
          $region23: #{multihead_self_attention.4} parent=19 // pred_region
            // Predicated region
            $region25: #{multihead_self_attention.4} parent=23 // pred_check
              _
            $region26: #{multihead_self_attention.4} parent=23 // pred_check_branch
              %197 = sbr.rel target = $region28
            $region27: #{multihead_self_attention.4} parent=23 // pred_region
              // Predicated region
              $region40: #{multihead_self_attention.4} parent=27 // pred_check
                _
              $region41: #{multihead_self_attention.4} parent=27 // pred_check_branch
                %466 = sbr.rel (0) target = $region43
              $region42: #{multihead_self_attention.4} parent=27 // pred_region
                loop: start=0, step=1, limit=1
                $region44: #{multihead_self_attention.4} parent=42 // loop_pre_header
                  _
                $region45: #{multihead_self_attention.4} parent=42 // loop_header
                  %s468 = sphi 0, %s472
                  %p469 = scmp.ge.s32.totalorder %s468, 1
                  %s473 = sphi %s193, %s193
                  %s474 = sphi %s187, %s187
                $region46: #{multihead_self_attention.4} parent=42 // loop_header_branch
                  %471 = sbr.rel (%p469) target = $region50
                $region47: #{multihead_self_attention.4} parent=42 // loop_body
                  _
                $region48: #{multihead_self_attention.4} parent=42 // loop_footer
                  %s472 = sadd.s32 1, %s468
                $region49: #{multihead_self_attention.4} parent=42 // loop_footer_branch
                  %467 = sbr.rel target = $region45
                $region50: #{multihead_self_attention.4} parent=42 // loop_exit
                  _
                loop: start=0, step=1, limit=1
                $region51: #{multihead_self_attention.4} parent=42 // loop_pre_header
                  _
                $region52: #{multihead_self_attention.4} parent=42 // loop_header
                  %s477 = sphi 0, %s481
                  %p478 = scmp.ge.s32.totalorder %s477, 1
                  %s482 = sphi %s193, %s193
                  %s483 = sphi %s187, %s187
                $region53: #{multihead_self_attention.4} parent=42 // loop_header_branch
                  %480 = sbr.rel (%p478) target = $region57
                $region54: #{multihead_self_attention.4} parent=42 // loop_body
                  %v484 = vld [vmem:[%s482] sm:$0xf]
                  %485 = vst [vmem:[%s483] sm:$0xf] %v484
                  %v486 = vld [vmem:[%s482 + $0x18] sm:$0xf]
                  %487 = vst [vmem:[%s483 + $0x4] sm:$0xf] %v486
                  %v488 = vld [vmem:[%s482 + $0x30] sm:$0xf]
                  %489 = vst [vmem:[%s483 + $0x8] sm:$0xf] %v488
                  %v490 = vld [vmem:[%s482 + $0x48] sm:$0xf]
                  %491 = vst [vmem:[%s483 + $0xc] sm:$0xf] %v490
                  %v492 = vld [vmem:[%s482 + $0x60] sm:$0xf]
                  %493 = vst [vmem:[%s483 + $0x10] sm:$0xf] %v492
                  %v494 = vld [vmem:[%s482 + $0x78] sm:$0xf]
                  %495 = vst [vmem:[%s483 + $0x14] sm:$0xf] %v494
                  %v496 = vld [vmem:[%s482 + $0x90] sm:$0xf]
                  %497 = vst [vmem:[%s483 + $0x18] sm:$0xf] %v496
                  %v498 = vld [vmem:[%s482 + $0xa8] sm:$0xf]
                  %499 = vst [vmem:[%s483 + $0x1c] sm:$0xf] %v498
                  %v500 = vld [vmem:[%s482 + $0xc0] sm:$0xf]
                  %501 = vst [vmem:[%s483 + $0x20] sm:$0xf] %v500
                  %v502 = vld [vmem:[%s482 + $0xd8] sm:$0xf]
                  %503 = vst [vmem:[%s483 + $0x24] sm:$0xf] %v502
                  %v504 = vld [vmem:[%s482 + $0xf0] sm:$0xf]
                  %505 = vst [vmem:[%s483 + $0x28] sm:$0xf] %v504
                  %v506 = vld [vmem:[%s482 + $0x108] sm:$0xf]
                  %507 = vst [vmem:[%s483 + $0x2c] sm:$0xf] %v506
                  %v508 = vld [vmem:[%s482 + $0x120] sm:$0xf]
                  %509 = vst [vmem:[%s483 + $0x30] sm:$0xf] %v508
                  %v510 = vld [vmem:[%s482 + $0x138] sm:$0xf]
                  %511 = vst [vmem:[%s483 + $0x34] sm:$0xf] %v510
                  %v512 = vld [vmem:[%s482 + $0x150] sm:$0xf]
                  %513 = vst [vmem:[%s483 + $0x38] sm:$0xf] %v512
                  %v514 = vld [vmem:[%s482 + $0x168] sm:$0xf]
                  %515 = vst [vmem:[%s483 + $0x3c] sm:$0xf] %v514
                  %v516 = vld [vmem:[%s482 + $0x180] sm:$0xf]
                  %517 = vst [vmem:[%s483 + $0x40] sm:$0xf] %v516
                  %v518 = vld [vmem:[%s482 + $0x198] sm:$0xf]
                  %519 = vst [vmem:[%s483 + $0x44] sm:$0xf] %v518
                  %v520 = vld [vmem:[%s482 + $0x1b0] sm:$0xf]
                  %521 = vst [vmem:[%s483 + $0x48] sm:$0xf] %v520
                  %v522 = vld [vmem:[%s482 + $0x1c8] sm:$0xf]
                  %523 = vst [vmem:[%s483 + $0x4c] sm:$0xf] %v522
                  %v524 = vld [vmem:[%s482 + $0x1e0] sm:$0xf]
                  %525 = vst [vmem:[%s483 + $0x50] sm:$0xf] %v524
                  %v526 = vld [vmem:[%s482 + $0x1f8] sm:$0xf]
                  %527 = vst [vmem:[%s483 + $0x54] sm:$0xf] %v526
                  %v528 = vld [vmem:[%s482 + $0x210] sm:$0xf]
                  %529 = vst [vmem:[%s483 + $0x58] sm:$0xf] %v528
                  %v530 = vld [vmem:[%s482 + $0x228] sm:$0xf]
                  %531 = vst [vmem:[%s483 + $0x5c] sm:$0xf] %v530
                  %v532 = vld [vmem:[%s482 + $0x240] sm:$0xf]
                  %533 = vst [vmem:[%s483 + $0x60] sm:$0xf] %v532
                  %v534 = vld [vmem:[%s482 + $0x258] sm:$0xf]
                  %535 = vst [vmem:[%s483 + $0x64] sm:$0xf] %v534
                  %v536 = vld [vmem:[%s482 + $0x270] sm:$0xf]
                  %537 = vst [vmem:[%s483 + $0x68] sm:$0xf] %v536
                  %v538 = vld [vmem:[%s482 + $0x288] sm:$0xf]
                  %539 = vst [vmem:[%s483 + $0x6c] sm:$0xf] %v538
                  %v540 = vld [vmem:[%s482 + $0x2a0] sm:$0xf]
                  %541 = vst [vmem:[%s483 + $0x70] sm:$0xf] %v540
                  %v542 = vld [vmem:[%s482 + $0x2b8] sm:$0xf]
                  %543 = vst [vmem:[%s483 + $0x74] sm:$0xf] %v542
                  %v544 = vld [vmem:[%s482 + $0x2d0] sm:$0xf]
                  %545 = vst [vmem:[%s483 + $0x78] sm:$0xf] %v544
                  %v546 = vld [vmem:[%s482 + $0x2e8] sm:$0xf]
                  %547 = vst [vmem:[%s483 + $0x7c] sm:$0xf] %v546
                  %v548 = vld [vmem:[%s482 + $0x300] sm:$0xf]
                  %549 = vst [vmem:[%s483 + $0x80] sm:$0xf] %v548
                  %v550 = vld [vmem:[%s482 + $0x318] sm:$0xf]
                  %551 = vst [vmem:[%s483 + $0x84] sm:$0xf] %v550
                  %v552 = vld [vmem:[%s482 + $0x330] sm:$0xf]
                  %553 = vst [vmem:[%s483 + $0x88] sm:$0xf] %v552
                  %v554 = vld [vmem:[%s482 + $0x348] sm:$0xf]
                  %555 = vst [vmem:[%s483 + $0x8c] sm:$0xf] %v554
                  %v556 = vld [vmem:[%s482 + $0x360] sm:$0xf]
                  %557 = vst [vmem:[%s483 + $0x90] sm:$0xf] %v556
                  %v558 = vld [vmem:[%s482 + $0x378] sm:$0xf]
                  %559 = vst [vmem:[%s483 + $0x94] sm:$0xf] %v558
                  %v560 = vld [vmem:[%s482 + $0x390] sm:$0xf]
                  %561 = vst [vmem:[%s483 + $0x98] sm:$0xf] %v560
                  %v562 = vld [vmem:[%s482 + $0x3a8] sm:$0xf]
                  %563 = vst [vmem:[%s483 + $0x9c] sm:$0xf] %v562
                  %v564 = vld [vmem:[%s482 + $0x3c0] sm:$0xf]
                  %565 = vst [vmem:[%s483 + $0xa0] sm:$0xf] %v564
                  %v566 = vld [vmem:[%s482 + $0x3d8] sm:$0xf]
                  %567 = vst [vmem:[%s483 + $0xa4] sm:$0xf] %v566
                  %v568 = vld [vmem:[%s482 + $0x3f0] sm:$0xf]
                  %569 = vst [vmem:[%s483 + $0xa8] sm:$0xf] %v568
                  %v570 = vld [vmem:[%s482 + $0x408] sm:$0xf]
                  %571 = vst [vmem:[%s483 + $0xac] sm:$0xf] %v570
                  %v572 = vld [vmem:[%s482 + $0x420] sm:$0xf]
                  %573 = vst [vmem:[%s483 + $0xb0] sm:$0xf] %v572
                  %v574 = vld [vmem:[%s482 + $0x438] sm:$0xf]
                  %575 = vst [vmem:[%s483 + $0xb4] sm:$0xf] %v574
                  %v576 = vld [vmem:[%s482 + $0x450] sm:$0xf]
                  %577 = vst [vmem:[%s483 + $0xb8] sm:$0xf] %v576
                  %v578 = vld [vmem:[%s482 + $0x468] sm:$0xf]
                  %579 = vst [vmem:[%s483 + $0xbc] sm:$0xf] %v578
                  %v580 = vld [vmem:[%s482 + $0x480] sm:$0xf]
                  %581 = vst [vmem:[%s483 + $0xc0] sm:$0xf] %v580
                  %v582 = vld [vmem:[%s482 + $0x498] sm:$0xf]
                  %583 = vst [vmem:[%s483 + $0xc4] sm:$0xf] %v582
                  %v584 = vld [vmem:[%s482 + $0x4b0] sm:$0xf]
                  %585 = vst [vmem:[%s483 + $0xc8] sm:$0xf] %v584
                  %v586 = vld [vmem:[%s482 + $0x4c8] sm:$0xf]
                  %587 = vst [vmem:[%s483 + $0xcc] sm:$0xf] %v586
                  %v588 = vld [vmem:[%s482 + $0x4e0] sm:$0xf]
                  %589 = vst [vmem:[%s483 + $0xd0] sm:$0xf] %v588
                  %v590 = vld [vmem:[%s482 + $0x4f8] sm:$0xf]
                  %591 = vst [vmem:[%s483 + $0xd4] sm:$0xf] %v590
                  %v592 = vld [vmem:[%s482 + $0x510] sm:$0xf]
                  %593 = vst [vmem:[%s483 + $0xd8] sm:$0xf] %v592
                  %v594 = vld [vmem:[%s482 + $0x528] sm:$0xf]
                  %595 = vst [vmem:[%s483 + $0xdc] sm:$0xf] %v594
                  %v596 = vld [vmem:[%s482 + $0x540] sm:$0xf]
                  %597 = vst [vmem:[%s483 + $0xe0] sm:$0xf] %v596
                  %v598 = vld [vmem:[%s482 + $0x558] sm:$0xf]
                  %599 = vst [vmem:[%s483 + $0xe4] sm:$0xf] %v598
                  %v600 = vld [vmem:[%s482 + $0x570] sm:$0xf]
                  %601 = vst [vmem:[%s483 + $0xe8] sm:$0xf] %v600
                  %v602 = vld [vmem:[%s482 + $0x588] sm:$0xf]
                  %603 = vst [vmem:[%s483 + $0xec] sm:$0xf] %v602
                  %v604 = vld [vmem:[%s482 + $0x5a0] sm:$0xf]
                  %605 = vst [vmem:[%s483 + $0xf0] sm:$0xf] %v604
                  %v606 = vld [vmem:[%s482 + $0x5b8] sm:$0xf]
                  %607 = vst [vmem:[%s483 + $0xf4] sm:$0xf] %v606
                  %v608 = vld [vmem:[%s482 + $0x5d0] sm:$0xf]
                  %609 = vst [vmem:[%s483 + $0xf8] sm:$0xf] %v608
                  %v610 = vld [vmem:[%s482 + $0x5e8] sm:$0xf]
                  %611 = vst [vmem:[%s483 + $0xfc] sm:$0xf] %v610
                  %v612 = vld [vmem:[%s482 + $0x600] sm:$0xf]
                  %613 = vst [vmem:[%s483 + $0x100] sm:$0xf] %v612
                  %v614 = vld [vmem:[%s482 + $0x618] sm:$0xf]
                  %615 = vst [vmem:[%s483 + $0x104] sm:$0xf] %v614
                  %v616 = vld [vmem:[%s482 + $0x630] sm:$0xf]
                  %617 = vst [vmem:[%s483 + $0x108] sm:$0xf] %v616
                  %v618 = vld [vmem:[%s482 + $0x648] sm:$0xf]
                  %619 = vst [vmem:[%s483 + $0x10c] sm:$0xf] %v618
                  %v620 = vld [vmem:[%s482 + $0x660] sm:$0xf]
                  %621 = vst [vmem:[%s483 + $0x110] sm:$0xf] %v620
                  %v622 = vld [vmem:[%s482 + $0x678] sm:$0xf]
                  %623 = vst [vmem:[%s483 + $0x114] sm:$0xf] %v622
                  %v624 = vld [vmem:[%s482 + $0x690] sm:$0xf]
                  %625 = vst [vmem:[%s483 + $0x118] sm:$0xf] %v624
                  %v626 = vld [vmem:[%s482 + $0x6a8] sm:$0xf]
                  %627 = vst [vmem:[%s483 + $0x11c] sm:$0xf] %v626
                  %v628 = vld [vmem:[%s482 + $0x6c0] sm:$0xf]
                  %629 = vst [vmem:[%s483 + $0x120] sm:$0xf] %v628
                  %v630 = vld [vmem:[%s482 + $0x6d8] sm:$0xf]
                  %631 = vst [vmem:[%s483 + $0x124] sm:$0xf] %v630
                  %v632 = vld [vmem:[%s482 + $0x6f0] sm:$0xf]
                  %633 = vst [vmem:[%s483 + $0x128] sm:$0xf] %v632
                  %v634 = vld [vmem:[%s482 + $0x708] sm:$0xf]
                  %635 = vst [vmem:[%s483 + $0x12c] sm:$0xf] %v634
                  %v636 = vld [vmem:[%s482 + $0x720] sm:$0xf]
                  %637 = vst [vmem:[%s483 + $0x130] sm:$0xf] %v636
                  %v638 = vld [vmem:[%s482 + $0x738] sm:$0xf]
                  %639 = vst [vmem:[%s483 + $0x134] sm:$0xf] %v638
                  %v640 = vld [vmem:[%s482 + $0x750] sm:$0xf]
                  %641 = vst [vmem:[%s483 + $0x138] sm:$0xf] %v640
                  %v642 = vld [vmem:[%s482 + $0x768] sm:$0xf]
                  %643 = vst [vmem:[%s483 + $0x13c] sm:$0xf] %v642
                  %v644 = vld [vmem:[%s482 + $0x780] sm:$0xf]
                  %645 = vst [vmem:[%s483 + $0x140] sm:$0xf] %v644
                  %v646 = vld [vmem:[%s482 + $0x798] sm:$0xf]
                  %647 = vst [vmem:[%s483 + $0x144] sm:$0xf] %v646
                  %v648 = vld [vmem:[%s482 + $0x7b0] sm:$0xf]
                  %649 = vst [vmem:[%s483 + $0x148] sm:$0xf] %v648
                  %v650 = vld [vmem:[%s482 + $0x7c8] sm:$0xf]
                  %651 = vst [vmem:[%s483 + $0x14c] sm:$0xf] %v650
                  %v652 = vld [vmem:[%s482 + $0x7e0] sm:$0xf]
                  %653 = vst [vmem:[%s483 + $0x150] sm:$0xf] %v652
                  %v654 = vld [vmem:[%s482 + $0x7f8] sm:$0xf]
                  %655 = vst [vmem:[%s483 + $0x154] sm:$0xf] %v654
                  %v656 = vld [vmem:[%s482 + $0x810] sm:$0xf]
                  %657 = vst [vmem:[%s483 + $0x158] sm:$0xf] %v656
                  %v658 = vld [vmem:[%s482 + $0x828] sm:$0xf]
                  %659 = vst [vmem:[%s483 + $0x15c] sm:$0xf] %v658
                  %v660 = vld [vmem:[%s482 + $0x840] sm:$0xf]
                  %661 = vst [vmem:[%s483 + $0x160] sm:$0xf] %v660
                  %v662 = vld [vmem:[%s482 + $0x858] sm:$0xf]
                  %663 = vst [vmem:[%s483 + $0x164] sm:$0xf] %v662
                  %v664 = vld [vmem:[%s482 + $0x870] sm:$0xf]
                  %665 = vst [vmem:[%s483 + $0x168] sm:$0xf] %v664
                  %v666 = vld [vmem:[%s482 + $0x888] sm:$0xf]
                  %667 = vst [vmem:[%s483 + $0x16c] sm:$0xf] %v666
                  %v668 = vld [vmem:[%s482 + $0x8a0] sm:$0xf]
                  %669 = vst [vmem:[%s483 + $0x170] sm:$0xf] %v668
                  %v670 = vld [vmem:[%s482 + $0x8b8] sm:$0xf]
                  %671 = vst [vmem:[%s483 + $0x174] sm:$0xf] %v670
                  %v672 = vld [vmem:[%s482 + $0x8d0] sm:$0xf]
                  %673 = vst [vmem:[%s483 + $0x178] sm:$0xf] %v672
                  %v674 = vld [vmem:[%s482 + $0x8e8] sm:$0xf]
                  %675 = vst [vmem:[%s483 + $0x17c] sm:$0xf] %v674
                  %v676 = vld [vmem:[%s482 + $0x900] sm:$0xf]
                  %677 = vst [vmem:[%s483 + $0x180] sm:$0xf] %v676
                  %v678 = vld [vmem:[%s482 + $0x918] sm:$0xf]
                  %679 = vst [vmem:[%s483 + $0x184] sm:$0xf] %v678
                  %v680 = vld [vmem:[%s482 + $0x930] sm:$0xf]
                  %681 = vst [vmem:[%s483 + $0x188] sm:$0xf] %v680
                  %v682 = vld [vmem:[%s482 + $0x948] sm:$0xf]
                  %683 = vst [vmem:[%s483 + $0x18c] sm:$0xf] %v682
                  %v684 = vld [vmem:[%s482 + $0x960] sm:$0xf]
                  %685 = vst [vmem:[%s483 + $0x190] sm:$0xf] %v684
                  %v686 = vld [vmem:[%s482 + $0x978] sm:$0xf]
                  %687 = vst [vmem:[%s483 + $0x194] sm:$0xf] %v686
                  %v688 = vld [vmem:[%s482 + $0x990] sm:$0xf]
                  %689 = vst [vmem:[%s483 + $0x198] sm:$0xf] %v688
                  %v690 = vld [vmem:[%s482 + $0x9a8] sm:$0xf]
                  %691 = vst [vmem:[%s483 + $0x19c] sm:$0xf] %v690
                  %v692 = vld [vmem:[%s482 + $0x9c0] sm:$0xf]
                  %693 = vst [vmem:[%s483 + $0x1a0] sm:$0xf] %v692
                  %v694 = vld [vmem:[%s482 + $0x9d8] sm:$0xf]
                  %695 = vst [vmem:[%s483 + $0x1a4] sm:$0xf] %v694
                  %v696 = vld [vmem:[%s482 + $0x9f0] sm:$0xf]
                  %697 = vst [vmem:[%s483 + $0x1a8] sm:$0xf] %v696
                  %v698 = vld [vmem:[%s482 + $0xa08] sm:$0xf]
                  %699 = vst [vmem:[%s483 + $0x1ac] sm:$0xf] %v698
                  %v700 = vld [vmem:[%s482 + $0xa20] sm:$0xf]
                  %701 = vst [vmem:[%s483 + $0x1b0] sm:$0xf] %v700
                  %v702 = vld [vmem:[%s482 + $0xa38] sm:$0xf]
                  %703 = vst [vmem:[%s483 + $0x1b4] sm:$0xf] %v702
                  %v704 = vld [vmem:[%s482 + $0xa50] sm:$0xf]
                  %705 = vst [vmem:[%s483 + $0x1b8] sm:$0xf] %v704
                  %v706 = vld [vmem:[%s482 + $0xa68] sm:$0xf]
                  %707 = vst [vmem:[%s483 + $0x1bc] sm:$0xf] %v706
                  %v708 = vld [vmem:[%s482 + $0xa80] sm:$0xf]
                  %709 = vst [vmem:[%s483 + $0x1c0] sm:$0xf] %v708
                  %v710 = vld [vmem:[%s482 + $0xa98] sm:$0xf]
                  %711 = vst [vmem:[%s483 + $0x1c4] sm:$0xf] %v710
                  %v712 = vld [vmem:[%s482 + $0xab0] sm:$0xf]
                  %713 = vst [vmem:[%s483 + $0x1c8] sm:$0xf] %v712
                  %v714 = vld [vmem:[%s482 + $0xac8] sm:$0xf]
                  %715 = vst [vmem:[%s483 + $0x1cc] sm:$0xf] %v714
                  %v716 = vld [vmem:[%s482 + $0xae0] sm:$0xf]
                  %717 = vst [vmem:[%s483 + $0x1d0] sm:$0xf] %v716
                  %v718 = vld [vmem:[%s482 + $0xaf8] sm:$0xf]
                  %719 = vst [vmem:[%s483 + $0x1d4] sm:$0xf] %v718
                  %v720 = vld [vmem:[%s482 + $0xb10] sm:$0xf]
                  %721 = vst [vmem:[%s483 + $0x1d8] sm:$0xf] %v720
                  %v722 = vld [vmem:[%s482 + $0xb28] sm:$0xf]
                  %723 = vst [vmem:[%s483 + $0x1dc] sm:$0xf] %v722
                  %v724 = vld [vmem:[%s482 + $0xb40] sm:$0xf]
                  %725 = vst [vmem:[%s483 + $0x1e0] sm:$0xf] %v724
                  %v726 = vld [vmem:[%s482 + $0xb58] sm:$0xf]
                  %727 = vst [vmem:[%s483 + $0x1e4] sm:$0xf] %v726
                  %v728 = vld [vmem:[%s482 + $0xb70] sm:$0xf]
                  %729 = vst [vmem:[%s483 + $0x1e8] sm:$0xf] %v728
                  %v730 = vld [vmem:[%s482 + $0xb88] sm:$0xf]
                  %731 = vst [vmem:[%s483 + $0x1ec] sm:$0xf] %v730
                  %v732 = vld [vmem:[%s482 + $0xba0] sm:$0xf]
                  %733 = vst [vmem:[%s483 + $0x1f0] sm:$0xf] %v732
                  %v734 = vld [vmem:[%s482 + $0xbb8] sm:$0xf]
                  %735 = vst [vmem:[%s483 + $0x1f4] sm:$0xf] %v734
                  %v736 = vld [vmem:[%s482 + $0xbd0] sm:$0xf]
                  %737 = vst [vmem:[%s483 + $0x1f8] sm:$0xf] %v736
                  %v738 = vld [vmem:[%s482 + $0xbe8] sm:$0xf]
                  %739 = vst [vmem:[%s483 + $0x1fc] sm:$0xf] %v738
                $region55: #{multihead_self_attention.4} parent=42 // loop_footer
                  %s481 = sadd.s32 1, %s477
                $region56: #{multihead_self_attention.4} parent=42 // loop_footer_branch
                  %476 = sbr.rel target = $region52
                $region57: #{multihead_self_attention.4} parent=42 // loop_exit
                  _
              $region43: #{multihead_self_attention.4} parent=27 // pred_fallthru
                _
            $region28: #{multihead_self_attention.4} parent=23 // pred_fallthru
              _
            // Predicated region
            $region29: #{multihead_self_attention.4} parent=23 // pred_check
              _
            $region30: #{multihead_self_attention.4} parent=23 // pred_check_branch
              %199 = sbr.rel (0) target = $region32
            $region31: #{multihead_self_attention.4} parent=23 // pred_region
              loop: start=0, step=1, limit=1
              $region33: #{multihead_self_attention.4} parent=31 // loop_pre_header
                _
              $region34: #{multihead_self_attention.4} parent=31 // loop_header
                %s202 = sphi 0, %s206
                %p203 = scmp.ge.s32.totalorder %s202, 1
                %s207 = sphi %s193, %s193
                %s208 = sphi %s187, %s187
              $region35: #{multihead_self_attention.4} parent=31 // loop_header_branch
                %205 = sbr.rel (%p203) target = $region39
              $region36: #{multihead_self_attention.4} parent=31 // loop_body
                %v209 = vld [vmem:[%s207] sm:$0xf]
                %210 = vst [vmem:[%s208] sm:$0xf] %v209
                %v211 = vld [vmem:[%s207 + $0x18] sm:$0xf]
                %212 = vst [vmem:[%s208 + $0x4] sm:$0xf] %v211
                %v213 = vld [vmem:[%s207 + $0x30] sm:$0xf]
                %214 = vst [vmem:[%s208 + $0x8] sm:$0xf] %v213
                %v215 = vld [vmem:[%s207 + $0x48] sm:$0xf]
                %216 = vst [vmem:[%s208 + $0xc] sm:$0xf] %v215
                %v217 = vld [vmem:[%s207 + $0x60] sm:$0xf]
                %218 = vst [vmem:[%s208 + $0x10] sm:$0xf] %v217
                %v219 = vld [vmem:[%s207 + $0x78] sm:$0xf]
                %220 = vst [vmem:[%s208 + $0x14] sm:$0xf] %v219
                %v221 = vld [vmem:[%s207 + $0x90] sm:$0xf]
                %222 = vst [vmem:[%s208 + $0x18] sm:$0xf] %v221
                %v223 = vld [vmem:[%s207 + $0xa8] sm:$0xf]
                %224 = vst [vmem:[%s208 + $0x1c] sm:$0xf] %v223
                %v225 = vld [vmem:[%s207 + $0xc0] sm:$0xf]
                %226 = vst [vmem:[%s208 + $0x20] sm:$0xf] %v225
                %v227 = vld [vmem:[%s207 + $0xd8] sm:$0xf]
                %228 = vst [vmem:[%s208 + $0x24] sm:$0xf] %v227
                %v229 = vld [vmem:[%s207 + $0xf0] sm:$0xf]
                %230 = vst [vmem:[%s208 + $0x28] sm:$0xf] %v229
                %v231 = vld [vmem:[%s207 + $0x108] sm:$0xf]
                %232 = vst [vmem:[%s208 + $0x2c] sm:$0xf] %v231
                %v233 = vld [vmem:[%s207 + $0x120] sm:$0xf]
                %234 = vst [vmem:[%s208 + $0x30] sm:$0xf] %v233
                %v235 = vld [vmem:[%s207 + $0x138] sm:$0xf]
                %236 = vst [vmem:[%s208 + $0x34] sm:$0xf] %v235
                %v237 = vld [vmem:[%s207 + $0x150] sm:$0xf]
                %238 = vst [vmem:[%s208 + $0x38] sm:$0xf] %v237
                %v239 = vld [vmem:[%s207 + $0x168] sm:$0xf]
                %240 = vst [vmem:[%s208 + $0x3c] sm:$0xf] %v239
                %v241 = vld [vmem:[%s207 + $0x180] sm:$0xf]
                %242 = vst [vmem:[%s208 + $0x40] sm:$0xf] %v241
                %v243 = vld [vmem:[%s207 + $0x198] sm:$0xf]
                %244 = vst [vmem:[%s208 + $0x44] sm:$0xf] %v243
                %v245 = vld [vmem:[%s207 + $0x1b0] sm:$0xf]
                %246 = vst [vmem:[%s208 + $0x48] sm:$0xf] %v245
                %v247 = vld [vmem:[%s207 + $0x1c8] sm:$0xf]
                %248 = vst [vmem:[%s208 + $0x4c] sm:$0xf] %v247
                %v249 = vld [vmem:[%s207 + $0x1e0] sm:$0xf]
                %250 = vst [vmem:[%s208 + $0x50] sm:$0xf] %v249
                %v251 = vld [vmem:[%s207 + $0x1f8] sm:$0xf]
                %252 = vst [vmem:[%s208 + $0x54] sm:$0xf] %v251
                %v253 = vld [vmem:[%s207 + $0x210] sm:$0xf]
                %254 = vst [vmem:[%s208 + $0x58] sm:$0xf] %v253
                %v255 = vld [vmem:[%s207 + $0x228] sm:$0xf]
                %256 = vst [vmem:[%s208 + $0x5c] sm:$0xf] %v255
                %v257 = vld [vmem:[%s207 + $0x240] sm:$0xf]
                %258 = vst [vmem:[%s208 + $0x60] sm:$0xf] %v257
                %v259 = vld [vmem:[%s207 + $0x258] sm:$0xf]
                %260 = vst [vmem:[%s208 + $0x64] sm:$0xf] %v259
                %v261 = vld [vmem:[%s207 + $0x270] sm:$0xf]
                %262 = vst [vmem:[%s208 + $0x68] sm:$0xf] %v261
                %v263 = vld [vmem:[%s207 + $0x288] sm:$0xf]
                %264 = vst [vmem:[%s208 + $0x6c] sm:$0xf] %v263
                %v265 = vld [vmem:[%s207 + $0x2a0] sm:$0xf]
                %266 = vst [vmem:[%s208 + $0x70] sm:$0xf] %v265
                %v267 = vld [vmem:[%s207 + $0x2b8] sm:$0xf]
                %268 = vst [vmem:[%s208 + $0x74] sm:$0xf] %v267
                %v269 = vld [vmem:[%s207 + $0x2d0] sm:$0xf]
                %270 = vst [vmem:[%s208 + $0x78] sm:$0xf] %v269
                %v271 = vld [vmem:[%s207 + $0x2e8] sm:$0xf]
                %272 = vst [vmem:[%s208 + $0x7c] sm:$0xf] %v271
                %v273 = vld [vmem:[%s207 + $0x300] sm:$0xf]
                %274 = vst [vmem:[%s208 + $0x80] sm:$0xf] %v273
                %v275 = vld [vmem:[%s207 + $0x318] sm:$0xf]
                %276 = vst [vmem:[%s208 + $0x84] sm:$0xf] %v275
                %v277 = vld [vmem:[%s207 + $0x330] sm:$0xf]
                %278 = vst [vmem:[%s208 + $0x88] sm:$0xf] %v277
                %v279 = vld [vmem:[%s207 + $0x348] sm:$0xf]
                %280 = vst [vmem:[%s208 + $0x8c] sm:$0xf] %v279
                %v281 = vld [vmem:[%s207 + $0x360] sm:$0xf]
                %282 = vst [vmem:[%s208 + $0x90] sm:$0xf] %v281
                %v283 = vld [vmem:[%s207 + $0x378] sm:$0xf]
                %284 = vst [vmem:[%s208 + $0x94] sm:$0xf] %v283
                %v285 = vld [vmem:[%s207 + $0x390] sm:$0xf]
                %286 = vst [vmem:[%s208 + $0x98] sm:$0xf] %v285
                %v287 = vld [vmem:[%s207 + $0x3a8] sm:$0xf]
                %288 = vst [vmem:[%s208 + $0x9c] sm:$0xf] %v287
                %v289 = vld [vmem:[%s207 + $0x3c0] sm:$0xf]
                %290 = vst [vmem:[%s208 + $0xa0] sm:$0xf] %v289
                %v291 = vld [vmem:[%s207 + $0x3d8] sm:$0xf]
                %292 = vst [vmem:[%s208 + $0xa4] sm:$0xf] %v291
                %v293 = vld [vmem:[%s207 + $0x3f0] sm:$0xf]
                %294 = vst [vmem:[%s208 + $0xa8] sm:$0xf] %v293
                %v295 = vld [vmem:[%s207 + $0x408] sm:$0xf]
                %296 = vst [vmem:[%s208 + $0xac] sm:$0xf] %v295
                %v297 = vld [vmem:[%s207 + $0x420] sm:$0xf]
                %298 = vst [vmem:[%s208 + $0xb0] sm:$0xf] %v297
                %v299 = vld [vmem:[%s207 + $0x438] sm:$0xf]
                %300 = vst [vmem:[%s208 + $0xb4] sm:$0xf] %v299
                %v301 = vld [vmem:[%s207 + $0x450] sm:$0xf]
                %302 = vst [vmem:[%s208 + $0xb8] sm:$0xf] %v301
                %v303 = vld [vmem:[%s207 + $0x468] sm:$0xf]
                %304 = vst [vmem:[%s208 + $0xbc] sm:$0xf] %v303
                %v305 = vld [vmem:[%s207 + $0x480] sm:$0xf]
                %306 = vst [vmem:[%s208 + $0xc0] sm:$0xf] %v305
                %v307 = vld [vmem:[%s207 + $0x498] sm:$0xf]
                %308 = vst [vmem:[%s208 + $0xc4] sm:$0xf] %v307
                %v309 = vld [vmem:[%s207 + $0x4b0] sm:$0xf]
                %310 = vst [vmem:[%s208 + $0xc8] sm:$0xf] %v309
                %v311 = vld [vmem:[%s207 + $0x4c8] sm:$0xf]
                %312 = vst [vmem:[%s208 + $0xcc] sm:$0xf] %v311
                %v313 = vld [vmem:[%s207 + $0x4e0] sm:$0xf]
                %314 = vst [vmem:[%s208 + $0xd0] sm:$0xf] %v313
                %v315 = vld [vmem:[%s207 + $0x4f8] sm:$0xf]
                %316 = vst [vmem:[%s208 + $0xd4] sm:$0xf] %v315
                %v317 = vld [vmem:[%s207 + $0x510] sm:$0xf]
                %318 = vst [vmem:[%s208 + $0xd8] sm:$0xf] %v317
                %v319 = vld [vmem:[%s207 + $0x528] sm:$0xf]
                %320 = vst [vmem:[%s208 + $0xdc] sm:$0xf] %v319
                %v321 = vld [vmem:[%s207 + $0x540] sm:$0xf]
                %322 = vst [vmem:[%s208 + $0xe0] sm:$0xf] %v321
                %v323 = vld [vmem:[%s207 + $0x558] sm:$0xf]
                %324 = vst [vmem:[%s208 + $0xe4] sm:$0xf] %v323
                %v325 = vld [vmem:[%s207 + $0x570] sm:$0xf]
                %326 = vst [vmem:[%s208 + $0xe8] sm:$0xf] %v325
                %v327 = vld [vmem:[%s207 + $0x588] sm:$0xf]
                %328 = vst [vmem:[%s208 + $0xec] sm:$0xf] %v327
                %v329 = vld [vmem:[%s207 + $0x5a0] sm:$0xf]
                %330 = vst [vmem:[%s208 + $0xf0] sm:$0xf] %v329
                %v331 = vld [vmem:[%s207 + $0x5b8] sm:$0xf]
                %332 = vst [vmem:[%s208 + $0xf4] sm:$0xf] %v331
                %v333 = vld [vmem:[%s207 + $0x5d0] sm:$0xf]
                %334 = vst [vmem:[%s208 + $0xf8] sm:$0xf] %v333
                %v335 = vld [vmem:[%s207 + $0x5e8] sm:$0xf]
                %336 = vst [vmem:[%s208 + $0xfc] sm:$0xf] %v335
                %v337 = vld [vmem:[%s207 + $0x600] sm:$0xf]
                %338 = vst [vmem:[%s208 + $0x100] sm:$0xf] %v337
                %v339 = vld [vmem:[%s207 + $0x618] sm:$0xf]
                %340 = vst [vmem:[%s208 + $0x104] sm:$0xf] %v339
                %v341 = vld [vmem:[%s207 + $0x630] sm:$0xf]
                %342 = vst [vmem:[%s208 + $0x108] sm:$0xf] %v341
                %v343 = vld [vmem:[%s207 + $0x648] sm:$0xf]
                %344 = vst [vmem:[%s208 + $0x10c] sm:$0xf] %v343
                %v345 = vld [vmem:[%s207 + $0x660] sm:$0xf]
                %346 = vst [vmem:[%s208 + $0x110] sm:$0xf] %v345
                %v347 = vld [vmem:[%s207 + $0x678] sm:$0xf]
                %348 = vst [vmem:[%s208 + $0x114] sm:$0xf] %v347
                %v349 = vld [vmem:[%s207 + $0x690] sm:$0xf]
                %350 = vst [vmem:[%s208 + $0x118] sm:$0xf] %v349
                %v351 = vld [vmem:[%s207 + $0x6a8] sm:$0xf]
                %352 = vst [vmem:[%s208 + $0x11c] sm:$0xf] %v351
                %v353 = vld [vmem:[%s207 + $0x6c0] sm:$0xf]
                %354 = vst [vmem:[%s208 + $0x120] sm:$0xf] %v353
                %v355 = vld [vmem:[%s207 + $0x6d8] sm:$0xf]
                %356 = vst [vmem:[%s208 + $0x124] sm:$0xf] %v355
                %v357 = vld [vmem:[%s207 + $0x6f0] sm:$0xf]
                %358 = vst [vmem:[%s208 + $0x128] sm:$0xf] %v357
                %v359 = vld [vmem:[%s207 + $0x708] sm:$0xf]
                %360 = vst [vmem:[%s208 + $0x12c] sm:$0xf] %v359
                %v361 = vld [vmem:[%s207 + $0x720] sm:$0xf]
                %362 = vst [vmem:[%s208 + $0x130] sm:$0xf] %v361
                %v363 = vld [vmem:[%s207 + $0x738] sm:$0xf]
                %364 = vst [vmem:[%s208 + $0x134] sm:$0xf] %v363
                %v365 = vld [vmem:[%s207 + $0x750] sm:$0xf]
                %366 = vst [vmem:[%s208 + $0x138] sm:$0xf] %v365
                %v367 = vld [vmem:[%s207 + $0x768] sm:$0xf]
                %368 = vst [vmem:[%s208 + $0x13c] sm:$0xf] %v367
                %v369 = vld [vmem:[%s207 + $0x780] sm:$0xf]
                %370 = vst [vmem:[%s208 + $0x140] sm:$0xf] %v369
                %v371 = vld [vmem:[%s207 + $0x798] sm:$0xf]
                %372 = vst [vmem:[%s208 + $0x144] sm:$0xf] %v371
                %v373 = vld [vmem:[%s207 + $0x7b0] sm:$0xf]
                %374 = vst [vmem:[%s208 + $0x148] sm:$0xf] %v373
                %v375 = vld [vmem:[%s207 + $0x7c8] sm:$0xf]
                %376 = vst [vmem:[%s208 + $0x14c] sm:$0xf] %v375
                %v377 = vld [vmem:[%s207 + $0x7e0] sm:$0xf]
                %378 = vst [vmem:[%s208 + $0x150] sm:$0xf] %v377
                %v379 = vld [vmem:[%s207 + $0x7f8] sm:$0xf]
                %380 = vst [vmem:[%s208 + $0x154] sm:$0xf] %v379
                %v381 = vld [vmem:[%s207 + $0x810] sm:$0xf]
                %382 = vst [vmem:[%s208 + $0x158] sm:$0xf] %v381
                %v383 = vld [vmem:[%s207 + $0x828] sm:$0xf]
                %384 = vst [vmem:[%s208 + $0x15c] sm:$0xf] %v383
                %v385 = vld [vmem:[%s207 + $0x840] sm:$0xf]
                %386 = vst [vmem:[%s208 + $0x160] sm:$0xf] %v385
                %v387 = vld [vmem:[%s207 + $0x858] sm:$0xf]
                %388 = vst [vmem:[%s208 + $0x164] sm:$0xf] %v387
                %v389 = vld [vmem:[%s207 + $0x870] sm:$0xf]
                %390 = vst [vmem:[%s208 + $0x168] sm:$0xf] %v389
                %v391 = vld [vmem:[%s207 + $0x888] sm:$0xf]
                %392 = vst [vmem:[%s208 + $0x16c] sm:$0xf] %v391
                %v393 = vld [vmem:[%s207 + $0x8a0] sm:$0xf]
                %394 = vst [vmem:[%s208 + $0x170] sm:$0xf] %v393
                %v395 = vld [vmem:[%s207 + $0x8b8] sm:$0xf]
                %396 = vst [vmem:[%s208 + $0x174] sm:$0xf] %v395
                %v397 = vld [vmem:[%s207 + $0x8d0] sm:$0xf]
                %398 = vst [vmem:[%s208 + $0x178] sm:$0xf] %v397
                %v399 = vld [vmem:[%s207 + $0x8e8] sm:$0xf]
                %400 = vst [vmem:[%s208 + $0x17c] sm:$0xf] %v399
                %v401 = vld [vmem:[%s207 + $0x900] sm:$0xf]
                %402 = vst [vmem:[%s208 + $0x180] sm:$0xf] %v401
                %v403 = vld [vmem:[%s207 + $0x918] sm:$0xf]
                %404 = vst [vmem:[%s208 + $0x184] sm:$0xf] %v403
                %v405 = vld [vmem:[%s207 + $0x930] sm:$0xf]
                %406 = vst [vmem:[%s208 + $0x188] sm:$0xf] %v405
                %v407 = vld [vmem:[%s207 + $0x948] sm:$0xf]
                %408 = vst [vmem:[%s208 + $0x18c] sm:$0xf] %v407
                %v409 = vld [vmem:[%s207 + $0x960] sm:$0xf]
                %410 = vst [vmem:[%s208 + $0x190] sm:$0xf] %v409
                %v411 = vld [vmem:[%s207 + $0x978] sm:$0xf]
                %412 = vst [vmem:[%s208 + $0x194] sm:$0xf] %v411
                %v413 = vld [vmem:[%s207 + $0x990] sm:$0xf]
                %414 = vst [vmem:[%s208 + $0x198] sm:$0xf] %v413
                %v415 = vld [vmem:[%s207 + $0x9a8] sm:$0xf]
                %416 = vst [vmem:[%s208 + $0x19c] sm:$0xf] %v415
                %v417 = vld [vmem:[%s207 + $0x9c0] sm:$0xf]
                %418 = vst [vmem:[%s208 + $0x1a0] sm:$0xf] %v417
                %v419 = vld [vmem:[%s207 + $0x9d8] sm:$0xf]
                %420 = vst [vmem:[%s208 + $0x1a4] sm:$0xf] %v419
                %v421 = vld [vmem:[%s207 + $0x9f0] sm:$0xf]
                %422 = vst [vmem:[%s208 + $0x1a8] sm:$0xf] %v421
                %v423 = vld [vmem:[%s207 + $0xa08] sm:$0xf]
                %424 = vst [vmem:[%s208 + $0x1ac] sm:$0xf] %v423
                %v425 = vld [vmem:[%s207 + $0xa20] sm:$0xf]
                %426 = vst [vmem:[%s208 + $0x1b0] sm:$0xf] %v425
                %v427 = vld [vmem:[%s207 + $0xa38] sm:$0xf]
                %428 = vst [vmem:[%s208 + $0x1b4] sm:$0xf] %v427
                %v429 = vld [vmem:[%s207 + $0xa50] sm:$0xf]
                %430 = vst [vmem:[%s208 + $0x1b8] sm:$0xf] %v429
                %v431 = vld [vmem:[%s207 + $0xa68] sm:$0xf]
                %432 = vst [vmem:[%s208 + $0x1bc] sm:$0xf] %v431
                %v433 = vld [vmem:[%s207 + $0xa80] sm:$0xf]
                %434 = vst [vmem:[%s208 + $0x1c0] sm:$0xf] %v433
                %v435 = vld [vmem:[%s207 + $0xa98] sm:$0xf]
                %436 = vst [vmem:[%s208 + $0x1c4] sm:$0xf] %v435
                %v437 = vld [vmem:[%s207 + $0xab0] sm:$0xf]
                %438 = vst [vmem:[%s208 + $0x1c8] sm:$0xf] %v437
                %v439 = vld [vmem:[%s207 + $0xac8] sm:$0xf]
                %440 = vst [vmem:[%s208 + $0x1cc] sm:$0xf] %v439
                %v441 = vld [vmem:[%s207 + $0xae0] sm:$0xf]
                %442 = vst [vmem:[%s208 + $0x1d0] sm:$0xf] %v441
                %v443 = vld [vmem:[%s207 + $0xaf8] sm:$0xf]
                %444 = vst [vmem:[%s208 + $0x1d4] sm:$0xf] %v443
                %v445 = vld [vmem:[%s207 + $0xb10] sm:$0xf]
                %446 = vst [vmem:[%s208 + $0x1d8] sm:$0xf] %v445
                %v447 = vld [vmem:[%s207 + $0xb28] sm:$0xf]
                %448 = vst [vmem:[%s208 + $0x1dc] sm:$0xf] %v447
                %v449 = vld [vmem:[%s207 + $0xb40] sm:$0xf]
                %450 = vst [vmem:[%s208 + $0x1e0] sm:$0xf] %v449
                %v451 = vld [vmem:[%s207 + $0xb58] sm:$0xf]
                %452 = vst [vmem:[%s208 + $0x1e4] sm:$0xf] %v451
                %v453 = vld [vmem:[%s207 + $0xb70] sm:$0xf]
                %454 = vst [vmem:[%s208 + $0x1e8] sm:$0xf] %v453
                %v455 = vld [vmem:[%s207 + $0xb88] sm:$0xf]
                %456 = vst [vmem:[%s208 + $0x1ec] sm:$0xf] %v455
                %v457 = vld [vmem:[%s207 + $0xba0] sm:$0xf]
                %458 = vst [vmem:[%s208 + $0x1f0] sm:$0xf] %v457
                %v459 = vld [vmem:[%s207 + $0xbb8] sm:$0xf]
                %460 = vst [vmem:[%s208 + $0x1f4] sm:$0xf] %v459
                %v461 = vld [vmem:[%s207 + $0xbd0] sm:$0xf]
                %462 = vst [vmem:[%s208 + $0x1f8] sm:$0xf] %v461
                %v463 = vld [vmem:[%s207 + $0xbe8] sm:$0xf]
                %464 = vst [vmem:[%s208 + $0x1fc] sm:$0xf] %v463
              $region37: #{multihead_self_attention.4} parent=31 // loop_footer
                %s206 = sadd.s32 1, %s202
              $region38: #{multihead_self_attention.4} parent=31 // loop_footer_branch
                %201 = sbr.rel target = $region34
              $region39: #{multihead_self_attention.4} parent=31 // loop_exit
                _
            $region32: #{multihead_self_attention.4} parent=23 // pred_fallthru
              _
          $region24: #{multihead_self_attention.4} parent=19 // pred_fallthru
            _
          %740 = vnop
        $region20: #{multihead_self_attention.4} parent=15 // pred_fallthru
          _
        // Predicated region
        $region58: #{multihead_self_attention.4} parent=15 // pred_check
          %p741 = pneg %p74
        $region59: #{multihead_self_attention.4} parent=15 // pred_check_branch
          %743 = sbr.rel (%p741) target = $region61
        $region60: #{multihead_self_attention.4} parent=15 // pred_region
          %s744 = sand.u32 %s64, 1
          %s745 = sand.u32 %s64, 1
          %s746 = smul.addr %s745, 512
          %s747 = scalar_lea.vmem [#allocation4], %s746
          %s748 = smul.addr %s21, 3
          %s749 = sadd.s32 1, %s748
          %s750 = smul.addr %s749, 4
          %s751 = scalar_lea.vmem %s1, %s750
          // Predicated region
          $region62: #{multihead_self_attention.4} parent=60 // pred_check
            _
          $region63: #{multihead_self_attention.4} parent=60 // pred_check_branch
            %753 = sbr.rel (0) target = $region65
          $region64: #{multihead_self_attention.4} parent=60 // pred_region
            // Predicated region
            $region66: #{multihead_self_attention.4} parent=64 // pred_check
              _
            $region67: #{multihead_self_attention.4} parent=64 // pred_check_branch
              %755 = sbr.rel target = $region69
            $region68: #{multihead_self_attention.4} parent=64 // pred_region
              // Predicated region
              $region81: #{multihead_self_attention.4} parent=68 // pred_check
                _
              $region82: #{multihead_self_attention.4} parent=68 // pred_check_branch
                %1024 = sbr.rel (0) target = $region84
              $region83: #{multihead_self_attention.4} parent=68 // pred_region
                loop: start=0, step=1, limit=1
                $region85: #{multihead_self_attention.4} parent=83 // loop_pre_header
                  _
                $region86: #{multihead_self_attention.4} parent=83 // loop_header
                  %s1026 = sphi 0, %s1030
                  %p1027 = scmp.ge.s32.totalorder %s1026, 1
                  %s1031 = sphi %s751, %s751
                  %s1032 = sphi %s747, %s747
                $region87: #{multihead_self_attention.4} parent=83 // loop_header_branch
                  %1029 = sbr.rel (%p1027) target = $region91
                $region88: #{multihead_self_attention.4} parent=83 // loop_body
                  _
                $region89: #{multihead_self_attention.4} parent=83 // loop_footer
                  %s1030 = sadd.s32 1, %s1026
                $region90: #{multihead_self_attention.4} parent=83 // loop_footer_branch
                  %1025 = sbr.rel target = $region86
                $region91: #{multihead_self_attention.4} parent=83 // loop_exit
                  _
                loop: start=0, step=1, limit=1
                $region92: #{multihead_self_attention.4} parent=83 // loop_pre_header
                  _
                $region93: #{multihead_self_attention.4} parent=83 // loop_header
                  %s1035 = sphi 0, %s1039
                  %p1036 = scmp.ge.s32.totalorder %s1035, 1
                  %s1040 = sphi %s751, %s751
                  %s1041 = sphi %s747, %s747
                $region94: #{multihead_self_attention.4} parent=83 // loop_header_branch
                  %1038 = sbr.rel (%p1036) target = $region98
                $region95: #{multihead_self_attention.4} parent=83 // loop_body
                  %v1042 = vld [vmem:[%s1040] sm:$0xf]
                  %1043 = vst [vmem:[%s1041] sm:$0xf] %v1042
                  %v1044 = vld [vmem:[%s1040 + $0x18] sm:$0xf]
                  %1045 = vst [vmem:[%s1041 + $0x4] sm:$0xf] %v1044
                  %v1046 = vld [vmem:[%s1040 + $0x30] sm:$0xf]
                  %1047 = vst [vmem:[%s1041 + $0x8] sm:$0xf] %v1046
                  %v1048 = vld [vmem:[%s1040 + $0x48] sm:$0xf]
                  %1049 = vst [vmem:[%s1041 + $0xc] sm:$0xf] %v1048
                  %v1050 = vld [vmem:[%s1040 + $0x60] sm:$0xf]
                  %1051 = vst [vmem:[%s1041 + $0x10] sm:$0xf] %v1050
                  %v1052 = vld [vmem:[%s1040 + $0x78] sm:$0xf]
                  %1053 = vst [vmem:[%s1041 + $0x14] sm:$0xf] %v1052
                  %v1054 = vld [vmem:[%s1040 + $0x90] sm:$0xf]
                  %1055 = vst [vmem:[%s1041 + $0x18] sm:$0xf] %v1054
                  %v1056 = vld [vmem:[%s1040 + $0xa8] sm:$0xf]
                  %1057 = vst [vmem:[%s1041 + $0x1c] sm:$0xf] %v1056
                  %v1058 = vld [vmem:[%s1040 + $0xc0] sm:$0xf]
                  %1059 = vst [vmem:[%s1041 + $0x20] sm:$0xf] %v1058
                  %v1060 = vld [vmem:[%s1040 + $0xd8] sm:$0xf]
                  %1061 = vst [vmem:[%s1041 + $0x24] sm:$0xf] %v1060
                  %v1062 = vld [vmem:[%s1040 + $0xf0] sm:$0xf]
                  %1063 = vst [vmem:[%s1041 + $0x28] sm:$0xf] %v1062
                  %v1064 = vld [vmem:[%s1040 + $0x108] sm:$0xf]
                  %1065 = vst [vmem:[%s1041 + $0x2c] sm:$0xf] %v1064
                  %v1066 = vld [vmem:[%s1040 + $0x120] sm:$0xf]
                  %1067 = vst [vmem:[%s1041 + $0x30] sm:$0xf] %v1066
                  %v1068 = vld [vmem:[%s1040 + $0x138] sm:$0xf]
                  %1069 = vst [vmem:[%s1041 + $0x34] sm:$0xf] %v1068
                  %v1070 = vld [vmem:[%s1040 + $0x150] sm:$0xf]
                  %1071 = vst [vmem:[%s1041 + $0x38] sm:$0xf] %v1070
                  %v1072 = vld [vmem:[%s1040 + $0x168] sm:$0xf]
                  %1073 = vst [vmem:[%s1041 + $0x3c] sm:$0xf] %v1072
                  %v1074 = vld [vmem:[%s1040 + $0x180] sm:$0xf]
                  %1075 = vst [vmem:[%s1041 + $0x40] sm:$0xf] %v1074
                  %v1076 = vld [vmem:[%s1040 + $0x198] sm:$0xf]
                  %1077 = vst [vmem:[%s1041 + $0x44] sm:$0xf] %v1076
                  %v1078 = vld [vmem:[%s1040 + $0x1b0] sm:$0xf]
                  %1079 = vst [vmem:[%s1041 + $0x48] sm:$0xf] %v1078
                  %v1080 = vld [vmem:[%s1040 + $0x1c8] sm:$0xf]
                  %1081 = vst [vmem:[%s1041 + $0x4c] sm:$0xf] %v1080
                  %v1082 = vld [vmem:[%s1040 + $0x1e0] sm:$0xf]
                  %1083 = vst [vmem:[%s1041 + $0x50] sm:$0xf] %v1082
                  %v1084 = vld [vmem:[%s1040 + $0x1f8] sm:$0xf]
                  %1085 = vst [vmem:[%s1041 + $0x54] sm:$0xf] %v1084
                  %v1086 = vld [vmem:[%s1040 + $0x210] sm:$0xf]
                  %1087 = vst [vmem:[%s1041 + $0x58] sm:$0xf] %v1086
                  %v1088 = vld [vmem:[%s1040 + $0x228] sm:$0xf]
                  %1089 = vst [vmem:[%s1041 + $0x5c] sm:$0xf] %v1088
                  %v1090 = vld [vmem:[%s1040 + $0x240] sm:$0xf]
                  %1091 = vst [vmem:[%s1041 + $0x60] sm:$0xf] %v1090
                  %v1092 = vld [vmem:[%s1040 + $0x258] sm:$0xf]
                  %1093 = vst [vmem:[%s1041 + $0x64] sm:$0xf] %v1092
                  %v1094 = vld [vmem:[%s1040 + $0x270] sm:$0xf]
                  %1095 = vst [vmem:[%s1041 + $0x68] sm:$0xf] %v1094
                  %v1096 = vld [vmem:[%s1040 + $0x288] sm:$0xf]
                  %1097 = vst [vmem:[%s1041 + $0x6c] sm:$0xf] %v1096
                  %v1098 = vld [vmem:[%s1040 + $0x2a0] sm:$0xf]
                  %1099 = vst [vmem:[%s1041 + $0x70] sm:$0xf] %v1098
                  %v1100 = vld [vmem:[%s1040 + $0x2b8] sm:$0xf]
                  %1101 = vst [vmem:[%s1041 + $0x74] sm:$0xf] %v1100
                  %v1102 = vld [vmem:[%s1040 + $0x2d0] sm:$0xf]
                  %1103 = vst [vmem:[%s1041 + $0x78] sm:$0xf] %v1102
                  %v1104 = vld [vmem:[%s1040 + $0x2e8] sm:$0xf]
                  %1105 = vst [vmem:[%s1041 + $0x7c] sm:$0xf] %v1104
                  %v1106 = vld [vmem:[%s1040 + $0x300] sm:$0xf]
                  %1107 = vst [vmem:[%s1041 + $0x80] sm:$0xf] %v1106
                  %v1108 = vld [vmem:[%s1040 + $0x318] sm:$0xf]
                  %1109 = vst [vmem:[%s1041 + $0x84] sm:$0xf] %v1108
                  %v1110 = vld [vmem:[%s1040 + $0x330] sm:$0xf]
                  %1111 = vst [vmem:[%s1041 + $0x88] sm:$0xf] %v1110
                  %v1112 = vld [vmem:[%s1040 + $0x348] sm:$0xf]
                  %1113 = vst [vmem:[%s1041 + $0x8c] sm:$0xf] %v1112
                  %v1114 = vld [vmem:[%s1040 + $0x360] sm:$0xf]
                  %1115 = vst [vmem:[%s1041 + $0x90] sm:$0xf] %v1114
                  %v1116 = vld [vmem:[%s1040 + $0x378] sm:$0xf]
                  %1117 = vst [vmem:[%s1041 + $0x94] sm:$0xf] %v1116
                  %v1118 = vld [vmem:[%s1040 + $0x390] sm:$0xf]
                  %1119 = vst [vmem:[%s1041 + $0x98] sm:$0xf] %v1118
                  %v1120 = vld [vmem:[%s1040 + $0x3a8] sm:$0xf]
                  %1121 = vst [vmem:[%s1041 + $0x9c] sm:$0xf] %v1120
                  %v1122 = vld [vmem:[%s1040 + $0x3c0] sm:$0xf]
                  %1123 = vst [vmem:[%s1041 + $0xa0] sm:$0xf] %v1122
                  %v1124 = vld [vmem:[%s1040 + $0x3d8] sm:$0xf]
                  %1125 = vst [vmem:[%s1041 + $0xa4] sm:$0xf] %v1124
                  %v1126 = vld [vmem:[%s1040 + $0x3f0] sm:$0xf]
                  %1127 = vst [vmem:[%s1041 + $0xa8] sm:$0xf] %v1126
                  %v1128 = vld [vmem:[%s1040 + $0x408] sm:$0xf]
                  %1129 = vst [vmem:[%s1041 + $0xac] sm:$0xf] %v1128
                  %v1130 = vld [vmem:[%s1040 + $0x420] sm:$0xf]
                  %1131 = vst [vmem:[%s1041 + $0xb0] sm:$0xf] %v1130
                  %v1132 = vld [vmem:[%s1040 + $0x438] sm:$0xf]
                  %1133 = vst [vmem:[%s1041 + $0xb4] sm:$0xf] %v1132
                  %v1134 = vld [vmem:[%s1040 + $0x450] sm:$0xf]
                  %1135 = vst [vmem:[%s1041 + $0xb8] sm:$0xf] %v1134
                  %v1136 = vld [vmem:[%s1040 + $0x468] sm:$0xf]
                  %1137 = vst [vmem:[%s1041 + $0xbc] sm:$0xf] %v1136
                  %v1138 = vld [vmem:[%s1040 + $0x480] sm:$0xf]
                  %1139 = vst [vmem:[%s1041 + $0xc0] sm:$0xf] %v1138
                  %v1140 = vld [vmem:[%s1040 + $0x498] sm:$0xf]
                  %1141 = vst [vmem:[%s1041 + $0xc4] sm:$0xf] %v1140
                  %v1142 = vld [vmem:[%s1040 + $0x4b0] sm:$0xf]
                  %1143 = vst [vmem:[%s1041 + $0xc8] sm:$0xf] %v1142
                  %v1144 = vld [vmem:[%s1040 + $0x4c8] sm:$0xf]
                  %1145 = vst [vmem:[%s1041 + $0xcc] sm:$0xf] %v1144
                  %v1146 = vld [vmem:[%s1040 + $0x4e0] sm:$0xf]
                  %1147 = vst [vmem:[%s1041 + $0xd0] sm:$0xf] %v1146
                  %v1148 = vld [vmem:[%s1040 + $0x4f8] sm:$0xf]
                  %1149 = vst [vmem:[%s1041 + $0xd4] sm:$0xf] %v1148
                  %v1150 = vld [vmem:[%s1040 + $0x510] sm:$0xf]
                  %1151 = vst [vmem:[%s1041 + $0xd8] sm:$0xf] %v1150
                  %v1152 = vld [vmem:[%s1040 + $0x528] sm:$0xf]
                  %1153 = vst [vmem:[%s1041 + $0xdc] sm:$0xf] %v1152
                  %v1154 = vld [vmem:[%s1040 + $0x540] sm:$0xf]
                  %1155 = vst [vmem:[%s1041 + $0xe0] sm:$0xf] %v1154
                  %v1156 = vld [vmem:[%s1040 + $0x558] sm:$0xf]
                  %1157 = vst [vmem:[%s1041 + $0xe4] sm:$0xf] %v1156
                  %v1158 = vld [vmem:[%s1040 + $0x570] sm:$0xf]
                  %1159 = vst [vmem:[%s1041 + $0xe8] sm:$0xf] %v1158
                  %v1160 = vld [vmem:[%s1040 + $0x588] sm:$0xf]
                  %1161 = vst [vmem:[%s1041 + $0xec] sm:$0xf] %v1160
                  %v1162 = vld [vmem:[%s1040 + $0x5a0] sm:$0xf]
                  %1163 = vst [vmem:[%s1041 + $0xf0] sm:$0xf] %v1162
                  %v1164 = vld [vmem:[%s1040 + $0x5b8] sm:$0xf]
                  %1165 = vst [vmem:[%s1041 + $0xf4] sm:$0xf] %v1164
                  %v1166 = vld [vmem:[%s1040 + $0x5d0] sm:$0xf]
                  %1167 = vst [vmem:[%s1041 + $0xf8] sm:$0xf] %v1166
                  %v1168 = vld [vmem:[%s1040 + $0x5e8] sm:$0xf]
                  %1169 = vst [vmem:[%s1041 + $0xfc] sm:$0xf] %v1168
                  %v1170 = vld [vmem:[%s1040 + $0x600] sm:$0xf]
                  %1171 = vst [vmem:[%s1041 + $0x100] sm:$0xf] %v1170
                  %v1172 = vld [vmem:[%s1040 + $0x618] sm:$0xf]
                  %1173 = vst [vmem:[%s1041 + $0x104] sm:$0xf] %v1172
                  %v1174 = vld [vmem:[%s1040 + $0x630] sm:$0xf]
                  %1175 = vst [vmem:[%s1041 + $0x108] sm:$0xf] %v1174
                  %v1176 = vld [vmem:[%s1040 + $0x648] sm:$0xf]
                  %1177 = vst [vmem:[%s1041 + $0x10c] sm:$0xf] %v1176
                  %v1178 = vld [vmem:[%s1040 + $0x660] sm:$0xf]
                  %1179 = vst [vmem:[%s1041 + $0x110] sm:$0xf] %v1178
                  %v1180 = vld [vmem:[%s1040 + $0x678] sm:$0xf]
                  %1181 = vst [vmem:[%s1041 + $0x114] sm:$0xf] %v1180
                  %v1182 = vld [vmem:[%s1040 + $0x690] sm:$0xf]
                  %1183 = vst [vmem:[%s1041 + $0x118] sm:$0xf] %v1182
                  %v1184 = vld [vmem:[%s1040 + $0x6a8] sm:$0xf]
                  %1185 = vst [vmem:[%s1041 + $0x11c] sm:$0xf] %v1184
                  %v1186 = vld [vmem:[%s1040 + $0x6c0] sm:$0xf]
                  %1187 = vst [vmem:[%s1041 + $0x120] sm:$0xf] %v1186
                  %v1188 = vld [vmem:[%s1040 + $0x6d8] sm:$0xf]
                  %1189 = vst [vmem:[%s1041 + $0x124] sm:$0xf] %v1188
                  %v1190 = vld [vmem:[%s1040 + $0x6f0] sm:$0xf]
                  %1191 = vst [vmem:[%s1041 + $0x128] sm:$0xf] %v1190
                  %v1192 = vld [vmem:[%s1040 + $0x708] sm:$0xf]
                  %1193 = vst [vmem:[%s1041 + $0x12c] sm:$0xf] %v1192
                  %v1194 = vld [vmem:[%s1040 + $0x720] sm:$0xf]
                  %1195 = vst [vmem:[%s1041 + $0x130] sm:$0xf] %v1194
                  %v1196 = vld [vmem:[%s1040 + $0x738] sm:$0xf]
                  %1197 = vst [vmem:[%s1041 + $0x134] sm:$0xf] %v1196
                  %v1198 = vld [vmem:[%s1040 + $0x750] sm:$0xf]
                  %1199 = vst [vmem:[%s1041 + $0x138] sm:$0xf] %v1198
                  %v1200 = vld [vmem:[%s1040 + $0x768] sm:$0xf]
                  %1201 = vst [vmem:[%s1041 + $0x13c] sm:$0xf] %v1200
                  %v1202 = vld [vmem:[%s1040 + $0x780] sm:$0xf]
                  %1203 = vst [vmem:[%s1041 + $0x140] sm:$0xf] %v1202
                  %v1204 = vld [vmem:[%s1040 + $0x798] sm:$0xf]
                  %1205 = vst [vmem:[%s1041 + $0x144] sm:$0xf] %v1204
                  %v1206 = vld [vmem:[%s1040 + $0x7b0] sm:$0xf]
                  %1207 = vst [vmem:[%s1041 + $0x148] sm:$0xf] %v1206
                  %v1208 = vld [vmem:[%s1040 + $0x7c8] sm:$0xf]
                  %1209 = vst [vmem:[%s1041 + $0x14c] sm:$0xf] %v1208
                  %v1210 = vld [vmem:[%s1040 + $0x7e0] sm:$0xf]
                  %1211 = vst [vmem:[%s1041 + $0x150] sm:$0xf] %v1210
                  %v1212 = vld [vmem:[%s1040 + $0x7f8] sm:$0xf]
                  %1213 = vst [vmem:[%s1041 + $0x154] sm:$0xf] %v1212
                  %v1214 = vld [vmem:[%s1040 + $0x810] sm:$0xf]
                  %1215 = vst [vmem:[%s1041 + $0x158] sm:$0xf] %v1214
                  %v1216 = vld [vmem:[%s1040 + $0x828] sm:$0xf]
                  %1217 = vst [vmem:[%s1041 + $0x15c] sm:$0xf] %v1216
                  %v1218 = vld [vmem:[%s1040 + $0x840] sm:$0xf]
                  %1219 = vst [vmem:[%s1041 + $0x160] sm:$0xf] %v1218
                  %v1220 = vld [vmem:[%s1040 + $0x858] sm:$0xf]
                  %1221 = vst [vmem:[%s1041 + $0x164] sm:$0xf] %v1220
                  %v1222 = vld [vmem:[%s1040 + $0x870] sm:$0xf]
                  %1223 = vst [vmem:[%s1041 + $0x168] sm:$0xf] %v1222
                  %v1224 = vld [vmem:[%s1040 + $0x888] sm:$0xf]
                  %1225 = vst [vmem:[%s1041 + $0x16c] sm:$0xf] %v1224
                  %v1226 = vld [vmem:[%s1040 + $0x8a0] sm:$0xf]
                  %1227 = vst [vmem:[%s1041 + $0x170] sm:$0xf] %v1226
                  %v1228 = vld [vmem:[%s1040 + $0x8b8] sm:$0xf]
                  %1229 = vst [vmem:[%s1041 + $0x174] sm:$0xf] %v1228
                  %v1230 = vld [vmem:[%s1040 + $0x8d0] sm:$0xf]
                  %1231 = vst [vmem:[%s1041 + $0x178] sm:$0xf] %v1230
                  %v1232 = vld [vmem:[%s1040 + $0x8e8] sm:$0xf]
                  %1233 = vst [vmem:[%s1041 + $0x17c] sm:$0xf] %v1232
                  %v1234 = vld [vmem:[%s1040 + $0x900] sm:$0xf]
                  %1235 = vst [vmem:[%s1041 + $0x180] sm:$0xf] %v1234
                  %v1236 = vld [vmem:[%s1040 + $0x918] sm:$0xf]
                  %1237 = vst [vmem:[%s1041 + $0x184] sm:$0xf] %v1236
                  %v1238 = vld [vmem:[%s1040 + $0x930] sm:$0xf]
                  %1239 = vst [vmem:[%s1041 + $0x188] sm:$0xf] %v1238
                  %v1240 = vld [vmem:[%s1040 + $0x948] sm:$0xf]
                  %1241 = vst [vmem:[%s1041 + $0x18c] sm:$0xf] %v1240
                  %v1242 = vld [vmem:[%s1040 + $0x960] sm:$0xf]
                  %1243 = vst [vmem:[%s1041 + $0x190] sm:$0xf] %v1242
                  %v1244 = vld [vmem:[%s1040 + $0x978] sm:$0xf]
                  %1245 = vst [vmem:[%s1041 + $0x194] sm:$0xf] %v1244
                  %v1246 = vld [vmem:[%s1040 + $0x990] sm:$0xf]
                  %1247 = vst [vmem:[%s1041 + $0x198] sm:$0xf] %v1246
                  %v1248 = vld [vmem:[%s1040 + $0x9a8] sm:$0xf]
                  %1249 = vst [vmem:[%s1041 + $0x19c] sm:$0xf] %v1248
                  %v1250 = vld [vmem:[%s1040 + $0x9c0] sm:$0xf]
                  %1251 = vst [vmem:[%s1041 + $0x1a0] sm:$0xf] %v1250
                  %v1252 = vld [vmem:[%s1040 + $0x9d8] sm:$0xf]
                  %1253 = vst [vmem:[%s1041 + $0x1a4] sm:$0xf] %v1252
                  %v1254 = vld [vmem:[%s1040 + $0x9f0] sm:$0xf]
                  %1255 = vst [vmem:[%s1041 + $0x1a8] sm:$0xf] %v1254
                  %v1256 = vld [vmem:[%s1040 + $0xa08] sm:$0xf]
                  %1257 = vst [vmem:[%s1041 + $0x1ac] sm:$0xf] %v1256
                  %v1258 = vld [vmem:[%s1040 + $0xa20] sm:$0xf]
                  %1259 = vst [vmem:[%s1041 + $0x1b0] sm:$0xf] %v1258
                  %v1260 = vld [vmem:[%s1040 + $0xa38] sm:$0xf]
                  %1261 = vst [vmem:[%s1041 + $0x1b4] sm:$0xf] %v1260
                  %v1262 = vld [vmem:[%s1040 + $0xa50] sm:$0xf]
                  %1263 = vst [vmem:[%s1041 + $0x1b8] sm:$0xf] %v1262
                  %v1264 = vld [vmem:[%s1040 + $0xa68] sm:$0xf]
                  %1265 = vst [vmem:[%s1041 + $0x1bc] sm:$0xf] %v1264
                  %v1266 = vld [vmem:[%s1040 + $0xa80] sm:$0xf]
                  %1267 = vst [vmem:[%s1041 + $0x1c0] sm:$0xf] %v1266
                  %v1268 = vld [vmem:[%s1040 + $0xa98] sm:$0xf]
                  %1269 = vst [vmem:[%s1041 + $0x1c4] sm:$0xf] %v1268
                  %v1270 = vld [vmem:[%s1040 + $0xab0] sm:$0xf]
                  %1271 = vst [vmem:[%s1041 + $0x1c8] sm:$0xf] %v1270
                  %v1272 = vld [vmem:[%s1040 + $0xac8] sm:$0xf]
                  %1273 = vst [vmem:[%s1041 + $0x1cc] sm:$0xf] %v1272
                  %v1274 = vld [vmem:[%s1040 + $0xae0] sm:$0xf]
                  %1275 = vst [vmem:[%s1041 + $0x1d0] sm:$0xf] %v1274
                  %v1276 = vld [vmem:[%s1040 + $0xaf8] sm:$0xf]
                  %1277 = vst [vmem:[%s1041 + $0x1d4] sm:$0xf] %v1276
                  %v1278 = vld [vmem:[%s1040 + $0xb10] sm:$0xf]
                  %1279 = vst [vmem:[%s1041 + $0x1d8] sm:$0xf] %v1278
                  %v1280 = vld [vmem:[%s1040 + $0xb28] sm:$0xf]
                  %1281 = vst [vmem:[%s1041 + $0x1dc] sm:$0xf] %v1280
                  %v1282 = vld [vmem:[%s1040 + $0xb40] sm:$0xf]
                  %1283 = vst [vmem:[%s1041 + $0x1e0] sm:$0xf] %v1282
                  %v1284 = vld [vmem:[%s1040 + $0xb58] sm:$0xf]
                  %1285 = vst [vmem:[%s1041 + $0x1e4] sm:$0xf] %v1284
                  %v1286 = vld [vmem:[%s1040 + $0xb70] sm:$0xf]
                  %1287 = vst [vmem:[%s1041 + $0x1e8] sm:$0xf] %v1286
                  %v1288 = vld [vmem:[%s1040 + $0xb88] sm:$0xf]
                  %1289 = vst [vmem:[%s1041 + $0x1ec] sm:$0xf] %v1288
                  %v1290 = vld [vmem:[%s1040 + $0xba0] sm:$0xf]
                  %1291 = vst [vmem:[%s1041 + $0x1f0] sm:$0xf] %v1290
                  %v1292 = vld [vmem:[%s1040 + $0xbb8] sm:$0xf]
                  %1293 = vst [vmem:[%s1041 + $0x1f4] sm:$0xf] %v1292
                  %v1294 = vld [vmem:[%s1040 + $0xbd0] sm:$0xf]
                  %1295 = vst [vmem:[%s1041 + $0x1f8] sm:$0xf] %v1294
                  %v1296 = vld [vmem:[%s1040 + $0xbe8] sm:$0xf]
                  %1297 = vst [vmem:[%s1041 + $0x1fc] sm:$0xf] %v1296
                $region96: #{multihead_self_attention.4} parent=83 // loop_footer
                  %s1039 = sadd.s32 1, %s1035
                $region97: #{multihead_self_attention.4} parent=83 // loop_footer_branch
                  %1034 = sbr.rel target = $region93
                $region98: #{multihead_self_attention.4} parent=83 // loop_exit
                  _
              $region84: #{multihead_self_attention.4} parent=68 // pred_fallthru
                _
            $region69: #{multihead_self_attention.4} parent=64 // pred_fallthru
              _
            // Predicated region
            $region70: #{multihead_self_attention.4} parent=64 // pred_check
              _
            $region71: #{multihead_self_attention.4} parent=64 // pred_check_branch
              %757 = sbr.rel (0) target = $region73
            $region72: #{multihead_self_attention.4} parent=64 // pred_region
              loop: start=0, step=1, limit=1
              $region74: #{multihead_self_attention.4} parent=72 // loop_pre_header
                _
              $region75: #{multihead_self_attention.4} parent=72 // loop_header
                %s760 = sphi 0, %s764
                %p761 = scmp.ge.s32.totalorder %s760, 1
                %s765 = sphi %s751, %s751
                %s766 = sphi %s747, %s747
              $region76: #{multihead_self_attention.4} parent=72 // loop_header_branch
                %763 = sbr.rel (%p761) target = $region80
              $region77: #{multihead_self_attention.4} parent=72 // loop_body
                %v767 = vld [vmem:[%s765] sm:$0xf]
                %768 = vst [vmem:[%s766] sm:$0xf] %v767
                %v769 = vld [vmem:[%s765 + $0x18] sm:$0xf]
                %770 = vst [vmem:[%s766 + $0x4] sm:$0xf] %v769
                %v771 = vld [vmem:[%s765 + $0x30] sm:$0xf]
                %772 = vst [vmem:[%s766 + $0x8] sm:$0xf] %v771
                %v773 = vld [vmem:[%s765 + $0x48] sm:$0xf]
                %774 = vst [vmem:[%s766 + $0xc] sm:$0xf] %v773
                %v775 = vld [vmem:[%s765 + $0x60] sm:$0xf]
                %776 = vst [vmem:[%s766 + $0x10] sm:$0xf] %v775
                %v777 = vld [vmem:[%s765 + $0x78] sm:$0xf]
                %778 = vst [vmem:[%s766 + $0x14] sm:$0xf] %v777
                %v779 = vld [vmem:[%s765 + $0x90] sm:$0xf]
                %780 = vst [vmem:[%s766 + $0x18] sm:$0xf] %v779
                %v781 = vld [vmem:[%s765 + $0xa8] sm:$0xf]
                %782 = vst [vmem:[%s766 + $0x1c] sm:$0xf] %v781
                %v783 = vld [vmem:[%s765 + $0xc0] sm:$0xf]
                %784 = vst [vmem:[%s766 + $0x20] sm:$0xf] %v783
                %v785 = vld [vmem:[%s765 + $0xd8] sm:$0xf]
                %786 = vst [vmem:[%s766 + $0x24] sm:$0xf] %v785
                %v787 = vld [vmem:[%s765 + $0xf0] sm:$0xf]
                %788 = vst [vmem:[%s766 + $0x28] sm:$0xf] %v787
                %v789 = vld [vmem:[%s765 + $0x108] sm:$0xf]
                %790 = vst [vmem:[%s766 + $0x2c] sm:$0xf] %v789
                %v791 = vld [vmem:[%s765 + $0x120] sm:$0xf]
                %792 = vst [vmem:[%s766 + $0x30] sm:$0xf] %v791
                %v793 = vld [vmem:[%s765 + $0x138] sm:$0xf]
                %794 = vst [vmem:[%s766 + $0x34] sm:$0xf] %v793
                %v795 = vld [vmem:[%s765 + $0x150] sm:$0xf]
                %796 = vst [vmem:[%s766 + $0x38] sm:$0xf] %v795
                %v797 = vld [vmem:[%s765 + $0x168] sm:$0xf]
                %798 = vst [vmem:[%s766 + $0x3c] sm:$0xf] %v797
                %v799 = vld [vmem:[%s765 + $0x180] sm:$0xf]
                %800 = vst [vmem:[%s766 + $0x40] sm:$0xf] %v799
                %v801 = vld [vmem:[%s765 + $0x198] sm:$0xf]
                %802 = vst [vmem:[%s766 + $0x44] sm:$0xf] %v801
                %v803 = vld [vmem:[%s765 + $0x1b0] sm:$0xf]
                %804 = vst [vmem:[%s766 + $0x48] sm:$0xf] %v803
                %v805 = vld [vmem:[%s765 + $0x1c8] sm:$0xf]
                %806 = vst [vmem:[%s766 + $0x4c] sm:$0xf] %v805
                %v807 = vld [vmem:[%s765 + $0x1e0] sm:$0xf]
                %808 = vst [vmem:[%s766 + $0x50] sm:$0xf] %v807
                %v809 = vld [vmem:[%s765 + $0x1f8] sm:$0xf]
                %810 = vst [vmem:[%s766 + $0x54] sm:$0xf] %v809
                %v811 = vld [vmem:[%s765 + $0x210] sm:$0xf]
                %812 = vst [vmem:[%s766 + $0x58] sm:$0xf] %v811
                %v813 = vld [vmem:[%s765 + $0x228] sm:$0xf]
                %814 = vst [vmem:[%s766 + $0x5c] sm:$0xf] %v813
                %v815 = vld [vmem:[%s765 + $0x240] sm:$0xf]
                %816 = vst [vmem:[%s766 + $0x60] sm:$0xf] %v815
                %v817 = vld [vmem:[%s765 + $0x258] sm:$0xf]
                %818 = vst [vmem:[%s766 + $0x64] sm:$0xf] %v817
                %v819 = vld [vmem:[%s765 + $0x270] sm:$0xf]
                %820 = vst [vmem:[%s766 + $0x68] sm:$0xf] %v819
                %v821 = vld [vmem:[%s765 + $0x288] sm:$0xf]
                %822 = vst [vmem:[%s766 + $0x6c] sm:$0xf] %v821
                %v823 = vld [vmem:[%s765 + $0x2a0] sm:$0xf]
                %824 = vst [vmem:[%s766 + $0x70] sm:$0xf] %v823
                %v825 = vld [vmem:[%s765 + $0x2b8] sm:$0xf]
                %826 = vst [vmem:[%s766 + $0x74] sm:$0xf] %v825
                %v827 = vld [vmem:[%s765 + $0x2d0] sm:$0xf]
                %828 = vst [vmem:[%s766 + $0x78] sm:$0xf] %v827
                %v829 = vld [vmem:[%s765 + $0x2e8] sm:$0xf]
                %830 = vst [vmem:[%s766 + $0x7c] sm:$0xf] %v829
                %v831 = vld [vmem:[%s765 + $0x300] sm:$0xf]
                %832 = vst [vmem:[%s766 + $0x80] sm:$0xf] %v831
                %v833 = vld [vmem:[%s765 + $0x318] sm:$0xf]
                %834 = vst [vmem:[%s766 + $0x84] sm:$0xf] %v833
                %v835 = vld [vmem:[%s765 + $0x330] sm:$0xf]
                %836 = vst [vmem:[%s766 + $0x88] sm:$0xf] %v835
                %v837 = vld [vmem:[%s765 + $0x348] sm:$0xf]
                %838 = vst [vmem:[%s766 + $0x8c] sm:$0xf] %v837
                %v839 = vld [vmem:[%s765 + $0x360] sm:$0xf]
                %840 = vst [vmem:[%s766 + $0x90] sm:$0xf] %v839
                %v841 = vld [vmem:[%s765 + $0x378] sm:$0xf]
                %842 = vst [vmem:[%s766 + $0x94] sm:$0xf] %v841
                %v843 = vld [vmem:[%s765 + $0x390] sm:$0xf]
                %844 = vst [vmem:[%s766 + $0x98] sm:$0xf] %v843
                %v845 = vld [vmem:[%s765 + $0x3a8] sm:$0xf]
                %846 = vst [vmem:[%s766 + $0x9c] sm:$0xf] %v845
                %v847 = vld [vmem:[%s765 + $0x3c0] sm:$0xf]
                %848 = vst [vmem:[%s766 + $0xa0] sm:$0xf] %v847
                %v849 = vld [vmem:[%s765 + $0x3d8] sm:$0xf]
                %850 = vst [vmem:[%s766 + $0xa4] sm:$0xf] %v849
                %v851 = vld [vmem:[%s765 + $0x3f0] sm:$0xf]
                %852 = vst [vmem:[%s766 + $0xa8] sm:$0xf] %v851
                %v853 = vld [vmem:[%s765 + $0x408] sm:$0xf]
                %854 = vst [vmem:[%s766 + $0xac] sm:$0xf] %v853
                %v855 = vld [vmem:[%s765 + $0x420] sm:$0xf]
                %856 = vst [vmem:[%s766 + $0xb0] sm:$0xf] %v855
                %v857 = vld [vmem:[%s765 + $0x438] sm:$0xf]
                %858 = vst [vmem:[%s766 + $0xb4] sm:$0xf] %v857
                %v859 = vld [vmem:[%s765 + $0x450] sm:$0xf]
                %860 = vst [vmem:[%s766 + $0xb8] sm:$0xf] %v859
                %v861 = vld [vmem:[%s765 + $0x468] sm:$0xf]
                %862 = vst [vmem:[%s766 + $0xbc] sm:$0xf] %v861
                %v863 = vld [vmem:[%s765 + $0x480] sm:$0xf]
                %864 = vst [vmem:[%s766 + $0xc0] sm:$0xf] %v863
                %v865 = vld [vmem:[%s765 + $0x498] sm:$0xf]
                %866 = vst [vmem:[%s766 + $0xc4] sm:$0xf] %v865
                %v867 = vld [vmem:[%s765 + $0x4b0] sm:$0xf]
                %868 = vst [vmem:[%s766 + $0xc8] sm:$0xf] %v867
                %v869 = vld [vmem:[%s765 + $0x4c8] sm:$0xf]
                %870 = vst [vmem:[%s766 + $0xcc] sm:$0xf] %v869
                %v871 = vld [vmem:[%s765 + $0x4e0] sm:$0xf]
                %872 = vst [vmem:[%s766 + $0xd0] sm:$0xf] %v871
                %v873 = vld [vmem:[%s765 + $0x4f8] sm:$0xf]
                %874 = vst [vmem:[%s766 + $0xd4] sm:$0xf] %v873
                %v875 = vld [vmem:[%s765 + $0x510] sm:$0xf]
                %876 = vst [vmem:[%s766 + $0xd8] sm:$0xf] %v875
                %v877 = vld [vmem:[%s765 + $0x528] sm:$0xf]
                %878 = vst [vmem:[%s766 + $0xdc] sm:$0xf] %v877
                %v879 = vld [vmem:[%s765 + $0x540] sm:$0xf]
                %880 = vst [vmem:[%s766 + $0xe0] sm:$0xf] %v879
                %v881 = vld [vmem:[%s765 + $0x558] sm:$0xf]
                %882 = vst [vmem:[%s766 + $0xe4] sm:$0xf] %v881
                %v883 = vld [vmem:[%s765 + $0x570] sm:$0xf]
                %884 = vst [vmem:[%s766 + $0xe8] sm:$0xf] %v883
                %v885 = vld [vmem:[%s765 + $0x588] sm:$0xf]
                %886 = vst [vmem:[%s766 + $0xec] sm:$0xf] %v885
                %v887 = vld [vmem:[%s765 + $0x5a0] sm:$0xf]
                %888 = vst [vmem:[%s766 + $0xf0] sm:$0xf] %v887
                %v889 = vld [vmem:[%s765 + $0x5b8] sm:$0xf]
                %890 = vst [vmem:[%s766 + $0xf4] sm:$0xf] %v889
                %v891 = vld [vmem:[%s765 + $0x5d0] sm:$0xf]
                %892 = vst [vmem:[%s766 + $0xf8] sm:$0xf] %v891
                %v893 = vld [vmem:[%s765 + $0x5e8] sm:$0xf]
                %894 = vst [vmem:[%s766 + $0xfc] sm:$0xf] %v893
                %v895 = vld [vmem:[%s765 + $0x600] sm:$0xf]
                %896 = vst [vmem:[%s766 + $0x100] sm:$0xf] %v895
                %v897 = vld [vmem:[%s765 + $0x618] sm:$0xf]
                %898 = vst [vmem:[%s766 + $0x104] sm:$0xf] %v897
                %v899 = vld [vmem:[%s765 + $0x630] sm:$0xf]
                %900 = vst [vmem:[%s766 + $0x108] sm:$0xf] %v899
                %v901 = vld [vmem:[%s765 + $0x648] sm:$0xf]
                %902 = vst [vmem:[%s766 + $0x10c] sm:$0xf] %v901
                %v903 = vld [vmem:[%s765 + $0x660] sm:$0xf]
                %904 = vst [vmem:[%s766 + $0x110] sm:$0xf] %v903
                %v905 = vld [vmem:[%s765 + $0x678] sm:$0xf]
                %906 = vst [vmem:[%s766 + $0x114] sm:$0xf] %v905
                %v907 = vld [vmem:[%s765 + $0x690] sm:$0xf]
                %908 = vst [vmem:[%s766 + $0x118] sm:$0xf] %v907
                %v909 = vld [vmem:[%s765 + $0x6a8] sm:$0xf]
                %910 = vst [vmem:[%s766 + $0x11c] sm:$0xf] %v909
                %v911 = vld [vmem:[%s765 + $0x6c0] sm:$0xf]
                %912 = vst [vmem:[%s766 + $0x120] sm:$0xf] %v911
                %v913 = vld [vmem:[%s765 + $0x6d8] sm:$0xf]
                %914 = vst [vmem:[%s766 + $0x124] sm:$0xf] %v913
                %v915 = vld [vmem:[%s765 + $0x6f0] sm:$0xf]
                %916 = vst [vmem:[%s766 + $0x128] sm:$0xf] %v915
                %v917 = vld [vmem:[%s765 + $0x708] sm:$0xf]
                %918 = vst [vmem:[%s766 + $0x12c] sm:$0xf] %v917
                %v919 = vld [vmem:[%s765 + $0x720] sm:$0xf]
                %920 = vst [vmem:[%s766 + $0x130] sm:$0xf] %v919
                %v921 = vld [vmem:[%s765 + $0x738] sm:$0xf]
                %922 = vst [vmem:[%s766 + $0x134] sm:$0xf] %v921
                %v923 = vld [vmem:[%s765 + $0x750] sm:$0xf]
                %924 = vst [vmem:[%s766 + $0x138] sm:$0xf] %v923
                %v925 = vld [vmem:[%s765 + $0x768] sm:$0xf]
                %926 = vst [vmem:[%s766 + $0x13c] sm:$0xf] %v925
                %v927 = vld [vmem:[%s765 + $0x780] sm:$0xf]
                %928 = vst [vmem:[%s766 + $0x140] sm:$0xf] %v927
                %v929 = vld [vmem:[%s765 + $0x798] sm:$0xf]
                %930 = vst [vmem:[%s766 + $0x144] sm:$0xf] %v929
                %v931 = vld [vmem:[%s765 + $0x7b0] sm:$0xf]
                %932 = vst [vmem:[%s766 + $0x148] sm:$0xf] %v931
                %v933 = vld [vmem:[%s765 + $0x7c8] sm:$0xf]
                %934 = vst [vmem:[%s766 + $0x14c] sm:$0xf] %v933
                %v935 = vld [vmem:[%s765 + $0x7e0] sm:$0xf]
                %936 = vst [vmem:[%s766 + $0x150] sm:$0xf] %v935
                %v937 = vld [vmem:[%s765 + $0x7f8] sm:$0xf]
                %938 = vst [vmem:[%s766 + $0x154] sm:$0xf] %v937
                %v939 = vld [vmem:[%s765 + $0x810] sm:$0xf]
                %940 = vst [vmem:[%s766 + $0x158] sm:$0xf] %v939
                %v941 = vld [vmem:[%s765 + $0x828] sm:$0xf]
                %942 = vst [vmem:[%s766 + $0x15c] sm:$0xf] %v941
                %v943 = vld [vmem:[%s765 + $0x840] sm:$0xf]
                %944 = vst [vmem:[%s766 + $0x160] sm:$0xf] %v943
                %v945 = vld [vmem:[%s765 + $0x858] sm:$0xf]
                %946 = vst [vmem:[%s766 + $0x164] sm:$0xf] %v945
                %v947 = vld [vmem:[%s765 + $0x870] sm:$0xf]
                %948 = vst [vmem:[%s766 + $0x168] sm:$0xf] %v947
                %v949 = vld [vmem:[%s765 + $0x888] sm:$0xf]
                %950 = vst [vmem:[%s766 + $0x16c] sm:$0xf] %v949
                %v951 = vld [vmem:[%s765 + $0x8a0] sm:$0xf]
                %952 = vst [vmem:[%s766 + $0x170] sm:$0xf] %v951
                %v953 = vld [vmem:[%s765 + $0x8b8] sm:$0xf]
                %954 = vst [vmem:[%s766 + $0x174] sm:$0xf] %v953
                %v955 = vld [vmem:[%s765 + $0x8d0] sm:$0xf]
                %956 = vst [vmem:[%s766 + $0x178] sm:$0xf] %v955
                %v957 = vld [vmem:[%s765 + $0x8e8] sm:$0xf]
                %958 = vst [vmem:[%s766 + $0x17c] sm:$0xf] %v957
                %v959 = vld [vmem:[%s765 + $0x900] sm:$0xf]
                %960 = vst [vmem:[%s766 + $0x180] sm:$0xf] %v959
                %v961 = vld [vmem:[%s765 + $0x918] sm:$0xf]
                %962 = vst [vmem:[%s766 + $0x184] sm:$0xf] %v961
                %v963 = vld [vmem:[%s765 + $0x930] sm:$0xf]
                %964 = vst [vmem:[%s766 + $0x188] sm:$0xf] %v963
                %v965 = vld [vmem:[%s765 + $0x948] sm:$0xf]
                %966 = vst [vmem:[%s766 + $0x18c] sm:$0xf] %v965
                %v967 = vld [vmem:[%s765 + $0x960] sm:$0xf]
                %968 = vst [vmem:[%s766 + $0x190] sm:$0xf] %v967
                %v969 = vld [vmem:[%s765 + $0x978] sm:$0xf]
                %970 = vst [vmem:[%s766 + $0x194] sm:$0xf] %v969
                %v971 = vld [vmem:[%s765 + $0x990] sm:$0xf]
                %972 = vst [vmem:[%s766 + $0x198] sm:$0xf] %v971
                %v973 = vld [vmem:[%s765 + $0x9a8] sm:$0xf]
                %974 = vst [vmem:[%s766 + $0x19c] sm:$0xf] %v973
                %v975 = vld [vmem:[%s765 + $0x9c0] sm:$0xf]
                %976 = vst [vmem:[%s766 + $0x1a0] sm:$0xf] %v975
                %v977 = vld [vmem:[%s765 + $0x9d8] sm:$0xf]
                %978 = vst [vmem:[%s766 + $0x1a4] sm:$0xf] %v977
                %v979 = vld [vmem:[%s765 + $0x9f0] sm:$0xf]
                %980 = vst [vmem:[%s766 + $0x1a8] sm:$0xf] %v979
                %v981 = vld [vmem:[%s765 + $0xa08] sm:$0xf]
                %982 = vst [vmem:[%s766 + $0x1ac] sm:$0xf] %v981
                %v983 = vld [vmem:[%s765 + $0xa20] sm:$0xf]
                %984 = vst [vmem:[%s766 + $0x1b0] sm:$0xf] %v983
                %v985 = vld [vmem:[%s765 + $0xa38] sm:$0xf]
                %986 = vst [vmem:[%s766 + $0x1b4] sm:$0xf] %v985
                %v987 = vld [vmem:[%s765 + $0xa50] sm:$0xf]
                %988 = vst [vmem:[%s766 + $0x1b8] sm:$0xf] %v987
                %v989 = vld [vmem:[%s765 + $0xa68] sm:$0xf]
                %990 = vst [vmem:[%s766 + $0x1bc] sm:$0xf] %v989
                %v991 = vld [vmem:[%s765 + $0xa80] sm:$0xf]
                %992 = vst [vmem:[%s766 + $0x1c0] sm:$0xf] %v991
                %v993 = vld [vmem:[%s765 + $0xa98] sm:$0xf]
                %994 = vst [vmem:[%s766 + $0x1c4] sm:$0xf] %v993
                %v995 = vld [vmem:[%s765 + $0xab0] sm:$0xf]
                %996 = vst [vmem:[%s766 + $0x1c8] sm:$0xf] %v995
                %v997 = vld [vmem:[%s765 + $0xac8] sm:$0xf]
                %998 = vst [vmem:[%s766 + $0x1cc] sm:$0xf] %v997
                %v999 = vld [vmem:[%s765 + $0xae0] sm:$0xf]
                %1000 = vst [vmem:[%s766 + $0x1d0] sm:$0xf] %v999
                %v1001 = vld [vmem:[%s765 + $0xaf8] sm:$0xf]
                %1002 = vst [vmem:[%s766 + $0x1d4] sm:$0xf] %v1001
                %v1003 = vld [vmem:[%s765 + $0xb10] sm:$0xf]
                %1004 = vst [vmem:[%s766 + $0x1d8] sm:$0xf] %v1003
                %v1005 = vld [vmem:[%s765 + $0xb28] sm:$0xf]
                %1006 = vst [vmem:[%s766 + $0x1dc] sm:$0xf] %v1005
                %v1007 = vld [vmem:[%s765 + $0xb40] sm:$0xf]
                %1008 = vst [vmem:[%s766 + $0x1e0] sm:$0xf] %v1007
                %v1009 = vld [vmem:[%s765 + $0xb58] sm:$0xf]
                %1010 = vst [vmem:[%s766 + $0x1e4] sm:$0xf] %v1009
                %v1011 = vld [vmem:[%s765 + $0xb70] sm:$0xf]
                %1012 = vst [vmem:[%s766 + $0x1e8] sm:$0xf] %v1011
                %v1013 = vld [vmem:[%s765 + $0xb88] sm:$0xf]
                %1014 = vst [vmem:[%s766 + $0x1ec] sm:$0xf] %v1013
                %v1015 = vld [vmem:[%s765 + $0xba0] sm:$0xf]
                %1016 = vst [vmem:[%s766 + $0x1f0] sm:$0xf] %v1015
                %v1017 = vld [vmem:[%s765 + $0xbb8] sm:$0xf]
                %1018 = vst [vmem:[%s766 + $0x1f4] sm:$0xf] %v1017
                %v1019 = vld [vmem:[%s765 + $0xbd0] sm:$0xf]
                %1020 = vst [vmem:[%s766 + $0x1f8] sm:$0xf] %v1019
                %v1021 = vld [vmem:[%s765 + $0xbe8] sm:$0xf]
                %1022 = vst [vmem:[%s766 + $0x1fc] sm:$0xf] %v1021
              $region78: #{multihead_self_attention.4} parent=72 // loop_footer
                %s764 = sadd.s32 1, %s760
              $region79: #{multihead_self_attention.4} parent=72 // loop_footer_branch
                %759 = sbr.rel target = $region75
              $region80: #{multihead_self_attention.4} parent=72 // loop_exit
                _
            $region73: #{multihead_self_attention.4} parent=64 // pred_fallthru
              _
          $region65: #{multihead_self_attention.4} parent=60 // pred_fallthru
            _
          %1298 = vnop
        $region61: #{multihead_self_attention.4} parent=15 // pred_fallthru
          _
        // Predicated region
        $region99: #{multihead_self_attention.4} parent=15 // pred_check
          %p1299 = pneg %p100
        $region100: #{multihead_self_attention.4} parent=15 // pred_check_branch
          %1301 = sbr.rel (%p1299) target = $region102
        $region101: #{multihead_self_attention.4} parent=15 // pred_region
          %s1302 = sand.u32 %s90, 1
          %s1303 = sand.u32 %s90, 1
          %s1304 = smul.addr %s1303, 512
          %s1305 = scalar_lea.vmem [#allocation5], %s1304
          %s1306 = smul.addr %s21, 3
          %s1307 = sadd.s32 2, %s1306
          %s1308 = smul.addr %s1307, 4
          %s1309 = scalar_lea.vmem %s2, %s1308
          // Predicated region
          $region103: #{multihead_self_attention.4} parent=101 // pred_check
            _
          $region104: #{multihead_self_attention.4} parent=101 // pred_check_branch
            %1311 = sbr.rel (0) target = $region106
          $region105: #{multihead_self_attention.4} parent=101 // pred_region
            // Predicated region
            $region107: #{multihead_self_attention.4} parent=105 // pred_check
              _
            $region108: #{multihead_self_attention.4} parent=105 // pred_check_branch
              %1313 = sbr.rel target = $region110
            $region109: #{multihead_self_attention.4} parent=105 // pred_region
              // Predicated region
              $region122: #{multihead_self_attention.4} parent=109 // pred_check
                _
              $region123: #{multihead_self_attention.4} parent=109 // pred_check_branch
                %1582 = sbr.rel (0) target = $region125
              $region124: #{multihead_self_attention.4} parent=109 // pred_region
                loop: start=0, step=1, limit=1
                $region126: #{multihead_self_attention.4} parent=124 // loop_pre_header
                  _
                $region127: #{multihead_self_attention.4} parent=124 // loop_header
                  %s1584 = sphi 0, %s1588
                  %p1585 = scmp.ge.s32.totalorder %s1584, 1
                  %s1589 = sphi %s1309, %s1309
                  %s1590 = sphi %s1305, %s1305
                $region128: #{multihead_self_attention.4} parent=124 // loop_header_branch
                  %1587 = sbr.rel (%p1585) target = $region132
                $region129: #{multihead_self_attention.4} parent=124 // loop_body
                  _
                $region130: #{multihead_self_attention.4} parent=124 // loop_footer
                  %s1588 = sadd.s32 1, %s1584
                $region131: #{multihead_self_attention.4} parent=124 // loop_footer_branch
                  %1583 = sbr.rel target = $region127
                $region132: #{multihead_self_attention.4} parent=124 // loop_exit
                  _
                loop: start=0, step=1, limit=1
                $region133: #{multihead_self_attention.4} parent=124 // loop_pre_header
                  _
                $region134: #{multihead_self_attention.4} parent=124 // loop_header
                  %s1593 = sphi 0, %s1597
                  %p1594 = scmp.ge.s32.totalorder %s1593, 1
                  %s1598 = sphi %s1309, %s1309
                  %s1599 = sphi %s1305, %s1305
                $region135: #{multihead_self_attention.4} parent=124 // loop_header_branch
                  %1596 = sbr.rel (%p1594) target = $region139
                $region136: #{multihead_self_attention.4} parent=124 // loop_body
                  %v1600 = vld [vmem:[%s1598] sm:$0xf]
                  %1601 = vst [vmem:[%s1599] sm:$0xf] %v1600
                  %v1602 = vld [vmem:[%s1598 + $0x18] sm:$0xf]
                  %1603 = vst [vmem:[%s1599 + $0x4] sm:$0xf] %v1602
                  %v1604 = vld [vmem:[%s1598 + $0x30] sm:$0xf]
                  %1605 = vst [vmem:[%s1599 + $0x8] sm:$0xf] %v1604
                  %v1606 = vld [vmem:[%s1598 + $0x48] sm:$0xf]
                  %1607 = vst [vmem:[%s1599 + $0xc] sm:$0xf] %v1606
                  %v1608 = vld [vmem:[%s1598 + $0x60] sm:$0xf]
                  %1609 = vst [vmem:[%s1599 + $0x10] sm:$0xf] %v1608
                  %v1610 = vld [vmem:[%s1598 + $0x78] sm:$0xf]
                  %1611 = vst [vmem:[%s1599 + $0x14] sm:$0xf] %v1610
                  %v1612 = vld [vmem:[%s1598 + $0x90] sm:$0xf]
                  %1613 = vst [vmem:[%s1599 + $0x18] sm:$0xf] %v1612
                  %v1614 = vld [vmem:[%s1598 + $0xa8] sm:$0xf]
                  %1615 = vst [vmem:[%s1599 + $0x1c] sm:$0xf] %v1614
                  %v1616 = vld [vmem:[%s1598 + $0xc0] sm:$0xf]
                  %1617 = vst [vmem:[%s1599 + $0x20] sm:$0xf] %v1616
                  %v1618 = vld [vmem:[%s1598 + $0xd8] sm:$0xf]
                  %1619 = vst [vmem:[%s1599 + $0x24] sm:$0xf] %v1618
                  %v1620 = vld [vmem:[%s1598 + $0xf0] sm:$0xf]
                  %1621 = vst [vmem:[%s1599 + $0x28] sm:$0xf] %v1620
                  %v1622 = vld [vmem:[%s1598 + $0x108] sm:$0xf]
                  %1623 = vst [vmem:[%s1599 + $0x2c] sm:$0xf] %v1622
                  %v1624 = vld [vmem:[%s1598 + $0x120] sm:$0xf]
                  %1625 = vst [vmem:[%s1599 + $0x30] sm:$0xf] %v1624
                  %v1626 = vld [vmem:[%s1598 + $0x138] sm:$0xf]
                  %1627 = vst [vmem:[%s1599 + $0x34] sm:$0xf] %v1626
                  %v1628 = vld [vmem:[%s1598 + $0x150] sm:$0xf]
                  %1629 = vst [vmem:[%s1599 + $0x38] sm:$0xf] %v1628
                  %v1630 = vld [vmem:[%s1598 + $0x168] sm:$0xf]
                  %1631 = vst [vmem:[%s1599 + $0x3c] sm:$0xf] %v1630
                  %v1632 = vld [vmem:[%s1598 + $0x180] sm:$0xf]
                  %1633 = vst [vmem:[%s1599 + $0x40] sm:$0xf] %v1632
                  %v1634 = vld [vmem:[%s1598 + $0x198] sm:$0xf]
                  %1635 = vst [vmem:[%s1599 + $0x44] sm:$0xf] %v1634
                  %v1636 = vld [vmem:[%s1598 + $0x1b0] sm:$0xf]
                  %1637 = vst [vmem:[%s1599 + $0x48] sm:$0xf] %v1636
                  %v1638 = vld [vmem:[%s1598 + $0x1c8] sm:$0xf]
                  %1639 = vst [vmem:[%s1599 + $0x4c] sm:$0xf] %v1638
                  %v1640 = vld [vmem:[%s1598 + $0x1e0] sm:$0xf]
                  %1641 = vst [vmem:[%s1599 + $0x50] sm:$0xf] %v1640
                  %v1642 = vld [vmem:[%s1598 + $0x1f8] sm:$0xf]
                  %1643 = vst [vmem:[%s1599 + $0x54] sm:$0xf] %v1642
                  %v1644 = vld [vmem:[%s1598 + $0x210] sm:$0xf]
                  %1645 = vst [vmem:[%s1599 + $0x58] sm:$0xf] %v1644
                  %v1646 = vld [vmem:[%s1598 + $0x228] sm:$0xf]
                  %1647 = vst [vmem:[%s1599 + $0x5c] sm:$0xf] %v1646
                  %v1648 = vld [vmem:[%s1598 + $0x240] sm:$0xf]
                  %1649 = vst [vmem:[%s1599 + $0x60] sm:$0xf] %v1648
                  %v1650 = vld [vmem:[%s1598 + $0x258] sm:$0xf]
                  %1651 = vst [vmem:[%s1599 + $0x64] sm:$0xf] %v1650
                  %v1652 = vld [vmem:[%s1598 + $0x270] sm:$0xf]
                  %1653 = vst [vmem:[%s1599 + $0x68] sm:$0xf] %v1652
                  %v1654 = vld [vmem:[%s1598 + $0x288] sm:$0xf]
                  %1655 = vst [vmem:[%s1599 + $0x6c] sm:$0xf] %v1654
                  %v1656 = vld [vmem:[%s1598 + $0x2a0] sm:$0xf]
                  %1657 = vst [vmem:[%s1599 + $0x70] sm:$0xf] %v1656
                  %v1658 = vld [vmem:[%s1598 + $0x2b8] sm:$0xf]
                  %1659 = vst [vmem:[%s1599 + $0x74] sm:$0xf] %v1658
                  %v1660 = vld [vmem:[%s1598 + $0x2d0] sm:$0xf]
                  %1661 = vst [vmem:[%s1599 + $0x78] sm:$0xf] %v1660
                  %v1662 = vld [vmem:[%s1598 + $0x2e8] sm:$0xf]
                  %1663 = vst [vmem:[%s1599 + $0x7c] sm:$0xf] %v1662
                  %v1664 = vld [vmem:[%s1598 + $0x300] sm:$0xf]
                  %1665 = vst [vmem:[%s1599 + $0x80] sm:$0xf] %v1664
                  %v1666 = vld [vmem:[%s1598 + $0x318] sm:$0xf]
                  %1667 = vst [vmem:[%s1599 + $0x84] sm:$0xf] %v1666
                  %v1668 = vld [vmem:[%s1598 + $0x330] sm:$0xf]
                  %1669 = vst [vmem:[%s1599 + $0x88] sm:$0xf] %v1668
                  %v1670 = vld [vmem:[%s1598 + $0x348] sm:$0xf]
                  %1671 = vst [vmem:[%s1599 + $0x8c] sm:$0xf] %v1670
                  %v1672 = vld [vmem:[%s1598 + $0x360] sm:$0xf]
                  %1673 = vst [vmem:[%s1599 + $0x90] sm:$0xf] %v1672
                  %v1674 = vld [vmem:[%s1598 + $0x378] sm:$0xf]
                  %1675 = vst [vmem:[%s1599 + $0x94] sm:$0xf] %v1674
                  %v1676 = vld [vmem:[%s1598 + $0x390] sm:$0xf]
                  %1677 = vst [vmem:[%s1599 + $0x98] sm:$0xf] %v1676
                  %v1678 = vld [vmem:[%s1598 + $0x3a8] sm:$0xf]
                  %1679 = vst [vmem:[%s1599 + $0x9c] sm:$0xf] %v1678
                  %v1680 = vld [vmem:[%s1598 + $0x3c0] sm:$0xf]
                  %1681 = vst [vmem:[%s1599 + $0xa0] sm:$0xf] %v1680
                  %v1682 = vld [vmem:[%s1598 + $0x3d8] sm:$0xf]
                  %1683 = vst [vmem:[%s1599 + $0xa4] sm:$0xf] %v1682
                  %v1684 = vld [vmem:[%s1598 + $0x3f0] sm:$0xf]
                  %1685 = vst [vmem:[%s1599 + $0xa8] sm:$0xf] %v1684
                  %v1686 = vld [vmem:[%s1598 + $0x408] sm:$0xf]
                  %1687 = vst [vmem:[%s1599 + $0xac] sm:$0xf] %v1686
                  %v1688 = vld [vmem:[%s1598 + $0x420] sm:$0xf]
                  %1689 = vst [vmem:[%s1599 + $0xb0] sm:$0xf] %v1688
                  %v1690 = vld [vmem:[%s1598 + $0x438] sm:$0xf]
                  %1691 = vst [vmem:[%s1599 + $0xb4] sm:$0xf] %v1690
                  %v1692 = vld [vmem:[%s1598 + $0x450] sm:$0xf]
                  %1693 = vst [vmem:[%s1599 + $0xb8] sm:$0xf] %v1692
                  %v1694 = vld [vmem:[%s1598 + $0x468] sm:$0xf]
                  %1695 = vst [vmem:[%s1599 + $0xbc] sm:$0xf] %v1694
                  %v1696 = vld [vmem:[%s1598 + $0x480] sm:$0xf]
                  %1697 = vst [vmem:[%s1599 + $0xc0] sm:$0xf] %v1696
                  %v1698 = vld [vmem:[%s1598 + $0x498] sm:$0xf]
                  %1699 = vst [vmem:[%s1599 + $0xc4] sm:$0xf] %v1698
                  %v1700 = vld [vmem:[%s1598 + $0x4b0] sm:$0xf]
                  %1701 = vst [vmem:[%s1599 + $0xc8] sm:$0xf] %v1700
                  %v1702 = vld [vmem:[%s1598 + $0x4c8] sm:$0xf]
                  %1703 = vst [vmem:[%s1599 + $0xcc] sm:$0xf] %v1702
                  %v1704 = vld [vmem:[%s1598 + $0x4e0] sm:$0xf]
                  %1705 = vst [vmem:[%s1599 + $0xd0] sm:$0xf] %v1704
                  %v1706 = vld [vmem:[%s1598 + $0x4f8] sm:$0xf]
                  %1707 = vst [vmem:[%s1599 + $0xd4] sm:$0xf] %v1706
                  %v1708 = vld [vmem:[%s1598 + $0x510] sm:$0xf]
                  %1709 = vst [vmem:[%s1599 + $0xd8] sm:$0xf] %v1708
                  %v1710 = vld [vmem:[%s1598 + $0x528] sm:$0xf]
                  %1711 = vst [vmem:[%s1599 + $0xdc] sm:$0xf] %v1710
                  %v1712 = vld [vmem:[%s1598 + $0x540] sm:$0xf]
                  %1713 = vst [vmem:[%s1599 + $0xe0] sm:$0xf] %v1712
                  %v1714 = vld [vmem:[%s1598 + $0x558] sm:$0xf]
                  %1715 = vst [vmem:[%s1599 + $0xe4] sm:$0xf] %v1714
                  %v1716 = vld [vmem:[%s1598 + $0x570] sm:$0xf]
                  %1717 = vst [vmem:[%s1599 + $0xe8] sm:$0xf] %v1716
                  %v1718 = vld [vmem:[%s1598 + $0x588] sm:$0xf]
                  %1719 = vst [vmem:[%s1599 + $0xec] sm:$0xf] %v1718
                  %v1720 = vld [vmem:[%s1598 + $0x5a0] sm:$0xf]
                  %1721 = vst [vmem:[%s1599 + $0xf0] sm:$0xf] %v1720
                  %v1722 = vld [vmem:[%s1598 + $0x5b8] sm:$0xf]
                  %1723 = vst [vmem:[%s1599 + $0xf4] sm:$0xf] %v1722
                  %v1724 = vld [vmem:[%s1598 + $0x5d0] sm:$0xf]
                  %1725 = vst [vmem:[%s1599 + $0xf8] sm:$0xf] %v1724
                  %v1726 = vld [vmem:[%s1598 + $0x5e8] sm:$0xf]
                  %1727 = vst [vmem:[%s1599 + $0xfc] sm:$0xf] %v1726
                  %v1728 = vld [vmem:[%s1598 + $0x600] sm:$0xf]
                  %1729 = vst [vmem:[%s1599 + $0x100] sm:$0xf] %v1728
                  %v1730 = vld [vmem:[%s1598 + $0x618] sm:$0xf]
                  %1731 = vst [vmem:[%s1599 + $0x104] sm:$0xf] %v1730
                  %v1732 = vld [vmem:[%s1598 + $0x630] sm:$0xf]
                  %1733 = vst [vmem:[%s1599 + $0x108] sm:$0xf] %v1732
                  %v1734 = vld [vmem:[%s1598 + $0x648] sm:$0xf]
                  %1735 = vst [vmem:[%s1599 + $0x10c] sm:$0xf] %v1734
                  %v1736 = vld [vmem:[%s1598 + $0x660] sm:$0xf]
                  %1737 = vst [vmem:[%s1599 + $0x110] sm:$0xf] %v1736
                  %v1738 = vld [vmem:[%s1598 + $0x678] sm:$0xf]
                  %1739 = vst [vmem:[%s1599 + $0x114] sm:$0xf] %v1738
                  %v1740 = vld [vmem:[%s1598 + $0x690] sm:$0xf]
                  %1741 = vst [vmem:[%s1599 + $0x118] sm:$0xf] %v1740
                  %v1742 = vld [vmem:[%s1598 + $0x6a8] sm:$0xf]
                  %1743 = vst [vmem:[%s1599 + $0x11c] sm:$0xf] %v1742
                  %v1744 = vld [vmem:[%s1598 + $0x6c0] sm:$0xf]
                  %1745 = vst [vmem:[%s1599 + $0x120] sm:$0xf] %v1744
                  %v1746 = vld [vmem:[%s1598 + $0x6d8] sm:$0xf]
                  %1747 = vst [vmem:[%s1599 + $0x124] sm:$0xf] %v1746
                  %v1748 = vld [vmem:[%s1598 + $0x6f0] sm:$0xf]
                  %1749 = vst [vmem:[%s1599 + $0x128] sm:$0xf] %v1748
                  %v1750 = vld [vmem:[%s1598 + $0x708] sm:$0xf]
                  %1751 = vst [vmem:[%s1599 + $0x12c] sm:$0xf] %v1750
                  %v1752 = vld [vmem:[%s1598 + $0x720] sm:$0xf]
                  %1753 = vst [vmem:[%s1599 + $0x130] sm:$0xf] %v1752
                  %v1754 = vld [vmem:[%s1598 + $0x738] sm:$0xf]
                  %1755 = vst [vmem:[%s1599 + $0x134] sm:$0xf] %v1754
                  %v1756 = vld [vmem:[%s1598 + $0x750] sm:$0xf]
                  %1757 = vst [vmem:[%s1599 + $0x138] sm:$0xf] %v1756
                  %v1758 = vld [vmem:[%s1598 + $0x768] sm:$0xf]
                  %1759 = vst [vmem:[%s1599 + $0x13c] sm:$0xf] %v1758
                  %v1760 = vld [vmem:[%s1598 + $0x780] sm:$0xf]
                  %1761 = vst [vmem:[%s1599 + $0x140] sm:$0xf] %v1760
                  %v1762 = vld [vmem:[%s1598 + $0x798] sm:$0xf]
                  %1763 = vst [vmem:[%s1599 + $0x144] sm:$0xf] %v1762
                  %v1764 = vld [vmem:[%s1598 + $0x7b0] sm:$0xf]
                  %1765 = vst [vmem:[%s1599 + $0x148] sm:$0xf] %v1764
                  %v1766 = vld [vmem:[%s1598 + $0x7c8] sm:$0xf]
                  %1767 = vst [vmem:[%s1599 + $0x14c] sm:$0xf] %v1766
                  %v1768 = vld [vmem:[%s1598 + $0x7e0] sm:$0xf]
                  %1769 = vst [vmem:[%s1599 + $0x150] sm:$0xf] %v1768
                  %v1770 = vld [vmem:[%s1598 + $0x7f8] sm:$0xf]
                  %1771 = vst [vmem:[%s1599 + $0x154] sm:$0xf] %v1770
                  %v1772 = vld [vmem:[%s1598 + $0x810] sm:$0xf]
                  %1773 = vst [vmem:[%s1599 + $0x158] sm:$0xf] %v1772
                  %v1774 = vld [vmem:[%s1598 + $0x828] sm:$0xf]
                  %1775 = vst [vmem:[%s1599 + $0x15c] sm:$0xf] %v1774
                  %v1776 = vld [vmem:[%s1598 + $0x840] sm:$0xf]
                  %1777 = vst [vmem:[%s1599 + $0x160] sm:$0xf] %v1776
                  %v1778 = vld [vmem:[%s1598 + $0x858] sm:$0xf]
                  %1779 = vst [vmem:[%s1599 + $0x164] sm:$0xf] %v1778
                  %v1780 = vld [vmem:[%s1598 + $0x870] sm:$0xf]
                  %1781 = vst [vmem:[%s1599 + $0x168] sm:$0xf] %v1780
                  %v1782 = vld [vmem:[%s1598 + $0x888] sm:$0xf]
                  %1783 = vst [vmem:[%s1599 + $0x16c] sm:$0xf] %v1782
                  %v1784 = vld [vmem:[%s1598 + $0x8a0] sm:$0xf]
                  %1785 = vst [vmem:[%s1599 + $0x170] sm:$0xf] %v1784
                  %v1786 = vld [vmem:[%s1598 + $0x8b8] sm:$0xf]
                  %1787 = vst [vmem:[%s1599 + $0x174] sm:$0xf] %v1786
                  %v1788 = vld [vmem:[%s1598 + $0x8d0] sm:$0xf]
                  %1789 = vst [vmem:[%s1599 + $0x178] sm:$0xf] %v1788
                  %v1790 = vld [vmem:[%s1598 + $0x8e8] sm:$0xf]
                  %1791 = vst [vmem:[%s1599 + $0x17c] sm:$0xf] %v1790
                  %v1792 = vld [vmem:[%s1598 + $0x900] sm:$0xf]
                  %1793 = vst [vmem:[%s1599 + $0x180] sm:$0xf] %v1792
                  %v1794 = vld [vmem:[%s1598 + $0x918] sm:$0xf]
                  %1795 = vst [vmem:[%s1599 + $0x184] sm:$0xf] %v1794
                  %v1796 = vld [vmem:[%s1598 + $0x930] sm:$0xf]
                  %1797 = vst [vmem:[%s1599 + $0x188] sm:$0xf] %v1796
                  %v1798 = vld [vmem:[%s1598 + $0x948] sm:$0xf]
                  %1799 = vst [vmem:[%s1599 + $0x18c] sm:$0xf] %v1798
                  %v1800 = vld [vmem:[%s1598 + $0x960] sm:$0xf]
                  %1801 = vst [vmem:[%s1599 + $0x190] sm:$0xf] %v1800
                  %v1802 = vld [vmem:[%s1598 + $0x978] sm:$0xf]
                  %1803 = vst [vmem:[%s1599 + $0x194] sm:$0xf] %v1802
                  %v1804 = vld [vmem:[%s1598 + $0x990] sm:$0xf]
                  %1805 = vst [vmem:[%s1599 + $0x198] sm:$0xf] %v1804
                  %v1806 = vld [vmem:[%s1598 + $0x9a8] sm:$0xf]
                  %1807 = vst [vmem:[%s1599 + $0x19c] sm:$0xf] %v1806
                  %v1808 = vld [vmem:[%s1598 + $0x9c0] sm:$0xf]
                  %1809 = vst [vmem:[%s1599 + $0x1a0] sm:$0xf] %v1808
                  %v1810 = vld [vmem:[%s1598 + $0x9d8] sm:$0xf]
                  %1811 = vst [vmem:[%s1599 + $0x1a4] sm:$0xf] %v1810
                  %v1812 = vld [vmem:[%s1598 + $0x9f0] sm:$0xf]
                  %1813 = vst [vmem:[%s1599 + $0x1a8] sm:$0xf] %v1812
                  %v1814 = vld [vmem:[%s1598 + $0xa08] sm:$0xf]
                  %1815 = vst [vmem:[%s1599 + $0x1ac] sm:$0xf] %v1814
                  %v1816 = vld [vmem:[%s1598 + $0xa20] sm:$0xf]
                  %1817 = vst [vmem:[%s1599 + $0x1b0] sm:$0xf] %v1816
                  %v1818 = vld [vmem:[%s1598 + $0xa38] sm:$0xf]
                  %1819 = vst [vmem:[%s1599 + $0x1b4] sm:$0xf] %v1818
                  %v1820 = vld [vmem:[%s1598 + $0xa50] sm:$0xf]
                  %1821 = vst [vmem:[%s1599 + $0x1b8] sm:$0xf] %v1820
                  %v1822 = vld [vmem:[%s1598 + $0xa68] sm:$0xf]
                  %1823 = vst [vmem:[%s1599 + $0x1bc] sm:$0xf] %v1822
                  %v1824 = vld [vmem:[%s1598 + $0xa80] sm:$0xf]
                  %1825 = vst [vmem:[%s1599 + $0x1c0] sm:$0xf] %v1824
                  %v1826 = vld [vmem:[%s1598 + $0xa98] sm:$0xf]
                  %1827 = vst [vmem:[%s1599 + $0x1c4] sm:$0xf] %v1826
                  %v1828 = vld [vmem:[%s1598 + $0xab0] sm:$0xf]
                  %1829 = vst [vmem:[%s1599 + $0x1c8] sm:$0xf] %v1828
                  %v1830 = vld [vmem:[%s1598 + $0xac8] sm:$0xf]
                  %1831 = vst [vmem:[%s1599 + $0x1cc] sm:$0xf] %v1830
                  %v1832 = vld [vmem:[%s1598 + $0xae0] sm:$0xf]
                  %1833 = vst [vmem:[%s1599 + $0x1d0] sm:$0xf] %v1832
                  %v1834 = vld [vmem:[%s1598 + $0xaf8] sm:$0xf]
                  %1835 = vst [vmem:[%s1599 + $0x1d4] sm:$0xf] %v1834
                  %v1836 = vld [vmem:[%s1598 + $0xb10] sm:$0xf]
                  %1837 = vst [vmem:[%s1599 + $0x1d8] sm:$0xf] %v1836
                  %v1838 = vld [vmem:[%s1598 + $0xb28] sm:$0xf]
                  %1839 = vst [vmem:[%s1599 + $0x1dc] sm:$0xf] %v1838
                  %v1840 = vld [vmem:[%s1598 + $0xb40] sm:$0xf]
                  %1841 = vst [vmem:[%s1599 + $0x1e0] sm:$0xf] %v1840
                  %v1842 = vld [vmem:[%s1598 + $0xb58] sm:$0xf]
                  %1843 = vst [vmem:[%s1599 + $0x1e4] sm:$0xf] %v1842
                  %v1844 = vld [vmem:[%s1598 + $0xb70] sm:$0xf]
                  %1845 = vst [vmem:[%s1599 + $0x1e8] sm:$0xf] %v1844
                  %v1846 = vld [vmem:[%s1598 + $0xb88] sm:$0xf]
                  %1847 = vst [vmem:[%s1599 + $0x1ec] sm:$0xf] %v1846
                  %v1848 = vld [vmem:[%s1598 + $0xba0] sm:$0xf]
                  %1849 = vst [vmem:[%s1599 + $0x1f0] sm:$0xf] %v1848
                  %v1850 = vld [vmem:[%s1598 + $0xbb8] sm:$0xf]
                  %1851 = vst [vmem:[%s1599 + $0x1f4] sm:$0xf] %v1850
                  %v1852 = vld [vmem:[%s1598 + $0xbd0] sm:$0xf]
                  %1853 = vst [vmem:[%s1599 + $0x1f8] sm:$0xf] %v1852
                  %v1854 = vld [vmem:[%s1598 + $0xbe8] sm:$0xf]
                  %1855 = vst [vmem:[%s1599 + $0x1fc] sm:$0xf] %v1854
                $region137: #{multihead_self_attention.4} parent=124 // loop_footer
                  %s1597 = sadd.s32 1, %s1593
                $region138: #{multihead_self_attention.4} parent=124 // loop_footer_branch
                  %1592 = sbr.rel target = $region134
                $region139: #{multihead_self_attention.4} parent=124 // loop_exit
                  _
              $region125: #{multihead_self_attention.4} parent=109 // pred_fallthru
                _
            $region110: #{multihead_self_attention.4} parent=105 // pred_fallthru
              _
            // Predicated region
            $region111: #{multihead_self_attention.4} parent=105 // pred_check
              _
            $region112: #{multihead_self_attention.4} parent=105 // pred_check_branch
              %1315 = sbr.rel (0) target = $region114
            $region113: #{multihead_self_attention.4} parent=105 // pred_region
              loop: start=0, step=1, limit=1
              $region115: #{multihead_self_attention.4} parent=113 // loop_pre_header
                _
              $region116: #{multihead_self_attention.4} parent=113 // loop_header
                %s1318 = sphi 0, %s1322
                %p1319 = scmp.ge.s32.totalorder %s1318, 1
                %s1323 = sphi %s1309, %s1309
                %s1324 = sphi %s1305, %s1305
              $region117: #{multihead_self_attention.4} parent=113 // loop_header_branch
                %1321 = sbr.rel (%p1319) target = $region121
              $region118: #{multihead_self_attention.4} parent=113 // loop_body
                %v1325 = vld [vmem:[%s1323] sm:$0xf]
                %1326 = vst [vmem:[%s1324] sm:$0xf] %v1325
                %v1327 = vld [vmem:[%s1323 + $0x18] sm:$0xf]
                %1328 = vst [vmem:[%s1324 + $0x4] sm:$0xf] %v1327
                %v1329 = vld [vmem:[%s1323 + $0x30] sm:$0xf]
                %1330 = vst [vmem:[%s1324 + $0x8] sm:$0xf] %v1329
                %v1331 = vld [vmem:[%s1323 + $0x48] sm:$0xf]
                %1332 = vst [vmem:[%s1324 + $0xc] sm:$0xf] %v1331
                %v1333 = vld [vmem:[%s1323 + $0x60] sm:$0xf]
                %1334 = vst [vmem:[%s1324 + $0x10] sm:$0xf] %v1333
                %v1335 = vld [vmem:[%s1323 + $0x78] sm:$0xf]
                %1336 = vst [vmem:[%s1324 + $0x14] sm:$0xf] %v1335
                %v1337 = vld [vmem:[%s1323 + $0x90] sm:$0xf]
                %1338 = vst [vmem:[%s1324 + $0x18] sm:$0xf] %v1337
                %v1339 = vld [vmem:[%s1323 + $0xa8] sm:$0xf]
                %1340 = vst [vmem:[%s1324 + $0x1c] sm:$0xf] %v1339
                %v1341 = vld [vmem:[%s1323 + $0xc0] sm:$0xf]
                %1342 = vst [vmem:[%s1324 + $0x20] sm:$0xf] %v1341
                %v1343 = vld [vmem:[%s1323 + $0xd8] sm:$0xf]
                %1344 = vst [vmem:[%s1324 + $0x24] sm:$0xf] %v1343
                %v1345 = vld [vmem:[%s1323 + $0xf0] sm:$0xf]
                %1346 = vst [vmem:[%s1324 + $0x28] sm:$0xf] %v1345
                %v1347 = vld [vmem:[%s1323 + $0x108] sm:$0xf]
                %1348 = vst [vmem:[%s1324 + $0x2c] sm:$0xf] %v1347
                %v1349 = vld [vmem:[%s1323 + $0x120] sm:$0xf]
                %1350 = vst [vmem:[%s1324 + $0x30] sm:$0xf] %v1349
                %v1351 = vld [vmem:[%s1323 + $0x138] sm:$0xf]
                %1352 = vst [vmem:[%s1324 + $0x34] sm:$0xf] %v1351
                %v1353 = vld [vmem:[%s1323 + $0x150] sm:$0xf]
                %1354 = vst [vmem:[%s1324 + $0x38] sm:$0xf] %v1353
                %v1355 = vld [vmem:[%s1323 + $0x168] sm:$0xf]
                %1356 = vst [vmem:[%s1324 + $0x3c] sm:$0xf] %v1355
                %v1357 = vld [vmem:[%s1323 + $0x180] sm:$0xf]
                %1358 = vst [vmem:[%s1324 + $0x40] sm:$0xf] %v1357
                %v1359 = vld [vmem:[%s1323 + $0x198] sm:$0xf]
                %1360 = vst [vmem:[%s1324 + $0x44] sm:$0xf] %v1359
                %v1361 = vld [vmem:[%s1323 + $0x1b0] sm:$0xf]
                %1362 = vst [vmem:[%s1324 + $0x48] sm:$0xf] %v1361
                %v1363 = vld [vmem:[%s1323 + $0x1c8] sm:$0xf]
                %1364 = vst [vmem:[%s1324 + $0x4c] sm:$0xf] %v1363
                %v1365 = vld [vmem:[%s1323 + $0x1e0] sm:$0xf]
                %1366 = vst [vmem:[%s1324 + $0x50] sm:$0xf] %v1365
                %v1367 = vld [vmem:[%s1323 + $0x1f8] sm:$0xf]
                %1368 = vst [vmem:[%s1324 + $0x54] sm:$0xf] %v1367
                %v1369 = vld [vmem:[%s1323 + $0x210] sm:$0xf]
                %1370 = vst [vmem:[%s1324 + $0x58] sm:$0xf] %v1369
                %v1371 = vld [vmem:[%s1323 + $0x228] sm:$0xf]
                %1372 = vst [vmem:[%s1324 + $0x5c] sm:$0xf] %v1371
                %v1373 = vld [vmem:[%s1323 + $0x240] sm:$0xf]
                %1374 = vst [vmem:[%s1324 + $0x60] sm:$0xf] %v1373
                %v1375 = vld [vmem:[%s1323 + $0x258] sm:$0xf]
                %1376 = vst [vmem:[%s1324 + $0x64] sm:$0xf] %v1375
                %v1377 = vld [vmem:[%s1323 + $0x270] sm:$0xf]
                %1378 = vst [vmem:[%s1324 + $0x68] sm:$0xf] %v1377
                %v1379 = vld [vmem:[%s1323 + $0x288] sm:$0xf]
                %1380 = vst [vmem:[%s1324 + $0x6c] sm:$0xf] %v1379
                %v1381 = vld [vmem:[%s1323 + $0x2a0] sm:$0xf]
                %1382 = vst [vmem:[%s1324 + $0x70] sm:$0xf] %v1381
                %v1383 = vld [vmem:[%s1323 + $0x2b8] sm:$0xf]
                %1384 = vst [vmem:[%s1324 + $0x74] sm:$0xf] %v1383
                %v1385 = vld [vmem:[%s1323 + $0x2d0] sm:$0xf]
                %1386 = vst [vmem:[%s1324 + $0x78] sm:$0xf] %v1385
                %v1387 = vld [vmem:[%s1323 + $0x2e8] sm:$0xf]
                %1388 = vst [vmem:[%s1324 + $0x7c] sm:$0xf] %v1387
                %v1389 = vld [vmem:[%s1323 + $0x300] sm:$0xf]
                %1390 = vst [vmem:[%s1324 + $0x80] sm:$0xf] %v1389
                %v1391 = vld [vmem:[%s1323 + $0x318] sm:$0xf]
                %1392 = vst [vmem:[%s1324 + $0x84] sm:$0xf] %v1391
                %v1393 = vld [vmem:[%s1323 + $0x330] sm:$0xf]
                %1394 = vst [vmem:[%s1324 + $0x88] sm:$0xf] %v1393
                %v1395 = vld [vmem:[%s1323 + $0x348] sm:$0xf]
                %1396 = vst [vmem:[%s1324 + $0x8c] sm:$0xf] %v1395
                %v1397 = vld [vmem:[%s1323 + $0x360] sm:$0xf]
                %1398 = vst [vmem:[%s1324 + $0x90] sm:$0xf] %v1397
                %v1399 = vld [vmem:[%s1323 + $0x378] sm:$0xf]
                %1400 = vst [vmem:[%s1324 + $0x94] sm:$0xf] %v1399
                %v1401 = vld [vmem:[%s1323 + $0x390] sm:$0xf]
                %1402 = vst [vmem:[%s1324 + $0x98] sm:$0xf] %v1401
                %v1403 = vld [vmem:[%s1323 + $0x3a8] sm:$0xf]
                %1404 = vst [vmem:[%s1324 + $0x9c] sm:$0xf] %v1403
                %v1405 = vld [vmem:[%s1323 + $0x3c0] sm:$0xf]
                %1406 = vst [vmem:[%s1324 + $0xa0] sm:$0xf] %v1405
                %v1407 = vld [vmem:[%s1323 + $0x3d8] sm:$0xf]
                %1408 = vst [vmem:[%s1324 + $0xa4] sm:$0xf] %v1407
                %v1409 = vld [vmem:[%s1323 + $0x3f0] sm:$0xf]
                %1410 = vst [vmem:[%s1324 + $0xa8] sm:$0xf] %v1409
                %v1411 = vld [vmem:[%s1323 + $0x408] sm:$0xf]
                %1412 = vst [vmem:[%s1324 + $0xac] sm:$0xf] %v1411
                %v1413 = vld [vmem:[%s1323 + $0x420] sm:$0xf]
                %1414 = vst [vmem:[%s1324 + $0xb0] sm:$0xf] %v1413
                %v1415 = vld [vmem:[%s1323 + $0x438] sm:$0xf]
                %1416 = vst [vmem:[%s1324 + $0xb4] sm:$0xf] %v1415
                %v1417 = vld [vmem:[%s1323 + $0x450] sm:$0xf]
                %1418 = vst [vmem:[%s1324 + $0xb8] sm:$0xf] %v1417
                %v1419 = vld [vmem:[%s1323 + $0x468] sm:$0xf]
                %1420 = vst [vmem:[%s1324 + $0xbc] sm:$0xf] %v1419
                %v1421 = vld [vmem:[%s1323 + $0x480] sm:$0xf]
                %1422 = vst [vmem:[%s1324 + $0xc0] sm:$0xf] %v1421
                %v1423 = vld [vmem:[%s1323 + $0x498] sm:$0xf]
                %1424 = vst [vmem:[%s1324 + $0xc4] sm:$0xf] %v1423
                %v1425 = vld [vmem:[%s1323 + $0x4b0] sm:$0xf]
                %1426 = vst [vmem:[%s1324 + $0xc8] sm:$0xf] %v1425
                %v1427 = vld [vmem:[%s1323 + $0x4c8] sm:$0xf]
                %1428 = vst [vmem:[%s1324 + $0xcc] sm:$0xf] %v1427
                %v1429 = vld [vmem:[%s1323 + $0x4e0] sm:$0xf]
                %1430 = vst [vmem:[%s1324 + $0xd0] sm:$0xf] %v1429
                %v1431 = vld [vmem:[%s1323 + $0x4f8] sm:$0xf]
                %1432 = vst [vmem:[%s1324 + $0xd4] sm:$0xf] %v1431
                %v1433 = vld [vmem:[%s1323 + $0x510] sm:$0xf]
                %1434 = vst [vmem:[%s1324 + $0xd8] sm:$0xf] %v1433
                %v1435 = vld [vmem:[%s1323 + $0x528] sm:$0xf]
                %1436 = vst [vmem:[%s1324 + $0xdc] sm:$0xf] %v1435
                %v1437 = vld [vmem:[%s1323 + $0x540] sm:$0xf]
                %1438 = vst [vmem:[%s1324 + $0xe0] sm:$0xf] %v1437
                %v1439 = vld [vmem:[%s1323 + $0x558] sm:$0xf]
                %1440 = vst [vmem:[%s1324 + $0xe4] sm:$0xf] %v1439
                %v1441 = vld [vmem:[%s1323 + $0x570] sm:$0xf]
                %1442 = vst [vmem:[%s1324 + $0xe8] sm:$0xf] %v1441
                %v1443 = vld [vmem:[%s1323 + $0x588] sm:$0xf]
                %1444 = vst [vmem:[%s1324 + $0xec] sm:$0xf] %v1443
                %v1445 = vld [vmem:[%s1323 + $0x5a0] sm:$0xf]
                %1446 = vst [vmem:[%s1324 + $0xf0] sm:$0xf] %v1445
                %v1447 = vld [vmem:[%s1323 + $0x5b8] sm:$0xf]
                %1448 = vst [vmem:[%s1324 + $0xf4] sm:$0xf] %v1447
                %v1449 = vld [vmem:[%s1323 + $0x5d0] sm:$0xf]
                %1450 = vst [vmem:[%s1324 + $0xf8] sm:$0xf] %v1449
                %v1451 = vld [vmem:[%s1323 + $0x5e8] sm:$0xf]
                %1452 = vst [vmem:[%s1324 + $0xfc] sm:$0xf] %v1451
                %v1453 = vld [vmem:[%s1323 + $0x600] sm:$0xf]
                %1454 = vst [vmem:[%s1324 + $0x100] sm:$0xf] %v1453
                %v1455 = vld [vmem:[%s1323 + $0x618] sm:$0xf]
                %1456 = vst [vmem:[%s1324 + $0x104] sm:$0xf] %v1455
                %v1457 = vld [vmem:[%s1323 + $0x630] sm:$0xf]
                %1458 = vst [vmem:[%s1324 + $0x108] sm:$0xf] %v1457
                %v1459 = vld [vmem:[%s1323 + $0x648] sm:$0xf]
                %1460 = vst [vmem:[%s1324 + $0x10c] sm:$0xf] %v1459
                %v1461 = vld [vmem:[%s1323 + $0x660] sm:$0xf]
                %1462 = vst [vmem:[%s1324 + $0x110] sm:$0xf] %v1461
                %v1463 = vld [vmem:[%s1323 + $0x678] sm:$0xf]
                %1464 = vst [vmem:[%s1324 + $0x114] sm:$0xf] %v1463
                %v1465 = vld [vmem:[%s1323 + $0x690] sm:$0xf]
                %1466 = vst [vmem:[%s1324 + $0x118] sm:$0xf] %v1465
                %v1467 = vld [vmem:[%s1323 + $0x6a8] sm:$0xf]
                %1468 = vst [vmem:[%s1324 + $0x11c] sm:$0xf] %v1467
                %v1469 = vld [vmem:[%s1323 + $0x6c0] sm:$0xf]
                %1470 = vst [vmem:[%s1324 + $0x120] sm:$0xf] %v1469
                %v1471 = vld [vmem:[%s1323 + $0x6d8] sm:$0xf]
                %1472 = vst [vmem:[%s1324 + $0x124] sm:$0xf] %v1471
                %v1473 = vld [vmem:[%s1323 + $0x6f0] sm:$0xf]
                %1474 = vst [vmem:[%s1324 + $0x128] sm:$0xf] %v1473
                %v1475 = vld [vmem:[%s1323 + $0x708] sm:$0xf]
                %1476 = vst [vmem:[%s1324 + $0x12c] sm:$0xf] %v1475
                %v1477 = vld [vmem:[%s1323 + $0x720] sm:$0xf]
                %1478 = vst [vmem:[%s1324 + $0x130] sm:$0xf] %v1477
                %v1479 = vld [vmem:[%s1323 + $0x738] sm:$0xf]
                %1480 = vst [vmem:[%s1324 + $0x134] sm:$0xf] %v1479
                %v1481 = vld [vmem:[%s1323 + $0x750] sm:$0xf]
                %1482 = vst [vmem:[%s1324 + $0x138] sm:$0xf] %v1481
                %v1483 = vld [vmem:[%s1323 + $0x768] sm:$0xf]
                %1484 = vst [vmem:[%s1324 + $0x13c] sm:$0xf] %v1483
                %v1485 = vld [vmem:[%s1323 + $0x780] sm:$0xf]
                %1486 = vst [vmem:[%s1324 + $0x140] sm:$0xf] %v1485
                %v1487 = vld [vmem:[%s1323 + $0x798] sm:$0xf]
                %1488 = vst [vmem:[%s1324 + $0x144] sm:$0xf] %v1487
                %v1489 = vld [vmem:[%s1323 + $0x7b0] sm:$0xf]
                %1490 = vst [vmem:[%s1324 + $0x148] sm:$0xf] %v1489
                %v1491 = vld [vmem:[%s1323 + $0x7c8] sm:$0xf]
                %1492 = vst [vmem:[%s1324 + $0x14c] sm:$0xf] %v1491
                %v1493 = vld [vmem:[%s1323 + $0x7e0] sm:$0xf]
                %1494 = vst [vmem:[%s1324 + $0x150] sm:$0xf] %v1493
                %v1495 = vld [vmem:[%s1323 + $0x7f8] sm:$0xf]
                %1496 = vst [vmem:[%s1324 + $0x154] sm:$0xf] %v1495
                %v1497 = vld [vmem:[%s1323 + $0x810] sm:$0xf]
                %1498 = vst [vmem:[%s1324 + $0x158] sm:$0xf] %v1497
                %v1499 = vld [vmem:[%s1323 + $0x828] sm:$0xf]
                %1500 = vst [vmem:[%s1324 + $0x15c] sm:$0xf] %v1499
                %v1501 = vld [vmem:[%s1323 + $0x840] sm:$0xf]
                %1502 = vst [vmem:[%s1324 + $0x160] sm:$0xf] %v1501
                %v1503 = vld [vmem:[%s1323 + $0x858] sm:$0xf]
                %1504 = vst [vmem:[%s1324 + $0x164] sm:$0xf] %v1503
                %v1505 = vld [vmem:[%s1323 + $0x870] sm:$0xf]
                %1506 = vst [vmem:[%s1324 + $0x168] sm:$0xf] %v1505
                %v1507 = vld [vmem:[%s1323 + $0x888] sm:$0xf]
                %1508 = vst [vmem:[%s1324 + $0x16c] sm:$0xf] %v1507
                %v1509 = vld [vmem:[%s1323 + $0x8a0] sm:$0xf]
                %1510 = vst [vmem:[%s1324 + $0x170] sm:$0xf] %v1509
                %v1511 = vld [vmem:[%s1323 + $0x8b8] sm:$0xf]
                %1512 = vst [vmem:[%s1324 + $0x174] sm:$0xf] %v1511
                %v1513 = vld [vmem:[%s1323 + $0x8d0] sm:$0xf]
                %1514 = vst [vmem:[%s1324 + $0x178] sm:$0xf] %v1513
                %v1515 = vld [vmem:[%s1323 + $0x8e8] sm:$0xf]
                %1516 = vst [vmem:[%s1324 + $0x17c] sm:$0xf] %v1515
                %v1517 = vld [vmem:[%s1323 + $0x900] sm:$0xf]
                %1518 = vst [vmem:[%s1324 + $0x180] sm:$0xf] %v1517
                %v1519 = vld [vmem:[%s1323 + $0x918] sm:$0xf]
                %1520 = vst [vmem:[%s1324 + $0x184] sm:$0xf] %v1519
                %v1521 = vld [vmem:[%s1323 + $0x930] sm:$0xf]
                %1522 = vst [vmem:[%s1324 + $0x188] sm:$0xf] %v1521
                %v1523 = vld [vmem:[%s1323 + $0x948] sm:$0xf]
                %1524 = vst [vmem:[%s1324 + $0x18c] sm:$0xf] %v1523
                %v1525 = vld [vmem:[%s1323 + $0x960] sm:$0xf]
                %1526 = vst [vmem:[%s1324 + $0x190] sm:$0xf] %v1525
                %v1527 = vld [vmem:[%s1323 + $0x978] sm:$0xf]
                %1528 = vst [vmem:[%s1324 + $0x194] sm:$0xf] %v1527
                %v1529 = vld [vmem:[%s1323 + $0x990] sm:$0xf]
                %1530 = vst [vmem:[%s1324 + $0x198] sm:$0xf] %v1529
                %v1531 = vld [vmem:[%s1323 + $0x9a8] sm:$0xf]
                %1532 = vst [vmem:[%s1324 + $0x19c] sm:$0xf] %v1531
                %v1533 = vld [vmem:[%s1323 + $0x9c0] sm:$0xf]
                %1534 = vst [vmem:[%s1324 + $0x1a0] sm:$0xf] %v1533
                %v1535 = vld [vmem:[%s1323 + $0x9d8] sm:$0xf]
                %1536 = vst [vmem:[%s1324 + $0x1a4] sm:$0xf] %v1535
                %v1537 = vld [vmem:[%s1323 + $0x9f0] sm:$0xf]
                %1538 = vst [vmem:[%s1324 + $0x1a8] sm:$0xf] %v1537
                %v1539 = vld [vmem:[%s1323 + $0xa08] sm:$0xf]
                %1540 = vst [vmem:[%s1324 + $0x1ac] sm:$0xf] %v1539
                %v1541 = vld [vmem:[%s1323 + $0xa20] sm:$0xf]
                %1542 = vst [vmem:[%s1324 + $0x1b0] sm:$0xf] %v1541
                %v1543 = vld [vmem:[%s1323 + $0xa38] sm:$0xf]
                %1544 = vst [vmem:[%s1324 + $0x1b4] sm:$0xf] %v1543
                %v1545 = vld [vmem:[%s1323 + $0xa50] sm:$0xf]
                %1546 = vst [vmem:[%s1324 + $0x1b8] sm:$0xf] %v1545
                %v1547 = vld [vmem:[%s1323 + $0xa68] sm:$0xf]
                %1548 = vst [vmem:[%s1324 + $0x1bc] sm:$0xf] %v1547
                %v1549 = vld [vmem:[%s1323 + $0xa80] sm:$0xf]
                %1550 = vst [vmem:[%s1324 + $0x1c0] sm:$0xf] %v1549
                %v1551 = vld [vmem:[%s1323 + $0xa98] sm:$0xf]
                %1552 = vst [vmem:[%s1324 + $0x1c4] sm:$0xf] %v1551
                %v1553 = vld [vmem:[%s1323 + $0xab0] sm:$0xf]
                %1554 = vst [vmem:[%s1324 + $0x1c8] sm:$0xf] %v1553
                %v1555 = vld [vmem:[%s1323 + $0xac8] sm:$0xf]
                %1556 = vst [vmem:[%s1324 + $0x1cc] sm:$0xf] %v1555
                %v1557 = vld [vmem:[%s1323 + $0xae0] sm:$0xf]
                %1558 = vst [vmem:[%s1324 + $0x1d0] sm:$0xf] %v1557
                %v1559 = vld [vmem:[%s1323 + $0xaf8] sm:$0xf]
                %1560 = vst [vmem:[%s1324 + $0x1d4] sm:$0xf] %v1559
                %v1561 = vld [vmem:[%s1323 + $0xb10] sm:$0xf]
                %1562 = vst [vmem:[%s1324 + $0x1d8] sm:$0xf] %v1561
                %v1563 = vld [vmem:[%s1323 + $0xb28] sm:$0xf]
                %1564 = vst [vmem:[%s1324 + $0x1dc] sm:$0xf] %v1563
                %v1565 = vld [vmem:[%s1323 + $0xb40] sm:$0xf]
                %1566 = vst [vmem:[%s1324 + $0x1e0] sm:$0xf] %v1565
                %v1567 = vld [vmem:[%s1323 + $0xb58] sm:$0xf]
                %1568 = vst [vmem:[%s1324 + $0x1e4] sm:$0xf] %v1567
                %v1569 = vld [vmem:[%s1323 + $0xb70] sm:$0xf]
                %1570 = vst [vmem:[%s1324 + $0x1e8] sm:$0xf] %v1569
                %v1571 = vld [vmem:[%s1323 + $0xb88] sm:$0xf]
                %1572 = vst [vmem:[%s1324 + $0x1ec] sm:$0xf] %v1571
                %v1573 = vld [vmem:[%s1323 + $0xba0] sm:$0xf]
                %1574 = vst [vmem:[%s1324 + $0x1f0] sm:$0xf] %v1573
                %v1575 = vld [vmem:[%s1323 + $0xbb8] sm:$0xf]
                %1576 = vst [vmem:[%s1324 + $0x1f4] sm:$0xf] %v1575
                %v1577 = vld [vmem:[%s1323 + $0xbd0] sm:$0xf]
                %1578 = vst [vmem:[%s1324 + $0x1f8] sm:$0xf] %v1577
                %v1579 = vld [vmem:[%s1323 + $0xbe8] sm:$0xf]
                %1580 = vst [vmem:[%s1324 + $0x1fc] sm:$0xf] %v1579
              $region119: #{multihead_self_attention.4} parent=113 // loop_footer
                %s1322 = sadd.s32 1, %s1318
              $region120: #{multihead_self_attention.4} parent=113 // loop_footer_branch
                %1317 = sbr.rel target = $region116
              $region121: #{multihead_self_attention.4} parent=113 // loop_exit
                _
            $region114: #{multihead_self_attention.4} parent=105 // pred_fallthru
              _
          $region106: #{multihead_self_attention.4} parent=101 // pred_fallthru
            _
          %1856 = vnop
        $region102: #{multihead_self_attention.4} parent=15 // pred_fallthru
          _
      $region16: #{multihead_self_attention.4} parent=5 // pred_fallthru
        _
      %p1857 = scmp.le.s32.totalorder 1, %s14
      %p1858 = scmp.lt.s32.totalorder %s14, 3
      %p1859 = pnand %p1857, %p1858
      %p1860 = pneg %p1859
      // Predicated region
      $region140: #{multihead_self_attention.4} parent=5 // pred_check
        _
      $region141: #{multihead_self_attention.4} parent=5 // pred_check_branch
        %1862 = sbr.rel (%p1859) target = $region143
      $region142: #{multihead_self_attention.4} parent=5 // pred_region
        %s1863 = ssub.s32 %s14, 1
        %s1864 = sand.u32 %s41, 1
        %s1865 = sand.u32 %s41, 1
        %s1866 = smul.addr %s1865, 512
        %s1867 = scalar_lea.vmem [#allocation3], %s1866
        // Predicated region
        $region144: #{multihead_self_attention.4} parent=142 // pred_check
          %p1868 = pneg %p54
        $region145: #{multihead_self_attention.4} parent=142 // pred_check_branch
          %1870 = sbr.rel (%p1868) target = $region147
        $region146: #{multihead_self_attention.4} parent=142 // pred_region
          _
        $region147: #{multihead_self_attention.4} parent=142 // pred_fallthru
          _
        %s1871 = sand.u32 %s67, 1
        %s1872 = sand.u32 %s67, 1
        %s1873 = smul.addr %s1872, 512
        %s1874 = scalar_lea.vmem [#allocation4], %s1873
        // Predicated region
        $region148: #{multihead_self_attention.4} parent=142 // pred_check
          %p1875 = pneg %p80
        $region149: #{multihead_self_attention.4} parent=142 // pred_check_branch
          %1877 = sbr.rel (%p1875) target = $region151
        $region150: #{multihead_self_attention.4} parent=142 // pred_region
          _
        $region151: #{multihead_self_attention.4} parent=142 // pred_fallthru
          _
        %s1878 = sand.u32 %s93, 1
        %s1879 = sand.u32 %s93, 1
        %s1880 = smul.addr %s1879, 512
        %s1881 = scalar_lea.vmem [#allocation5], %s1880
        // Predicated region
        $region152: #{multihead_self_attention.4} parent=142 // pred_check
          %p1882 = pneg %p106
        $region153: #{multihead_self_attention.4} parent=142 // pred_check_branch
          %1884 = sbr.rel (%p1882) target = $region155
        $region154: #{multihead_self_attention.4} parent=142 // pred_region
          _
        $region155: #{multihead_self_attention.4} parent=142 // pred_fallthru
          _
        %s1885 = sand.u32 %s41, 1
        %s1886 = sand.u32 %s41, 1
        %s1887 = smul.addr %s1886, 512
        %s1888 = scalar_lea.vmem [#allocation3], %s1887
        %p1889 = pneg %p54
        %p1890 = pneg %p51
        %s1891 = sand.u32 %s67, 1
        %s1892 = sand.u32 %s67, 1
        %s1893 = smul.addr %s1892, 512
        %s1894 = scalar_lea.vmem [#allocation4], %s1893
        %p1895 = pneg %p80
        %p1896 = pneg %p77
        %s1897 = sand.u32 %s93, 1
        %s1898 = sand.u32 %s93, 1
        %s1899 = smul.addr %s1898, 512
        %s1900 = scalar_lea.vmem [#allocation5], %s1899
        %p1901 = pneg %p106
        %p1902 = pneg %p103
        %p1903 = pneg %p134
        %p1904 = pneg %p131
        %s1905 = smul.u32 16, %s24
        %p1906 = scmp.lt.s32.totalorder %s23, 1
        %s1907 = scalar_select %p1906, %s23, 1
        %p1908 = scmp.lt.s32.totalorder %s1905, 15
        %s1909 = scalar_select %p1908, %s1905, 15
        %s1910 = smul.addr %s1907, 16
        %s1911 = sadd.s32 %s1909, %s1910
        %s1912 = smul.addr %s1911, 8
        %s1913 = scalar_lea.vmem %s3, %s1912
        %p1914 = pneg %p162
        %p1915 = pneg %p159
        %s1916 = sand.u32 %s149, 1
        %s1917 = scalar_lea.sflag [#allocation7], %s1916
        %s1918 = sand.u32 %s149, 1
        %s1919 = smul.addr %s1918, 128
        %s1920 = scalar_lea.vmem [#allocation6], %s1919
        %s1921 = smul.u32 128, %s24
        %s1922 = smul.u32 16, %s24
        %p1923 = scmp.lt.s32.totalorder %s23, 1
        %s1924 = scalar_select %p1923, %s23, 1
        %p1925 = scmp.lt.s32.totalorder %s1922, 15
        %s1926 = scalar_select %p1925, %s1922, 15
        %s1927 = smul.addr %s1924, 16
        %s1928 = sadd.s32 %s1926, %s1927
        %s1929 = smul.addr %s1928, 8
        %s1930 = scalar_lea.vmem %s3, %s1929
        %s1931 = smul.u32 16, %s24
        %s1932 = smul.u32 16, %s24
        %v1933 = vld [vmem:[%s1867] sm:$0xf]
        %v1934 = vld [vmem:[%s1867 + $0x4] sm:$0xf]
        %v1935 = vld [vmem:[%s1867 + $0x8] sm:$0xf]
        %v1936 = vld [vmem:[%s1867 + $0xc] sm:$0xf]
        %v1937 = vld [vmem:[%s1867 + $0x10] sm:$0xf]
        %v1938 = vld [vmem:[%s1867 + $0x14] sm:$0xf]
        %v1939 = vld [vmem:[%s1867 + $0x18] sm:$0xf]
        %v1940 = vld [vmem:[%s1867 + $0x1c] sm:$0xf]
        %v1941 = vld [vmem:[%s1867 + $0x20] sm:$0xf]
        %v1942 = vld [vmem:[%s1867 + $0x24] sm:$0xf]
        %v1943 = vld [vmem:[%s1867 + $0x28] sm:$0xf]
        %v1944 = vld [vmem:[%s1867 + $0x2c] sm:$0xf]
        %v1945 = vld [vmem:[%s1867 + $0x30] sm:$0xf]
        %v1946 = vld [vmem:[%s1867 + $0x34] sm:$0xf]
        %v1947 = vld [vmem:[%s1867 + $0x38] sm:$0xf]
        %v1948 = vld [vmem:[%s1867 + $0x3c] sm:$0xf]
        %v1949 = vld [vmem:[%s1867 + $0x40] sm:$0xf]
        %v1950 = vld [vmem:[%s1867 + $0x44] sm:$0xf]
        %v1951 = vld [vmem:[%s1867 + $0x48] sm:$0xf]
        %v1952 = vld [vmem:[%s1867 + $0x4c] sm:$0xf]
        %v1953 = vld [vmem:[%s1867 + $0x50] sm:$0xf]
        %v1954 = vld [vmem:[%s1867 + $0x54] sm:$0xf]
        %v1955 = vld [vmem:[%s1867 + $0x58] sm:$0xf]
        %v1956 = vld [vmem:[%s1867 + $0x5c] sm:$0xf]
        %v1957 = vld [vmem:[%s1867 + $0x60] sm:$0xf]
        %v1958 = vld [vmem:[%s1867 + $0x64] sm:$0xf]
        %v1959 = vld [vmem:[%s1867 + $0x68] sm:$0xf]
        %v1960 = vld [vmem:[%s1867 + $0x6c] sm:$0xf]
        %v1961 = vld [vmem:[%s1867 + $0x70] sm:$0xf]
        %v1962 = vld [vmem:[%s1867 + $0x74] sm:$0xf]
        %v1963 = vld [vmem:[%s1867 + $0x78] sm:$0xf]
        %v1964 = vld [vmem:[%s1867 + $0x7c] sm:$0xf]
        %v1965 = vld [vmem:[%s1867 + $0x80] sm:$0xf]
        %v1966 = vld [vmem:[%s1867 + $0x84] sm:$0xf]
        %v1967 = vld [vmem:[%s1867 + $0x88] sm:$0xf]
        %v1968 = vld [vmem:[%s1867 + $0x8c] sm:$0xf]
        %v1969 = vld [vmem:[%s1867 + $0x90] sm:$0xf]
        %v1970 = vld [vmem:[%s1867 + $0x94] sm:$0xf]
        %v1971 = vld [vmem:[%s1867 + $0x98] sm:$0xf]
        %v1972 = vld [vmem:[%s1867 + $0x9c] sm:$0xf]
        %v1973 = vld [vmem:[%s1867 + $0xa0] sm:$0xf]
        %v1974 = vld [vmem:[%s1867 + $0xa4] sm:$0xf]
        %v1975 = vld [vmem:[%s1867 + $0xa8] sm:$0xf]
        %v1976 = vld [vmem:[%s1867 + $0xac] sm:$0xf]
        %v1977 = vld [vmem:[%s1867 + $0xb0] sm:$0xf]
        %v1978 = vld [vmem:[%s1867 + $0xb4] sm:$0xf]
        %v1979 = vld [vmem:[%s1867 + $0xb8] sm:$0xf]
        %v1980 = vld [vmem:[%s1867 + $0xbc] sm:$0xf]
        %v1981 = vld [vmem:[%s1867 + $0xc0] sm:$0xf]
        %v1982 = vld [vmem:[%s1867 + $0xc4] sm:$0xf]
        %v1983 = vld [vmem:[%s1867 + $0xc8] sm:$0xf]
        %v1984 = vld [vmem:[%s1867 + $0xcc] sm:$0xf]
        %v1985 = vld [vmem:[%s1867 + $0xd0] sm:$0xf]
        %v1986 = vld [vmem:[%s1867 + $0xd4] sm:$0xf]
        %v1987 = vld [vmem:[%s1867 + $0xd8] sm:$0xf]
        %v1988 = vld [vmem:[%s1867 + $0xdc] sm:$0xf]
        %v1989 = vld [vmem:[%s1867 + $0xe0] sm:$0xf]
        %v1990 = vld [vmem:[%s1867 + $0xe4] sm:$0xf]
        %v1991 = vld [vmem:[%s1867 + $0xe8] sm:$0xf]
        %v1992 = vld [vmem:[%s1867 + $0xec] sm:$0xf]
        %v1993 = vld [vmem:[%s1867 + $0xf0] sm:$0xf]
        %v1994 = vld [vmem:[%s1867 + $0xf4] sm:$0xf]
        %v1995 = vld [vmem:[%s1867 + $0xf8] sm:$0xf]
        %v1996 = vld [vmem:[%s1867 + $0xfc] sm:$0xf]
        %v1997 = vld [vmem:[%s1867 + $0x100] sm:$0xf]
        %v1998 = vld [vmem:[%s1867 + $0x104] sm:$0xf]
        %v1999 = vld [vmem:[%s1867 + $0x108] sm:$0xf]
        %v2000 = vld [vmem:[%s1867 + $0x10c] sm:$0xf]
        %v2001 = vld [vmem:[%s1867 + $0x110] sm:$0xf]
        %v2002 = vld [vmem:[%s1867 + $0x114] sm:$0xf]
        %v2003 = vld [vmem:[%s1867 + $0x118] sm:$0xf]
        %v2004 = vld [vmem:[%s1867 + $0x11c] sm:$0xf]
        %v2005 = vld [vmem:[%s1867 + $0x120] sm:$0xf]
        %v2006 = vld [vmem:[%s1867 + $0x124] sm:$0xf]
        %v2007 = vld [vmem:[%s1867 + $0x128] sm:$0xf]
        %v2008 = vld [vmem:[%s1867 + $0x12c] sm:$0xf]
        %v2009 = vld [vmem:[%s1867 + $0x130] sm:$0xf]
        %v2010 = vld [vmem:[%s1867 + $0x134] sm:$0xf]
        %v2011 = vld [vmem:[%s1867 + $0x138] sm:$0xf]
        %v2012 = vld [vmem:[%s1867 + $0x13c] sm:$0xf]
        %v2013 = vld [vmem:[%s1867 + $0x140] sm:$0xf]
        %v2014 = vld [vmem:[%s1867 + $0x144] sm:$0xf]
        %v2015 = vld [vmem:[%s1867 + $0x148] sm:$0xf]
        %v2016 = vld [vmem:[%s1867 + $0x14c] sm:$0xf]
        %v2017 = vld [vmem:[%s1867 + $0x150] sm:$0xf]
        %v2018 = vld [vmem:[%s1867 + $0x154] sm:$0xf]
        %v2019 = vld [vmem:[%s1867 + $0x158] sm:$0xf]
        %v2020 = vld [vmem:[%s1867 + $0x15c] sm:$0xf]
        %v2021 = vld [vmem:[%s1867 + $0x160] sm:$0xf]
        %v2022 = vld [vmem:[%s1867 + $0x164] sm:$0xf]
        %v2023 = vld [vmem:[%s1867 + $0x168] sm:$0xf]
        %v2024 = vld [vmem:[%s1867 + $0x16c] sm:$0xf]
        %v2025 = vld [vmem:[%s1867 + $0x170] sm:$0xf]
        %v2026 = vld [vmem:[%s1867 + $0x174] sm:$0xf]
        %v2027 = vld [vmem:[%s1867 + $0x178] sm:$0xf]
        %v2028 = vld [vmem:[%s1867 + $0x17c] sm:$0xf]
        %v2029 = vld [vmem:[%s1867 + $0x180] sm:$0xf]
        %v2030 = vld [vmem:[%s1867 + $0x184] sm:$0xf]
        %v2031 = vld [vmem:[%s1867 + $0x188] sm:$0xf]
        %v2032 = vld [vmem:[%s1867 + $0x18c] sm:$0xf]
        %v2033 = vld [vmem:[%s1867 + $0x190] sm:$0xf]
        %v2034 = vld [vmem:[%s1867 + $0x194] sm:$0xf]
        %v2035 = vld [vmem:[%s1867 + $0x198] sm:$0xf]
        %v2036 = vld [vmem:[%s1867 + $0x19c] sm:$0xf]
        %v2037 = vld [vmem:[%s1867 + $0x1a0] sm:$0xf]
        %v2038 = vld [vmem:[%s1867 + $0x1a4] sm:$0xf]
        %v2039 = vld [vmem:[%s1867 + $0x1a8] sm:$0xf]
        %v2040 = vld [vmem:[%s1867 + $0x1ac] sm:$0xf]
        %v2041 = vld [vmem:[%s1867 + $0x1b0] sm:$0xf]
        %v2042 = vld [vmem:[%s1867 + $0x1b4] sm:$0xf]
        %v2043 = vld [vmem:[%s1867 + $0x1b8] sm:$0xf]
        %v2044 = vld [vmem:[%s1867 + $0x1bc] sm:$0xf]
        %v2045 = vld [vmem:[%s1867 + $0x1c0] sm:$0xf]
        %v2046 = vld [vmem:[%s1867 + $0x1c4] sm:$0xf]
        %v2047 = vld [vmem:[%s1867 + $0x1c8] sm:$0xf]
        %v2048 = vld [vmem:[%s1867 + $0x1cc] sm:$0xf]
        %v2049 = vld [vmem:[%s1867 + $0x1d0] sm:$0xf]
        %v2050 = vld [vmem:[%s1867 + $0x1d4] sm:$0xf]
        %v2051 = vld [vmem:[%s1867 + $0x1d8] sm:$0xf]
        %v2052 = vld [vmem:[%s1867 + $0x1dc] sm:$0xf]
        %v2053 = vld [vmem:[%s1867 + $0x1e0] sm:$0xf]
        %v2054 = vld [vmem:[%s1867 + $0x1e4] sm:$0xf]
        %v2055 = vld [vmem:[%s1867 + $0x1e8] sm:$0xf]
        %v2056 = vld [vmem:[%s1867 + $0x1ec] sm:$0xf]
        %v2057 = vld [vmem:[%s1867 + $0x1f0] sm:$0xf]
        %v2058 = vld [vmem:[%s1867 + $0x1f4] sm:$0xf]
        %v2059 = vld [vmem:[%s1867 + $0x1f8] sm:$0xf]
        %v2060 = vld [vmem:[%s1867 + $0x1fc] sm:$0xf]
        %v2061 = vld [vmem:[%s1874] sm:$0xf]
        %v2062 = vld [vmem:[%s1874 + $0x4] sm:$0xf]
        %v2063 = vld [vmem:[%s1874 + $0x8] sm:$0xf]
        %v2064 = vld [vmem:[%s1874 + $0xc] sm:$0xf]
        %v2065 = vld [vmem:[%s1874 + $0x10] sm:$0xf]
        %v2066 = vld [vmem:[%s1874 + $0x14] sm:$0xf]
        %v2067 = vld [vmem:[%s1874 + $0x18] sm:$0xf]
        %v2068 = vld [vmem:[%s1874 + $0x1c] sm:$0xf]
        %v2069 = vld [vmem:[%s1874 + $0x20] sm:$0xf]
        %v2070 = vld [vmem:[%s1874 + $0x24] sm:$0xf]
        %v2071 = vld [vmem:[%s1874 + $0x28] sm:$0xf]
        %v2072 = vld [vmem:[%s1874 + $0x2c] sm:$0xf]
        %v2073 = vld [vmem:[%s1874 + $0x30] sm:$0xf]
        %v2074 = vld [vmem:[%s1874 + $0x34] sm:$0xf]
        %v2075 = vld [vmem:[%s1874 + $0x38] sm:$0xf]
        %v2076 = vld [vmem:[%s1874 + $0x3c] sm:$0xf]
        %v2077 = vld [vmem:[%s1874 + $0x40] sm:$0xf]
        %v2078 = vld [vmem:[%s1874 + $0x44] sm:$0xf]
        %v2079 = vld [vmem:[%s1874 + $0x48] sm:$0xf]
        %v2080 = vld [vmem:[%s1874 + $0x4c] sm:$0xf]
        %v2081 = vld [vmem:[%s1874 + $0x50] sm:$0xf]
        %v2082 = vld [vmem:[%s1874 + $0x54] sm:$0xf]
        %v2083 = vld [vmem:[%s1874 + $0x58] sm:$0xf]
        %v2084 = vld [vmem:[%s1874 + $0x5c] sm:$0xf]
        %v2085 = vld [vmem:[%s1874 + $0x60] sm:$0xf]
        %v2086 = vld [vmem:[%s1874 + $0x64] sm:$0xf]
        %v2087 = vld [vmem:[%s1874 + $0x68] sm:$0xf]
        %v2088 = vld [vmem:[%s1874 + $0x6c] sm:$0xf]
        %v2089 = vld [vmem:[%s1874 + $0x70] sm:$0xf]
        %v2090 = vld [vmem:[%s1874 + $0x74] sm:$0xf]
        %v2091 = vld [vmem:[%s1874 + $0x78] sm:$0xf]
        %v2092 = vld [vmem:[%s1874 + $0x7c] sm:$0xf]
        %v2093 = vld [vmem:[%s1874 + $0x80] sm:$0xf]
        %v2094 = vld [vmem:[%s1874 + $0x84] sm:$0xf]
        %v2095 = vld [vmem:[%s1874 + $0x88] sm:$0xf]
        %v2096 = vld [vmem:[%s1874 + $0x8c] sm:$0xf]
        %v2097 = vld [vmem:[%s1874 + $0x90] sm:$0xf]
        %v2098 = vld [vmem:[%s1874 + $0x94] sm:$0xf]
        %v2099 = vld [vmem:[%s1874 + $0x98] sm:$0xf]
        %v2100 = vld [vmem:[%s1874 + $0x9c] sm:$0xf]
        %v2101 = vld [vmem:[%s1874 + $0xa0] sm:$0xf]
        %v2102 = vld [vmem:[%s1874 + $0xa4] sm:$0xf]
        %v2103 = vld [vmem:[%s1874 + $0xa8] sm:$0xf]
        %v2104 = vld [vmem:[%s1874 + $0xac] sm:$0xf]
        %v2105 = vld [vmem:[%s1874 + $0xb0] sm:$0xf]
        %v2106 = vld [vmem:[%s1874 + $0xb4] sm:$0xf]
        %v2107 = vld [vmem:[%s1874 + $0xb8] sm:$0xf]
        %v2108 = vld [vmem:[%s1874 + $0xbc] sm:$0xf]
        %v2109 = vld [vmem:[%s1874 + $0xc0] sm:$0xf]
        %v2110 = vld [vmem:[%s1874 + $0xc4] sm:$0xf]
        %v2111 = vld [vmem:[%s1874 + $0xc8] sm:$0xf]
        %v2112 = vld [vmem:[%s1874 + $0xcc] sm:$0xf]
        %v2113 = vld [vmem:[%s1874 + $0xd0] sm:$0xf]
        %v2114 = vld [vmem:[%s1874 + $0xd4] sm:$0xf]
        %v2115 = vld [vmem:[%s1874 + $0xd8] sm:$0xf]
        %v2116 = vld [vmem:[%s1874 + $0xdc] sm:$0xf]
        %v2117 = vld [vmem:[%s1874 + $0xe0] sm:$0xf]
        %v2118 = vld [vmem:[%s1874 + $0xe4] sm:$0xf]
        %v2119 = vld [vmem:[%s1874 + $0xe8] sm:$0xf]
        %v2120 = vld [vmem:[%s1874 + $0xec] sm:$0xf]
        %v2121 = vld [vmem:[%s1874 + $0xf0] sm:$0xf]
        %v2122 = vld [vmem:[%s1874 + $0xf4] sm:$0xf]
        %v2123 = vld [vmem:[%s1874 + $0xf8] sm:$0xf]
        %v2124 = vld [vmem:[%s1874 + $0xfc] sm:$0xf]
        %v2125 = vld [vmem:[%s1874 + $0x100] sm:$0xf]
        %v2126 = vld [vmem:[%s1874 + $0x104] sm:$0xf]
        %v2127 = vld [vmem:[%s1874 + $0x108] sm:$0xf]
        %v2128 = vld [vmem:[%s1874 + $0x10c] sm:$0xf]
        %v2129 = vld [vmem:[%s1874 + $0x110] sm:$0xf]
        %v2130 = vld [vmem:[%s1874 + $0x114] sm:$0xf]
        %v2131 = vld [vmem:[%s1874 + $0x118] sm:$0xf]
        %v2132 = vld [vmem:[%s1874 + $0x11c] sm:$0xf]
        %v2133 = vld [vmem:[%s1874 + $0x120] sm:$0xf]
        %v2134 = vld [vmem:[%s1874 + $0x124] sm:$0xf]
        %v2135 = vld [vmem:[%s1874 + $0x128] sm:$0xf]
        %v2136 = vld [vmem:[%s1874 + $0x12c] sm:$0xf]
        %v2137 = vld [vmem:[%s1874 + $0x130] sm:$0xf]
        %v2138 = vld [vmem:[%s1874 + $0x134] sm:$0xf]
        %v2139 = vld [vmem:[%s1874 + $0x138] sm:$0xf]
        %v2140 = vld [vmem:[%s1874 + $0x13c] sm:$0xf]
        %v2141 = vld [vmem:[%s1874 + $0x140] sm:$0xf]
        %v2142 = vld [vmem:[%s1874 + $0x144] sm:$0xf]
        %v2143 = vld [vmem:[%s1874 + $0x148] sm:$0xf]
        %v2144 = vld [vmem:[%s1874 + $0x14c] sm:$0xf]
        %v2145 = vld [vmem:[%s1874 + $0x150] sm:$0xf]
        %v2146 = vld [vmem:[%s1874 + $0x154] sm:$0xf]
        %v2147 = vld [vmem:[%s1874 + $0x158] sm:$0xf]
        %v2148 = vld [vmem:[%s1874 + $0x15c] sm:$0xf]
        %v2149 = vld [vmem:[%s1874 + $0x160] sm:$0xf]
        %v2150 = vld [vmem:[%s1874 + $0x164] sm:$0xf]
        %v2151 = vld [vmem:[%s1874 + $0x168] sm:$0xf]
        %v2152 = vld [vmem:[%s1874 + $0x16c] sm:$0xf]
        %v2153 = vld [vmem:[%s1874 + $0x170] sm:$0xf]
        %v2154 = vld [vmem:[%s1874 + $0x174] sm:$0xf]
        %v2155 = vld [vmem:[%s1874 + $0x178] sm:$0xf]
        %v2156 = vld [vmem:[%s1874 + $0x17c] sm:$0xf]
        %v2157 = vld [vmem:[%s1874 + $0x180] sm:$0xf]
        %v2158 = vld [vmem:[%s1874 + $0x184] sm:$0xf]
        %v2159 = vld [vmem:[%s1874 + $0x188] sm:$0xf]
        %v2160 = vld [vmem:[%s1874 + $0x18c] sm:$0xf]
        %v2161 = vld [vmem:[%s1874 + $0x190] sm:$0xf]
        %v2162 = vld [vmem:[%s1874 + $0x194] sm:$0xf]
        %v2163 = vld [vmem:[%s1874 + $0x198] sm:$0xf]
        %v2164 = vld [vmem:[%s1874 + $0x19c] sm:$0xf]
        %v2165 = vld [vmem:[%s1874 + $0x1a0] sm:$0xf]
        %v2166 = vld [vmem:[%s1874 + $0x1a4] sm:$0xf]
        %v2167 = vld [vmem:[%s1874 + $0x1a8] sm:$0xf]
        %v2168 = vld [vmem:[%s1874 + $0x1ac] sm:$0xf]
        %v2169 = vld [vmem:[%s1874 + $0x1b0] sm:$0xf]
        %v2170 = vld [vmem:[%s1874 + $0x1b4] sm:$0xf]
        %v2171 = vld [vmem:[%s1874 + $0x1b8] sm:$0xf]
        %v2172 = vld [vmem:[%s1874 + $0x1bc] sm:$0xf]
        %v2173 = vld [vmem:[%s1874 + $0x1c0] sm:$0xf]
        %v2174 = vld [vmem:[%s1874 + $0x1c4] sm:$0xf]
        %v2175 = vld [vmem:[%s1874 + $0x1c8] sm:$0xf]
        %v2176 = vld [vmem:[%s1874 + $0x1cc] sm:$0xf]
        %v2177 = vld [vmem:[%s1874 + $0x1d0] sm:$0xf]
        %v2178 = vld [vmem:[%s1874 + $0x1d4] sm:$0xf]
        %v2179 = vld [vmem:[%s1874 + $0x1d8] sm:$0xf]
        %v2180 = vld [vmem:[%s1874 + $0x1dc] sm:$0xf]
        %v2181 = vld [vmem:[%s1874 + $0x1e0] sm:$0xf]
        %v2182 = vld [vmem:[%s1874 + $0x1e4] sm:$0xf]
        %v2183 = vld [vmem:[%s1874 + $0x1e8] sm:$0xf]
        %v2184 = vld [vmem:[%s1874 + $0x1ec] sm:$0xf]
        %v2185 = vld [vmem:[%s1874 + $0x1f0] sm:$0xf]
        %v2186 = vld [vmem:[%s1874 + $0x1f4] sm:$0xf]
        %v2187 = vld [vmem:[%s1874 + $0x1f8] sm:$0xf]
        %v2188 = vld [vmem:[%s1874 + $0x1fc] sm:$0xf]
        %v2189 = vld [vmem:[%s1881] sm:$0xf]
        %v2190 = vld [vmem:[%s1881 + $0x4] sm:$0xf]
        %v2191 = vld [vmem:[%s1881 + $0x8] sm:$0xf]
        %v2192 = vld [vmem:[%s1881 + $0xc] sm:$0xf]
        %v2193 = vld [vmem:[%s1881 + $0x10] sm:$0xf]
        %v2194 = vld [vmem:[%s1881 + $0x14] sm:$0xf]
        %v2195 = vld [vmem:[%s1881 + $0x18] sm:$0xf]
        %v2196 = vld [vmem:[%s1881 + $0x1c] sm:$0xf]
        %v2197 = vld [vmem:[%s1881 + $0x20] sm:$0xf]
        %v2198 = vld [vmem:[%s1881 + $0x24] sm:$0xf]
        %v2199 = vld [vmem:[%s1881 + $0x28] sm:$0xf]
        %v2200 = vld [vmem:[%s1881 + $0x2c] sm:$0xf]
        %v2201 = vld [vmem:[%s1881 + $0x30] sm:$0xf]
        %v2202 = vld [vmem:[%s1881 + $0x34] sm:$0xf]
        %v2203 = vld [vmem:[%s1881 + $0x38] sm:$0xf]
        %v2204 = vld [vmem:[%s1881 + $0x3c] sm:$0xf]
        %v2205 = vld [vmem:[%s1881 + $0x40] sm:$0xf]
        %v2206 = vld [vmem:[%s1881 + $0x44] sm:$0xf]
        %v2207 = vld [vmem:[%s1881 + $0x48] sm:$0xf]
        %v2208 = vld [vmem:[%s1881 + $0x4c] sm:$0xf]
        %v2209 = vld [vmem:[%s1881 + $0x50] sm:$0xf]
        %v2210 = vld [vmem:[%s1881 + $0x54] sm:$0xf]
        %v2211 = vld [vmem:[%s1881 + $0x58] sm:$0xf]
        %v2212 = vld [vmem:[%s1881 + $0x5c] sm:$0xf]
        %v2213 = vld [vmem:[%s1881 + $0x60] sm:$0xf]
        %v2214 = vld [vmem:[%s1881 + $0x64] sm:$0xf]
        %v2215 = vld [vmem:[%s1881 + $0x68] sm:$0xf]
        %v2216 = vld [vmem:[%s1881 + $0x6c] sm:$0xf]
        %v2217 = vld [vmem:[%s1881 + $0x70] sm:$0xf]
        %v2218 = vld [vmem:[%s1881 + $0x74] sm:$0xf]
        %v2219 = vld [vmem:[%s1881 + $0x78] sm:$0xf]
        %v2220 = vld [vmem:[%s1881 + $0x7c] sm:$0xf]
        %v2221 = vld [vmem:[%s1881 + $0x80] sm:$0xf]
        %v2222 = vld [vmem:[%s1881 + $0x84] sm:$0xf]
        %v2223 = vld [vmem:[%s1881 + $0x88] sm:$0xf]
        %v2224 = vld [vmem:[%s1881 + $0x8c] sm:$0xf]
        %v2225 = vld [vmem:[%s1881 + $0x90] sm:$0xf]
        %v2226 = vld [vmem:[%s1881 + $0x94] sm:$0xf]
        %v2227 = vld [vmem:[%s1881 + $0x98] sm:$0xf]
        %v2228 = vld [vmem:[%s1881 + $0x9c] sm:$0xf]
        %v2229 = vld [vmem:[%s1881 + $0xa0] sm:$0xf]
        %v2230 = vld [vmem:[%s1881 + $0xa4] sm:$0xf]
        %v2231 = vld [vmem:[%s1881 + $0xa8] sm:$0xf]
        %v2232 = vld [vmem:[%s1881 + $0xac] sm:$0xf]
        %v2233 = vld [vmem:[%s1881 + $0xb0] sm:$0xf]
        %v2234 = vld [vmem:[%s1881 + $0xb4] sm:$0xf]
        %v2235 = vld [vmem:[%s1881 + $0xb8] sm:$0xf]
        %v2236 = vld [vmem:[%s1881 + $0xbc] sm:$0xf]
        %v2237 = vld [vmem:[%s1881 + $0xc0] sm:$0xf]
        %v2238 = vld [vmem:[%s1881 + $0xc4] sm:$0xf]
        %v2239 = vld [vmem:[%s1881 + $0xc8] sm:$0xf]
        %v2240 = vld [vmem:[%s1881 + $0xcc] sm:$0xf]
        %v2241 = vld [vmem:[%s1881 + $0xd0] sm:$0xf]
        %v2242 = vld [vmem:[%s1881 + $0xd4] sm:$0xf]
        %v2243 = vld [vmem:[%s1881 + $0xd8] sm:$0xf]
        %v2244 = vld [vmem:[%s1881 + $0xdc] sm:$0xf]
        %v2245 = vld [vmem:[%s1881 + $0xe0] sm:$0xf]
        %v2246 = vld [vmem:[%s1881 + $0xe4] sm:$0xf]
        %v2247 = vld [vmem:[%s1881 + $0xe8] sm:$0xf]
        %v2248 = vld [vmem:[%s1881 + $0xec] sm:$0xf]
        %v2249 = vld [vmem:[%s1881 + $0xf0] sm:$0xf]
        %v2250 = vld [vmem:[%s1881 + $0xf4] sm:$0xf]
        %v2251 = vld [vmem:[%s1881 + $0xf8] sm:$0xf]
        %v2252 = vld [vmem:[%s1881 + $0xfc] sm:$0xf]
        %v2253 = vld [vmem:[%s1881 + $0x100] sm:$0xf]
        %v2254 = vld [vmem:[%s1881 + $0x104] sm:$0xf]
        %v2255 = vld [vmem:[%s1881 + $0x108] sm:$0xf]
        %v2256 = vld [vmem:[%s1881 + $0x10c] sm:$0xf]
        %v2257 = vld [vmem:[%s1881 + $0x110] sm:$0xf]
        %v2258 = vld [vmem:[%s1881 + $0x114] sm:$0xf]
        %v2259 = vld [vmem:[%s1881 + $0x118] sm:$0xf]
        %v2260 = vld [vmem:[%s1881 + $0x11c] sm:$0xf]
        %v2261 = vld [vmem:[%s1881 + $0x120] sm:$0xf]
        %v2262 = vld [vmem:[%s1881 + $0x124] sm:$0xf]
        %v2263 = vld [vmem:[%s1881 + $0x128] sm:$0xf]
        %v2264 = vld [vmem:[%s1881 + $0x12c] sm:$0xf]
        %v2265 = vld [vmem:[%s1881 + $0x130] sm:$0xf]
        %v2266 = vld [vmem:[%s1881 + $0x134] sm:$0xf]
        %v2267 = vld [vmem:[%s1881 + $0x138] sm:$0xf]
        %v2268 = vld [vmem:[%s1881 + $0x13c] sm:$0xf]
        %v2269 = vld [vmem:[%s1881 + $0x140] sm:$0xf]
        %v2270 = vld [vmem:[%s1881 + $0x144] sm:$0xf]
        %v2271 = vld [vmem:[%s1881 + $0x148] sm:$0xf]
        %v2272 = vld [vmem:[%s1881 + $0x14c] sm:$0xf]
        %v2273 = vld [vmem:[%s1881 + $0x150] sm:$0xf]
        %v2274 = vld [vmem:[%s1881 + $0x154] sm:$0xf]
        %v2275 = vld [vmem:[%s1881 + $0x158] sm:$0xf]
        %v2276 = vld [vmem:[%s1881 + $0x15c] sm:$0xf]
        %v2277 = vld [vmem:[%s1881 + $0x160] sm:$0xf]
        %v2278 = vld [vmem:[%s1881 + $0x164] sm:$0xf]
        %v2279 = vld [vmem:[%s1881 + $0x168] sm:$0xf]
        %v2280 = vld [vmem:[%s1881 + $0x16c] sm:$0xf]
        %v2281 = vld [vmem:[%s1881 + $0x170] sm:$0xf]
        %v2282 = vld [vmem:[%s1881 + $0x174] sm:$0xf]
        %v2283 = vld [vmem:[%s1881 + $0x178] sm:$0xf]
        %v2284 = vld [vmem:[%s1881 + $0x17c] sm:$0xf]
        %v2285 = vld [vmem:[%s1881 + $0x180] sm:$0xf]
        %v2286 = vld [vmem:[%s1881 + $0x184] sm:$0xf]
        %v2287 = vld [vmem:[%s1881 + $0x188] sm:$0xf]
        %v2288 = vld [vmem:[%s1881 + $0x18c] sm:$0xf]
        %v2289 = vld [vmem:[%s1881 + $0x190] sm:$0xf]
        %v2290 = vld [vmem:[%s1881 + $0x194] sm:$0xf]
        %v2291 = vld [vmem:[%s1881 + $0x198] sm:$0xf]
        %v2292 = vld [vmem:[%s1881 + $0x19c] sm:$0xf]
        %v2293 = vld [vmem:[%s1881 + $0x1a0] sm:$0xf]
        %v2294 = vld [vmem:[%s1881 + $0x1a4] sm:$0xf]
        %v2295 = vld [vmem:[%s1881 + $0x1a8] sm:$0xf]
        %v2296 = vld [vmem:[%s1881 + $0x1ac] sm:$0xf]
        %v2297 = vld [vmem:[%s1881 + $0x1b0] sm:$0xf]
        %v2298 = vld [vmem:[%s1881 + $0x1b4] sm:$0xf]
        %v2299 = vld [vmem:[%s1881 + $0x1b8] sm:$0xf]
        %v2300 = vld [vmem:[%s1881 + $0x1bc] sm:$0xf]
        %v2301 = vld [vmem:[%s1881 + $0x1c0] sm:$0xf]
        %v2302 = vld [vmem:[%s1881 + $0x1c4] sm:$0xf]
        %v2303 = vld [vmem:[%s1881 + $0x1c8] sm:$0xf]
        %v2304 = vld [vmem:[%s1881 + $0x1cc] sm:$0xf]
        %v2305 = vld [vmem:[%s1881 + $0x1d0] sm:$0xf]
        %v2306 = vld [vmem:[%s1881 + $0x1d4] sm:$0xf]
        %v2307 = vld [vmem:[%s1881 + $0x1d8] sm:$0xf]
        %v2308 = vld [vmem:[%s1881 + $0x1dc] sm:$0xf]
        %v2309 = vld [vmem:[%s1881 + $0x1e0] sm:$0xf]
        %v2310 = vld [vmem:[%s1881 + $0x1e4] sm:$0xf]
        %v2311 = vld [vmem:[%s1881 + $0x1e8] sm:$0xf]
        %v2312 = vld [vmem:[%s1881 + $0x1ec] sm:$0xf]
        %v2313 = vld [vmem:[%s1881 + $0x1f0] sm:$0xf]
        %v2314 = vld [vmem:[%s1881 + $0x1f4] sm:$0xf]
        %v2315 = vld [vmem:[%s1881 + $0x1f8] sm:$0xf]
        %v2316 = vld [vmem:[%s1881 + $0x1fc] sm:$0xf]
        %v2445 = vrot.slane %v1934, 7
        %vm2446 = vcmask 1041409
        %v2447 = vsel %vm2446, %v2445, %v1933
        %v2448 = vrot.slane %v1935, 6
        %vm2449 = vcmask 1042434
        %v2450 = vsel %vm2449, %v2448, %v2447
        %v2451 = vrot.slane %v1936, 5
        %vm2452 = vcmask 1043459
        %v2453 = vsel %vm2452, %v2451, %v2450
        %v2454 = vrot.slane %v1937, 4
        %vm2455 = vcmask 1044484
        %v2456 = vsel %vm2455, %v2454, %v2453
        %v2457 = vrot.slane %v1938, 3
        %vm2458 = vcmask 1045509
        %v2459 = vsel %vm2458, %v2457, %v2456
        %v2460 = vrot.slane %v1939, 2
        %vm2461 = vcmask 1046534
        %v2462 = vsel %vm2461, %v2460, %v2459
        %v2463 = vrot.slane %v1940, 1
        %vm2464 = vcmask 1047559
        %v2465 = vsel %vm2464, %v2463, %v2462
        %v2466 = vrot.slane %v1942, 7
        %v2467 = vsel %vm2446, %v2466, %v1941
        %v2468 = vrot.slane %v1943, 6
        %v2469 = vsel %vm2449, %v2468, %v2467
        %v2470 = vrot.slane %v1944, 5
        %v2471 = vsel %vm2452, %v2470, %v2469
        %v2472 = vrot.slane %v1945, 4
        %v2473 = vsel %vm2455, %v2472, %v2471
        %v2474 = vrot.slane %v1946, 3
        %v2475 = vsel %vm2458, %v2474, %v2473
        %v2476 = vrot.slane %v1947, 2
        %v2477 = vsel %vm2461, %v2476, %v2475
        %v2478 = vrot.slane %v1948, 1
        %v2479 = vsel %vm2464, %v2478, %v2477
        %v2480 = vrot.slane %v1950, 7
        %v2481 = vsel %vm2446, %v2480, %v1949
        %v2482 = vrot.slane %v1951, 6
        %v2483 = vsel %vm2449, %v2482, %v2481
        %v2484 = vrot.slane %v1952, 5
        %v2485 = vsel %vm2452, %v2484, %v2483
        %v2486 = vrot.slane %v1953, 4
        %v2487 = vsel %vm2455, %v2486, %v2485
        %v2488 = vrot.slane %v1954, 3
        %v2489 = vsel %vm2458, %v2488, %v2487
        %v2490 = vrot.slane %v1955, 2
        %v2491 = vsel %vm2461, %v2490, %v2489
        %v2492 = vrot.slane %v1956, 1
        %v2493 = vsel %vm2464, %v2492, %v2491
        %v2494 = vrot.slane %v1958, 7
        %v2495 = vsel %vm2446, %v2494, %v1957
        %v2496 = vrot.slane %v1959, 6
        %v2497 = vsel %vm2449, %v2496, %v2495
        %v2498 = vrot.slane %v1960, 5
        %v2499 = vsel %vm2452, %v2498, %v2497
        %v2500 = vrot.slane %v1961, 4
        %v2501 = vsel %vm2455, %v2500, %v2499
        %v2502 = vrot.slane %v1962, 3
        %v2503 = vsel %vm2458, %v2502, %v2501
        %v2504 = vrot.slane %v1963, 2
        %v2505 = vsel %vm2461, %v2504, %v2503
        %v2506 = vrot.slane %v1964, 1
        %v2507 = vsel %vm2464, %v2506, %v2505
        %v2508 = vrot.slane %v1966, 7
        %v2509 = vsel %vm2446, %v2508, %v1965
        %v2510 = vrot.slane %v1967, 6
        %v2511 = vsel %vm2449, %v2510, %v2509
        %v2512 = vrot.slane %v1968, 5
        %v2513 = vsel %vm2452, %v2512, %v2511
        %v2514 = vrot.slane %v1969, 4
        %v2515 = vsel %vm2455, %v2514, %v2513
        %v2516 = vrot.slane %v1970, 3
        %v2517 = vsel %vm2458, %v2516, %v2515
        %v2518 = vrot.slane %v1971, 2
        %v2519 = vsel %vm2461, %v2518, %v2517
        %v2520 = vrot.slane %v1972, 1
        %v2521 = vsel %vm2464, %v2520, %v2519
        %v2522 = vrot.slane %v1974, 7
        %v2523 = vsel %vm2446, %v2522, %v1973
        %v2524 = vrot.slane %v1975, 6
        %v2525 = vsel %vm2449, %v2524, %v2523
        %v2526 = vrot.slane %v1976, 5
        %v2527 = vsel %vm2452, %v2526, %v2525
        %v2528 = vrot.slane %v1977, 4
        %v2529 = vsel %vm2455, %v2528, %v2527
        %v2530 = vrot.slane %v1978, 3
        %v2531 = vsel %vm2458, %v2530, %v2529
        %v2532 = vrot.slane %v1979, 2
        %v2533 = vsel %vm2461, %v2532, %v2531
        %v2534 = vrot.slane %v1980, 1
        %v2535 = vsel %vm2464, %v2534, %v2533
        %v2536 = vrot.slane %v1982, 7
        %v2537 = vsel %vm2446, %v2536, %v1981
        %v2538 = vrot.slane %v1983, 6
        %v2539 = vsel %vm2449, %v2538, %v2537
        %v2540 = vrot.slane %v1984, 5
        %v2541 = vsel %vm2452, %v2540, %v2539
        %v2542 = vrot.slane %v1985, 4
        %v2543 = vsel %vm2455, %v2542, %v2541
        %v2544 = vrot.slane %v1986, 3
        %v2545 = vsel %vm2458, %v2544, %v2543
        %v2546 = vrot.slane %v1987, 2
        %v2547 = vsel %vm2461, %v2546, %v2545
        %v2548 = vrot.slane %v1988, 1
        %v2549 = vsel %vm2464, %v2548, %v2547
        %v2550 = vrot.slane %v1990, 7
        %v2551 = vsel %vm2446, %v2550, %v1989
        %v2552 = vrot.slane %v1991, 6
        %v2553 = vsel %vm2449, %v2552, %v2551
        %v2554 = vrot.slane %v1992, 5
        %v2555 = vsel %vm2452, %v2554, %v2553
        %v2556 = vrot.slane %v1993, 4
        %v2557 = vsel %vm2455, %v2556, %v2555
        %v2558 = vrot.slane %v1994, 3
        %v2559 = vsel %vm2458, %v2558, %v2557
        %v2560 = vrot.slane %v1995, 2
        %v2561 = vsel %vm2461, %v2560, %v2559
        %v2562 = vrot.slane %v1996, 1
        %v2563 = vsel %vm2464, %v2562, %v2561
        %v2564 = vrot.slane %v1998, 7
        %v2565 = vsel %vm2446, %v2564, %v1997
        %v2566 = vrot.slane %v1999, 6
        %v2567 = vsel %vm2449, %v2566, %v2565
        %v2568 = vrot.slane %v2000, 5
        %v2569 = vsel %vm2452, %v2568, %v2567
        %v2570 = vrot.slane %v2001, 4
        %v2571 = vsel %vm2455, %v2570, %v2569
        %v2572 = vrot.slane %v2002, 3
        %v2573 = vsel %vm2458, %v2572, %v2571
        %v2574 = vrot.slane %v2003, 2
        %v2575 = vsel %vm2461, %v2574, %v2573
        %v2576 = vrot.slane %v2004, 1
        %v2577 = vsel %vm2464, %v2576, %v2575
        %v2578 = vrot.slane %v2006, 7
        %v2579 = vsel %vm2446, %v2578, %v2005
        %v2580 = vrot.slane %v2007, 6
        %v2581 = vsel %vm2449, %v2580, %v2579
        %v2582 = vrot.slane %v2008, 5
        %v2583 = vsel %vm2452, %v2582, %v2581
        %v2584 = vrot.slane %v2009, 4
        %v2585 = vsel %vm2455, %v2584, %v2583
        %v2586 = vrot.slane %v2010, 3
        %v2587 = vsel %vm2458, %v2586, %v2585
        %v2588 = vrot.slane %v2011, 2
        %v2589 = vsel %vm2461, %v2588, %v2587
        %v2590 = vrot.slane %v2012, 1
        %v2591 = vsel %vm2464, %v2590, %v2589
        %v2592 = vrot.slane %v2014, 7
        %v2593 = vsel %vm2446, %v2592, %v2013
        %v2594 = vrot.slane %v2015, 6
        %v2595 = vsel %vm2449, %v2594, %v2593
        %v2596 = vrot.slane %v2016, 5
        %v2597 = vsel %vm2452, %v2596, %v2595
        %v2598 = vrot.slane %v2017, 4
        %v2599 = vsel %vm2455, %v2598, %v2597
        %v2600 = vrot.slane %v2018, 3
        %v2601 = vsel %vm2458, %v2600, %v2599
        %v2602 = vrot.slane %v2019, 2
        %v2603 = vsel %vm2461, %v2602, %v2601
        %v2604 = vrot.slane %v2020, 1
        %v2605 = vsel %vm2464, %v2604, %v2603
        %v2606 = vrot.slane %v2022, 7
        %v2607 = vsel %vm2446, %v2606, %v2021
        %v2608 = vrot.slane %v2023, 6
        %v2609 = vsel %vm2449, %v2608, %v2607
        %v2610 = vrot.slane %v2024, 5
        %v2611 = vsel %vm2452, %v2610, %v2609
        %v2612 = vrot.slane %v2025, 4
        %v2613 = vsel %vm2455, %v2612, %v2611
        %v2614 = vrot.slane %v2026, 3
        %v2615 = vsel %vm2458, %v2614, %v2613
        %v2616 = vrot.slane %v2027, 2
        %v2617 = vsel %vm2461, %v2616, %v2615
        %v2618 = vrot.slane %v2028, 1
        %v2619 = vsel %vm2464, %v2618, %v2617
        %v2620 = vrot.slane %v2030, 7
        %v2621 = vsel %vm2446, %v2620, %v2029
        %v2622 = vrot.slane %v2031, 6
        %v2623 = vsel %vm2449, %v2622, %v2621
        %v2624 = vrot.slane %v2032, 5
        %v2625 = vsel %vm2452, %v2624, %v2623
        %v2626 = vrot.slane %v2033, 4
        %v2627 = vsel %vm2455, %v2626, %v2625
        %v2628 = vrot.slane %v2034, 3
        %v2629 = vsel %vm2458, %v2628, %v2627
        %v2630 = vrot.slane %v2035, 2
        %v2631 = vsel %vm2461, %v2630, %v2629
        %v2632 = vrot.slane %v2036, 1
        %v2633 = vsel %vm2464, %v2632, %v2631
        %v2634 = vrot.slane %v2038, 7
        %v2635 = vsel %vm2446, %v2634, %v2037
        %v2636 = vrot.slane %v2039, 6
        %v2637 = vsel %vm2449, %v2636, %v2635
        %v2638 = vrot.slane %v2040, 5
        %v2639 = vsel %vm2452, %v2638, %v2637
        %v2640 = vrot.slane %v2041, 4
        %v2641 = vsel %vm2455, %v2640, %v2639
        %v2642 = vrot.slane %v2042, 3
        %v2643 = vsel %vm2458, %v2642, %v2641
        %v2644 = vrot.slane %v2043, 2
        %v2645 = vsel %vm2461, %v2644, %v2643
        %v2646 = vrot.slane %v2044, 1
        %v2647 = vsel %vm2464, %v2646, %v2645
        %v2648 = vrot.slane %v2046, 7
        %v2649 = vsel %vm2446, %v2648, %v2045
        %v2650 = vrot.slane %v2047, 6
        %v2651 = vsel %vm2449, %v2650, %v2649
        %v2652 = vrot.slane %v2048, 5
        %v2653 = vsel %vm2452, %v2652, %v2651
        %v2654 = vrot.slane %v2049, 4
        %v2655 = vsel %vm2455, %v2654, %v2653
        %v2656 = vrot.slane %v2050, 3
        %v2657 = vsel %vm2458, %v2656, %v2655
        %v2658 = vrot.slane %v2051, 2
        %v2659 = vsel %vm2461, %v2658, %v2657
        %v2660 = vrot.slane %v2052, 1
        %v2661 = vsel %vm2464, %v2660, %v2659
        %v2662 = vrot.slane %v2054, 7
        %v2663 = vsel %vm2446, %v2662, %v2053
        %v2664 = vrot.slane %v2055, 6
        %v2665 = vsel %vm2449, %v2664, %v2663
        %v2666 = vrot.slane %v2056, 5
        %v2667 = vsel %vm2452, %v2666, %v2665
        %v2668 = vrot.slane %v2057, 4
        %v2669 = vsel %vm2455, %v2668, %v2667
        %v2670 = vrot.slane %v2058, 3
        %v2671 = vsel %vm2458, %v2670, %v2669
        %v2672 = vrot.slane %v2059, 2
        %v2673 = vsel %vm2461, %v2672, %v2671
        %v2674 = vrot.slane %v2060, 1
        %v2675 = vsel %vm2464, %v2674, %v2673
        %v2804 = vrot.slane %v2062, 7
        %v2805 = vsel %vm2446, %v2804, %v2061
        %v2806 = vrot.slane %v2063, 6
        %v2807 = vsel %vm2449, %v2806, %v2805
        %v2808 = vrot.slane %v2064, 5
        %v2809 = vsel %vm2452, %v2808, %v2807
        %v2810 = vrot.slane %v2065, 4
        %v2811 = vsel %vm2455, %v2810, %v2809
        %v2812 = vrot.slane %v2066, 3
        %v2813 = vsel %vm2458, %v2812, %v2811
        %v2814 = vrot.slane %v2067, 2
        %v2815 = vsel %vm2461, %v2814, %v2813
        %v2816 = vrot.slane %v2068, 1
        %v2817 = vsel %vm2464, %v2816, %v2815
        %v2818 = vrot.slane %v2070, 7
        %v2819 = vsel %vm2446, %v2818, %v2069
        %v2820 = vrot.slane %v2071, 6
        %v2821 = vsel %vm2449, %v2820, %v2819
        %v2822 = vrot.slane %v2072, 5
        %v2823 = vsel %vm2452, %v2822, %v2821
        %v2824 = vrot.slane %v2073, 4
        %v2825 = vsel %vm2455, %v2824, %v2823
        %v2826 = vrot.slane %v2074, 3
        %v2827 = vsel %vm2458, %v2826, %v2825
        %v2828 = vrot.slane %v2075, 2
        %v2829 = vsel %vm2461, %v2828, %v2827
        %v2830 = vrot.slane %v2076, 1
        %v2831 = vsel %vm2464, %v2830, %v2829
        %v2832 = vrot.slane %v2078, 7
        %v2833 = vsel %vm2446, %v2832, %v2077
        %v2834 = vrot.slane %v2079, 6
        %v2835 = vsel %vm2449, %v2834, %v2833
        %v2836 = vrot.slane %v2080, 5
        %v2837 = vsel %vm2452, %v2836, %v2835
        %v2838 = vrot.slane %v2081, 4
        %v2839 = vsel %vm2455, %v2838, %v2837
        %v2840 = vrot.slane %v2082, 3
        %v2841 = vsel %vm2458, %v2840, %v2839
        %v2842 = vrot.slane %v2083, 2
        %v2843 = vsel %vm2461, %v2842, %v2841
        %v2844 = vrot.slane %v2084, 1
        %v2845 = vsel %vm2464, %v2844, %v2843
        %v2846 = vrot.slane %v2086, 7
        %v2847 = vsel %vm2446, %v2846, %v2085
        %v2848 = vrot.slane %v2087, 6
        %v2849 = vsel %vm2449, %v2848, %v2847
        %v2850 = vrot.slane %v2088, 5
        %v2851 = vsel %vm2452, %v2850, %v2849
        %v2852 = vrot.slane %v2089, 4
        %v2853 = vsel %vm2455, %v2852, %v2851
        %v2854 = vrot.slane %v2090, 3
        %v2855 = vsel %vm2458, %v2854, %v2853
        %v2856 = vrot.slane %v2091, 2
        %v2857 = vsel %vm2461, %v2856, %v2855
        %v2858 = vrot.slane %v2092, 1
        %v2859 = vsel %vm2464, %v2858, %v2857
        %v2860 = vrot.slane %v2094, 7
        %v2861 = vsel %vm2446, %v2860, %v2093
        %v2862 = vrot.slane %v2095, 6
        %v2863 = vsel %vm2449, %v2862, %v2861
        %v2864 = vrot.slane %v2096, 5
        %v2865 = vsel %vm2452, %v2864, %v2863
        %v2866 = vrot.slane %v2097, 4
        %v2867 = vsel %vm2455, %v2866, %v2865
        %v2868 = vrot.slane %v2098, 3
        %v2869 = vsel %vm2458, %v2868, %v2867
        %v2870 = vrot.slane %v2099, 2
        %v2871 = vsel %vm2461, %v2870, %v2869
        %v2872 = vrot.slane %v2100, 1
        %v2873 = vsel %vm2464, %v2872, %v2871
        %v2874 = vrot.slane %v2102, 7
        %v2875 = vsel %vm2446, %v2874, %v2101
        %v2876 = vrot.slane %v2103, 6
        %v2877 = vsel %vm2449, %v2876, %v2875
        %v2878 = vrot.slane %v2104, 5
        %v2879 = vsel %vm2452, %v2878, %v2877
        %v2880 = vrot.slane %v2105, 4
        %v2881 = vsel %vm2455, %v2880, %v2879
        %v2882 = vrot.slane %v2106, 3
        %v2883 = vsel %vm2458, %v2882, %v2881
        %v2884 = vrot.slane %v2107, 2
        %v2885 = vsel %vm2461, %v2884, %v2883
        %v2886 = vrot.slane %v2108, 1
        %v2887 = vsel %vm2464, %v2886, %v2885
        %v2888 = vrot.slane %v2110, 7
        %v2889 = vsel %vm2446, %v2888, %v2109
        %v2890 = vrot.slane %v2111, 6
        %v2891 = vsel %vm2449, %v2890, %v2889
        %v2892 = vrot.slane %v2112, 5
        %v2893 = vsel %vm2452, %v2892, %v2891
        %v2894 = vrot.slane %v2113, 4
        %v2895 = vsel %vm2455, %v2894, %v2893
        %v2896 = vrot.slane %v2114, 3
        %v2897 = vsel %vm2458, %v2896, %v2895
        %v2898 = vrot.slane %v2115, 2
        %v2899 = vsel %vm2461, %v2898, %v2897
        %v2900 = vrot.slane %v2116, 1
        %v2901 = vsel %vm2464, %v2900, %v2899
        %v2902 = vrot.slane %v2118, 7
        %v2903 = vsel %vm2446, %v2902, %v2117
        %v2904 = vrot.slane %v2119, 6
        %v2905 = vsel %vm2449, %v2904, %v2903
        %v2906 = vrot.slane %v2120, 5
        %v2907 = vsel %vm2452, %v2906, %v2905
        %v2908 = vrot.slane %v2121, 4
        %v2909 = vsel %vm2455, %v2908, %v2907
        %v2910 = vrot.slane %v2122, 3
        %v2911 = vsel %vm2458, %v2910, %v2909
        %v2912 = vrot.slane %v2123, 2
        %v2913 = vsel %vm2461, %v2912, %v2911
        %v2914 = vrot.slane %v2124, 1
        %v2915 = vsel %vm2464, %v2914, %v2913
        %v2916 = vrot.slane %v2126, 7
        %v2917 = vsel %vm2446, %v2916, %v2125
        %v2918 = vrot.slane %v2127, 6
        %v2919 = vsel %vm2449, %v2918, %v2917
        %v2920 = vrot.slane %v2128, 5
        %v2921 = vsel %vm2452, %v2920, %v2919
        %v2922 = vrot.slane %v2129, 4
        %v2923 = vsel %vm2455, %v2922, %v2921
        %v2924 = vrot.slane %v2130, 3
        %v2925 = vsel %vm2458, %v2924, %v2923
        %v2926 = vrot.slane %v2131, 2
        %v2927 = vsel %vm2461, %v2926, %v2925
        %v2928 = vrot.slane %v2132, 1
        %v2929 = vsel %vm2464, %v2928, %v2927
        %v2930 = vrot.slane %v2134, 7
        %v2931 = vsel %vm2446, %v2930, %v2133
        %v2932 = vrot.slane %v2135, 6
        %v2933 = vsel %vm2449, %v2932, %v2931
        %v2934 = vrot.slane %v2136, 5
        %v2935 = vsel %vm2452, %v2934, %v2933
        %v2936 = vrot.slane %v2137, 4
        %v2937 = vsel %vm2455, %v2936, %v2935
        %v2938 = vrot.slane %v2138, 3
        %v2939 = vsel %vm2458, %v2938, %v2937
        %v2940 = vrot.slane %v2139, 2
        %v2941 = vsel %vm2461, %v2940, %v2939
        %v2942 = vrot.slane %v2140, 1
        %v2943 = vsel %vm2464, %v2942, %v2941
        %v2944 = vrot.slane %v2142, 7
        %v2945 = vsel %vm2446, %v2944, %v2141
        %v2946 = vrot.slane %v2143, 6
        %v2947 = vsel %vm2449, %v2946, %v2945
        %v2948 = vrot.slane %v2144, 5
        %v2949 = vsel %vm2452, %v2948, %v2947
        %v2950 = vrot.slane %v2145, 4
        %v2951 = vsel %vm2455, %v2950, %v2949
        %v2952 = vrot.slane %v2146, 3
        %v2953 = vsel %vm2458, %v2952, %v2951
        %v2954 = vrot.slane %v2147, 2
        %v2955 = vsel %vm2461, %v2954, %v2953
        %v2956 = vrot.slane %v2148, 1
        %v2957 = vsel %vm2464, %v2956, %v2955
        %v2958 = vrot.slane %v2150, 7
        %v2959 = vsel %vm2446, %v2958, %v2149
        %v2960 = vrot.slane %v2151, 6
        %v2961 = vsel %vm2449, %v2960, %v2959
        %v2962 = vrot.slane %v2152, 5
        %v2963 = vsel %vm2452, %v2962, %v2961
        %v2964 = vrot.slane %v2153, 4
        %v2965 = vsel %vm2455, %v2964, %v2963
        %v2966 = vrot.slane %v2154, 3
        %v2967 = vsel %vm2458, %v2966, %v2965
        %v2968 = vrot.slane %v2155, 2
        %v2969 = vsel %vm2461, %v2968, %v2967
        %v2970 = vrot.slane %v2156, 1
        %v2971 = vsel %vm2464, %v2970, %v2969
        %v2972 = vrot.slane %v2158, 7
        %v2973 = vsel %vm2446, %v2972, %v2157
        %v2974 = vrot.slane %v2159, 6
        %v2975 = vsel %vm2449, %v2974, %v2973
        %v2976 = vrot.slane %v2160, 5
        %v2977 = vsel %vm2452, %v2976, %v2975
        %v2978 = vrot.slane %v2161, 4
        %v2979 = vsel %vm2455, %v2978, %v2977
        %v2980 = vrot.slane %v2162, 3
        %v2981 = vsel %vm2458, %v2980, %v2979
        %v2982 = vrot.slane %v2163, 2
        %v2983 = vsel %vm2461, %v2982, %v2981
        %v2984 = vrot.slane %v2164, 1
        %v2985 = vsel %vm2464, %v2984, %v2983
        %v2986 = vrot.slane %v2166, 7
        %v2987 = vsel %vm2446, %v2986, %v2165
        %v2988 = vrot.slane %v2167, 6
        %v2989 = vsel %vm2449, %v2988, %v2987
        %v2990 = vrot.slane %v2168, 5
        %v2991 = vsel %vm2452, %v2990, %v2989
        %v2992 = vrot.slane %v2169, 4
        %v2993 = vsel %vm2455, %v2992, %v2991
        %v2994 = vrot.slane %v2170, 3
        %v2995 = vsel %vm2458, %v2994, %v2993
        %v2996 = vrot.slane %v2171, 2
        %v2997 = vsel %vm2461, %v2996, %v2995
        %v2998 = vrot.slane %v2172, 1
        %v2999 = vsel %vm2464, %v2998, %v2997
        %v3000 = vrot.slane %v2174, 7
        %v3001 = vsel %vm2446, %v3000, %v2173
        %v3002 = vrot.slane %v2175, 6
        %v3003 = vsel %vm2449, %v3002, %v3001
        %v3004 = vrot.slane %v2176, 5
        %v3005 = vsel %vm2452, %v3004, %v3003
        %v3006 = vrot.slane %v2177, 4
        %v3007 = vsel %vm2455, %v3006, %v3005
        %v3008 = vrot.slane %v2178, 3
        %v3009 = vsel %vm2458, %v3008, %v3007
        %v3010 = vrot.slane %v2179, 2
        %v3011 = vsel %vm2461, %v3010, %v3009
        %v3012 = vrot.slane %v2180, 1
        %v3013 = vsel %vm2464, %v3012, %v3011
        %v3014 = vrot.slane %v2182, 7
        %v3015 = vsel %vm2446, %v3014, %v2181
        %v3016 = vrot.slane %v2183, 6
        %v3017 = vsel %vm2449, %v3016, %v3015
        %v3018 = vrot.slane %v2184, 5
        %v3019 = vsel %vm2452, %v3018, %v3017
        %v3020 = vrot.slane %v2185, 4
        %v3021 = vsel %vm2455, %v3020, %v3019
        %v3022 = vrot.slane %v2186, 3
        %v3023 = vsel %vm2458, %v3022, %v3021
        %v3024 = vrot.slane %v2187, 2
        %v3025 = vsel %vm2461, %v3024, %v3023
        %v3026 = vrot.slane %v2188, 1
        %v3027 = vsel %vm2464, %v3026, %v3025
        %vm3028 = vcmask 130048
        %v3029 = vsel %vm3028, %v2465, 0
        %v3031 = vsel %vm3028, %v2479, 0
        %v3033 = vsel %vm3028, %v2493, 0
        %v3035 = vsel %vm3028, %v2507, 0
        %v3037 = vsel %vm3028, %v2521, 0
        %v3039 = vsel %vm3028, %v2535, 0
        %v3041 = vsel %vm3028, %v2549, 0
        %v3043 = vsel %vm3028, %v2563, 0
        %v3045 = vsel %vm3028, %v2577, 0
        %v3047 = vsel %vm3028, %v2591, 0
        %v3049 = vsel %vm3028, %v2605, 0
        %v3051 = vsel %vm3028, %v2619, 0
        %v3053 = vsel %vm3028, %v2633, 0
        %v3055 = vsel %vm3028, %v2647, 0
        %v3057 = vsel %vm3028, %v2661, 0
        %v3059 = vsel %vm3028, %v2675, 0
        %v3061 = vsel %vm3028, %v2817, 0
        %v3063 = vsel %vm3028, %v2831, 0
        %v3065 = vsel %vm3028, %v2845, 0
        %v3067 = vsel %vm3028, %v2859, 0
        %v3069 = vsel %vm3028, %v2873, 0
        %v3071 = vsel %vm3028, %v2887, 0
        %v3073 = vsel %vm3028, %v2901, 0
        %v3075 = vsel %vm3028, %v2915, 0
        %v3077 = vsel %vm3028, %v2929, 0
        %v3079 = vsel %vm3028, %v2943, 0
        %v3081 = vsel %vm3028, %v2957, 0
        %v3083 = vsel %vm3028, %v2971, 0
        %v3085 = vsel %vm3028, %v2985, 0
        %v3087 = vsel %vm3028, %v2999, 0
        %v3089 = vsel %vm3028, %v3013, 0
        %v3091 = vsel %vm3028, %v3027, 0
        %3093 = vmatprep.subr.mxu0 0.0
        %3094 = vmatpush1.xpose.msra.mxu0 %v3061
        %3095 = vmatprep.subr.mxu0 0.0
        %3096 = vmatpush1.xpose.msra.mxu0 %v3063
        %3097 = vmatprep.subr.mxu0 0.0
        %3098 = vmatpush1.xpose.msra.mxu0 %v3065
        %3099 = vmatprep.subr.mxu0 0.0
        %3100 = vmatpush1.xpose.msra.mxu0 %v3067
        %3101 = vmatprep.subr.mxu0 0.0
        %3102 = vmatpush1.xpose.msra.mxu0 %v3069
        %3103 = vmatprep.subr.mxu0 0.0
        %3104 = vmatpush1.xpose.msra.mxu0 %v3071
        %3105 = vmatprep.subr.mxu0 0.0
        %3106 = vmatpush1.xpose.msra.mxu0 %v3073
        %3107 = vmatprep.subr.mxu0 0.0
        %3108 = vmatpush1.xpose.msra.mxu0 %v3075
        %3109 = vmatprep.subr.mxu0 0.0
        %3110 = vmatpush1.xpose.msra.mxu0 %v3077
        %3111 = vmatprep.subr.mxu0 0.0
        %3112 = vmatpush1.xpose.msra.mxu0 %v3079
        %3113 = vmatprep.subr.mxu0 0.0
        %3114 = vmatpush1.xpose.msra.mxu0 %v3081
        %3115 = vmatprep.subr.mxu0 0.0
        %3116 = vmatpush1.xpose.msra.mxu0 %v3083
        %3117 = vmatprep.subr.mxu0 0.0
        %3118 = vmatpush1.xpose.msra.mxu0 %v3085
        %3119 = vmatprep.subr.mxu0 0.0
        %3120 = vmatpush1.xpose.msra.mxu0 %v3087
        %3121 = vmatprep.subr.mxu0 0.0
        %3122 = vmatpush1.xpose.msra.mxu0 %v3089
        %3123 = vmatprep.subr.mxu0 0.0
        %3124 = vmatpush1.xpose.msra.mxu0 %v3091
        %3125 = vmatprep.subr.mxu0 0.0
        %3126 = vmatpush1.xpose.msra.mxu0 0.0
        %3127 = vmatprep.subr.mxu0 0.0
        %3128 = vmatpush1.xpose.msra.mxu0 0.0
        %3129 = vmatprep.subr.mxu0 0.0
        %3130 = vmatpush1.xpose.msra.mxu0 0.0
        %3131 = vmatprep.subr.mxu0 0.0
        %3132 = vmatpush1.xpose.msra.mxu0 0.0
        %3133 = vmatprep.subr.mxu0 0.0
        %3134 = vmatpush1.xpose.msra.mxu0 0.0
        %3135 = vmatprep.subr.mxu0 0.0
        %3136 = vmatpush1.xpose.msra.mxu0 0.0
        %3137 = vmatprep.subr.mxu0 0.0
        %3138 = vmatpush1.xpose.msra.mxu0 0.0
        %3139 = vmatprep.subr.mxu0 0.0
        %3140 = vmatpush1.xpose.msra.mxu0 0.0
        %3141 = vmatprep.subr.mxu0 0.0
        %3142 = vmatpush1.xpose.msra.mxu0 0.0
        %3143 = vmatprep.subr.mxu0 0.0
        %3144 = vmatpush1.xpose.msra.mxu0 0.0
        %3145 = vmatprep.subr.mxu0 0.0
        %3146 = vmatpush1.xpose.msra.mxu0 0.0
        %3147 = vmatprep.subr.mxu0 0.0
        %3148 = vmatpush1.xpose.msra.mxu0 0.0
        %3149 = vmatprep.subr.mxu0 0.0
        %3150 = vmatpush1.xpose.msra.mxu0 0.0
        %3151 = vmatprep.subr.mxu0 0.0
        %3152 = vmatpush1.xpose.msra.mxu0 0.0
        %3153 = vmatprep.subr.mxu0 0.0
        %3154 = vmatpush1.xpose.msra.mxu0 0.0
        %3155 = vmatprep.subr.mxu0 0.0
        %3156 = vmatpush1.xpose.msra.mxu0 0.0
        %3157 = vmatprep.mubr.f32.mxu0 0.0
        %3158 = vmatmul.mubr.f32.gmra.mrb[0].mxu0 %v3029
        %v3159 = vpop.f32.mrb[0].mxu0
        %v3160 = vadd.f32 0.0, %v3159
        %v3161 = vpop.f32.mrb[0].mxu0
        %3162 = vmatprep.mubr.f32.mxu0 0.0
        %3163 = vmatmul.mubr.f32.gmra.mrb[0].mxu0 %v3031
        %v3164 = vpop.f32.mrb[0].mxu0
        %v3165 = vadd.f32 0.0, %v3164
        %v3166 = vpop.f32.mrb[0].mxu0
        %3167 = vmatprep.mubr.f32.mxu0 0.0
        %3168 = vmatmul.mubr.f32.gmra.mrb[0].mxu0 %v3033
        %v3169 = vpop.f32.mrb[0].mxu0
        %v3170 = vadd.f32 0.0, %v3169
        %v3171 = vpop.f32.mrb[0].mxu0
        %3172 = vmatprep.mubr.f32.mxu0 0.0
        %3173 = vmatmul.mubr.f32.gmra.mrb[0].mxu0 %v3035
        %v3174 = vpop.f32.mrb[0].mxu0
        %v3175 = vadd.f32 0.0, %v3174
        %v3176 = vpop.f32.mrb[0].mxu0
        %3177 = vmatprep.mubr.f32.mxu0 0.0
        %3178 = vmatmul.mubr.f32.gmra.mrb[0].mxu0 %v3037
        %v3179 = vpop.f32.mrb[0].mxu0
        %v3180 = vadd.f32 0.0, %v3179
        %v3181 = vpop.f32.mrb[0].mxu0
        %3182 = vmatprep.mubr.f32.mxu0 0.0
        %3183 = vmatmul.mubr.f32.gmra.mrb[0].mxu0 %v3039
        %v3184 = vpop.f32.mrb[0].mxu0
        %v3185 = vadd.f32 0.0, %v3184
        %v3186 = vpop.f32.mrb[0].mxu0
        %3187 = vmatprep.mubr.f32.mxu0 0.0
        %3188 = vmatmul.mubr.f32.gmra.mrb[0].mxu0 %v3041
        %v3189 = vpop.f32.mrb[0].mxu0
        %v3190 = vadd.f32 0.0, %v3189
        %v3191 = vpop.f32.mrb[0].mxu0
        %3192 = vmatprep.mubr.f32.mxu0 0.0
        %3193 = vmatmul.mubr.f32.gmra.mrb[0].mxu0 %v3043
        %v3194 = vpop.f32.mrb[0].mxu0
        %v3195 = vadd.f32 0.0, %v3194
        %v3196 = vpop.f32.mrb[0].mxu0
        %3197 = vmatprep.mubr.f32.mxu0 0.0
        %3198 = vmatmul.mubr.f32.gmra.mrb[0].mxu0 %v3045
        %v3199 = vpop.f32.mrb[0].mxu0
        %v3200 = vadd.f32 0.0, %v3199
        %v3201 = vpop.f32.mrb[0].mxu0
        %3202 = vmatprep.mubr.f32.mxu0 0.0
        %3203 = vmatmul.mubr.f32.gmra.mrb[0].mxu0 %v3047
        %v3204 = vpop.f32.mrb[0].mxu0
        %v3205 = vadd.f32 0.0, %v3204
        %v3206 = vpop.f32.mrb[0].mxu0
        %3207 = vmatprep.mubr.f32.mxu0 0.0
        %3208 = vmatmul.mubr.f32.gmra.mrb[0].mxu0 %v3049
        %v3209 = vpop.f32.mrb[0].mxu0
        %v3210 = vadd.f32 0.0, %v3209
        %v3211 = vpop.f32.mrb[0].mxu0
        %3212 = vmatprep.mubr.f32.mxu0 0.0
        %3213 = vmatmul.mubr.f32.gmra.mrb[0].mxu0 %v3051
        %v3214 = vpop.f32.mrb[0].mxu0
        %v3215 = vadd.f32 0.0, %v3214
        %v3216 = vpop.f32.mrb[0].mxu0
        %3217 = vmatprep.mubr.f32.mxu0 0.0
        %3218 = vmatmul.mubr.f32.gmra.mrb[0].mxu0 %v3053
        %v3219 = vpop.f32.mrb[0].mxu0
        %v3220 = vadd.f32 0.0, %v3219
        %v3221 = vpop.f32.mrb[0].mxu0
        %3222 = vmatprep.mubr.f32.mxu0 0.0
        %3223 = vmatmul.mubr.f32.gmra.mrb[0].mxu0 %v3055
        %v3224 = vpop.f32.mrb[0].mxu0
        %v3225 = vadd.f32 0.0, %v3224
        %v3226 = vpop.f32.mrb[0].mxu0
        %3227 = vmatprep.mubr.f32.mxu0 0.0
        %3228 = vmatmul.mubr.f32.gmra.mrb[0].mxu0 %v3057
        %v3229 = vpop.f32.mrb[0].mxu0
        %v3230 = vadd.f32 0.0, %v3229
        %v3231 = vpop.f32.mrb[0].mxu0
        %3232 = vmatprep.mubr.f32.mxu0 0.0
        %3233 = vmatmul.mubr.f32.gmra.mrb[0].mxu0 %v3059
        %v3234 = vpop.f32.mrb[0].mxu0
        %v3235 = vadd.f32 0.0, %v3234
        %v3236 = vpop.f32.mrb[0].mxu0
        %3237 = vdwg.mxu0
        %3238 = vmax.xlane.f32.xlu0 %v3160
        %v3239 = vpop.xlane.xlu0 %3238
        %3240 = vmax.xlane.f32.xlu0 %v3165
        %v3241 = vpop.xlane.xlu0 %3240
        %3242 = vmax.xlane.f32.xlu0 %v3170
        %v3243 = vpop.xlane.xlu0 %3242
        %3244 = vmax.xlane.f32.xlu0 %v3175
        %v3245 = vpop.xlane.xlu0 %3244
        %3246 = vmax.xlane.f32.xlu0 %v3180
        %v3247 = vpop.xlane.xlu0 %3246
        %3248 = vmax.xlane.f32.xlu0 %v3185
        %v3249 = vpop.xlane.xlu0 %3248
        %3250 = vmax.xlane.f32.xlu0 %v3190
        %v3251 = vpop.xlane.xlu0 %3250
        %3252 = vmax.xlane.f32.xlu0 %v3195
        %v3253 = vpop.xlane.xlu0 %3252
        %3254 = vmax.xlane.f32.xlu0 %v3200
        %v3255 = vpop.xlane.xlu0 %3254
        %3256 = vmax.xlane.f32.xlu0 %v3205
        %v3257 = vpop.xlane.xlu0 %3256
        %3258 = vmax.xlane.f32.xlu0 %v3210
        %v3259 = vpop.xlane.xlu0 %3258
        %3260 = vmax.xlane.f32.xlu0 %v3215
        %v3261 = vpop.xlane.xlu0 %3260
        %3262 = vmax.xlane.f32.xlu0 %v3220
        %v3263 = vpop.xlane.xlu0 %3262
        %3264 = vmax.xlane.f32.xlu0 %v3225
        %v3265 = vpop.xlane.xlu0 %3264
        %3266 = vmax.xlane.f32.xlu0 %v3230
        %v3267 = vpop.xlane.xlu0 %3266
        %3268 = vmax.xlane.f32.xlu0 %v3235
        %v3269 = vpop.xlane.xlu0 %3268
        %v3270 = vsub.f32 %v3160, %v3239
        %v3271 = vsub.f32 %v3165, %v3241
        %v3272 = vsub.f32 %v3170, %v3243
        %v3273 = vsub.f32 %v3175, %v3245
        %v3274 = vsub.f32 %v3180, %v3247
        %v3275 = vsub.f32 %v3185, %v3249
        %v3276 = vsub.f32 %v3190, %v3251
        %v3277 = vsub.f32 %v3195, %v3253
        %v3278 = vsub.f32 %v3200, %v3255
        %v3279 = vsub.f32 %v3205, %v3257
        %v3280 = vsub.f32 %v3210, %v3259
        %v3281 = vsub.f32 %v3215, %v3261
        %v3282 = vsub.f32 %v3220, %v3263
        %v3283 = vsub.f32 %v3225, %v3265
        %v3284 = vsub.f32 %v3230, %v3267
        %v3285 = vsub.f32 %v3235, %v3269
        %v3286 = vmul.f32 %v3270, 1.442695
        %v3287 = vpow.pop %v3286
        %v3288 = vmul.f32 %v3271, 1.442695
        %v3289 = vpow.pop %v3288
        %v3290 = vmul.f32 %v3272, 1.442695
        %v3291 = vpow.pop %v3290
        %v3292 = vmul.f32 %v3273, 1.442695
        %v3293 = vpow.pop %v3292
        %v3294 = vmul.f32 %v3274, 1.442695
        %v3295 = vpow.pop %v3294
        %v3296 = vmul.f32 %v3275, 1.442695
        %v3297 = vpow.pop %v3296
        %v3298 = vmul.f32 %v3276, 1.442695
        %v3299 = vpow.pop %v3298
        %v3300 = vmul.f32 %v3277, 1.442695
        %v3301 = vpow.pop %v3300
        %v3302 = vmul.f32 %v3278, 1.442695
        %v3303 = vpow.pop %v3302
        %v3304 = vmul.f32 %v3279, 1.442695
        %v3305 = vpow.pop %v3304
        %v3306 = vmul.f32 %v3280, 1.442695
        %v3307 = vpow.pop %v3306
        %v3308 = vmul.f32 %v3281, 1.442695
        %v3309 = vpow.pop %v3308
        %v3310 = vmul.f32 %v3282, 1.442695
        %v3311 = vpow.pop %v3310
        %v3312 = vmul.f32 %v3283, 1.442695
        %v3313 = vpow.pop %v3312
        %v3314 = vmul.f32 %v3284, 1.442695
        %v3315 = vpow.pop %v3314
        %v3316 = vmul.f32 %v3285, 1.442695
        %v3317 = vpow.pop %v3316
        %3318 = vadd.xlane.f32.xlu0 %v3287
        %v3319 = vpop.xlane.xlu0 %3318
        %3320 = vadd.xlane.f32.xlu0 %v3289
        %v3321 = vpop.xlane.xlu0 %3320
        %3322 = vadd.xlane.f32.xlu0 %v3291
        %v3323 = vpop.xlane.xlu0 %3322
        %3324 = vadd.xlane.f32.xlu0 %v3293
        %v3325 = vpop.xlane.xlu0 %3324
        %3326 = vadd.xlane.f32.xlu0 %v3295
        %v3327 = vpop.xlane.xlu0 %3326
        %3328 = vadd.xlane.f32.xlu0 %v3297
        %v3329 = vpop.xlane.xlu0 %3328
        %3330 = vadd.xlane.f32.xlu0 %v3299
        %v3331 = vpop.xlane.xlu0 %3330
        %3332 = vadd.xlane.f32.xlu0 %v3301
        %v3333 = vpop.xlane.xlu0 %3332
        %3334 = vadd.xlane.f32.xlu0 %v3303
        %v3335 = vpop.xlane.xlu0 %3334
        %3336 = vadd.xlane.f32.xlu0 %v3305
        %v3337 = vpop.xlane.xlu0 %3336
        %3338 = vadd.xlane.f32.xlu0 %v3307
        %v3339 = vpop.xlane.xlu0 %3338
        %3340 = vadd.xlane.f32.xlu0 %v3309
        %v3341 = vpop.xlane.xlu0 %3340
        %3342 = vadd.xlane.f32.xlu0 %v3311
        %v3343 = vpop.xlane.xlu0 %3342
        %3344 = vadd.xlane.f32.xlu0 %v3313
        %v3345 = vpop.xlane.xlu0 %3344
        %3346 = vadd.xlane.f32.xlu0 %v3315
        %v3347 = vpop.xlane.xlu0 %3346
        %3348 = vadd.xlane.f32.xlu0 %v3317
        %v3349 = vpop.xlane.xlu0 %3348
        %v3350 = vrcp.pop %v3319
        %v3351 = vrcp.pop %v3321
        %v3352 = vrcp.pop %v3323
        %v3353 = vrcp.pop %v3325
        %v3354 = vrcp.pop %v3327
        %v3355 = vrcp.pop %v3329
        %v3356 = vrcp.pop %v3331
        %v3357 = vrcp.pop %v3333
        %v3358 = vrcp.pop %v3335
        %v3359 = vrcp.pop %v3337
        %v3360 = vrcp.pop %v3339
        %v3361 = vrcp.pop %v3341
        %v3362 = vrcp.pop %v3343
        %v3363 = vrcp.pop %v3345
        %v3364 = vrcp.pop %v3347
        %v3365 = vrcp.pop %v3349
        %v3366 = vmul.f32 %v3287, %v3350
        %v3367 = vmul.f32 %v3289, %v3351
        %v3368 = vmul.f32 %v3291, %v3352
        %v3369 = vmul.f32 %v3293, %v3353
        %v3370 = vmul.f32 %v3295, %v3354
        %v3371 = vmul.f32 %v3297, %v3355
        %v3372 = vmul.f32 %v3299, %v3356
        %v3373 = vmul.f32 %v3301, %v3357
        %v3374 = vmul.f32 %v3303, %v3358
        %v3375 = vmul.f32 %v3305, %v3359
        %v3376 = vmul.f32 %v3307, %v3360
        %v3377 = vmul.f32 %v3309, %v3361
        %v3378 = vmul.f32 %v3311, %v3362
        %v3379 = vmul.f32 %v3313, %v3363
        %v3380 = vmul.f32 %v3315, %v3364
        %v3381 = vmul.f32 %v3317, %v3365
        %v3382 = vadd.f32 %v3366, 0.0
        %v3383 = vadd.f32 %v3367, 0.0
        %v3384 = vadd.f32 %v3368, 0.0
        %v3385 = vadd.f32 %v3369, 0.0
        %v3386 = vadd.f32 %v3370, 0.0
        %v3387 = vadd.f32 %v3371, 0.0
        %v3388 = vadd.f32 %v3372, 0.0
        %v3389 = vadd.f32 %v3373, 0.0
        %v3390 = vadd.f32 %v3374, 0.0
        %v3391 = vadd.f32 %v3375, 0.0
        %v3392 = vadd.f32 %v3376, 0.0
        %v3393 = vadd.f32 %v3377, 0.0
        %v3394 = vadd.f32 %v3378, 0.0
        %v3395 = vadd.f32 %v3379, 0.0
        %v3396 = vadd.f32 %v3380, 0.0
        %v3397 = vadd.f32 %v3381, 0.0
        %v3526 = vrot.slane %v2190, 7
        %v3527 = vsel %vm2446, %v3526, %v2189
        %v3528 = vrot.slane %v2191, 6
        %v3529 = vsel %vm2449, %v3528, %v3527
        %v3530 = vrot.slane %v2192, 5
        %v3531 = vsel %vm2452, %v3530, %v3529
        %v3532 = vrot.slane %v2193, 4
        %v3533 = vsel %vm2455, %v3532, %v3531
        %v3534 = vrot.slane %v2194, 3
        %v3535 = vsel %vm2458, %v3534, %v3533
        %v3536 = vrot.slane %v2195, 2
        %v3537 = vsel %vm2461, %v3536, %v3535
        %v3538 = vrot.slane %v2196, 1
        %v3539 = vsel %vm2464, %v3538, %v3537
        %v3540 = vrot.slane %v2198, 7
        %v3541 = vsel %vm2446, %v3540, %v2197
        %v3542 = vrot.slane %v2199, 6
        %v3543 = vsel %vm2449, %v3542, %v3541
        %v3544 = vrot.slane %v2200, 5
        %v3545 = vsel %vm2452, %v3544, %v3543
        %v3546 = vrot.slane %v2201, 4
        %v3547 = vsel %vm2455, %v3546, %v3545
        %v3548 = vrot.slane %v2202, 3
        %v3549 = vsel %vm2458, %v3548, %v3547
        %v3550 = vrot.slane %v2203, 2
        %v3551 = vsel %vm2461, %v3550, %v3549
        %v3552 = vrot.slane %v2204, 1
        %v3553 = vsel %vm2464, %v3552, %v3551
        %v3554 = vrot.slane %v2206, 7
        %v3555 = vsel %vm2446, %v3554, %v2205
        %v3556 = vrot.slane %v2207, 6
        %v3557 = vsel %vm2449, %v3556, %v3555
        %v3558 = vrot.slane %v2208, 5
        %v3559 = vsel %vm2452, %v3558, %v3557
        %v3560 = vrot.slane %v2209, 4
        %v3561 = vsel %vm2455, %v3560, %v3559
        %v3562 = vrot.slane %v2210, 3
        %v3563 = vsel %vm2458, %v3562, %v3561
        %v3564 = vrot.slane %v2211, 2
        %v3565 = vsel %vm2461, %v3564, %v3563
        %v3566 = vrot.slane %v2212, 1
        %v3567 = vsel %vm2464, %v3566, %v3565
        %v3568 = vrot.slane %v2214, 7
        %v3569 = vsel %vm2446, %v3568, %v2213
        %v3570 = vrot.slane %v2215, 6
        %v3571 = vsel %vm2449, %v3570, %v3569
        %v3572 = vrot.slane %v2216, 5
        %v3573 = vsel %vm2452, %v3572, %v3571
        %v3574 = vrot.slane %v2217, 4
        %v3575 = vsel %vm2455, %v3574, %v3573
        %v3576 = vrot.slane %v2218, 3
        %v3577 = vsel %vm2458, %v3576, %v3575
        %v3578 = vrot.slane %v2219, 2
        %v3579 = vsel %vm2461, %v3578, %v3577
        %v3580 = vrot.slane %v2220, 1
        %v3581 = vsel %vm2464, %v3580, %v3579
        %v3582 = vrot.slane %v2222, 7
        %v3583 = vsel %vm2446, %v3582, %v2221
        %v3584 = vrot.slane %v2223, 6
        %v3585 = vsel %vm2449, %v3584, %v3583
        %v3586 = vrot.slane %v2224, 5
        %v3587 = vsel %vm2452, %v3586, %v3585
        %v3588 = vrot.slane %v2225, 4
        %v3589 = vsel %vm2455, %v3588, %v3587
        %v3590 = vrot.slane %v2226, 3
        %v3591 = vsel %vm2458, %v3590, %v3589
        %v3592 = vrot.slane %v2227, 2
        %v3593 = vsel %vm2461, %v3592, %v3591
        %v3594 = vrot.slane %v2228, 1
        %v3595 = vsel %vm2464, %v3594, %v3593
        %v3596 = vrot.slane %v2230, 7
        %v3597 = vsel %vm2446, %v3596, %v2229
        %v3598 = vrot.slane %v2231, 6
        %v3599 = vsel %vm2449, %v3598, %v3597
        %v3600 = vrot.slane %v2232, 5
        %v3601 = vsel %vm2452, %v3600, %v3599
        %v3602 = vrot.slane %v2233, 4
        %v3603 = vsel %vm2455, %v3602, %v3601
        %v3604 = vrot.slane %v2234, 3
        %v3605 = vsel %vm2458, %v3604, %v3603
        %v3606 = vrot.slane %v2235, 2
        %v3607 = vsel %vm2461, %v3606, %v3605
        %v3608 = vrot.slane %v2236, 1
        %v3609 = vsel %vm2464, %v3608, %v3607
        %v3610 = vrot.slane %v2238, 7
        %v3611 = vsel %vm2446, %v3610, %v2237
        %v3612 = vrot.slane %v2239, 6
        %v3613 = vsel %vm2449, %v3612, %v3611
        %v3614 = vrot.slane %v2240, 5
        %v3615 = vsel %vm2452, %v3614, %v3613
        %v3616 = vrot.slane %v2241, 4
        %v3617 = vsel %vm2455, %v3616, %v3615
        %v3618 = vrot.slane %v2242, 3
        %v3619 = vsel %vm2458, %v3618, %v3617
        %v3620 = vrot.slane %v2243, 2
        %v3621 = vsel %vm2461, %v3620, %v3619
        %v3622 = vrot.slane %v2244, 1
        %v3623 = vsel %vm2464, %v3622, %v3621
        %v3624 = vrot.slane %v2246, 7
        %v3625 = vsel %vm2446, %v3624, %v2245
        %v3626 = vrot.slane %v2247, 6
        %v3627 = vsel %vm2449, %v3626, %v3625
        %v3628 = vrot.slane %v2248, 5
        %v3629 = vsel %vm2452, %v3628, %v3627
        %v3630 = vrot.slane %v2249, 4
        %v3631 = vsel %vm2455, %v3630, %v3629
        %v3632 = vrot.slane %v2250, 3
        %v3633 = vsel %vm2458, %v3632, %v3631
        %v3634 = vrot.slane %v2251, 2
        %v3635 = vsel %vm2461, %v3634, %v3633
        %v3636 = vrot.slane %v2252, 1
        %v3637 = vsel %vm2464, %v3636, %v3635
        %v3638 = vrot.slane %v2254, 7
        %v3639 = vsel %vm2446, %v3638, %v2253
        %v3640 = vrot.slane %v2255, 6
        %v3641 = vsel %vm2449, %v3640, %v3639
        %v3642 = vrot.slane %v2256, 5
        %v3643 = vsel %vm2452, %v3642, %v3641
        %v3644 = vrot.slane %v2257, 4
        %v3645 = vsel %vm2455, %v3644, %v3643
        %v3646 = vrot.slane %v2258, 3
        %v3647 = vsel %vm2458, %v3646, %v3645
        %v3648 = vrot.slane %v2259, 2
        %v3649 = vsel %vm2461, %v3648, %v3647
        %v3650 = vrot.slane %v2260, 1
        %v3651 = vsel %vm2464, %v3650, %v3649
        %v3652 = vrot.slane %v2262, 7
        %v3653 = vsel %vm2446, %v3652, %v2261
        %v3654 = vrot.slane %v2263, 6
        %v3655 = vsel %vm2449, %v3654, %v3653
        %v3656 = vrot.slane %v2264, 5
        %v3657 = vsel %vm2452, %v3656, %v3655
        %v3658 = vrot.slane %v2265, 4
        %v3659 = vsel %vm2455, %v3658, %v3657
        %v3660 = vrot.slane %v2266, 3
        %v3661 = vsel %vm2458, %v3660, %v3659
        %v3662 = vrot.slane %v2267, 2
        %v3663 = vsel %vm2461, %v3662, %v3661
        %v3664 = vrot.slane %v2268, 1
        %v3665 = vsel %vm2464, %v3664, %v3663
        %v3666 = vrot.slane %v2270, 7
        %v3667 = vsel %vm2446, %v3666, %v2269
        %v3668 = vrot.slane %v2271, 6
        %v3669 = vsel %vm2449, %v3668, %v3667
        %v3670 = vrot.slane %v2272, 5
        %v3671 = vsel %vm2452, %v3670, %v3669
        %v3672 = vrot.slane %v2273, 4
        %v3673 = vsel %vm2455, %v3672, %v3671
        %v3674 = vrot.slane %v2274, 3
        %v3675 = vsel %vm2458, %v3674, %v3673
        %v3676 = vrot.slane %v2275, 2
        %v3677 = vsel %vm2461, %v3676, %v3675
        %v3678 = vrot.slane %v2276, 1
        %v3679 = vsel %vm2464, %v3678, %v3677
        %v3680 = vrot.slane %v2278, 7
        %v3681 = vsel %vm2446, %v3680, %v2277
        %v3682 = vrot.slane %v2279, 6
        %v3683 = vsel %vm2449, %v3682, %v3681
        %v3684 = vrot.slane %v2280, 5
        %v3685 = vsel %vm2452, %v3684, %v3683
        %v3686 = vrot.slane %v2281, 4
        %v3687 = vsel %vm2455, %v3686, %v3685
        %v3688 = vrot.slane %v2282, 3
        %v3689 = vsel %vm2458, %v3688, %v3687
        %v3690 = vrot.slane %v2283, 2
        %v3691 = vsel %vm2461, %v3690, %v3689
        %v3692 = vrot.slane %v2284, 1
        %v3693 = vsel %vm2464, %v3692, %v3691
        %v3694 = vrot.slane %v2286, 7
        %v3695 = vsel %vm2446, %v3694, %v2285
        %v3696 = vrot.slane %v2287, 6
        %v3697 = vsel %vm2449, %v3696, %v3695
        %v3698 = vrot.slane %v2288, 5
        %v3699 = vsel %vm2452, %v3698, %v3697
        %v3700 = vrot.slane %v2289, 4
        %v3701 = vsel %vm2455, %v3700, %v3699
        %v3702 = vrot.slane %v2290, 3
        %v3703 = vsel %vm2458, %v3702, %v3701
        %v3704 = vrot.slane %v2291, 2
        %v3705 = vsel %vm2461, %v3704, %v3703
        %v3706 = vrot.slane %v2292, 1
        %v3707 = vsel %vm2464, %v3706, %v3705
        %v3708 = vrot.slane %v2294, 7
        %v3709 = vsel %vm2446, %v3708, %v2293
        %v3710 = vrot.slane %v2295, 6
        %v3711 = vsel %vm2449, %v3710, %v3709
        %v3712 = vrot.slane %v2296, 5
        %v3713 = vsel %vm2452, %v3712, %v3711
        %v3714 = vrot.slane %v2297, 4
        %v3715 = vsel %vm2455, %v3714, %v3713
        %v3716 = vrot.slane %v2298, 3
        %v3717 = vsel %vm2458, %v3716, %v3715
        %v3718 = vrot.slane %v2299, 2
        %v3719 = vsel %vm2461, %v3718, %v3717
        %v3720 = vrot.slane %v2300, 1
        %v3721 = vsel %vm2464, %v3720, %v3719
        %v3722 = vrot.slane %v2302, 7
        %v3723 = vsel %vm2446, %v3722, %v2301
        %v3724 = vrot.slane %v2303, 6
        %v3725 = vsel %vm2449, %v3724, %v3723
        %v3726 = vrot.slane %v2304, 5
        %v3727 = vsel %vm2452, %v3726, %v3725
        %v3728 = vrot.slane %v2305, 4
        %v3729 = vsel %vm2455, %v3728, %v3727
        %v3730 = vrot.slane %v2306, 3
        %v3731 = vsel %vm2458, %v3730, %v3729
        %v3732 = vrot.slane %v2307, 2
        %v3733 = vsel %vm2461, %v3732, %v3731
        %v3734 = vrot.slane %v2308, 1
        %v3735 = vsel %vm2464, %v3734, %v3733
        %v3736 = vrot.slane %v2310, 7
        %v3737 = vsel %vm2446, %v3736, %v2309
        %v3738 = vrot.slane %v2311, 6
        %v3739 = vsel %vm2449, %v3738, %v3737
        %v3740 = vrot.slane %v2312, 5
        %v3741 = vsel %vm2452, %v3740, %v3739
        %v3742 = vrot.slane %v2313, 4
        %v3743 = vsel %vm2455, %v3742, %v3741
        %v3744 = vrot.slane %v2314, 3
        %v3745 = vsel %vm2458, %v3744, %v3743
        %v3746 = vrot.slane %v2315, 2
        %v3747 = vsel %vm2461, %v3746, %v3745
        %v3748 = vrot.slane %v2316, 1
        %v3749 = vsel %vm2464, %v3748, %v3747
        %3766 = vmatprep.subr.mxu0 0.0
        %3767 = vmatpush1.msra.mxu0 %v3539
        %3768 = vmatprep.subr.mxu0 0.0
        %3769 = vmatpush1.msra.mxu0 %v3553
        %3770 = vmatprep.subr.mxu0 0.0
        %3771 = vmatpush1.msra.mxu0 %v3567
        %3772 = vmatprep.subr.mxu0 0.0
        %3773 = vmatpush1.msra.mxu0 %v3581
        %3774 = vmatprep.subr.mxu0 0.0
        %3775 = vmatpush1.msra.mxu0 %v3595
        %3776 = vmatprep.subr.mxu0 0.0
        %3777 = vmatpush1.msra.mxu0 %v3609
        %3778 = vmatprep.subr.mxu0 0.0
        %3779 = vmatpush1.msra.mxu0 %v3623
        %3780 = vmatprep.subr.mxu0 0.0
        %3781 = vmatpush1.msra.mxu0 %v3637
        %3782 = vmatprep.subr.mxu0 0.0
        %3783 = vmatpush1.msra.mxu0 %v3651
        %3784 = vmatprep.subr.mxu0 0.0
        %3785 = vmatpush1.msra.mxu0 %v3665
        %3786 = vmatprep.subr.mxu0 0.0
        %3787 = vmatpush1.msra.mxu0 %v3679
        %3788 = vmatprep.subr.mxu0 0.0
        %3789 = vmatpush1.msra.mxu0 %v3693
        %3790 = vmatprep.subr.mxu0 0.0
        %3791 = vmatpush1.msra.mxu0 %v3707
        %3792 = vmatprep.subr.mxu0 0.0
        %3793 = vmatpush1.msra.mxu0 %v3721
        %3794 = vmatprep.subr.mxu0 0.0
        %3795 = vmatpush1.msra.mxu0 %v3735
        %3796 = vmatprep.subr.mxu0 0.0
        %3797 = vmatpush1.msra.mxu0 %v3749
        %3798 = vmatprep.subr.mxu0 0.0
        %3799 = vmatpush1.msra.mxu0 0.0
        %3800 = vmatprep.subr.mxu0 0.0
        %3801 = vmatpush1.msra.mxu0 0.0
        %3802 = vmatprep.subr.mxu0 0.0
        %3803 = vmatpush1.msra.mxu0 0.0
        %3804 = vmatprep.subr.mxu0 0.0
        %3805 = vmatpush1.msra.mxu0 0.0
        %3806 = vmatprep.subr.mxu0 0.0
        %3807 = vmatpush1.msra.mxu0 0.0
        %3808 = vmatprep.subr.mxu0 0.0
        %3809 = vmatpush1.msra.mxu0 0.0
        %3810 = vmatprep.subr.mxu0 0.0
        %3811 = vmatpush1.msra.mxu0 0.0
        %3812 = vmatprep.subr.mxu0 0.0
        %3813 = vmatpush1.msra.mxu0 0.0
        %3814 = vmatprep.subr.mxu0 0.0
        %3815 = vmatpush1.msra.mxu0 0.0
        %3816 = vmatprep.subr.mxu0 0.0
        %3817 = vmatpush1.msra.mxu0 0.0
        %3818 = vmatprep.subr.mxu0 0.0
        %3819 = vmatpush1.msra.mxu0 0.0
        %3820 = vmatprep.subr.mxu0 0.0
        %3821 = vmatpush1.msra.mxu0 0.0
        %3822 = vmatprep.subr.mxu0 0.0
        %3823 = vmatpush1.msra.mxu0 0.0
        %3824 = vmatprep.subr.mxu0 0.0
        %3825 = vmatpush1.msra.mxu0 0.0
        %3826 = vmatprep.subr.mxu0 0.0
        %3827 = vmatpush1.msra.mxu0 0.0
        %3828 = vmatprep.subr.mxu0 0.0
        %3829 = vmatpush1.msra.mxu0 0.0
        %3830 = vmatprep.mubr.f32.mxu0 0.0
        %3831 = vmatmul.mubr.f32.gmra.mrb[0].mxu0 %v3366
        %v3832 = vpop.f32.mrb[0].mxu0
        %v3833 = vadd.f32 0.0, %v3832
        %v3834 = vpop.f32.mrb[0].mxu0
        %3835 = vmatprep.mubr.f32.mxu0 0.0
        %3836 = vmatmul.mubr.f32.gmra.mrb[0].mxu0 %v3367
        %v3837 = vpop.f32.mrb[0].mxu0
        %v3838 = vadd.f32 0.0, %v3837
        %v3839 = vpop.f32.mrb[0].mxu0
        %3840 = vmatprep.mubr.f32.mxu0 0.0
        %3841 = vmatmul.mubr.f32.gmra.mrb[0].mxu0 %v3368
        %v3842 = vpop.f32.mrb[0].mxu0
        %v3843 = vadd.f32 0.0, %v3842
        %v3844 = vpop.f32.mrb[0].mxu0
        %3845 = vmatprep.mubr.f32.mxu0 0.0
        %3846 = vmatmul.mubr.f32.gmra.mrb[0].mxu0 %v3369
        %v3847 = vpop.f32.mrb[0].mxu0
        %v3848 = vadd.f32 0.0, %v3847
        %v3849 = vpop.f32.mrb[0].mxu0
        %3850 = vmatprep.mubr.f32.mxu0 0.0
        %3851 = vmatmul.mubr.f32.gmra.mrb[0].mxu0 %v3370
        %v3852 = vpop.f32.mrb[0].mxu0
        %v3853 = vadd.f32 0.0, %v3852
        %v3854 = vpop.f32.mrb[0].mxu0
        %3855 = vmatprep.mubr.f32.mxu0 0.0
        %3856 = vmatmul.mubr.f32.gmra.mrb[0].mxu0 %v3371
        %v3857 = vpop.f32.mrb[0].mxu0
        %v3858 = vadd.f32 0.0, %v3857
        %v3859 = vpop.f32.mrb[0].mxu0
        %3860 = vmatprep.mubr.f32.mxu0 0.0
        %3861 = vmatmul.mubr.f32.gmra.mrb[0].mxu0 %v3372
        %v3862 = vpop.f32.mrb[0].mxu0
        %v3863 = vadd.f32 0.0, %v3862
        %v3864 = vpop.f32.mrb[0].mxu0
        %3865 = vmatprep.mubr.f32.mxu0 0.0
        %3866 = vmatmul.mubr.f32.gmra.mrb[0].mxu0 %v3373
        %v3867 = vpop.f32.mrb[0].mxu0
        %v3868 = vadd.f32 0.0, %v3867
        %v3869 = vpop.f32.mrb[0].mxu0
        %3870 = vmatprep.mubr.f32.mxu0 0.0
        %3871 = vmatmul.mubr.f32.gmra.mrb[0].mxu0 %v3374
        %v3872 = vpop.f32.mrb[0].mxu0
        %v3873 = vadd.f32 0.0, %v3872
        %v3874 = vpop.f32.mrb[0].mxu0
        %3875 = vmatprep.mubr.f32.mxu0 0.0
        %3876 = vmatmul.mubr.f32.gmra.mrb[0].mxu0 %v3375
        %v3877 = vpop.f32.mrb[0].mxu0
        %v3878 = vadd.f32 0.0, %v3877
        %v3879 = vpop.f32.mrb[0].mxu0
        %3880 = vmatprep.mubr.f32.mxu0 0.0
        %3881 = vmatmul.mubr.f32.gmra.mrb[0].mxu0 %v3376
        %v3882 = vpop.f32.mrb[0].mxu0
        %v3883 = vadd.f32 0.0, %v3882
        %v3884 = vpop.f32.mrb[0].mxu0
        %3885 = vmatprep.mubr.f32.mxu0 0.0
        %3886 = vmatmul.mubr.f32.gmra.mrb[0].mxu0 %v3377
        %v3887 = vpop.f32.mrb[0].mxu0
        %v3888 = vadd.f32 0.0, %v3887
        %v3889 = vpop.f32.mrb[0].mxu0
        %3890 = vmatprep.mubr.f32.mxu0 0.0
        %3891 = vmatmul.mubr.f32.gmra.mrb[0].mxu0 %v3378
        %v3892 = vpop.f32.mrb[0].mxu0
        %v3893 = vadd.f32 0.0, %v3892
        %v3894 = vpop.f32.mrb[0].mxu0
        %3895 = vmatprep.mubr.f32.mxu0 0.0
        %3896 = vmatmul.mubr.f32.gmra.mrb[0].mxu0 %v3379
        %v3897 = vpop.f32.mrb[0].mxu0
        %v3898 = vadd.f32 0.0, %v3897
        %v3899 = vpop.f32.mrb[0].mxu0
        %3900 = vmatprep.mubr.f32.mxu0 0.0
        %3901 = vmatmul.mubr.f32.gmra.mrb[0].mxu0 %v3380
        %v3902 = vpop.f32.mrb[0].mxu0
        %v3903 = vadd.f32 0.0, %v3902
        %v3904 = vpop.f32.mrb[0].mxu0
        %3905 = vmatprep.mubr.f32.mxu0 0.0
        %3906 = vmatmul.mubr.f32.gmra.mrb[0].mxu0 %v3381
        %v3907 = vpop.f32.mrb[0].mxu0
        %v3908 = vadd.f32 0.0, %v3907
        %v3909 = vpop.f32.mrb[0].mxu0
        %3910 = vdwg.mxu0
        %3911 = vst.msk [vmem:[#allocation2] sm:$0xff] %vm3028, %v3833
        %3912 = vst.msk [vmem:[#allocation2 + $0x8] sm:$0xff] %vm3028, %v3838
        %3913 = vst.msk [vmem:[#allocation2 + $0x10] sm:$0xff] %vm3028, %v3843
        %3914 = vst.msk [vmem:[#allocation2 + $0x18] sm:$0xff] %vm3028, %v3848
        %3915 = vst.msk [vmem:[#allocation2 + $0x20] sm:$0xff] %vm3028, %v3853
        %3916 = vst.msk [vmem:[#allocation2 + $0x28] sm:$0xff] %vm3028, %v3858
        %3917 = vst.msk [vmem:[#allocation2 + $0x30] sm:$0xff] %vm3028, %v3863
        %3918 = vst.msk [vmem:[#allocation2 + $0x38] sm:$0xff] %vm3028, %v3868
        %3919 = vst.msk [vmem:[#allocation2 + $0x40] sm:$0xff] %vm3028, %v3873
        %3920 = vst.msk [vmem:[#allocation2 + $0x48] sm:$0xff] %vm3028, %v3878
        %3921 = vst.msk [vmem:[#allocation2 + $0x50] sm:$0xff] %vm3028, %v3883
        %3922 = vst.msk [vmem:[#allocation2 + $0x58] sm:$0xff] %vm3028, %v3888
        %3923 = vst.msk [vmem:[#allocation2 + $0x60] sm:$0xff] %vm3028, %v3893
        %3924 = vst.msk [vmem:[#allocation2 + $0x68] sm:$0xff] %vm3028, %v3898
        %3925 = vst.msk [vmem:[#allocation2 + $0x70] sm:$0xff] %vm3028, %v3903
        %3926 = vst.msk [vmem:[#allocation2 + $0x78] sm:$0xff] %vm3028, %v3908
        %v3927 = vrot.slane %v1933, 1
        %v3928 = vsel %vm2446, %v1934, %v3927
        %v3929 = vrot.slane %v1935, 7
        %v3930 = vsel %vm2449, %v3929, %v3928
        %v3931 = vrot.slane %v1936, 6
        %v3932 = vsel %vm2452, %v3931, %v3930
        %v3933 = vrot.slane %v1937, 5
        %v3934 = vsel %vm2455, %v3933, %v3932
        %v3935 = vrot.slane %v1938, 4
        %v3936 = vsel %vm2458, %v3935, %v3934
        %v3937 = vrot.slane %v1939, 3
        %v3938 = vsel %vm2461, %v3937, %v3936
        %v3939 = vrot.slane %v1940, 2
        %v3940 = vsel %vm2464, %v3939, %v3938
        %v3941 = vrot.slane %v1941, 1
        %v3942 = vsel %vm2446, %v1942, %v3941
        %v3943 = vrot.slane %v1943, 7
        %v3944 = vsel %vm2449, %v3943, %v3942
        %v3945 = vrot.slane %v1944, 6
        %v3946 = vsel %vm2452, %v3945, %v3944
        %v3947 = vrot.slane %v1945, 5
        %v3948 = vsel %vm2455, %v3947, %v3946
        %v3949 = vrot.slane %v1946, 4
        %v3950 = vsel %vm2458, %v3949, %v3948
        %v3951 = vrot.slane %v1947, 3
        %v3952 = vsel %vm2461, %v3951, %v3950
        %v3953 = vrot.slane %v1948, 2
        %v3954 = vsel %vm2464, %v3953, %v3952
        %v3955 = vrot.slane %v1949, 1
        %v3956 = vsel %vm2446, %v1950, %v3955
        %v3957 = vrot.slane %v1951, 7
        %v3958 = vsel %vm2449, %v3957, %v3956
        %v3959 = vrot.slane %v1952, 6
        %v3960 = vsel %vm2452, %v3959, %v3958
        %v3961 = vrot.slane %v1953, 5
        %v3962 = vsel %vm2455, %v3961, %v3960
        %v3963 = vrot.slane %v1954, 4
        %v3964 = vsel %vm2458, %v3963, %v3962
        %v3965 = vrot.slane %v1955, 3
        %v3966 = vsel %vm2461, %v3965, %v3964
        %v3967 = vrot.slane %v1956, 2
        %v3968 = vsel %vm2464, %v3967, %v3966
        %v3969 = vrot.slane %v1957, 1
        %v3970 = vsel %vm2446, %v1958, %v3969
        %v3971 = vrot.slane %v1959, 7
        %v3972 = vsel %vm2449, %v3971, %v3970
        %v3973 = vrot.slane %v1960, 6
        %v3974 = vsel %vm2452, %v3973, %v3972
        %v3975 = vrot.slane %v1961, 5
        %v3976 = vsel %vm2455, %v3975, %v3974
        %v3977 = vrot.slane %v1962, 4
        %v3978 = vsel %vm2458, %v3977, %v3976
        %v3979 = vrot.slane %v1963, 3
        %v3980 = vsel %vm2461, %v3979, %v3978
        %v3981 = vrot.slane %v1964, 2
        %v3982 = vsel %vm2464, %v3981, %v3980
        %v3983 = vrot.slane %v1965, 1
        %v3984 = vsel %vm2446, %v1966, %v3983
        %v3985 = vrot.slane %v1967, 7
        %v3986 = vsel %vm2449, %v3985, %v3984
        %v3987 = vrot.slane %v1968, 6
        %v3988 = vsel %vm2452, %v3987, %v3986
        %v3989 = vrot.slane %v1969, 5
        %v3990 = vsel %vm2455, %v3989, %v3988
        %v3991 = vrot.slane %v1970, 4
        %v3992 = vsel %vm2458, %v3991, %v3990
        %v3993 = vrot.slane %v1971, 3
        %v3994 = vsel %vm2461, %v3993, %v3992
        %v3995 = vrot.slane %v1972, 2
        %v3996 = vsel %vm2464, %v3995, %v3994
        %v3997 = vrot.slane %v1973, 1
        %v3998 = vsel %vm2446, %v1974, %v3997
        %v3999 = vrot.slane %v1975, 7
        %v4000 = vsel %vm2449, %v3999, %v3998
        %v4001 = vrot.slane %v1976, 6
        %v4002 = vsel %vm2452, %v4001, %v4000
        %v4003 = vrot.slane %v1977, 5
        %v4004 = vsel %vm2455, %v4003, %v4002
        %v4005 = vrot.slane %v1978, 4
        %v4006 = vsel %vm2458, %v4005, %v4004
        %v4007 = vrot.slane %v1979, 3
        %v4008 = vsel %vm2461, %v4007, %v4006
        %v4009 = vrot.slane %v1980, 2
        %v4010 = vsel %vm2464, %v4009, %v4008
        %v4011 = vrot.slane %v1981, 1
        %v4012 = vsel %vm2446, %v1982, %v4011
        %v4013 = vrot.slane %v1983, 7
        %v4014 = vsel %vm2449, %v4013, %v4012
        %v4015 = vrot.slane %v1984, 6
        %v4016 = vsel %vm2452, %v4015, %v4014
        %v4017 = vrot.slane %v1985, 5
        %v4018 = vsel %vm2455, %v4017, %v4016
        %v4019 = vrot.slane %v1986, 4
        %v4020 = vsel %vm2458, %v4019, %v4018
        %v4021 = vrot.slane %v1987, 3
        %v4022 = vsel %vm2461, %v4021, %v4020
        %v4023 = vrot.slane %v1988, 2
        %v4024 = vsel %vm2464, %v4023, %v4022
        %v4025 = vrot.slane %v1989, 1
        %v4026 = vsel %vm2446, %v1990, %v4025
        %v4027 = vrot.slane %v1991, 7
        %v4028 = vsel %vm2449, %v4027, %v4026
        %v4029 = vrot.slane %v1992, 6
        %v4030 = vsel %vm2452, %v4029, %v4028
        %v4031 = vrot.slane %v1993, 5
        %v4032 = vsel %vm2455, %v4031, %v4030
        %v4033 = vrot.slane %v1994, 4
        %v4034 = vsel %vm2458, %v4033, %v4032
        %v4035 = vrot.slane %v1995, 3
        %v4036 = vsel %vm2461, %v4035, %v4034
        %v4037 = vrot.slane %v1996, 2
        %v4038 = vsel %vm2464, %v4037, %v4036
        %v4039 = vrot.slane %v1997, 1
        %v4040 = vsel %vm2446, %v1998, %v4039
        %v4041 = vrot.slane %v1999, 7
        %v4042 = vsel %vm2449, %v4041, %v4040
        %v4043 = vrot.slane %v2000, 6
        %v4044 = vsel %vm2452, %v4043, %v4042
        %v4045 = vrot.slane %v2001, 5
        %v4046 = vsel %vm2455, %v4045, %v4044
        %v4047 = vrot.slane %v2002, 4
        %v4048 = vsel %vm2458, %v4047, %v4046
        %v4049 = vrot.slane %v2003, 3
        %v4050 = vsel %vm2461, %v4049, %v4048
        %v4051 = vrot.slane %v2004, 2
        %v4052 = vsel %vm2464, %v4051, %v4050
        %v4053 = vrot.slane %v2005, 1
        %v4054 = vsel %vm2446, %v2006, %v4053
        %v4055 = vrot.slane %v2007, 7
        %v4056 = vsel %vm2449, %v4055, %v4054
        %v4057 = vrot.slane %v2008, 6
        %v4058 = vsel %vm2452, %v4057, %v4056
        %v4059 = vrot.slane %v2009, 5
        %v4060 = vsel %vm2455, %v4059, %v4058
        %v4061 = vrot.slane %v2010, 4
        %v4062 = vsel %vm2458, %v4061, %v4060
        %v4063 = vrot.slane %v2011, 3
        %v4064 = vsel %vm2461, %v4063, %v4062
        %v4065 = vrot.slane %v2012, 2
        %v4066 = vsel %vm2464, %v4065, %v4064
        %v4067 = vrot.slane %v2013, 1
        %v4068 = vsel %vm2446, %v2014, %v4067
        %v4069 = vrot.slane %v2015, 7
        %v4070 = vsel %vm2449, %v4069, %v4068
        %v4071 = vrot.slane %v2016, 6
        %v4072 = vsel %vm2452, %v4071, %v4070
        %v4073 = vrot.slane %v2017, 5
        %v4074 = vsel %vm2455, %v4073, %v4072
        %v4075 = vrot.slane %v2018, 4
        %v4076 = vsel %vm2458, %v4075, %v4074
        %v4077 = vrot.slane %v2019, 3
        %v4078 = vsel %vm2461, %v4077, %v4076
        %v4079 = vrot.slane %v2020, 2
        %v4080 = vsel %vm2464, %v4079, %v4078
        %v4081 = vrot.slane %v2021, 1
        %v4082 = vsel %vm2446, %v2022, %v4081
        %v4083 = vrot.slane %v2023, 7
        %v4084 = vsel %vm2449, %v4083, %v4082
        %v4085 = vrot.slane %v2024, 6
        %v4086 = vsel %vm2452, %v4085, %v4084
        %v4087 = vrot.slane %v2025, 5
        %v4088 = vsel %vm2455, %v4087, %v4086
        %v4089 = vrot.slane %v2026, 4
        %v4090 = vsel %vm2458, %v4089, %v4088
        %v4091 = vrot.slane %v2027, 3
        %v4092 = vsel %vm2461, %v4091, %v4090
        %v4093 = vrot.slane %v2028, 2
        %v4094 = vsel %vm2464, %v4093, %v4092
        %v4095 = vrot.slane %v2029, 1
        %v4096 = vsel %vm2446, %v2030, %v4095
        %v4097 = vrot.slane %v2031, 7
        %v4098 = vsel %vm2449, %v4097, %v4096
        %v4099 = vrot.slane %v2032, 6
        %v4100 = vsel %vm2452, %v4099, %v4098
        %v4101 = vrot.slane %v2033, 5
        %v4102 = vsel %vm2455, %v4101, %v4100
        %v4103 = vrot.slane %v2034, 4
        %v4104 = vsel %vm2458, %v4103, %v4102
        %v4105 = vrot.slane %v2035, 3
        %v4106 = vsel %vm2461, %v4105, %v4104
        %v4107 = vrot.slane %v2036, 2
        %v4108 = vsel %vm2464, %v4107, %v4106
        %v4109 = vrot.slane %v2037, 1
        %v4110 = vsel %vm2446, %v2038, %v4109
        %v4111 = vrot.slane %v2039, 7
        %v4112 = vsel %vm2449, %v4111, %v4110
        %v4113 = vrot.slane %v2040, 6
        %v4114 = vsel %vm2452, %v4113, %v4112
        %v4115 = vrot.slane %v2041, 5
        %v4116 = vsel %vm2455, %v4115, %v4114
        %v4117 = vrot.slane %v2042, 4
        %v4118 = vsel %vm2458, %v4117, %v4116
        %v4119 = vrot.slane %v2043, 3
        %v4120 = vsel %vm2461, %v4119, %v4118
        %v4121 = vrot.slane %v2044, 2
        %v4122 = vsel %vm2464, %v4121, %v4120
        %v4123 = vrot.slane %v2045, 1
        %v4124 = vsel %vm2446, %v2046, %v4123
        %v4125 = vrot.slane %v2047, 7
        %v4126 = vsel %vm2449, %v4125, %v4124
        %v4127 = vrot.slane %v2048, 6
        %v4128 = vsel %vm2452, %v4127, %v4126
        %v4129 = vrot.slane %v2049, 5
        %v4130 = vsel %vm2455, %v4129, %v4128
        %v4131 = vrot.slane %v2050, 4
        %v4132 = vsel %vm2458, %v4131, %v4130
        %v4133 = vrot.slane %v2051, 3
        %v4134 = vsel %vm2461, %v4133, %v4132
        %v4135 = vrot.slane %v2052, 2
        %v4136 = vsel %vm2464, %v4135, %v4134
        %v4137 = vrot.slane %v2053, 1
        %v4138 = vsel %vm2446, %v2054, %v4137
        %v4139 = vrot.slane %v2055, 7
        %v4140 = vsel %vm2449, %v4139, %v4138
        %v4141 = vrot.slane %v2056, 6
        %v4142 = vsel %vm2452, %v4141, %v4140
        %v4143 = vrot.slane %v2057, 5
        %v4144 = vsel %vm2455, %v4143, %v4142
        %v4145 = vrot.slane %v2058, 4
        %v4146 = vsel %vm2458, %v4145, %v4144
        %v4147 = vrot.slane %v2059, 3
        %v4148 = vsel %vm2461, %v4147, %v4146
        %v4149 = vrot.slane %v2060, 2
        %v4150 = vsel %vm2464, %v4149, %v4148
        %v4151 = vrot.slane %v2061, 1
        %v4152 = vsel %vm2446, %v2062, %v4151
        %v4153 = vrot.slane %v2063, 7
        %v4154 = vsel %vm2449, %v4153, %v4152
        %v4155 = vrot.slane %v2064, 6
        %v4156 = vsel %vm2452, %v4155, %v4154
        %v4157 = vrot.slane %v2065, 5
        %v4158 = vsel %vm2455, %v4157, %v4156
        %v4159 = vrot.slane %v2066, 4
        %v4160 = vsel %vm2458, %v4159, %v4158
        %v4161 = vrot.slane %v2067, 3
        %v4162 = vsel %vm2461, %v4161, %v4160
        %v4163 = vrot.slane %v2068, 2
        %v4164 = vsel %vm2464, %v4163, %v4162
        %v4165 = vrot.slane %v2069, 1
        %v4166 = vsel %vm2446, %v2070, %v4165
        %v4167 = vrot.slane %v2071, 7
        %v4168 = vsel %vm2449, %v4167, %v4166
        %v4169 = vrot.slane %v2072, 6
        %v4170 = vsel %vm2452, %v4169, %v4168
        %v4171 = vrot.slane %v2073, 5
        %v4172 = vsel %vm2455, %v4171, %v4170
        %v4173 = vrot.slane %v2074, 4
        %v4174 = vsel %vm2458, %v4173, %v4172
        %v4175 = vrot.slane %v2075, 3
        %v4176 = vsel %vm2461, %v4175, %v4174
        %v4177 = vrot.slane %v2076, 2
        %v4178 = vsel %vm2464, %v4177, %v4176
        %v4179 = vrot.slane %v2077, 1
        %v4180 = vsel %vm2446, %v2078, %v4179
        %v4181 = vrot.slane %v2079, 7
        %v4182 = vsel %vm2449, %v4181, %v4180
        %v4183 = vrot.slane %v2080, 6
        %v4184 = vsel %vm2452, %v4183, %v4182
        %v4185 = vrot.slane %v2081, 5
        %v4186 = vsel %vm2455, %v4185, %v4184
        %v4187 = vrot.slane %v2082, 4
        %v4188 = vsel %vm2458, %v4187, %v4186
        %v4189 = vrot.slane %v2083, 3
        %v4190 = vsel %vm2461, %v4189, %v4188
        %v4191 = vrot.slane %v2084, 2
        %v4192 = vsel %vm2464, %v4191, %v4190
        %v4193 = vrot.slane %v2085, 1
        %v4194 = vsel %vm2446, %v2086, %v4193
        %v4195 = vrot.slane %v2087, 7
        %v4196 = vsel %vm2449, %v4195, %v4194
        %v4197 = vrot.slane %v2088, 6
        %v4198 = vsel %vm2452, %v4197, %v4196
        %v4199 = vrot.slane %v2089, 5
        %v4200 = vsel %vm2455, %v4199, %v4198
        %v4201 = vrot.slane %v2090, 4
        %v4202 = vsel %vm2458, %v4201, %v4200
        %v4203 = vrot.slane %v2091, 3
        %v4204 = vsel %vm2461, %v4203, %v4202
        %v4205 = vrot.slane %v2092, 2
        %v4206 = vsel %vm2464, %v4205, %v4204
        %v4207 = vrot.slane %v2093, 1
        %v4208 = vsel %vm2446, %v2094, %v4207
        %v4209 = vrot.slane %v2095, 7
        %v4210 = vsel %vm2449, %v4209, %v4208
        %v4211 = vrot.slane %v2096, 6
        %v4212 = vsel %vm2452, %v4211, %v4210
        %v4213 = vrot.slane %v2097, 5
        %v4214 = vsel %vm2455, %v4213, %v4212
        %v4215 = vrot.slane %v2098, 4
        %v4216 = vsel %vm2458, %v4215, %v4214
        %v4217 = vrot.slane %v2099, 3
        %v4218 = vsel %vm2461, %v4217, %v4216
        %v4219 = vrot.slane %v2100, 2
        %v4220 = vsel %vm2464, %v4219, %v4218
        %v4221 = vrot.slane %v2101, 1
        %v4222 = vsel %vm2446, %v2102, %v4221
        %v4223 = vrot.slane %v2103, 7
        %v4224 = vsel %vm2449, %v4223, %v4222
        %v4225 = vrot.slane %v2104, 6
        %v4226 = vsel %vm2452, %v4225, %v4224
        %v4227 = vrot.slane %v2105, 5
        %v4228 = vsel %vm2455, %v4227, %v4226
        %v4229 = vrot.slane %v2106, 4
        %v4230 = vsel %vm2458, %v4229, %v4228
        %v4231 = vrot.slane %v2107, 3
        %v4232 = vsel %vm2461, %v4231, %v4230
        %v4233 = vrot.slane %v2108, 2
        %v4234 = vsel %vm2464, %v4233, %v4232
        %v4235 = vrot.slane %v2109, 1
        %v4236 = vsel %vm2446, %v2110, %v4235
        %v4237 = vrot.slane %v2111, 7
        %v4238 = vsel %vm2449, %v4237, %v4236
        %v4239 = vrot.slane %v2112, 6
        %v4240 = vsel %vm2452, %v4239, %v4238
        %v4241 = vrot.slane %v2113, 5
        %v4242 = vsel %vm2455, %v4241, %v4240
        %v4243 = vrot.slane %v2114, 4
        %v4244 = vsel %vm2458, %v4243, %v4242
        %v4245 = vrot.slane %v2115, 3
        %v4246 = vsel %vm2461, %v4245, %v4244
        %v4247 = vrot.slane %v2116, 2
        %v4248 = vsel %vm2464, %v4247, %v4246
        %v4249 = vrot.slane %v2117, 1
        %v4250 = vsel %vm2446, %v2118, %v4249
        %v4251 = vrot.slane %v2119, 7
        %v4252 = vsel %vm2449, %v4251, %v4250
        %v4253 = vrot.slane %v2120, 6
        %v4254 = vsel %vm2452, %v4253, %v4252
        %v4255 = vrot.slane %v2121, 5
        %v4256 = vsel %vm2455, %v4255, %v4254
        %v4257 = vrot.slane %v2122, 4
        %v4258 = vsel %vm2458, %v4257, %v4256
        %v4259 = vrot.slane %v2123, 3
        %v4260 = vsel %vm2461, %v4259, %v4258
        %v4261 = vrot.slane %v2124, 2
        %v4262 = vsel %vm2464, %v4261, %v4260
        %v4263 = vrot.slane %v2125, 1
        %v4264 = vsel %vm2446, %v2126, %v4263
        %v4265 = vrot.slane %v2127, 7
        %v4266 = vsel %vm2449, %v4265, %v4264
        %v4267 = vrot.slane %v2128, 6
        %v4268 = vsel %vm2452, %v4267, %v4266
        %v4269 = vrot.slane %v2129, 5
        %v4270 = vsel %vm2455, %v4269, %v4268
        %v4271 = vrot.slane %v2130, 4
        %v4272 = vsel %vm2458, %v4271, %v4270
        %v4273 = vrot.slane %v2131, 3
        %v4274 = vsel %vm2461, %v4273, %v4272
        %v4275 = vrot.slane %v2132, 2
        %v4276 = vsel %vm2464, %v4275, %v4274
        %v4277 = vrot.slane %v2133, 1
        %v4278 = vsel %vm2446, %v2134, %v4277
        %v4279 = vrot.slane %v2135, 7
        %v4280 = vsel %vm2449, %v4279, %v4278
        %v4281 = vrot.slane %v2136, 6
        %v4282 = vsel %vm2452, %v4281, %v4280
        %v4283 = vrot.slane %v2137, 5
        %v4284 = vsel %vm2455, %v4283, %v4282
        %v4285 = vrot.slane %v2138, 4
        %v4286 = vsel %vm2458, %v4285, %v4284
        %v4287 = vrot.slane %v2139, 3
        %v4288 = vsel %vm2461, %v4287, %v4286
        %v4289 = vrot.slane %v2140, 2
        %v4290 = vsel %vm2464, %v4289, %v4288
        %v4291 = vrot.slane %v2141, 1
        %v4292 = vsel %vm2446, %v2142, %v4291
        %v4293 = vrot.slane %v2143, 7
        %v4294 = vsel %vm2449, %v4293, %v4292
        %v4295 = vrot.slane %v2144, 6
        %v4296 = vsel %vm2452, %v4295, %v4294
        %v4297 = vrot.slane %v2145, 5
        %v4298 = vsel %vm2455, %v4297, %v4296
        %v4299 = vrot.slane %v2146, 4
        %v4300 = vsel %vm2458, %v4299, %v4298
        %v4301 = vrot.slane %v2147, 3
        %v4302 = vsel %vm2461, %v4301, %v4300
        %v4303 = vrot.slane %v2148, 2
        %v4304 = vsel %vm2464, %v4303, %v4302
        %v4305 = vrot.slane %v2149, 1
        %v4306 = vsel %vm2446, %v2150, %v4305
        %v4307 = vrot.slane %v2151, 7
        %v4308 = vsel %vm2449, %v4307, %v4306
        %v4309 = vrot.slane %v2152, 6
        %v4310 = vsel %vm2452, %v4309, %v4308
        %v4311 = vrot.slane %v2153, 5
        %v4312 = vsel %vm2455, %v4311, %v4310
        %v4313 = vrot.slane %v2154, 4
        %v4314 = vsel %vm2458, %v4313, %v4312
        %v4315 = vrot.slane %v2155, 3
        %v4316 = vsel %vm2461, %v4315, %v4314
        %v4317 = vrot.slane %v2156, 2
        %v4318 = vsel %vm2464, %v4317, %v4316
        %v4319 = vrot.slane %v2157, 1
        %v4320 = vsel %vm2446, %v2158, %v4319
        %v4321 = vrot.slane %v2159, 7
        %v4322 = vsel %vm2449, %v4321, %v4320
        %v4323 = vrot.slane %v2160, 6
        %v4324 = vsel %vm2452, %v4323, %v4322
        %v4325 = vrot.slane %v2161, 5
        %v4326 = vsel %vm2455, %v4325, %v4324
        %v4327 = vrot.slane %v2162, 4
        %v4328 = vsel %vm2458, %v4327, %v4326
        %v4329 = vrot.slane %v2163, 3
        %v4330 = vsel %vm2461, %v4329, %v4328
        %v4331 = vrot.slane %v2164, 2
        %v4332 = vsel %vm2464, %v4331, %v4330
        %v4333 = vrot.slane %v2165, 1
        %v4334 = vsel %vm2446, %v2166, %v4333
        %v4335 = vrot.slane %v2167, 7
        %v4336 = vsel %vm2449, %v4335, %v4334
        %v4337 = vrot.slane %v2168, 6
        %v4338 = vsel %vm2452, %v4337, %v4336
        %v4339 = vrot.slane %v2169, 5
        %v4340 = vsel %vm2455, %v4339, %v4338
        %v4341 = vrot.slane %v2170, 4
        %v4342 = vsel %vm2458, %v4341, %v4340
        %v4343 = vrot.slane %v2171, 3
        %v4344 = vsel %vm2461, %v4343, %v4342
        %v4345 = vrot.slane %v2172, 2
        %v4346 = vsel %vm2464, %v4345, %v4344
        %v4347 = vrot.slane %v2173, 1
        %v4348 = vsel %vm2446, %v2174, %v4347
        %v4349 = vrot.slane %v2175, 7
        %v4350 = vsel %vm2449, %v4349, %v4348
        %v4351 = vrot.slane %v2176, 6
        %v4352 = vsel %vm2452, %v4351, %v4350
        %v4353 = vrot.slane %v2177, 5
        %v4354 = vsel %vm2455, %v4353, %v4352
        %v4355 = vrot.slane %v2178, 4
        %v4356 = vsel %vm2458, %v4355, %v4354
        %v4357 = vrot.slane %v2179, 3
        %v4358 = vsel %vm2461, %v4357, %v4356
        %v4359 = vrot.slane %v2180, 2
        %v4360 = vsel %vm2464, %v4359, %v4358
        %v4361 = vrot.slane %v2181, 1
        %v4362 = vsel %vm2446, %v2182, %v4361
        %v4363 = vrot.slane %v2183, 7
        %v4364 = vsel %vm2449, %v4363, %v4362
        %v4365 = vrot.slane %v2184, 6
        %v4366 = vsel %vm2452, %v4365, %v4364
        %v4367 = vrot.slane %v2185, 5
        %v4368 = vsel %vm2455, %v4367, %v4366
        %v4369 = vrot.slane %v2186, 4
        %v4370 = vsel %vm2458, %v4369, %v4368
        %v4371 = vrot.slane %v2187, 3
        %v4372 = vsel %vm2461, %v4371, %v4370
        %v4373 = vrot.slane %v2188, 2
        %v4374 = vsel %vm2464, %v4373, %v4372
        %v4375 = vsel %vm3028, %v3940, 0
        %v4377 = vsel %vm3028, %v3954, 0
        %v4379 = vsel %vm3028, %v3968, 0
        %v4381 = vsel %vm3028, %v3982, 0
        %v4383 = vsel %vm3028, %v3996, 0
        %v4385 = vsel %vm3028, %v4010, 0
        %v4387 = vsel %vm3028, %v4024, 0
        %v4389 = vsel %vm3028, %v4038, 0
        %v4391 = vsel %vm3028, %v4052, 0
        %v4393 = vsel %vm3028, %v4066, 0
        %v4395 = vsel %vm3028, %v4080, 0
        %v4397 = vsel %vm3028, %v4094, 0
        %v4399 = vsel %vm3028, %v4108, 0
        %v4401 = vsel %vm3028, %v4122, 0
        %v4403 = vsel %vm3028, %v4136, 0
        %v4405 = vsel %vm3028, %v4150, 0
        %v4407 = vsel %vm3028, %v4164, 0
        %v4409 = vsel %vm3028, %v4178, 0
        %v4411 = vsel %vm3028, %v4192, 0
        %v4413 = vsel %vm3028, %v4206, 0
        %v4415 = vsel %vm3028, %v4220, 0
        %v4417 = vsel %vm3028, %v4234, 0
        %v4419 = vsel %vm3028, %v4248, 0
        %v4421 = vsel %vm3028, %v4262, 0
        %v4423 = vsel %vm3028, %v4276, 0
        %v4425 = vsel %vm3028, %v4290, 0
        %v4427 = vsel %vm3028, %v4304, 0
        %v4429 = vsel %vm3028, %v4318, 0
        %v4431 = vsel %vm3028, %v4332, 0
        %v4433 = vsel %vm3028, %v4346, 0
        %v4435 = vsel %vm3028, %v4360, 0
        %v4437 = vsel %vm3028, %v4374, 0
        %4439 = vmatprep.subr.mxu0 0.0
        %4440 = vmatpush1.xpose.msra.mxu0 %v4407
        %4441 = vmatprep.subr.mxu0 0.0
        %4442 = vmatpush1.xpose.msra.mxu0 %v4409
        %4443 = vmatprep.subr.mxu0 0.0
        %4444 = vmatpush1.xpose.msra.mxu0 %v4411
        %4445 = vmatprep.subr.mxu0 0.0
        %4446 = vmatpush1.xpose.msra.mxu0 %v4413
        %4447 = vmatprep.subr.mxu0 0.0
        %4448 = vmatpush1.xpose.msra.mxu0 %v4415
        %4449 = vmatprep.subr.mxu0 0.0
        %4450 = vmatpush1.xpose.msra.mxu0 %v4417
        %4451 = vmatprep.subr.mxu0 0.0
        %4452 = vmatpush1.xpose.msra.mxu0 %v4419
        %4453 = vmatprep.subr.mxu0 0.0
        %4454 = vmatpush1.xpose.msra.mxu0 %v4421
        %4455 = vmatprep.subr.mxu0 0.0
        %4456 = vmatpush1.xpose.msra.mxu0 %v4423
        %4457 = vmatprep.subr.mxu0 0.0
        %4458 = vmatpush1.xpose.msra.mxu0 %v4425
        %4459 = vmatprep.subr.mxu0 0.0
        %4460 = vmatpush1.xpose.msra.mxu0 %v4427
        %4461 = vmatprep.subr.mxu0 0.0
        %4462 = vmatpush1.xpose.msra.mxu0 %v4429
        %4463 = vmatprep.subr.mxu0 0.0
        %4464 = vmatpush1.xpose.msra.mxu0 %v4431
        %4465 = vmatprep.subr.mxu0 0.0
        %4466 = vmatpush1.xpose.msra.mxu0 %v4433
        %4467 = vmatprep.subr.mxu0 0.0
        %4468 = vmatpush1.xpose.msra.mxu0 %v4435
        %4469 = vmatprep.subr.mxu0 0.0
        %4470 = vmatpush1.xpose.msra.mxu0 %v4437
        %4471 = vmatprep.subr.mxu0 0.0
        %4472 = vmatpush1.xpose.msra.mxu0 0.0
        %4473 = vmatprep.subr.mxu0 0.0
        %4474 = vmatpush1.xpose.msra.mxu0 0.0
        %4475 = vmatprep.subr.mxu0 0.0
        %4476 = vmatpush1.xpose.msra.mxu0 0.0
        %4477 = vmatprep.subr.mxu0 0.0
        %4478 = vmatpush1.xpose.msra.mxu0 0.0
        %4479 = vmatprep.subr.mxu0 0.0
        %4480 = vmatpush1.xpose.msra.mxu0 0.0
        %4481 = vmatprep.subr.mxu0 0.0
        %4482 = vmatpush1.xpose.msra.mxu0 0.0
        %4483 = vmatprep.subr.mxu0 0.0
        %4484 = vmatpush1.xpose.msra.mxu0 0.0
        %4485 = vmatprep.subr.mxu0 0.0
        %4486 = vmatpush1.xpose.msra.mxu0 0.0
        %4487 = vmatprep.subr.mxu0 0.0
        %4488 = vmatpush1.xpose.msra.mxu0 0.0
        %4489 = vmatprep.subr.mxu0 0.0
        %4490 = vmatpush1.xpose.msra.mxu0 0.0
        %4491 = vmatprep.subr.mxu0 0.0
        %4492 = vmatpush1.xpose.msra.mxu0 0.0
        %4493 = vmatprep.subr.mxu0 0.0
        %4494 = vmatpush1.xpose.msra.mxu0 0.0
        %4495 = vmatprep.subr.mxu0 0.0
        %4496 = vmatpush1.xpose.msra.mxu0 0.0
        %4497 = vmatprep.subr.mxu0 0.0
        %4498 = vmatpush1.xpose.msra.mxu0 0.0
        %4499 = vmatprep.subr.mxu0 0.0
        %4500 = vmatpush1.xpose.msra.mxu0 0.0
        %4501 = vmatprep.subr.mxu0 0.0
        %4502 = vmatpush1.xpose.msra.mxu0 0.0
        %4503 = vmatprep.mubr.f32.mxu0 0.0
        %4504 = vmatmul.mubr.f32.gmra.mrb[0].mxu0 %v4375
        %v4505 = vpop.f32.mrb[0].mxu0
        %v4506 = vadd.f32 0.0, %v4505
        %v4507 = vpop.f32.mrb[0].mxu0
        %4508 = vmatprep.mubr.f32.mxu0 0.0
        %4509 = vmatmul.mubr.f32.gmra.mrb[0].mxu0 %v4377
        %v4510 = vpop.f32.mrb[0].mxu0
        %v4511 = vadd.f32 0.0, %v4510
        %v4512 = vpop.f32.mrb[0].mxu0
        %4513 = vmatprep.mubr.f32.mxu0 0.0
        %4514 = vmatmul.mubr.f32.gmra.mrb[0].mxu0 %v4379
        %v4515 = vpop.f32.mrb[0].mxu0
        %v4516 = vadd.f32 0.0, %v4515
        %v4517 = vpop.f32.mrb[0].mxu0
        %4518 = vmatprep.mubr.f32.mxu0 0.0
        %4519 = vmatmul.mubr.f32.gmra.mrb[0].mxu0 %v4381
        %v4520 = vpop.f32.mrb[0].mxu0
        %v4521 = vadd.f32 0.0, %v4520
        %v4522 = vpop.f32.mrb[0].mxu0
        %4523 = vmatprep.mubr.f32.mxu0 0.0
        %4524 = vmatmul.mubr.f32.gmra.mrb[0].mxu0 %v4383
        %v4525 = vpop.f32.mrb[0].mxu0
        %v4526 = vadd.f32 0.0, %v4525
        %v4527 = vpop.f32.mrb[0].mxu0
        %4528 = vmatprep.mubr.f32.mxu0 0.0
        %4529 = vmatmul.mubr.f32.gmra.mrb[0].mxu0 %v4385
        %v4530 = vpop.f32.mrb[0].mxu0
        %v4531 = vadd.f32 0.0, %v4530
        %v4532 = vpop.f32.mrb[0].mxu0
        %4533 = vmatprep.mubr.f32.mxu0 0.0
        %4534 = vmatmul.mubr.f32.gmra.mrb[0].mxu0 %v4387
        %v4535 = vpop.f32.mrb[0].mxu0
        %v4536 = vadd.f32 0.0, %v4535
        %v4537 = vpop.f32.mrb[0].mxu0
        %4538 = vmatprep.mubr.f32.mxu0 0.0
        %4539 = vmatmul.mubr.f32.gmra.mrb[0].mxu0 %v4389
        %v4540 = vpop.f32.mrb[0].mxu0
        %v4541 = vadd.f32 0.0, %v4540
        %v4542 = vpop.f32.mrb[0].mxu0
        %4543 = vmatprep.mubr.f32.mxu0 0.0
        %4544 = vmatmul.mubr.f32.gmra.mrb[0].mxu0 %v4391
        %v4545 = vpop.f32.mrb[0].mxu0
        %v4546 = vadd.f32 0.0, %v4545
        %v4547 = vpop.f32.mrb[0].mxu0
        %4548 = vmatprep.mubr.f32.mxu0 0.0
        %4549 = vmatmul.mubr.f32.gmra.mrb[0].mxu0 %v4393
        %v4550 = vpop.f32.mrb[0].mxu0
        %v4551 = vadd.f32 0.0, %v4550
        %v4552 = vpop.f32.mrb[0].mxu0
        %4553 = vmatprep.mubr.f32.mxu0 0.0
        %4554 = vmatmul.mubr.f32.gmra.mrb[0].mxu0 %v4395
        %v4555 = vpop.f32.mrb[0].mxu0
        %v4556 = vadd.f32 0.0, %v4555
        %v4557 = vpop.f32.mrb[0].mxu0
        %4558 = vmatprep.mubr.f32.mxu0 0.0
        %4559 = vmatmul.mubr.f32.gmra.mrb[0].mxu0 %v4397
        %v4560 = vpop.f32.mrb[0].mxu0
        %v4561 = vadd.f32 0.0, %v4560
        %v4562 = vpop.f32.mrb[0].mxu0
        %4563 = vmatprep.mubr.f32.mxu0 0.0
        %4564 = vmatmul.mubr.f32.gmra.mrb[0].mxu0 %v4399
        %v4565 = vpop.f32.mrb[0].mxu0
        %v4566 = vadd.f32 0.0, %v4565
        %v4567 = vpop.f32.mrb[0].mxu0
        %4568 = vmatprep.mubr.f32.mxu0 0.0
        %4569 = vmatmul.mubr.f32.gmra.mrb[0].mxu0 %v4401
        %v4570 = vpop.f32.mrb[0].mxu0
        %v4571 = vadd.f32 0.0, %v4570
        %v4572 = vpop.f32.mrb[0].mxu0
        %4573 = vmatprep.mubr.f32.mxu0 0.0
        %4574 = vmatmul.mubr.f32.gmra.mrb[0].mxu0 %v4403
        %v4575 = vpop.f32.mrb[0].mxu0
        %v4576 = vadd.f32 0.0, %v4575
        %v4577 = vpop.f32.mrb[0].mxu0
        %4578 = vmatprep.mubr.f32.mxu0 0.0
        %4579 = vmatmul.mubr.f32.gmra.mrb[0].mxu0 %v4405
        %v4580 = vpop.f32.mrb[0].mxu0
        %v4581 = vadd.f32 0.0, %v4580
        %v4582 = vpop.f32.mrb[0].mxu0
        %4583 = vdwg.mxu0
        %4584 = vmax.xlane.f32.xlu0 %v4506
        %v4585 = vpop.xlane.xlu0 %4584
        %4586 = vmax.xlane.f32.xlu0 %v4511
        %v4587 = vpop.xlane.xlu0 %4586
        %4588 = vmax.xlane.f32.xlu0 %v4516
        %v4589 = vpop.xlane.xlu0 %4588
        %4590 = vmax.xlane.f32.xlu0 %v4521
        %v4591 = vpop.xlane.xlu0 %4590
        %4592 = vmax.xlane.f32.xlu0 %v4526
        %v4593 = vpop.xlane.xlu0 %4592
        %4594 = vmax.xlane.f32.xlu0 %v4531
        %v4595 = vpop.xlane.xlu0 %4594
        %4596 = vmax.xlane.f32.xlu0 %v4536
        %v4597 = vpop.xlane.xlu0 %4596
        %4598 = vmax.xlane.f32.xlu0 %v4541
        %v4599 = vpop.xlane.xlu0 %4598
        %4600 = vmax.xlane.f32.xlu0 %v4546
        %v4601 = vpop.xlane.xlu0 %4600
        %4602 = vmax.xlane.f32.xlu0 %v4551
        %v4603 = vpop.xlane.xlu0 %4602
        %4604 = vmax.xlane.f32.xlu0 %v4556
        %v4605 = vpop.xlane.xlu0 %4604
        %4606 = vmax.xlane.f32.xlu0 %v4561
        %v4607 = vpop.xlane.xlu0 %4606
        %4608 = vmax.xlane.f32.xlu0 %v4566
        %v4609 = vpop.xlane.xlu0 %4608
        %4610 = vmax.xlane.f32.xlu0 %v4571
        %v4611 = vpop.xlane.xlu0 %4610
        %4612 = vmax.xlane.f32.xlu0 %v4576
        %v4613 = vpop.xlane.xlu0 %4612
        %4614 = vmax.xlane.f32.xlu0 %v4581
        %v4615 = vpop.xlane.xlu0 %4614
        %v4616 = vsub.f32 %v4506, %v4585
        %v4617 = vsub.f32 %v4511, %v4587
        %v4618 = vsub.f32 %v4516, %v4589
        %v4619 = vsub.f32 %v4521, %v4591
        %v4620 = vsub.f32 %v4526, %v4593
        %v4621 = vsub.f32 %v4531, %v4595
        %v4622 = vsub.f32 %v4536, %v4597
        %v4623 = vsub.f32 %v4541, %v4599
        %v4624 = vsub.f32 %v4546, %v4601
        %v4625 = vsub.f32 %v4551, %v4603
        %v4626 = vsub.f32 %v4556, %v4605
        %v4627 = vsub.f32 %v4561, %v4607
        %v4628 = vsub.f32 %v4566, %v4609
        %v4629 = vsub.f32 %v4571, %v4611
        %v4630 = vsub.f32 %v4576, %v4613
        %v4631 = vsub.f32 %v4581, %v4615
        %v4632 = vmul.f32 %v4616, 1.442695
        %v4633 = vpow.pop %v4632
        %v4634 = vmul.f32 %v4617, 1.442695
        %v4635 = vpow.pop %v4634
        %v4636 = vmul.f32 %v4618, 1.442695
        %v4637 = vpow.pop %v4636
        %v4638 = vmul.f32 %v4619, 1.442695
        %v4639 = vpow.pop %v4638
        %v4640 = vmul.f32 %v4620, 1.442695
        %v4641 = vpow.pop %v4640
        %v4642 = vmul.f32 %v4621, 1.442695
        %v4643 = vpow.pop %v4642
        %v4644 = vmul.f32 %v4622, 1.442695
        %v4645 = vpow.pop %v4644
        %v4646 = vmul.f32 %v4623, 1.442695
        %v4647 = vpow.pop %v4646
        %v4648 = vmul.f32 %v4624, 1.442695
        %v4649 = vpow.pop %v4648
        %v4650 = vmul.f32 %v4625, 1.442695
        %v4651 = vpow.pop %v4650
        %v4652 = vmul.f32 %v4626, 1.442695
        %v4653 = vpow.pop %v4652
        %v4654 = vmul.f32 %v4627, 1.442695
        %v4655 = vpow.pop %v4654
        %v4656 = vmul.f32 %v4628, 1.442695
        %v4657 = vpow.pop %v4656
        %v4658 = vmul.f32 %v4629, 1.442695
        %v4659 = vpow.pop %v4658
        %v4660 = vmul.f32 %v4630, 1.442695
        %v4661 = vpow.pop %v4660
        %v4662 = vmul.f32 %v4631, 1.442695
        %v4663 = vpow.pop %v4662
        %4664 = vadd.xlane.f32.xlu0 %v4633
        %v4665 = vpop.xlane.xlu0 %4664
        %4666 = vadd.xlane.f32.xlu0 %v4635
        %v4667 = vpop.xlane.xlu0 %4666
        %4668 = vadd.xlane.f32.xlu0 %v4637
        %v4669 = vpop.xlane.xlu0 %4668
        %4670 = vadd.xlane.f32.xlu0 %v4639
        %v4671 = vpop.xlane.xlu0 %4670
        %4672 = vadd.xlane.f32.xlu0 %v4641
        %v4673 = vpop.xlane.xlu0 %4672
        %4674 = vadd.xlane.f32.xlu0 %v4643
        %v4675 = vpop.xlane.xlu0 %4674
        %4676 = vadd.xlane.f32.xlu0 %v4645
        %v4677 = vpop.xlane.xlu0 %4676
        %4678 = vadd.xlane.f32.xlu0 %v4647
        %v4679 = vpop.xlane.xlu0 %4678
        %4680 = vadd.xlane.f32.xlu0 %v4649
        %v4681 = vpop.xlane.xlu0 %4680
        %4682 = vadd.xlane.f32.xlu0 %v4651
        %v4683 = vpop.xlane.xlu0 %4682
        %4684 = vadd.xlane.f32.xlu0 %v4653
        %v4685 = vpop.xlane.xlu0 %4684
        %4686 = vadd.xlane.f32.xlu0 %v4655
        %v4687 = vpop.xlane.xlu0 %4686
        %4688 = vadd.xlane.f32.xlu0 %v4657
        %v4689 = vpop.xlane.xlu0 %4688
        %4690 = vadd.xlane.f32.xlu0 %v4659
        %v4691 = vpop.xlane.xlu0 %4690
        %4692 = vadd.xlane.f32.xlu0 %v4661
        %v4693 = vpop.xlane.xlu0 %4692
        %4694 = vadd.xlane.f32.xlu0 %v4663
        %v4695 = vpop.xlane.xlu0 %4694
        %v4696 = vrcp.pop %v4665
        %v4697 = vrcp.pop %v4667
        %v4698 = vrcp.pop %v4669
        %v4699 = vrcp.pop %v4671
        %v4700 = vrcp.pop %v4673
        %v4701 = vrcp.pop %v4675
        %v4702 = vrcp.pop %v4677
        %v4703 = vrcp.pop %v4679
        %v4704 = vrcp.pop %v4681
        %v4705 = vrcp.pop %v4683
        %v4706 = vrcp.pop %v4685
        %v4707 = vrcp.pop %v4687
        %v4708 = vrcp.pop %v4689
        %v4709 = vrcp.pop %v4691
        %v4710 = vrcp.pop %v4693
        %v4711 = vrcp.pop %v4695
        %v4712 = vmul.f32 %v4633, %v4696
        %v4713 = vmul.f32 %v4635, %v4697
        %v4714 = vmul.f32 %v4637, %v4698
        %v4715 = vmul.f32 %v4639, %v4699
        %v4716 = vmul.f32 %v4641, %v4700
        %v4717 = vmul.f32 %v4643, %v4701
        %v4718 = vmul.f32 %v4645, %v4702
        %v4719 = vmul.f32 %v4647, %v4703
        %v4720 = vmul.f32 %v4649, %v4704
        %v4721 = vmul.f32 %v4651, %v4705
        %v4722 = vmul.f32 %v4653, %v4706
        %v4723 = vmul.f32 %v4655, %v4707
        %v4724 = vmul.f32 %v4657, %v4708
        %v4725 = vmul.f32 %v4659, %v4709
        %v4726 = vmul.f32 %v4661, %v4710
        %v4727 = vmul.f32 %v4663, %v4711
        %v4728 = vadd.f32 %v3382, %v4712
        %v4729 = vadd.f32 %v3383, %v4713
        %v4730 = vadd.f32 %v3384, %v4714
        %v4731 = vadd.f32 %v3385, %v4715
        %v4732 = vadd.f32 %v3386, %v4716
        %v4733 = vadd.f32 %v3387, %v4717
        %v4734 = vadd.f32 %v3388, %v4718
        %v4735 = vadd.f32 %v3389, %v4719
        %v4736 = vadd.f32 %v3390, %v4720
        %v4737 = vadd.f32 %v3391, %v4721
        %v4738 = vadd.f32 %v3392, %v4722
        %v4739 = vadd.f32 %v3393, %v4723
        %v4740 = vadd.f32 %v3394, %v4724
        %v4741 = vadd.f32 %v3395, %v4725
        %v4742 = vadd.f32 %v3396, %v4726
        %v4743 = vadd.f32 %v3397, %v4727
        %v4744 = vrot.slane %v2189, 1
        %v4745 = vsel %vm2446, %v2190, %v4744
        %v4746 = vrot.slane %v2191, 7
        %v4747 = vsel %vm2449, %v4746, %v4745
        %v4748 = vrot.slane %v2192, 6
        %v4749 = vsel %vm2452, %v4748, %v4747
        %v4750 = vrot.slane %v2193, 5
        %v4751 = vsel %vm2455, %v4750, %v4749
        %v4752 = vrot.slane %v2194, 4
        %v4753 = vsel %vm2458, %v4752, %v4751
        %v4754 = vrot.slane %v2195, 3
        %v4755 = vsel %vm2461, %v4754, %v4753
        %v4756 = vrot.slane %v2196, 2
        %v4757 = vsel %vm2464, %v4756, %v4755
        %v4758 = vrot.slane %v2197, 1
        %v4759 = vsel %vm2446, %v2198, %v4758
        %v4760 = vrot.slane %v2199, 7
        %v4761 = vsel %vm2449, %v4760, %v4759
        %v4762 = vrot.slane %v2200, 6
        %v4763 = vsel %vm2452, %v4762, %v4761
        %v4764 = vrot.slane %v2201, 5
        %v4765 = vsel %vm2455, %v4764, %v4763
        %v4766 = vrot.slane %v2202, 4
        %v4767 = vsel %vm2458, %v4766, %v4765
        %v4768 = vrot.slane %v2203, 3
        %v4769 = vsel %vm2461, %v4768, %v4767
        %v4770 = vrot.slane %v2204, 2
        %v4771 = vsel %vm2464, %v4770, %v4769
        %v4772 = vrot.slane %v2205, 1
        %v4773 = vsel %vm2446, %v2206, %v4772
        %v4774 = vrot.slane %v2207, 7
        %v4775 = vsel %vm2449, %v4774, %v4773
        %v4776 = vrot.slane %v2208, 6
        %v4777 = vsel %vm2452, %v4776, %v4775
        %v4778 = vrot.slane %v2209, 5
        %v4779 = vsel %vm2455, %v4778, %v4777
        %v4780 = vrot.slane %v2210, 4
        %v4781 = vsel %vm2458, %v4780, %v4779
        %v4782 = vrot.slane %v2211, 3
        %v4783 = vsel %vm2461, %v4782, %v4781
        %v4784 = vrot.slane %v2212, 2
        %v4785 = vsel %vm2464, %v4784, %v4783
        %v4786 = vrot.slane %v2213, 1
        %v4787 = vsel %vm2446, %v2214, %v4786
        %v4788 = vrot.slane %v2215, 7
        %v4789 = vsel %vm2449, %v4788, %v4787
        %v4790 = vrot.slane %v2216, 6
        %v4791 = vsel %vm2452, %v4790, %v4789
        %v4792 = vrot.slane %v2217, 5
        %v4793 = vsel %vm2455, %v4792, %v4791
        %v4794 = vrot.slane %v2218, 4
        %v4795 = vsel %vm2458, %v4794, %v4793
        %v4796 = vrot.slane %v2219, 3
        %v4797 = vsel %vm2461, %v4796, %v4795
        %v4798 = vrot.slane %v2220, 2
        %v4799 = vsel %vm2464, %v4798, %v4797
        %v4800 = vrot.slane %v2221, 1
        %v4801 = vsel %vm2446, %v2222, %v4800
        %v4802 = vrot.slane %v2223, 7
        %v4803 = vsel %vm2449, %v4802, %v4801
        %v4804 = vrot.slane %v2224, 6
        %v4805 = vsel %vm2452, %v4804, %v4803
        %v4806 = vrot.slane %v2225, 5
        %v4807 = vsel %vm2455, %v4806, %v4805
        %v4808 = vrot.slane %v2226, 4
        %v4809 = vsel %vm2458, %v4808, %v4807
        %v4810 = vrot.slane %v2227, 3
        %v4811 = vsel %vm2461, %v4810, %v4809
        %v4812 = vrot.slane %v2228, 2
        %v4813 = vsel %vm2464, %v4812, %v4811
        %v4814 = vrot.slane %v2229, 1
        %v4815 = vsel %vm2446, %v2230, %v4814
        %v4816 = vrot.slane %v2231, 7
        %v4817 = vsel %vm2449, %v4816, %v4815
        %v4818 = vrot.slane %v2232, 6
        %v4819 = vsel %vm2452, %v4818, %v4817
        %v4820 = vrot.slane %v2233, 5
        %v4821 = vsel %vm2455, %v4820, %v4819
        %v4822 = vrot.slane %v2234, 4
        %v4823 = vsel %vm2458, %v4822, %v4821
        %v4824 = vrot.slane %v2235, 3
        %v4825 = vsel %vm2461, %v4824, %v4823
        %v4826 = vrot.slane %v2236, 2
        %v4827 = vsel %vm2464, %v4826, %v4825
        %v4828 = vrot.slane %v2237, 1
        %v4829 = vsel %vm2446, %v2238, %v4828
        %v4830 = vrot.slane %v2239, 7
        %v4831 = vsel %vm2449, %v4830, %v4829
        %v4832 = vrot.slane %v2240, 6
        %v4833 = vsel %vm2452, %v4832, %v4831
        %v4834 = vrot.slane %v2241, 5
        %v4835 = vsel %vm2455, %v4834, %v4833
        %v4836 = vrot.slane %v2242, 4
        %v4837 = vsel %vm2458, %v4836, %v4835
        %v4838 = vrot.slane %v2243, 3
        %v4839 = vsel %vm2461, %v4838, %v4837
        %v4840 = vrot.slane %v2244, 2
        %v4841 = vsel %vm2464, %v4840, %v4839
        %v4842 = vrot.slane %v2245, 1
        %v4843 = vsel %vm2446, %v2246, %v4842
        %v4844 = vrot.slane %v2247, 7
        %v4845 = vsel %vm2449, %v4844, %v4843
        %v4846 = vrot.slane %v2248, 6
        %v4847 = vsel %vm2452, %v4846, %v4845
        %v4848 = vrot.slane %v2249, 5
        %v4849 = vsel %vm2455, %v4848, %v4847
        %v4850 = vrot.slane %v2250, 4
        %v4851 = vsel %vm2458, %v4850, %v4849
        %v4852 = vrot.slane %v2251, 3
        %v4853 = vsel %vm2461, %v4852, %v4851
        %v4854 = vrot.slane %v2252, 2
        %v4855 = vsel %vm2464, %v4854, %v4853
        %v4856 = vrot.slane %v2253, 1
        %v4857 = vsel %vm2446, %v2254, %v4856
        %v4858 = vrot.slane %v2255, 7
        %v4859 = vsel %vm2449, %v4858, %v4857
        %v4860 = vrot.slane %v2256, 6
        %v4861 = vsel %vm2452, %v4860, %v4859
        %v4862 = vrot.slane %v2257, 5
        %v4863 = vsel %vm2455, %v4862, %v4861
        %v4864 = vrot.slane %v2258, 4
        %v4865 = vsel %vm2458, %v4864, %v4863
        %v4866 = vrot.slane %v2259, 3
        %v4867 = vsel %vm2461, %v4866, %v4865
        %v4868 = vrot.slane %v2260, 2
        %v4869 = vsel %vm2464, %v4868, %v4867
        %v4870 = vrot.slane %v2261, 1
        %v4871 = vsel %vm2446, %v2262, %v4870
        %v4872 = vrot.slane %v2263, 7
        %v4873 = vsel %vm2449, %v4872, %v4871
        %v4874 = vrot.slane %v2264, 6
        %v4875 = vsel %vm2452, %v4874, %v4873
        %v4876 = vrot.slane %v2265, 5
        %v4877 = vsel %vm2455, %v4876, %v4875
        %v4878 = vrot.slane %v2266, 4
        %v4879 = vsel %vm2458, %v4878, %v4877
        %v4880 = vrot.slane %v2267, 3
        %v4881 = vsel %vm2461, %v4880, %v4879
        %v4882 = vrot.slane %v2268, 2
        %v4883 = vsel %vm2464, %v4882, %v4881
        %v4884 = vrot.slane %v2269, 1
        %v4885 = vsel %vm2446, %v2270, %v4884
        %v4886 = vrot.slane %v2271, 7
        %v4887 = vsel %vm2449, %v4886, %v4885
        %v4888 = vrot.slane %v2272, 6
        %v4889 = vsel %vm2452, %v4888, %v4887
        %v4890 = vrot.slane %v2273, 5
        %v4891 = vsel %vm2455, %v4890, %v4889
        %v4892 = vrot.slane %v2274, 4
        %v4893 = vsel %vm2458, %v4892, %v4891
        %v4894 = vrot.slane %v2275, 3
        %v4895 = vsel %vm2461, %v4894, %v4893
        %v4896 = vrot.slane %v2276, 2
        %v4897 = vsel %vm2464, %v4896, %v4895
        %v4898 = vrot.slane %v2277, 1
        %v4899 = vsel %vm2446, %v2278, %v4898
        %v4900 = vrot.slane %v2279, 7
        %v4901 = vsel %vm2449, %v4900, %v4899
        %v4902 = vrot.slane %v2280, 6
        %v4903 = vsel %vm2452, %v4902, %v4901
        %v4904 = vrot.slane %v2281, 5
        %v4905 = vsel %vm2455, %v4904, %v4903
        %v4906 = vrot.slane %v2282, 4
        %v4907 = vsel %vm2458, %v4906, %v4905
        %v4908 = vrot.slane %v2283, 3
        %v4909 = vsel %vm2461, %v4908, %v4907
        %v4910 = vrot.slane %v2284, 2
        %v4911 = vsel %vm2464, %v4910, %v4909
        %v4912 = vrot.slane %v2285, 1
        %v4913 = vsel %vm2446, %v2286, %v4912
        %v4914 = vrot.slane %v2287, 7
        %v4915 = vsel %vm2449, %v4914, %v4913
        %v4916 = vrot.slane %v2288, 6
        %v4917 = vsel %vm2452, %v4916, %v4915
        %v4918 = vrot.slane %v2289, 5
        %v4919 = vsel %vm2455, %v4918, %v4917
        %v4920 = vrot.slane %v2290, 4
        %v4921 = vsel %vm2458, %v4920, %v4919
        %v4922 = vrot.slane %v2291, 3
        %v4923 = vsel %vm2461, %v4922, %v4921
        %v4924 = vrot.slane %v2292, 2
        %v4925 = vsel %vm2464, %v4924, %v4923
        %v4926 = vrot.slane %v2293, 1
        %v4927 = vsel %vm2446, %v2294, %v4926
        %v4928 = vrot.slane %v2295, 7
        %v4929 = vsel %vm2449, %v4928, %v4927
        %v4930 = vrot.slane %v2296, 6
        %v4931 = vsel %vm2452, %v4930, %v4929
        %v4932 = vrot.slane %v2297, 5
        %v4933 = vsel %vm2455, %v4932, %v4931
        %v4934 = vrot.slane %v2298, 4
        %v4935 = vsel %vm2458, %v4934, %v4933
        %v4936 = vrot.slane %v2299, 3
        %v4937 = vsel %vm2461, %v4936, %v4935
        %v4938 = vrot.slane %v2300, 2
        %v4939 = vsel %vm2464, %v4938, %v4937
        %v4940 = vrot.slane %v2301, 1
        %v4941 = vsel %vm2446, %v2302, %v4940
        %v4942 = vrot.slane %v2303, 7
        %v4943 = vsel %vm2449, %v4942, %v4941
        %v4944 = vrot.slane %v2304, 6
        %v4945 = vsel %vm2452, %v4944, %v4943
        %v4946 = vrot.slane %v2305, 5
        %v4947 = vsel %vm2455, %v4946, %v4945
        %v4948 = vrot.slane %v2306, 4
        %v4949 = vsel %vm2458, %v4948, %v4947
        %v4950 = vrot.slane %v2307, 3
        %v4951 = vsel %vm2461, %v4950, %v4949
        %v4952 = vrot.slane %v2308, 2
        %v4953 = vsel %vm2464, %v4952, %v4951
        %v4954 = vrot.slane %v2309, 1
        %v4955 = vsel %vm2446, %v2310, %v4954
        %v4956 = vrot.slane %v2311, 7
        %v4957 = vsel %vm2449, %v4956, %v4955
        %v4958 = vrot.slane %v2312, 6
        %v4959 = vsel %vm2452, %v4958, %v4957
        %v4960 = vrot.slane %v2313, 5
        %v4961 = vsel %vm2455, %v4960, %v4959
        %v4962 = vrot.slane %v2314, 4
        %v4963 = vsel %vm2458, %v4962, %v4961
        %v4964 = vrot.slane %v2315, 3
        %v4965 = vsel %vm2461, %v4964, %v4963
        %v4966 = vrot.slane %v2316, 2
        %v4967 = vsel %vm2464, %v4966, %v4965
        %4984 = vmatprep.subr.mxu0 0.0
        %4985 = vmatpush1.msra.mxu0 %v4757
        %4986 = vmatprep.subr.mxu0 0.0
        %4987 = vmatpush1.msra.mxu0 %v4771
        %4988 = vmatprep.subr.mxu0 0.0
        %4989 = vmatpush1.msra.mxu0 %v4785
        %4990 = vmatprep.subr.mxu0 0.0
        %4991 = vmatpush1.msra.mxu0 %v4799
        %4992 = vmatprep.subr.mxu0 0.0
        %4993 = vmatpush1.msra.mxu0 %v4813
        %4994 = vmatprep.subr.mxu0 0.0
        %4995 = vmatpush1.msra.mxu0 %v4827
        %4996 = vmatprep.subr.mxu0 0.0
        %4997 = vmatpush1.msra.mxu0 %v4841
        %4998 = vmatprep.subr.mxu0 0.0
        %4999 = vmatpush1.msra.mxu0 %v4855
        %5000 = vmatprep.subr.mxu0 0.0
        %5001 = vmatpush1.msra.mxu0 %v4869
        %5002 = vmatprep.subr.mxu0 0.0
        %5003 = vmatpush1.msra.mxu0 %v4883
        %5004 = vmatprep.subr.mxu0 0.0
        %5005 = vmatpush1.msra.mxu0 %v4897
        %5006 = vmatprep.subr.mxu0 0.0
        %5007 = vmatpush1.msra.mxu0 %v4911
        %5008 = vmatprep.subr.mxu0 0.0
        %5009 = vmatpush1.msra.mxu0 %v4925
        %5010 = vmatprep.subr.mxu0 0.0
        %5011 = vmatpush1.msra.mxu0 %v4939
        %5012 = vmatprep.subr.mxu0 0.0
        %5013 = vmatpush1.msra.mxu0 %v4953
        %5014 = vmatprep.subr.mxu0 0.0
        %5015 = vmatpush1.msra.mxu0 %v4967
        %5016 = vmatprep.subr.mxu0 0.0
        %5017 = vmatpush1.msra.mxu0 0.0
        %5018 = vmatprep.subr.mxu0 0.0
        %5019 = vmatpush1.msra.mxu0 0.0
        %5020 = vmatprep.subr.mxu0 0.0
        %5021 = vmatpush1.msra.mxu0 0.0
        %5022 = vmatprep.subr.mxu0 0.0
        %5023 = vmatpush1.msra.mxu0 0.0
        %5024 = vmatprep.subr.mxu0 0.0
        %5025 = vmatpush1.msra.mxu0 0.0
        %5026 = vmatprep.subr.mxu0 0.0
        %5027 = vmatpush1.msra.mxu0 0.0
        %5028 = vmatprep.subr.mxu0 0.0
        %5029 = vmatpush1.msra.mxu0 0.0
        %5030 = vmatprep.subr.mxu0 0.0
        %5031 = vmatpush1.msra.mxu0 0.0
        %5032 = vmatprep.subr.mxu0 0.0
        %5033 = vmatpush1.msra.mxu0 0.0
        %5034 = vmatprep.subr.mxu0 0.0
        %5035 = vmatpush1.msra.mxu0 0.0
        %5036 = vmatprep.subr.mxu0 0.0
        %5037 = vmatpush1.msra.mxu0 0.0
        %5038 = vmatprep.subr.mxu0 0.0
        %5039 = vmatpush1.msra.mxu0 0.0
        %5040 = vmatprep.subr.mxu0 0.0
        %5041 = vmatpush1.msra.mxu0 0.0
        %5042 = vmatprep.subr.mxu0 0.0
        %5043 = vmatpush1.msra.mxu0 0.0
        %5044 = vmatprep.subr.mxu0 0.0
        %5045 = vmatpush1.msra.mxu0 0.0
        %5046 = vmatprep.subr.mxu0 0.0
        %5047 = vmatpush1.msra.mxu0 0.0
        %5048 = vmatprep.mubr.f32.mxu0 0.0
        %5049 = vmatmul.mubr.f32.gmra.mrb[0].mxu0 %v4712
        %v5050 = vpop.f32.mrb[0].mxu0
        %v5051 = vadd.f32 0.0, %v5050
        %v5052 = vpop.f32.mrb[0].mxu0
        %5053 = vmatprep.mubr.f32.mxu0 0.0
        %5054 = vmatmul.mubr.f32.gmra.mrb[0].mxu0 %v4713
        %v5055 = vpop.f32.mrb[0].mxu0
        %v5056 = vadd.f32 0.0, %v5055
        %v5057 = vpop.f32.mrb[0].mxu0
        %5058 = vmatprep.mubr.f32.mxu0 0.0
        %5059 = vmatmul.mubr.f32.gmra.mrb[0].mxu0 %v4714
        %v5060 = vpop.f32.mrb[0].mxu0
        %v5061 = vadd.f32 0.0, %v5060
        %v5062 = vpop.f32.mrb[0].mxu0
        %5063 = vmatprep.mubr.f32.mxu0 0.0
        %5064 = vmatmul.mubr.f32.gmra.mrb[0].mxu0 %v4715
        %v5065 = vpop.f32.mrb[0].mxu0
        %v5066 = vadd.f32 0.0, %v5065
        %v5067 = vpop.f32.mrb[0].mxu0
        %5068 = vmatprep.mubr.f32.mxu0 0.0
        %5069 = vmatmul.mubr.f32.gmra.mrb[0].mxu0 %v4716
        %v5070 = vpop.f32.mrb[0].mxu0
        %v5071 = vadd.f32 0.0, %v5070
        %v5072 = vpop.f32.mrb[0].mxu0
        %5073 = vmatprep.mubr.f32.mxu0 0.0
        %5074 = vmatmul.mubr.f32.gmra.mrb[0].mxu0 %v4717
        %v5075 = vpop.f32.mrb[0].mxu0
        %v5076 = vadd.f32 0.0, %v5075
        %v5077 = vpop.f32.mrb[0].mxu0
        %5078 = vmatprep.mubr.f32.mxu0 0.0
        %5079 = vmatmul.mubr.f32.gmra.mrb[0].mxu0 %v4718
        %v5080 = vpop.f32.mrb[0].mxu0
        %v5081 = vadd.f32 0.0, %v5080
        %v5082 = vpop.f32.mrb[0].mxu0
        %5083 = vmatprep.mubr.f32.mxu0 0.0
        %5084 = vmatmul.mubr.f32.gmra.mrb[0].mxu0 %v4719
        %v5085 = vpop.f32.mrb[0].mxu0
        %v5086 = vadd.f32 0.0, %v5085
        %v5087 = vpop.f32.mrb[0].mxu0
        %5088 = vmatprep.mubr.f32.mxu0 0.0
        %5089 = vmatmul.mubr.f32.gmra.mrb[0].mxu0 %v4720
        %v5090 = vpop.f32.mrb[0].mxu0
        %v5091 = vadd.f32 0.0, %v5090
        %v5092 = vpop.f32.mrb[0].mxu0
        %5093 = vmatprep.mubr.f32.mxu0 0.0
        %5094 = vmatmul.mubr.f32.gmra.mrb[0].mxu0 %v4721
        %v5095 = vpop.f32.mrb[0].mxu0
        %v5096 = vadd.f32 0.0, %v5095
        %v5097 = vpop.f32.mrb[0].mxu0
        %5098 = vmatprep.mubr.f32.mxu0 0.0
        %5099 = vmatmul.mubr.f32.gmra.mrb[0].mxu0 %v4722
        %v5100 = vpop.f32.mrb[0].mxu0
        %v5101 = vadd.f32 0.0, %v5100
        %v5102 = vpop.f32.mrb[0].mxu0
        %5103 = vmatprep.mubr.f32.mxu0 0.0
        %5104 = vmatmul.mubr.f32.gmra.mrb[0].mxu0 %v4723
        %v5105 = vpop.f32.mrb[0].mxu0
        %v5106 = vadd.f32 0.0, %v5105
        %v5107 = vpop.f32.mrb[0].mxu0
        %5108 = vmatprep.mubr.f32.mxu0 0.0
        %5109 = vmatmul.mubr.f32.gmra.mrb[0].mxu0 %v4724
        %v5110 = vpop.f32.mrb[0].mxu0
        %v5111 = vadd.f32 0.0, %v5110
        %v5112 = vpop.f32.mrb[0].mxu0
        %5113 = vmatprep.mubr.f32.mxu0 0.0
        %5114 = vmatmul.mubr.f32.gmra.mrb[0].mxu0 %v4725
        %v5115 = vpop.f32.mrb[0].mxu0
        %v5116 = vadd.f32 0.0, %v5115
        %v5117 = vpop.f32.mrb[0].mxu0
        %5118 = vmatprep.mubr.f32.mxu0 0.0
        %5119 = vmatmul.mubr.f32.gmra.mrb[0].mxu0 %v4726
        %v5120 = vpop.f32.mrb[0].mxu0
        %v5121 = vadd.f32 0.0, %v5120
        %v5122 = vpop.f32.mrb[0].mxu0
        %5123 = vmatprep.mubr.f32.mxu0 0.0
        %5124 = vmatmul.mubr.f32.gmra.mrb[0].mxu0 %v4727
        %v5125 = vpop.f32.mrb[0].mxu0
        %v5126 = vadd.f32 0.0, %v5125
        %v5127 = vpop.f32.mrb[0].mxu0
        %5128 = vdwg.mxu0
        %5145 = vrot.lane.b32.xlu0 %v5051, 16
        %v5146 = vpop.permute.xlu0 %5145
        %5147 = vrot.lane.b32.xlu0 %v5056, 16
        %v5148 = vpop.permute.xlu0 %5147
        %5149 = vrot.lane.b32.xlu0 %v5061, 16
        %v5150 = vpop.permute.xlu0 %5149
        %5151 = vrot.lane.b32.xlu0 %v5066, 16
        %v5152 = vpop.permute.xlu0 %5151
        %5153 = vrot.lane.b32.xlu0 %v5071, 16
        %v5154 = vpop.permute.xlu0 %5153
        %5155 = vrot.lane.b32.xlu0 %v5076, 16
        %v5156 = vpop.permute.xlu0 %5155
        %5157 = vrot.lane.b32.xlu0 %v5081, 16
        %v5158 = vpop.permute.xlu0 %5157
        %5159 = vrot.lane.b32.xlu0 %v5086, 16
        %v5160 = vpop.permute.xlu0 %5159
        %5161 = vrot.lane.b32.xlu0 %v5091, 16
        %v5162 = vpop.permute.xlu0 %5161
        %5163 = vrot.lane.b32.xlu0 %v5096, 16
        %v5164 = vpop.permute.xlu0 %5163
        %5165 = vrot.lane.b32.xlu0 %v5101, 16
        %v5166 = vpop.permute.xlu0 %5165
        %5167 = vrot.lane.b32.xlu0 %v5106, 16
        %v5168 = vpop.permute.xlu0 %5167
        %5169 = vrot.lane.b32.xlu0 %v5111, 16
        %v5170 = vpop.permute.xlu0 %5169
        %5171 = vrot.lane.b32.xlu0 %v5116, 16
        %v5172 = vpop.permute.xlu0 %5171
        %5173 = vrot.lane.b32.xlu0 %v5121, 16
        %v5174 = vpop.permute.xlu0 %5173
        %5175 = vrot.lane.b32.xlu0 %v5126, 16
        %v5176 = vpop.permute.xlu0 %5175
        %vm5193 = vcmask 261248
        %5194 = vst.msk [vmem:[#allocation2] sm:$0xff] %vm5193, %v5146
        %5195 = vst.msk [vmem:[#allocation2 + $0x8] sm:$0xff] %vm5193, %v5148
        %5196 = vst.msk [vmem:[#allocation2 + $0x10] sm:$0xff] %vm5193, %v5150
        %5197 = vst.msk [vmem:[#allocation2 + $0x18] sm:$0xff] %vm5193, %v5152
        %5198 = vst.msk [vmem:[#allocation2 + $0x20] sm:$0xff] %vm5193, %v5154
        %5199 = vst.msk [vmem:[#allocation2 + $0x28] sm:$0xff] %vm5193, %v5156
        %5200 = vst.msk [vmem:[#allocation2 + $0x30] sm:$0xff] %vm5193, %v5158
        %5201 = vst.msk [vmem:[#allocation2 + $0x38] sm:$0xff] %vm5193, %v5160
        %5202 = vst.msk [vmem:[#allocation2 + $0x40] sm:$0xff] %vm5193, %v5162
        %5203 = vst.msk [vmem:[#allocation2 + $0x48] sm:$0xff] %vm5193, %v5164
        %5204 = vst.msk [vmem:[#allocation2 + $0x50] sm:$0xff] %vm5193, %v5166
        %5205 = vst.msk [vmem:[#allocation2 + $0x58] sm:$0xff] %vm5193, %v5168
        %5206 = vst.msk [vmem:[#allocation2 + $0x60] sm:$0xff] %vm5193, %v5170
        %5207 = vst.msk [vmem:[#allocation2 + $0x68] sm:$0xff] %vm5193, %v5172
        %5208 = vst.msk [vmem:[#allocation2 + $0x70] sm:$0xff] %vm5193, %v5174
        %5209 = vst.msk [vmem:[#allocation2 + $0x78] sm:$0xff] %vm5193, %v5176
        %v5210 = vrot.slane %v1933, 2
        %v5211 = vrot.slane %v1934, 1
        %v5212 = vsel %vm2446, %v5211, %v5210
        %v5213 = vsel %vm2449, %v1935, %v5212
        %v5214 = vrot.slane %v1936, 7
        %v5215 = vsel %vm2452, %v5214, %v5213
        %v5216 = vrot.slane %v1937, 6
        %v5217 = vsel %vm2455, %v5216, %v5215
        %v5218 = vrot.slane %v1938, 5
        %v5219 = vsel %vm2458, %v5218, %v5217
        %v5220 = vrot.slane %v1939, 4
        %v5221 = vsel %vm2461, %v5220, %v5219
        %v5222 = vrot.slane %v1940, 3
        %v5223 = vsel %vm2464, %v5222, %v5221
        %v5224 = vrot.slane %v1941, 2
        %v5225 = vrot.slane %v1942, 1
        %v5226 = vsel %vm2446, %v5225, %v5224
        %v5227 = vsel %vm2449, %v1943, %v5226
        %v5228 = vrot.slane %v1944, 7
        %v5229 = vsel %vm2452, %v5228, %v5227
        %v5230 = vrot.slane %v1945, 6
        %v5231 = vsel %vm2455, %v5230, %v5229
        %v5232 = vrot.slane %v1946, 5
        %v5233 = vsel %vm2458, %v5232, %v5231
        %v5234 = vrot.slane %v1947, 4
        %v5235 = vsel %vm2461, %v5234, %v5233
        %v5236 = vrot.slane %v1948, 3
        %v5237 = vsel %vm2464, %v5236, %v5235
        %v5238 = vrot.slane %v1949, 2
        %v5239 = vrot.slane %v1950, 1
        %v5240 = vsel %vm2446, %v5239, %v5238
        %v5241 = vsel %vm2449, %v1951, %v5240
        %v5242 = vrot.slane %v1952, 7
        %v5243 = vsel %vm2452, %v5242, %v5241
        %v5244 = vrot.slane %v1953, 6
        %v5245 = vsel %vm2455, %v5244, %v5243
        %v5246 = vrot.slane %v1954, 5
        %v5247 = vsel %vm2458, %v5246, %v5245
        %v5248 = vrot.slane %v1955, 4
        %v5249 = vsel %vm2461, %v5248, %v5247
        %v5250 = vrot.slane %v1956, 3
        %v5251 = vsel %vm2464, %v5250, %v5249
        %v5252 = vrot.slane %v1957, 2
        %v5253 = vrot.slane %v1958, 1
        %v5254 = vsel %vm2446, %v5253, %v5252
        %v5255 = vsel %vm2449, %v1959, %v5254
        %v5256 = vrot.slane %v1960, 7
        %v5257 = vsel %vm2452, %v5256, %v5255
        %v5258 = vrot.slane %v1961, 6
        %v5259 = vsel %vm2455, %v5258, %v5257
        %v5260 = vrot.slane %v1962, 5
        %v5261 = vsel %vm2458, %v5260, %v5259
        %v5262 = vrot.slane %v1963, 4
        %v5263 = vsel %vm2461, %v5262, %v5261
        %v5264 = vrot.slane %v1964, 3
        %v5265 = vsel %vm2464, %v5264, %v5263
        %v5266 = vrot.slane %v1965, 2
        %v5267 = vrot.slane %v1966, 1
        %v5268 = vsel %vm2446, %v5267, %v5266
        %v5269 = vsel %vm2449, %v1967, %v5268
        %v5270 = vrot.slane %v1968, 7
        %v5271 = vsel %vm2452, %v5270, %v5269
        %v5272 = vrot.slane %v1969, 6
        %v5273 = vsel %vm2455, %v5272, %v5271
        %v5274 = vrot.slane %v1970, 5
        %v5275 = vsel %vm2458, %v5274, %v5273
        %v5276 = vrot.slane %v1971, 4
        %v5277 = vsel %vm2461, %v5276, %v5275
        %v5278 = vrot.slane %v1972, 3
        %v5279 = vsel %vm2464, %v5278, %v5277
        %v5280 = vrot.slane %v1973, 2
        %v5281 = vrot.slane %v1974, 1
        %v5282 = vsel %vm2446, %v5281, %v5280
        %v5283 = vsel %vm2449, %v1975, %v5282
        %v5284 = vrot.slane %v1976, 7
        %v5285 = vsel %vm2452, %v5284, %v5283
        %v5286 = vrot.slane %v1977, 6
        %v5287 = vsel %vm2455, %v5286, %v5285
        %v5288 = vrot.slane %v1978, 5
        %v5289 = vsel %vm2458, %v5288, %v5287
        %v5290 = vrot.slane %v1979, 4
        %v5291 = vsel %vm2461, %v5290, %v5289
        %v5292 = vrot.slane %v1980, 3
        %v5293 = vsel %vm2464, %v5292, %v5291
        %v5294 = vrot.slane %v1981, 2
        %v5295 = vrot.slane %v1982, 1
        %v5296 = vsel %vm2446, %v5295, %v5294
        %v5297 = vsel %vm2449, %v1983, %v5296
        %v5298 = vrot.slane %v1984, 7
        %v5299 = vsel %vm2452, %v5298, %v5297
        %v5300 = vrot.slane %v1985, 6
        %v5301 = vsel %vm2455, %v5300, %v5299
        %v5302 = vrot.slane %v1986, 5
        %v5303 = vsel %vm2458, %v5302, %v5301
        %v5304 = vrot.slane %v1987, 4
        %v5305 = vsel %vm2461, %v5304, %v5303
        %v5306 = vrot.slane %v1988, 3
        %v5307 = vsel %vm2464, %v5306, %v5305
        %v5308 = vrot.slane %v1989, 2
        %v5309 = vrot.slane %v1990, 1
        %v5310 = vsel %vm2446, %v5309, %v5308
        %v5311 = vsel %vm2449, %v1991, %v5310
        %v5312 = vrot.slane %v1992, 7
        %v5313 = vsel %vm2452, %v5312, %v5311
        %v5314 = vrot.slane %v1993, 6
        %v5315 = vsel %vm2455, %v5314, %v5313
        %v5316 = vrot.slane %v1994, 5
        %v5317 = vsel %vm2458, %v5316, %v5315
        %v5318 = vrot.slane %v1995, 4
        %v5319 = vsel %vm2461, %v5318, %v5317
        %v5320 = vrot.slane %v1996, 3
        %v5321 = vsel %vm2464, %v5320, %v5319
        %v5322 = vrot.slane %v1997, 2
        %v5323 = vrot.slane %v1998, 1
        %v5324 = vsel %vm2446, %v5323, %v5322
        %v5325 = vsel %vm2449, %v1999, %v5324
        %v5326 = vrot.slane %v2000, 7
        %v5327 = vsel %vm2452, %v5326, %v5325
        %v5328 = vrot.slane %v2001, 6
        %v5329 = vsel %vm2455, %v5328, %v5327
        %v5330 = vrot.slane %v2002, 5
        %v5331 = vsel %vm2458, %v5330, %v5329
        %v5332 = vrot.slane %v2003, 4
        %v5333 = vsel %vm2461, %v5332, %v5331
        %v5334 = vrot.slane %v2004, 3
        %v5335 = vsel %vm2464, %v5334, %v5333
        %v5336 = vrot.slane %v2005, 2
        %v5337 = vrot.slane %v2006, 1
        %v5338 = vsel %vm2446, %v5337, %v5336
        %v5339 = vsel %vm2449, %v2007, %v5338
        %v5340 = vrot.slane %v2008, 7
        %v5341 = vsel %vm2452, %v5340, %v5339
        %v5342 = vrot.slane %v2009, 6
        %v5343 = vsel %vm2455, %v5342, %v5341
        %v5344 = vrot.slane %v2010, 5
        %v5345 = vsel %vm2458, %v5344, %v5343
        %v5346 = vrot.slane %v2011, 4
        %v5347 = vsel %vm2461, %v5346, %v5345
        %v5348 = vrot.slane %v2012, 3
        %v5349 = vsel %vm2464, %v5348, %v5347
        %v5350 = vrot.slane %v2013, 2
        %v5351 = vrot.slane %v2014, 1
        %v5352 = vsel %vm2446, %v5351, %v5350
        %v5353 = vsel %vm2449, %v2015, %v5352
        %v5354 = vrot.slane %v2016, 7
        %v5355 = vsel %vm2452, %v5354, %v5353
        %v5356 = vrot.slane %v2017, 6
        %v5357 = vsel %vm2455, %v5356, %v5355
        %v5358 = vrot.slane %v2018, 5
        %v5359 = vsel %vm2458, %v5358, %v5357
        %v5360 = vrot.slane %v2019, 4
        %v5361 = vsel %vm2461, %v5360, %v5359
        %v5362 = vrot.slane %v2020, 3
        %v5363 = vsel %vm2464, %v5362, %v5361
        %v5364 = vrot.slane %v2021, 2
        %v5365 = vrot.slane %v2022, 1
        %v5366 = vsel %vm2446, %v5365, %v5364
        %v5367 = vsel %vm2449, %v2023, %v5366
        %v5368 = vrot.slane %v2024, 7
        %v5369 = vsel %vm2452, %v5368, %v5367
        %v5370 = vrot.slane %v2025, 6
        %v5371 = vsel %vm2455, %v5370, %v5369
        %v5372 = vrot.slane %v2026, 5
        %v5373 = vsel %vm2458, %v5372, %v5371
        %v5374 = vrot.slane %v2027, 4
        %v5375 = vsel %vm2461, %v5374, %v5373
        %v5376 = vrot.slane %v2028, 3
        %v5377 = vsel %vm2464, %v5376, %v5375
        %v5378 = vrot.slane %v2029, 2
        %v5379 = vrot.slane %v2030, 1
        %v5380 = vsel %vm2446, %v5379, %v5378
        %v5381 = vsel %vm2449, %v2031, %v5380
        %v5382 = vrot.slane %v2032, 7
        %v5383 = vsel %vm2452, %v5382, %v5381
        %v5384 = vrot.slane %v2033, 6
        %v5385 = vsel %vm2455, %v5384, %v5383
        %v5386 = vrot.slane %v2034, 5
        %v5387 = vsel %vm2458, %v5386, %v5385
        %v5388 = vrot.slane %v2035, 4
        %v5389 = vsel %vm2461, %v5388, %v5387
        %v5390 = vrot.slane %v2036, 3
        %v5391 = vsel %vm2464, %v5390, %v5389
        %v5392 = vrot.slane %v2037, 2
        %v5393 = vrot.slane %v2038, 1
        %v5394 = vsel %vm2446, %v5393, %v5392
        %v5395 = vsel %vm2449, %v2039, %v5394
        %v5396 = vrot.slane %v2040, 7
        %v5397 = vsel %vm2452, %v5396, %v5395
        %v5398 = vrot.slane %v2041, 6
        %v5399 = vsel %vm2455, %v5398, %v5397
        %v5400 = vrot.slane %v2042, 5
        %v5401 = vsel %vm2458, %v5400, %v5399
        %v5402 = vrot.slane %v2043, 4
        %v5403 = vsel %vm2461, %v5402, %v5401
        %v5404 = vrot.slane %v2044, 3
        %v5405 = vsel %vm2464, %v5404, %v5403
        %v5406 = vrot.slane %v2045, 2
        %v5407 = vrot.slane %v2046, 1
        %v5408 = vsel %vm2446, %v5407, %v5406
        %v5409 = vsel %vm2449, %v2047, %v5408
        %v5410 = vrot.slane %v2048, 7
        %v5411 = vsel %vm2452, %v5410, %v5409
        %v5412 = vrot.slane %v2049, 6
        %v5413 = vsel %vm2455, %v5412, %v5411
        %v5414 = vrot.slane %v2050, 5
        %v5415 = vsel %vm2458, %v5414, %v5413
        %v5416 = vrot.slane %v2051, 4
        %v5417 = vsel %vm2461, %v5416, %v5415
        %v5418 = vrot.slane %v2052, 3
        %v5419 = vsel %vm2464, %v5418, %v5417
        %v5420 = vrot.slane %v2053, 2
        %v5421 = vrot.slane %v2054, 1
        %v5422 = vsel %vm2446, %v5421, %v5420
        %v5423 = vsel %vm2449, %v2055, %v5422
        %v5424 = vrot.slane %v2056, 7
        %v5425 = vsel %vm2452, %v5424, %v5423
        %v5426 = vrot.slane %v2057, 6
        %v5427 = vsel %vm2455, %v5426, %v5425
        %v5428 = vrot.slane %v2058, 5
        %v5429 = vsel %vm2458, %v5428, %v5427
        %v5430 = vrot.slane %v2059, 4
        %v5431 = vsel %vm2461, %v5430, %v5429
        %v5432 = vrot.slane %v2060, 3
        %v5433 = vsel %vm2464, %v5432, %v5431
        %v5434 = vrot.slane %v2061, 2
        %v5435 = vrot.slane %v2062, 1
        %v5436 = vsel %vm2446, %v5435, %v5434
        %v5437 = vsel %vm2449, %v2063, %v5436
        %v5438 = vrot.slane %v2064, 7
        %v5439 = vsel %vm2452, %v5438, %v5437
        %v5440 = vrot.slane %v2065, 6
        %v5441 = vsel %vm2455, %v5440, %v5439
        %v5442 = vrot.slane %v2066, 5
        %v5443 = vsel %vm2458, %v5442, %v5441
        %v5444 = vrot.slane %v2067, 4
        %v5445 = vsel %vm2461, %v5444, %v5443
        %v5446 = vrot.slane %v2068, 3
        %v5447 = vsel %vm2464, %v5446, %v5445
        %v5448 = vrot.slane %v2069, 2
        %v5449 = vrot.slane %v2070, 1
        %v5450 = vsel %vm2446, %v5449, %v5448
        %v5451 = vsel %vm2449, %v2071, %v5450
        %v5452 = vrot.slane %v2072, 7
        %v5453 = vsel %vm2452, %v5452, %v5451
        %v5454 = vrot.slane %v2073, 6
        %v5455 = vsel %vm2455, %v5454, %v5453
        %v5456 = vrot.slane %v2074, 5
        %v5457 = vsel %vm2458, %v5456, %v5455
        %v5458 = vrot.slane %v2075, 4
        %v5459 = vsel %vm2461, %v5458, %v5457
        %v5460 = vrot.slane %v2076, 3
        %v5461 = vsel %vm2464, %v5460, %v5459
        %v5462 = vrot.slane %v2077, 2
        %v5463 = vrot.slane %v2078, 1
        %v5464 = vsel %vm2446, %v5463, %v5462
        %v5465 = vsel %vm2449, %v2079, %v5464
        %v5466 = vrot.slane %v2080, 7
        %v5467 = vsel %vm2452, %v5466, %v5465
        %v5468 = vrot.slane %v2081, 6
        %v5469 = vsel %vm2455, %v5468, %v5467
        %v5470 = vrot.slane %v2082, 5
        %v5471 = vsel %vm2458, %v5470, %v5469
        %v5472 = vrot.slane %v2083, 4
        %v5473 = vsel %vm2461, %v5472, %v5471
        %v5474 = vrot.slane %v2084, 3
        %v5475 = vsel %vm2464, %v5474, %v5473
        %v5476 = vrot.slane %v2085, 2
        %v5477 = vrot.slane %v2086, 1
        %v5478 = vsel %vm2446, %v5477, %v5476
        %v5479 = vsel %vm2449, %v2087, %v5478
        %v5480 = vrot.slane %v2088, 7
        %v5481 = vsel %vm2452, %v5480, %v5479
        %v5482 = vrot.slane %v2089, 6
        %v5483 = vsel %vm2455, %v5482, %v5481
        %v5484 = vrot.slane %v2090, 5
        %v5485 = vsel %vm2458, %v5484, %v5483
        %v5486 = vrot.slane %v2091, 4
        %v5487 = vsel %vm2461, %v5486, %v5485
        %v5488 = vrot.slane %v2092, 3
        %v5489 = vsel %vm2464, %v5488, %v5487
        %v5490 = vrot.slane %v2093, 2
        %v5491 = vrot.slane %v2094, 1
        %v5492 = vsel %vm2446, %v5491, %v5490
        %v5493 = vsel %vm2449, %v2095, %v5492
        %v5494 = vrot.slane %v2096, 7
        %v5495 = vsel %vm2452, %v5494, %v5493
        %v5496 = vrot.slane %v2097, 6
        %v5497 = vsel %vm2455, %v5496, %v5495
        %v5498 = vrot.slane %v2098, 5
        %v5499 = vsel %vm2458, %v5498, %v5497
        %v5500 = vrot.slane %v2099, 4
        %v5501 = vsel %vm2461, %v5500, %v5499
        %v5502 = vrot.slane %v2100, 3
        %v5503 = vsel %vm2464, %v5502, %v5501
        %v5504 = vrot.slane %v2101, 2
        %v5505 = vrot.slane %v2102, 1
        %v5506 = vsel %vm2446, %v5505, %v5504
        %v5507 = vsel %vm2449, %v2103, %v5506
        %v5508 = vrot.slane %v2104, 7
        %v5509 = vsel %vm2452, %v5508, %v5507
        %v5510 = vrot.slane %v2105, 6
        %v5511 = vsel %vm2455, %v5510, %v5509
        %v5512 = vrot.slane %v2106, 5
        %v5513 = vsel %vm2458, %v5512, %v5511
        %v5514 = vrot.slane %v2107, 4
        %v5515 = vsel %vm2461, %v5514, %v5513
        %v5516 = vrot.slane %v2108, 3
        %v5517 = vsel %vm2464, %v5516, %v5515
        %v5518 = vrot.slane %v2109, 2
        %v5519 = vrot.slane %v2110, 1
        %v5520 = vsel %vm2446, %v5519, %v5518
        %v5521 = vsel %vm2449, %v2111, %v5520
        %v5522 = vrot.slane %v2112, 7
        %v5523 = vsel %vm2452, %v5522, %v5521
        %v5524 = vrot.slane %v2113, 6
        %v5525 = vsel %vm2455, %v5524, %v5523
        %v5526 = vrot.slane %v2114, 5
        %v5527 = vsel %vm2458, %v5526, %v5525
        %v5528 = vrot.slane %v2115, 4
        %v5529 = vsel %vm2461, %v5528, %v5527
        %v5530 = vrot.slane %v2116, 3
        %v5531 = vsel %vm2464, %v5530, %v5529
        %v5532 = vrot.slane %v2117, 2
        %v5533 = vrot.slane %v2118, 1
        %v5534 = vsel %vm2446, %v5533, %v5532
        %v5535 = vsel %vm2449, %v2119, %v5534
        %v5536 = vrot.slane %v2120, 7
        %v5537 = vsel %vm2452, %v5536, %v5535
        %v5538 = vrot.slane %v2121, 6
        %v5539 = vsel %vm2455, %v5538, %v5537
        %v5540 = vrot.slane %v2122, 5
        %v5541 = vsel %vm2458, %v5540, %v5539
        %v5542 = vrot.slane %v2123, 4
        %v5543 = vsel %vm2461, %v5542, %v5541
        %v5544 = vrot.slane %v2124, 3
        %v5545 = vsel %vm2464, %v5544, %v5543
        %v5546 = vrot.slane %v2125, 2
        %v5547 = vrot.slane %v2126, 1
        %v5548 = vsel %vm2446, %v5547, %v5546
        %v5549 = vsel %vm2449, %v2127, %v5548
        %v5550 = vrot.slane %v2128, 7
        %v5551 = vsel %vm2452, %v5550, %v5549
        %v5552 = vrot.slane %v2129, 6
        %v5553 = vsel %vm2455, %v5552, %v5551
        %v5554 = vrot.slane %v2130, 5
        %v5555 = vsel %vm2458, %v5554, %v5553
        %v5556 = vrot.slane %v2131, 4
        %v5557 = vsel %vm2461, %v5556, %v5555
        %v5558 = vrot.slane %v2132, 3
        %v5559 = vsel %vm2464, %v5558, %v5557
        %v5560 = vrot.slane %v2133, 2
        %v5561 = vrot.slane %v2134, 1
        %v5562 = vsel %vm2446, %v5561, %v5560
        %v5563 = vsel %vm2449, %v2135, %v5562
        %v5564 = vrot.slane %v2136, 7
        %v5565 = vsel %vm2452, %v5564, %v5563
        %v5566 = vrot.slane %v2137, 6
        %v5567 = vsel %vm2455, %v5566, %v5565
        %v5568 = vrot.slane %v2138, 5
        %v5569 = vsel %vm2458, %v5568, %v5567
        %v5570 = vrot.slane %v2139, 4
        %v5571 = vsel %vm2461, %v5570, %v5569
        %v5572 = vrot.slane %v2140, 3
        %v5573 = vsel %vm2464, %v5572, %v5571
        %v5574 = vrot.slane %v2141, 2
        %v5575 = vrot.slane %v2142, 1
        %v5576 = vsel %vm2446, %v5575, %v5574
        %v5577 = vsel %vm2449, %v2143, %v5576
        %v5578 = vrot.slane %v2144, 7
        %v5579 = vsel %vm2452, %v5578, %v5577
        %v5580 = vrot.slane %v2145, 6
        %v5581 = vsel %vm2455, %v5580, %v5579
        %v5582 = vrot.slane %v2146, 5
        %v5583 = vsel %vm2458, %v5582, %v5581
        %v5584 = vrot.slane %v2147, 4
        %v5585 = vsel %vm2461, %v5584, %v5583
        %v5586 = vrot.slane %v2148, 3
        %v5587 = vsel %vm2464, %v5586, %v5585
        %v5588 = vrot.slane %v2149, 2
        %v5589 = vrot.slane %v2150, 1
        %v5590 = vsel %vm2446, %v5589, %v5588
        %v5591 = vsel %vm2449, %v2151, %v5590
        %v5592 = vrot.slane %v2152, 7
        %v5593 = vsel %vm2452, %v5592, %v5591
        %v5594 = vrot.slane %v2153, 6
        %v5595 = vsel %vm2455, %v5594, %v5593
        %v5596 = vrot.slane %v2154, 5
        %v5597 = vsel %vm2458, %v5596, %v5595
        %v5598 = vrot.slane %v2155, 4
        %v5599 = vsel %vm2461, %v5598, %v5597
        %v5600 = vrot.slane %v2156, 3
        %v5601 = vsel %vm2464, %v5600, %v5599
        %v5602 = vrot.slane %v2157, 2
        %v5603 = vrot.slane %v2158, 1
        %v5604 = vsel %vm2446, %v5603, %v5602
        %v5605 = vsel %vm2449, %v2159, %v5604
        %v5606 = vrot.slane %v2160, 7
        %v5607 = vsel %vm2452, %v5606, %v5605
        %v5608 = vrot.slane %v2161, 6
        %v5609 = vsel %vm2455, %v5608, %v5607
        %v5610 = vrot.slane %v2162, 5
        %v5611 = vsel %vm2458, %v5610, %v5609
        %v5612 = vrot.slane %v2163, 4
        %v5613 = vsel %vm2461, %v5612, %v5611
        %v5614 = vrot.slane %v2164, 3
        %v5615 = vsel %vm2464, %v5614, %v5613
        %v5616 = vrot.slane %v2165, 2
        %v5617 = vrot.slane %v2166, 1
        %v5618 = vsel %vm2446, %v5617, %v5616
        %v5619 = vsel %vm2449, %v2167, %v5618
        %v5620 = vrot.slane %v2168, 7
        %v5621 = vsel %vm2452, %v5620, %v5619
        %v5622 = vrot.slane %v2169, 6
        %v5623 = vsel %vm2455, %v5622, %v5621
        %v5624 = vrot.slane %v2170, 5
        %v5625 = vsel %vm2458, %v5624, %v5623
        %v5626 = vrot.slane %v2171, 4
        %v5627 = vsel %vm2461, %v5626, %v5625
        %v5628 = vrot.slane %v2172, 3
        %v5629 = vsel %vm2464, %v5628, %v5627
        %v5630 = vrot.slane %v2173, 2
        %v5631 = vrot.slane %v2174, 1
        %v5632 = vsel %vm2446, %v5631, %v5630
        %v5633 = vsel %vm2449, %v2175, %v5632
        %v5634 = vrot.slane %v2176, 7
        %v5635 = vsel %vm2452, %v5634, %v5633
        %v5636 = vrot.slane %v2177, 6
        %v5637 = vsel %vm2455, %v5636, %v5635
        %v5638 = vrot.slane %v2178, 5
        %v5639 = vsel %vm2458, %v5638, %v5637
        %v5640 = vrot.slane %v2179, 4
        %v5641 = vsel %vm2461, %v5640, %v5639
        %v5642 = vrot.slane %v2180, 3
        %v5643 = vsel %vm2464, %v5642, %v5641
        %v5644 = vrot.slane %v2181, 2
        %v5645 = vrot.slane %v2182, 1
        %v5646 = vsel %vm2446, %v5645, %v5644
        %v5647 = vsel %vm2449, %v2183, %v5646
        %v5648 = vrot.slane %v2184, 7
        %v5649 = vsel %vm2452, %v5648, %v5647
        %v5650 = vrot.slane %v2185, 6
        %v5651 = vsel %vm2455, %v5650, %v5649
        %v5652 = vrot.slane %v2186, 5
        %v5653 = vsel %vm2458, %v5652, %v5651
        %v5654 = vrot.slane %v2187, 4
        %v5655 = vsel %vm2461, %v5654, %v5653
        %v5656 = vrot.slane %v2188, 3
        %v5657 = vsel %vm2464, %v5656, %v5655
        %v5658 = vsel %vm3028, %v5223, 0
        %v5660 = vsel %vm3028, %v5237, 0
        %v5662 = vsel %vm3028, %v5251, 0
        %v5664 = vsel %vm3028, %v5265, 0
        %v5666 = vsel %vm3028, %v5279, 0
        %v5668 = vsel %vm3028, %v5293, 0
        %v5670 = vsel %vm3028, %v5307, 0
        %v5672 = vsel %vm3028, %v5321, 0
        %v5674 = vsel %vm3028, %v5335, 0
        %v5676 = vsel %vm3028, %v5349, 0
        %v5678 = vsel %vm3028, %v5363, 0
        %v5680 = vsel %vm3028, %v5377, 0
        %v5682 = vsel %vm3028, %v5391, 0
        %v5684 = vsel %vm3028, %v5405, 0
        %v5686 = vsel %vm3028, %v5419, 0
        %v5688 = vsel %vm3028, %v5433, 0
        %v5690 = vsel %vm3028, %v5447, 0
        %v5692 = vsel %vm3028, %v5461, 0
        %v5694 = vsel %vm3028, %v5475, 0
        %v5696 = vsel %vm3028, %v5489, 0
        %v5698 = vsel %vm3028, %v5503, 0
        %v5700 = vsel %vm3028, %v5517, 0
        %v5702 = vsel %vm3028, %v5531, 0
        %v5704 = vsel %vm3028, %v5545, 0
        %v5706 = vsel %vm3028, %v5559, 0
        %v5708 = vsel %vm3028, %v5573, 0
        %v5710 = vsel %vm3028, %v5587, 0
        %v5712 = vsel %vm3028, %v5601, 0
        %v5714 = vsel %vm3028, %v5615, 0
        %v5716 = vsel %vm3028, %v5629, 0
        %v5718 = vsel %vm3028, %v5643, 0
        %v5720 = vsel %vm3028, %v5657, 0
        %5722 = vmatprep.subr.mxu0 0.0
        %5723 = vmatpush1.xpose.msra.mxu0 %v5690
        %5724 = vmatprep.subr.mxu0 0.0
        %5725 = vmatpush1.xpose.msra.mxu0 %v5692
        %5726 = vmatprep.subr.mxu0 0.0
        %5727 = vmatpush1.xpose.msra.mxu0 %v5694
        %5728 = vmatprep.subr.mxu0 0.0
        %5729 = vmatpush1.xpose.msra.mxu0 %v5696
        %5730 = vmatprep.subr.mxu0 0.0
        %5731 = vmatpush1.xpose.msra.mxu0 %v5698
        %5732 = vmatprep.subr.mxu0 0.0
        %5733 = vmatpush1.xpose.msra.mxu0 %v5700
        %5734 = vmatprep.subr.mxu0 0.0
        %5735 = vmatpush1.xpose.msra.mxu0 %v5702
        %5736 = vmatprep.subr.mxu0 0.0
        %5737 = vmatpush1.xpose.msra.mxu0 %v5704
        %5738 = vmatprep.subr.mxu0 0.0
        %5739 = vmatpush1.xpose.msra.mxu0 %v5706
        %5740 = vmatprep.subr.mxu0 0.0
        %5741 = vmatpush1.xpose.msra.mxu0 %v5708
        %5742 = vmatprep.subr.mxu0 0.0
        %5743 = vmatpush1.xpose.msra.mxu0 %v5710
        %5744 = vmatprep.subr.mxu0 0.0
        %5745 = vmatpush1.xpose.msra.mxu0 %v5712
        %5746 = vmatprep.subr.mxu0 0.0
        %5747 = vmatpush1.xpose.msra.mxu0 %v5714
        %5748 = vmatprep.subr.mxu0 0.0
        %5749 = vmatpush1.xpose.msra.mxu0 %v5716
        %5750 = vmatprep.subr.mxu0 0.0
        %5751 = vmatpush1.xpose.msra.mxu0 %v5718
        %5752 = vmatprep.subr.mxu0 0.0
        %5753 = vmatpush1.xpose.msra.mxu0 %v5720
        %5754 = vmatprep.subr.mxu0 0.0
        %5755 = vmatpush1.xpose.msra.mxu0 0.0
        %5756 = vmatprep.subr.mxu0 0.0
        %5757 = vmatpush1.xpose.msra.mxu0 0.0
        %5758 = vmatprep.subr.mxu0 0.0
        %5759 = vmatpush1.xpose.msra.mxu0 0.0
        %5760 = vmatprep.subr.mxu0 0.0
        %5761 = vmatpush1.xpose.msra.mxu0 0.0
        %5762 = vmatprep.subr.mxu0 0.0
        %5763 = vmatpush1.xpose.msra.mxu0 0.0
        %5764 = vmatprep.subr.mxu0 0.0
        %5765 = vmatpush1.xpose.msra.mxu0 0.0
        %5766 = vmatprep.subr.mxu0 0.0
        %5767 = vmatpush1.xpose.msra.mxu0 0.0
        %5768 = vmatprep.subr.mxu0 0.0
        %5769 = vmatpush1.xpose.msra.mxu0 0.0
        %5770 = vmatprep.subr.mxu0 0.0
        %5771 = vmatpush1.xpose.msra.mxu0 0.0
        %5772 = vmatprep.subr.mxu0 0.0
        %5773 = vmatpush1.xpose.msra.mxu0 0.0
        %5774 = vmatprep.subr.mxu0 0.0
        %5775 = vmatpush1.xpose.msra.mxu0 0.0
        %5776 = vmatprep.subr.mxu0 0.0
        %5777 = vmatpush1.xpose.msra.mxu0 0.0
        %5778 = vmatprep.subr.mxu0 0.0
        %5779 = vmatpush1.xpose.msra.mxu0 0.0
        %5780 = vmatprep.subr.mxu0 0.0
        %5781 = vmatpush1.xpose.msra.mxu0 0.0
        %5782 = vmatprep.subr.mxu0 0.0
        %5783 = vmatpush1.xpose.msra.mxu0 0.0
        %5784 = vmatprep.subr.mxu0 0.0
        %5785 = vmatpush1.xpose.msra.mxu0 0.0
        %5786 = vmatprep.mubr.f32.mxu0 0.0
        %5787 = vmatmul.mubr.f32.gmra.mrb[0].mxu0 %v5658
        %v5788 = vpop.f32.mrb[0].mxu0
        %v5789 = vadd.f32 0.0, %v5788
        %v5790 = vpop.f32.mrb[0].mxu0
        %5791 = vmatprep.mubr.f32.mxu0 0.0
        %5792 = vmatmul.mubr.f32.gmra.mrb[0].mxu0 %v5660
        %v5793 = vpop.f32.mrb[0].mxu0
        %v5794 = vadd.f32 0.0, %v5793
        %v5795 = vpop.f32.mrb[0].mxu0
        %5796 = vmatprep.mubr.f32.mxu0 0.0
        %5797 = vmatmul.mubr.f32.gmra.mrb[0].mxu0 %v5662
        %v5798 = vpop.f32.mrb[0].mxu0
        %v5799 = vadd.f32 0.0, %v5798
        %v5800 = vpop.f32.mrb[0].mxu0
        %5801 = vmatprep.mubr.f32.mxu0 0.0
        %5802 = vmatmul.mubr.f32.gmra.mrb[0].mxu0 %v5664
        %v5803 = vpop.f32.mrb[0].mxu0
        %v5804 = vadd.f32 0.0, %v5803
        %v5805 = vpop.f32.mrb[0].mxu0
        %5806 = vmatprep.mubr.f32.mxu0 0.0
        %5807 = vmatmul.mubr.f32.gmra.mrb[0].mxu0 %v5666
        %v5808 = vpop.f32.mrb[0].mxu0
        %v5809 = vadd.f32 0.0, %v5808
        %v5810 = vpop.f32.mrb[0].mxu0
        %5811 = vmatprep.mubr.f32.mxu0 0.0
        %5812 = vmatmul.mubr.f32.gmra.mrb[0].mxu0 %v5668
        %v5813 = vpop.f32.mrb[0].mxu0
        %v5814 = vadd.f32 0.0, %v5813
        %v5815 = vpop.f32.mrb[0].mxu0
        %5816 = vmatprep.mubr.f32.mxu0 0.0
        %5817 = vmatmul.mubr.f32.gmra.mrb[0].mxu0 %v5670
        %v5818 = vpop.f32.mrb[0].mxu0
        %v5819 = vadd.f32 0.0, %v5818
        %v5820 = vpop.f32.mrb[0].mxu0
        %5821 = vmatprep.mubr.f32.mxu0 0.0
        %5822 = vmatmul.mubr.f32.gmra.mrb[0].mxu0 %v5672
        %v5823 = vpop.f32.mrb[0].mxu0
        %v5824 = vadd.f32 0.0, %v5823
        %v5825 = vpop.f32.mrb[0].mxu0
        %5826 = vmatprep.mubr.f32.mxu0 0.0
        %5827 = vmatmul.mubr.f32.gmra.mrb[0].mxu0 %v5674
        %v5828 = vpop.f32.mrb[0].mxu0
        %v5829 = vadd.f32 0.0, %v5828
        %v5830 = vpop.f32.mrb[0].mxu0
        %5831 = vmatprep.mubr.f32.mxu0 0.0
        %5832 = vmatmul.mubr.f32.gmra.mrb[0].mxu0 %v5676
        %v5833 = vpop.f32.mrb[0].mxu0
        %v5834 = vadd.f32 0.0, %v5833
        %v5835 = vpop.f32.mrb[0].mxu0
        %5836 = vmatprep.mubr.f32.mxu0 0.0
        %5837 = vmatmul.mubr.f32.gmra.mrb[0].mxu0 %v5678
        %v5838 = vpop.f32.mrb[0].mxu0
        %v5839 = vadd.f32 0.0, %v5838
        %v5840 = vpop.f32.mrb[0].mxu0
        %5841 = vmatprep.mubr.f32.mxu0 0.0
        %5842 = vmatmul.mubr.f32.gmra.mrb[0].mxu0 %v5680
        %v5843 = vpop.f32.mrb[0].mxu0
        %v5844 = vadd.f32 0.0, %v5843
        %v5845 = vpop.f32.mrb[0].mxu0
        %5846 = vmatprep.mubr.f32.mxu0 0.0
        %5847 = vmatmul.mubr.f32.gmra.mrb[0].mxu0 %v5682
        %v5848 = vpop.f32.mrb[0].mxu0
        %v5849 = vadd.f32 0.0, %v5848
        %v5850 = vpop.f32.mrb[0].mxu0
        %5851 = vmatprep.mubr.f32.mxu0 0.0
        %5852 = vmatmul.mubr.f32.gmra.mrb[0].mxu0 %v5684
        %v5853 = vpop.f32.mrb[0].mxu0
        %v5854 = vadd.f32 0.0, %v5853
        %v5855 = vpop.f32.mrb[0].mxu0
        %5856 = vmatprep.mubr.f32.mxu0 0.0
        %5857 = vmatmul.mubr.f32.gmra.mrb[0].mxu0 %v5686
        %v5858 = vpop.f32.mrb[0].mxu0
        %v5859 = vadd.f32 0.0, %v5858
        %v5860 = vpop.f32.mrb[0].mxu0
        %5861 = vmatprep.mubr.f32.mxu0 0.0
        %5862 = vmatmul.mubr.f32.gmra.mrb[0].mxu0 %v5688
        %v5863 = vpop.f32.mrb[0].mxu0
        %v5864 = vadd.f32 0.0, %v5863
        %v5865 = vpop.f32.mrb[0].mxu0
        %5866 = vdwg.mxu0
        %5867 = vmax.xlane.f32.xlu0 %v5789
        %v5868 = vpop.xlane.xlu0 %5867
        %5869 = vmax.xlane.f32.xlu0 %v5794
        %v5870 = vpop.xlane.xlu0 %5869
        %5871 = vmax.xlane.f32.xlu0 %v5799
        %v5872 = vpop.xlane.xlu0 %5871
        %5873 = vmax.xlane.f32.xlu0 %v5804
        %v5874 = vpop.xlane.xlu0 %5873
        %5875 = vmax.xlane.f32.xlu0 %v5809
        %v5876 = vpop.xlane.xlu0 %5875
        %5877 = vmax.xlane.f32.xlu0 %v5814
        %v5878 = vpop.xlane.xlu0 %5877
        %5879 = vmax.xlane.f32.xlu0 %v5819
        %v5880 = vpop.xlane.xlu0 %5879
        %5881 = vmax.xlane.f32.xlu0 %v5824
        %v5882 = vpop.xlane.xlu0 %5881
        %5883 = vmax.xlane.f32.xlu0 %v5829
        %v5884 = vpop.xlane.xlu0 %5883
        %5885 = vmax.xlane.f32.xlu0 %v5834
        %v5886 = vpop.xlane.xlu0 %5885
        %5887 = vmax.xlane.f32.xlu0 %v5839
        %v5888 = vpop.xlane.xlu0 %5887
        %5889 = vmax.xlane.f32.xlu0 %v5844
        %v5890 = vpop.xlane.xlu0 %5889
        %5891 = vmax.xlane.f32.xlu0 %v5849
        %v5892 = vpop.xlane.xlu0 %5891
        %5893 = vmax.xlane.f32.xlu0 %v5854
        %v5894 = vpop.xlane.xlu0 %5893
        %5895 = vmax.xlane.f32.xlu0 %v5859
        %v5896 = vpop.xlane.xlu0 %5895
        %5897 = vmax.xlane.f32.xlu0 %v5864
        %v5898 = vpop.xlane.xlu0 %5897
        %v5899 = vsub.f32 %v5789, %v5868
        %v5900 = vsub.f32 %v5794, %v5870
        %v5901 = vsub.f32 %v5799, %v5872
        %v5902 = vsub.f32 %v5804, %v5874
        %v5903 = vsub.f32 %v5809, %v5876
        %v5904 = vsub.f32 %v5814, %v5878
        %v5905 = vsub.f32 %v5819, %v5880
        %v5906 = vsub.f32 %v5824, %v5882
        %v5907 = vsub.f32 %v5829, %v5884
        %v5908 = vsub.f32 %v5834, %v5886
        %v5909 = vsub.f32 %v5839, %v5888
        %v5910 = vsub.f32 %v5844, %v5890
        %v5911 = vsub.f32 %v5849, %v5892
        %v5912 = vsub.f32 %v5854, %v5894
        %v5913 = vsub.f32 %v5859, %v5896
        %v5914 = vsub.f32 %v5864, %v5898
        %v5915 = vmul.f32 %v5899, 1.442695
        %v5916 = vpow.pop %v5915
        %v5917 = vmul.f32 %v5900, 1.442695
        %v5918 = vpow.pop %v5917
        %v5919 = vmul.f32 %v5901, 1.442695
        %v5920 = vpow.pop %v5919
        %v5921 = vmul.f32 %v5902, 1.442695
        %v5922 = vpow.pop %v5921
        %v5923 = vmul.f32 %v5903, 1.442695
        %v5924 = vpow.pop %v5923
        %v5925 = vmul.f32 %v5904, 1.442695
        %v5926 = vpow.pop %v5925
        %v5927 = vmul.f32 %v5905, 1.442695
        %v5928 = vpow.pop %v5927
        %v5929 = vmul.f32 %v5906, 1.442695
        %v5930 = vpow.pop %v5929
        %v5931 = vmul.f32 %v5907, 1.442695
        %v5932 = vpow.pop %v5931
        %v5933 = vmul.f32 %v5908, 1.442695
        %v5934 = vpow.pop %v5933
        %v5935 = vmul.f32 %v5909, 1.442695
        %v5936 = vpow.pop %v5935
        %v5937 = vmul.f32 %v5910, 1.442695
        %v5938 = vpow.pop %v5937
        %v5939 = vmul.f32 %v5911, 1.442695
        %v5940 = vpow.pop %v5939
        %v5941 = vmul.f32 %v5912, 1.442695
        %v5942 = vpow.pop %v5941
        %v5943 = vmul.f32 %v5913, 1.442695
        %v5944 = vpow.pop %v5943
        %v5945 = vmul.f32 %v5914, 1.442695
        %v5946 = vpow.pop %v5945
        %5947 = vadd.xlane.f32.xlu0 %v5916
        %v5948 = vpop.xlane.xlu0 %5947
        %5949 = vadd.xlane.f32.xlu0 %v5918
        %v5950 = vpop.xlane.xlu0 %5949
        %5951 = vadd.xlane.f32.xlu0 %v5920
        %v5952 = vpop.xlane.xlu0 %5951
        %5953 = vadd.xlane.f32.xlu0 %v5922
        %v5954 = vpop.xlane.xlu0 %5953
        %5955 = vadd.xlane.f32.xlu0 %v5924
        %v5956 = vpop.xlane.xlu0 %5955
        %5957 = vadd.xlane.f32.xlu0 %v5926
        %v5958 = vpop.xlane.xlu0 %5957
        %5959 = vadd.xlane.f32.xlu0 %v5928
        %v5960 = vpop.xlane.xlu0 %5959
        %5961 = vadd.xlane.f32.xlu0 %v5930
        %v5962 = vpop.xlane.xlu0 %5961
        %5963 = vadd.xlane.f32.xlu0 %v5932
        %v5964 = vpop.xlane.xlu0 %5963
        %5965 = vadd.xlane.f32.xlu0 %v5934
        %v5966 = vpop.xlane.xlu0 %5965
        %5967 = vadd.xlane.f32.xlu0 %v5936
        %v5968 = vpop.xlane.xlu0 %5967
        %5969 = vadd.xlane.f32.xlu0 %v5938
        %v5970 = vpop.xlane.xlu0 %5969
        %5971 = vadd.xlane.f32.xlu0 %v5940
        %v5972 = vpop.xlane.xlu0 %5971
        %5973 = vadd.xlane.f32.xlu0 %v5942
        %v5974 = vpop.xlane.xlu0 %5973
        %5975 = vadd.xlane.f32.xlu0 %v5944
        %v5976 = vpop.xlane.xlu0 %5975
        %5977 = vadd.xlane.f32.xlu0 %v5946
        %v5978 = vpop.xlane.xlu0 %5977
        %v5979 = vrcp.pop %v5948
        %v5980 = vrcp.pop %v5950
        %v5981 = vrcp.pop %v5952
        %v5982 = vrcp.pop %v5954
        %v5983 = vrcp.pop %v5956
        %v5984 = vrcp.pop %v5958
        %v5985 = vrcp.pop %v5960
        %v5986 = vrcp.pop %v5962
        %v5987 = vrcp.pop %v5964
        %v5988 = vrcp.pop %v5966
        %v5989 = vrcp.pop %v5968
        %v5990 = vrcp.pop %v5970
        %v5991 = vrcp.pop %v5972
        %v5992 = vrcp.pop %v5974
        %v5993 = vrcp.pop %v5976
        %v5994 = vrcp.pop %v5978
        %v5995 = vmul.f32 %v5916, %v5979
        %v5996 = vmul.f32 %v5918, %v5980
        %v5997 = vmul.f32 %v5920, %v5981
        %v5998 = vmul.f32 %v5922, %v5982
        %v5999 = vmul.f32 %v5924, %v5983
        %v6000 = vmul.f32 %v5926, %v5984
        %v6001 = vmul.f32 %v5928, %v5985
        %v6002 = vmul.f32 %v5930, %v5986
        %v6003 = vmul.f32 %v5932, %v5987
        %v6004 = vmul.f32 %v5934, %v5988
        %v6005 = vmul.f32 %v5936, %v5989
        %v6006 = vmul.f32 %v5938, %v5990
        %v6007 = vmul.f32 %v5940, %v5991
        %v6008 = vmul.f32 %v5942, %v5992
        %v6009 = vmul.f32 %v5944, %v5993
        %v6010 = vmul.f32 %v5946, %v5994
        %v6011 = vadd.f32 %v4728, %v5995
        %v6012 = vadd.f32 %v4729, %v5996
        %v6013 = vadd.f32 %v4730, %v5997
        %v6014 = vadd.f32 %v4731, %v5998
        %v6015 = vadd.f32 %v4732, %v5999
        %v6016 = vadd.f32 %v4733, %v6000
        %v6017 = vadd.f32 %v4734, %v6001
        %v6018 = vadd.f32 %v4735, %v6002
        %v6019 = vadd.f32 %v4736, %v6003
        %v6020 = vadd.f32 %v4737, %v6004
        %v6021 = vadd.f32 %v4738, %v6005
        %v6022 = vadd.f32 %v4739, %v6006
        %v6023 = vadd.f32 %v4740, %v6007
        %v6024 = vadd.f32 %v4741, %v6008
        %v6025 = vadd.f32 %v4742, %v6009
        %v6026 = vadd.f32 %v4743, %v6010
        %v6027 = vrot.slane %v2189, 2
        %v6028 = vrot.slane %v2190, 1
        %v6029 = vsel %vm2446, %v6028, %v6027
        %v6030 = vsel %vm2449, %v2191, %v6029
        %v6031 = vrot.slane %v2192, 7
        %v6032 = vsel %vm2452, %v6031, %v6030
        %v6033 = vrot.slane %v2193, 6
        %v6034 = vsel %vm2455, %v6033, %v6032
        %v6035 = vrot.slane %v2194, 5
        %v6036 = vsel %vm2458, %v6035, %v6034
        %v6037 = vrot.slane %v2195, 4
        %v6038 = vsel %vm2461, %v6037, %v6036
        %v6039 = vrot.slane %v2196, 3
        %v6040 = vsel %vm2464, %v6039, %v6038
        %v6041 = vrot.slane %v2197, 2
        %v6042 = vrot.slane %v2198, 1
        %v6043 = vsel %vm2446, %v6042, %v6041
        %v6044 = vsel %vm2449, %v2199, %v6043
        %v6045 = vrot.slane %v2200, 7
        %v6046 = vsel %vm2452, %v6045, %v6044
        %v6047 = vrot.slane %v2201, 6
        %v6048 = vsel %vm2455, %v6047, %v6046
        %v6049 = vrot.slane %v2202, 5
        %v6050 = vsel %vm2458, %v6049, %v6048
        %v6051 = vrot.slane %v2203, 4
        %v6052 = vsel %vm2461, %v6051, %v6050
        %v6053 = vrot.slane %v2204, 3
        %v6054 = vsel %vm2464, %v6053, %v6052
        %v6055 = vrot.slane %v2205, 2
        %v6056 = vrot.slane %v2206, 1
        %v6057 = vsel %vm2446, %v6056, %v6055
        %v6058 = vsel %vm2449, %v2207, %v6057
        %v6059 = vrot.slane %v2208, 7
        %v6060 = vsel %vm2452, %v6059, %v6058
        %v6061 = vrot.slane %v2209, 6
        %v6062 = vsel %vm2455, %v6061, %v6060
        %v6063 = vrot.slane %v2210, 5
        %v6064 = vsel %vm2458, %v6063, %v6062
        %v6065 = vrot.slane %v2211, 4
        %v6066 = vsel %vm2461, %v6065, %v6064
        %v6067 = vrot.slane %v2212, 3
        %v6068 = vsel %vm2464, %v6067, %v6066
        %v6069 = vrot.slane %v2213, 2
        %v6070 = vrot.slane %v2214, 1
        %v6071 = vsel %vm2446, %v6070, %v6069
        %v6072 = vsel %vm2449, %v2215, %v6071
        %v6073 = vrot.slane %v2216, 7
        %v6074 = vsel %vm2452, %v6073, %v6072
        %v6075 = vrot.slane %v2217, 6
        %v6076 = vsel %vm2455, %v6075, %v6074
        %v6077 = vrot.slane %v2218, 5
        %v6078 = vsel %vm2458, %v6077, %v6076
        %v6079 = vrot.slane %v2219, 4
        %v6080 = vsel %vm2461, %v6079, %v6078
        %v6081 = vrot.slane %v2220, 3
        %v6082 = vsel %vm2464, %v6081, %v6080
        %v6083 = vrot.slane %v2221, 2
        %v6084 = vrot.slane %v2222, 1
        %v6085 = vsel %vm2446, %v6084, %v6083
        %v6086 = vsel %vm2449, %v2223, %v6085
        %v6087 = vrot.slane %v2224, 7
        %v6088 = vsel %vm2452, %v6087, %v6086
        %v6089 = vrot.slane %v2225, 6
        %v6090 = vsel %vm2455, %v6089, %v6088
        %v6091 = vrot.slane %v2226, 5
        %v6092 = vsel %vm2458, %v6091, %v6090
        %v6093 = vrot.slane %v2227, 4
        %v6094 = vsel %vm2461, %v6093, %v6092
        %v6095 = vrot.slane %v2228, 3
        %v6096 = vsel %vm2464, %v6095, %v6094
        %v6097 = vrot.slane %v2229, 2
        %v6098 = vrot.slane %v2230, 1
        %v6099 = vsel %vm2446, %v6098, %v6097
        %v6100 = vsel %vm2449, %v2231, %v6099
        %v6101 = vrot.slane %v2232, 7
        %v6102 = vsel %vm2452, %v6101, %v6100
        %v6103 = vrot.slane %v2233, 6
        %v6104 = vsel %vm2455, %v6103, %v6102
        %v6105 = vrot.slane %v2234, 5
        %v6106 = vsel %vm2458, %v6105, %v6104
        %v6107 = vrot.slane %v2235, 4
        %v6108 = vsel %vm2461, %v6107, %v6106
        %v6109 = vrot.slane %v2236, 3
        %v6110 = vsel %vm2464, %v6109, %v6108
        %v6111 = vrot.slane %v2237, 2
        %v6112 = vrot.slane %v2238, 1
        %v6113 = vsel %vm2446, %v6112, %v6111
        %v6114 = vsel %vm2449, %v2239, %v6113
        %v6115 = vrot.slane %v2240, 7
        %v6116 = vsel %vm2452, %v6115, %v6114
        %v6117 = vrot.slane %v2241, 6
        %v6118 = vsel %vm2455, %v6117, %v6116
        %v6119 = vrot.slane %v2242, 5
        %v6120 = vsel %vm2458, %v6119, %v6118
        %v6121 = vrot.slane %v2243, 4
        %v6122 = vsel %vm2461, %v6121, %v6120
        %v6123 = vrot.slane %v2244, 3
        %v6124 = vsel %vm2464, %v6123, %v6122
        %v6125 = vrot.slane %v2245, 2
        %v6126 = vrot.slane %v2246, 1
        %v6127 = vsel %vm2446, %v6126, %v6125
        %v6128 = vsel %vm2449, %v2247, %v6127
        %v6129 = vrot.slane %v2248, 7
        %v6130 = vsel %vm2452, %v6129, %v6128
        %v6131 = vrot.slane %v2249, 6
        %v6132 = vsel %vm2455, %v6131, %v6130
        %v6133 = vrot.slane %v2250, 5
        %v6134 = vsel %vm2458, %v6133, %v6132
        %v6135 = vrot.slane %v2251, 4
        %v6136 = vsel %vm2461, %v6135, %v6134
        %v6137 = vrot.slane %v2252, 3
        %v6138 = vsel %vm2464, %v6137, %v6136
        %v6139 = vrot.slane %v2253, 2
        %v6140 = vrot.slane %v2254, 1
        %v6141 = vsel %vm2446, %v6140, %v6139
        %v6142 = vsel %vm2449, %v2255, %v6141
        %v6143 = vrot.slane %v2256, 7
        %v6144 = vsel %vm2452, %v6143, %v6142
        %v6145 = vrot.slane %v2257, 6
        %v6146 = vsel %vm2455, %v6145, %v6144
        %v6147 = vrot.slane %v2258, 5
        %v6148 = vsel %vm2458, %v6147, %v6146
        %v6149 = vrot.slane %v2259, 4
        %v6150 = vsel %vm2461, %v6149, %v6148
        %v6151 = vrot.slane %v2260, 3
        %v6152 = vsel %vm2464, %v6151, %v6150
        %v6153 = vrot.slane %v2261, 2
        %v6154 = vrot.slane %v2262, 1
        %v6155 = vsel %vm2446, %v6154, %v6153
        %v6156 = vsel %vm2449, %v2263, %v6155
        %v6157 = vrot.slane %v2264, 7
        %v6158 = vsel %vm2452, %v6157, %v6156
        %v6159 = vrot.slane %v2265, 6
        %v6160 = vsel %vm2455, %v6159, %v6158
        %v6161 = vrot.slane %v2266, 5
        %v6162 = vsel %vm2458, %v6161, %v6160
        %v6163 = vrot.slane %v2267, 4
        %v6164 = vsel %vm2461, %v6163, %v6162
        %v6165 = vrot.slane %v2268, 3
        %v6166 = vsel %vm2464, %v6165, %v6164
        %v6167 = vrot.slane %v2269, 2
        %v6168 = vrot.slane %v2270, 1
        %v6169 = vsel %vm2446, %v6168, %v6167
        %v6170 = vsel %vm2449, %v2271, %v6169
        %v6171 = vrot.slane %v2272, 7
        %v6172 = vsel %vm2452, %v6171, %v6170
        %v6173 = vrot.slane %v2273, 6
        %v6174 = vsel %vm2455, %v6173, %v6172
        %v6175 = vrot.slane %v2274, 5
        %v6176 = vsel %vm2458, %v6175, %v6174
        %v6177 = vrot.slane %v2275, 4
        %v6178 = vsel %vm2461, %v6177, %v6176
        %v6179 = vrot.slane %v2276, 3
        %v6180 = vsel %vm2464, %v6179, %v6178
        %v6181 = vrot.slane %v2277, 2
        %v6182 = vrot.slane %v2278, 1
        %v6183 = vsel %vm2446, %v6182, %v6181
        %v6184 = vsel %vm2449, %v2279, %v6183
        %v6185 = vrot.slane %v2280, 7
        %v6186 = vsel %vm2452, %v6185, %v6184
        %v6187 = vrot.slane %v2281, 6
        %v6188 = vsel %vm2455, %v6187, %v6186
        %v6189 = vrot.slane %v2282, 5
        %v6190 = vsel %vm2458, %v6189, %v6188
        %v6191 = vrot.slane %v2283, 4
        %v6192 = vsel %vm2461, %v6191, %v6190
        %v6193 = vrot.slane %v2284, 3
        %v6194 = vsel %vm2464, %v6193, %v6192
        %v6195 = vrot.slane %v2285, 2
        %v6196 = vrot.slane %v2286, 1
        %v6197 = vsel %vm2446, %v6196, %v6195
        %v6198 = vsel %vm2449, %v2287, %v6197
        %v6199 = vrot.slane %v2288, 7
        %v6200 = vsel %vm2452, %v6199, %v6198
        %v6201 = vrot.slane %v2289, 6
        %v6202 = vsel %vm2455, %v6201, %v6200
        %v6203 = vrot.slane %v2290, 5
        %v6204 = vsel %vm2458, %v6203, %v6202
        %v6205 = vrot.slane %v2291, 4
        %v6206 = vsel %vm2461, %v6205, %v6204
        %v6207 = vrot.slane %v2292, 3
        %v6208 = vsel %vm2464, %v6207, %v6206
        %v6209 = vrot.slane %v2293, 2
        %v6210 = vrot.slane %v2294, 1
        %v6211 = vsel %vm2446, %v6210, %v6209
        %v6212 = vsel %vm2449, %v2295, %v6211
        %v6213 = vrot.slane %v2296, 7
        %v6214 = vsel %vm2452, %v6213, %v6212
        %v6215 = vrot.slane %v2297, 6
        %v6216 = vsel %vm2455, %v6215, %v6214
        %v6217 = vrot.slane %v2298, 5
        %v6218 = vsel %vm2458, %v6217, %v6216
        %v6219 = vrot.slane %v2299, 4
        %v6220 = vsel %vm2461, %v6219, %v6218
        %v6221 = vrot.slane %v2300, 3
        %v6222 = vsel %vm2464, %v6221, %v6220
        %v6223 = vrot.slane %v2301, 2
        %v6224 = vrot.slane %v2302, 1
        %v6225 = vsel %vm2446, %v6224, %v6223
        %v6226 = vsel %vm2449, %v2303, %v6225
        %v6227 = vrot.slane %v2304, 7
        %v6228 = vsel %vm2452, %v6227, %v6226
        %v6229 = vrot.slane %v2305, 6
        %v6230 = vsel %vm2455, %v6229, %v6228
        %v6231 = vrot.slane %v2306, 5
        %v6232 = vsel %vm2458, %v6231, %v6230
        %v6233 = vrot.slane %v2307, 4
        %v6234 = vsel %vm2461, %v6233, %v6232
        %v6235 = vrot.slane %v2308, 3
        %v6236 = vsel %vm2464, %v6235, %v6234
        %v6237 = vrot.slane %v2309, 2
        %v6238 = vrot.slane %v2310, 1
        %v6239 = vsel %vm2446, %v6238, %v6237
        %v6240 = vsel %vm2449, %v2311, %v6239
        %v6241 = vrot.slane %v2312, 7
        %v6242 = vsel %vm2452, %v6241, %v6240
        %v6243 = vrot.slane %v2313, 6
        %v6244 = vsel %vm2455, %v6243, %v6242
        %v6245 = vrot.slane %v2314, 5
        %v6246 = vsel %vm2458, %v6245, %v6244
        %v6247 = vrot.slane %v2315, 4
        %v6248 = vsel %vm2461, %v6247, %v6246
        %v6249 = vrot.slane %v2316, 3
        %v6250 = vsel %vm2464, %v6249, %v6248
        %6267 = vmatprep.subr.mxu0 0.0
        %6268 = vmatpush1.msra.mxu0 %v6040
        %6269 = vmatprep.subr.mxu0 0.0
        %6270 = vmatpush1.msra.mxu0 %v6054
        %6271 = vmatprep.subr.mxu0 0.0
        %6272 = vmatpush1.msra.mxu0 %v6068
        %6273 = vmatprep.subr.mxu0 0.0
        %6274 = vmatpush1.msra.mxu0 %v6082
        %6275 = vmatprep.subr.mxu0 0.0
        %6276 = vmatpush1.msra.mxu0 %v6096
        %6277 = vmatprep.subr.mxu0 0.0
        %6278 = vmatpush1.msra.mxu0 %v6110
        %6279 = vmatprep.subr.mxu0 0.0
        %6280 = vmatpush1.msra.mxu0 %v6124
        %6281 = vmatprep.subr.mxu0 0.0
        %6282 = vmatpush1.msra.mxu0 %v6138
        %6283 = vmatprep.subr.mxu0 0.0
        %6284 = vmatpush1.msra.mxu0 %v6152
        %6285 = vmatprep.subr.mxu0 0.0
        %6286 = vmatpush1.msra.mxu0 %v6166
        %6287 = vmatprep.subr.mxu0 0.0
        %6288 = vmatpush1.msra.mxu0 %v6180
        %6289 = vmatprep.subr.mxu0 0.0
        %6290 = vmatpush1.msra.mxu0 %v6194
        %6291 = vmatprep.subr.mxu0 0.0
        %6292 = vmatpush1.msra.mxu0 %v6208
        %6293 = vmatprep.subr.mxu0 0.0
        %6294 = vmatpush1.msra.mxu0 %v6222
        %6295 = vmatprep.subr.mxu0 0.0
        %6296 = vmatpush1.msra.mxu0 %v6236
        %6297 = vmatprep.subr.mxu0 0.0
        %6298 = vmatpush1.msra.mxu0 %v6250
        %6299 = vmatprep.subr.mxu0 0.0
        %6300 = vmatpush1.msra.mxu0 0.0
        %6301 = vmatprep.subr.mxu0 0.0
        %6302 = vmatpush1.msra.mxu0 0.0
        %6303 = vmatprep.subr.mxu0 0.0
        %6304 = vmatpush1.msra.mxu0 0.0
        %6305 = vmatprep.subr.mxu0 0.0
        %6306 = vmatpush1.msra.mxu0 0.0
        %6307 = vmatprep.subr.mxu0 0.0
        %6308 = vmatpush1.msra.mxu0 0.0
        %6309 = vmatprep.subr.mxu0 0.0
        %6310 = vmatpush1.msra.mxu0 0.0
        %6311 = vmatprep.subr.mxu0 0.0
        %6312 = vmatpush1.msra.mxu0 0.0
        %6313 = vmatprep.subr.mxu0 0.0
        %6314 = vmatpush1.msra.mxu0 0.0
        %6315 = vmatprep.subr.mxu0 0.0
        %6316 = vmatpush1.msra.mxu0 0.0
        %6317 = vmatprep.subr.mxu0 0.0
        %6318 = vmatpush1.msra.mxu0 0.0
        %6319 = vmatprep.subr.mxu0 0.0
        %6320 = vmatpush1.msra.mxu0 0.0
        %6321 = vmatprep.subr.mxu0 0.0
        %6322 = vmatpush1.msra.mxu0 0.0
        %6323 = vmatprep.subr.mxu0 0.0
        %6324 = vmatpush1.msra.mxu0 0.0
        %6325 = vmatprep.subr.mxu0 0.0
        %6326 = vmatpush1.msra.mxu0 0.0
        %6327 = vmatprep.subr.mxu0 0.0
        %6328 = vmatpush1.msra.mxu0 0.0
        %6329 = vmatprep.subr.mxu0 0.0
        %6330 = vmatpush1.msra.mxu0 0.0
        %6331 = vmatprep.mubr.f32.mxu0 0.0
        %6332 = vmatmul.mubr.f32.gmra.mrb[0].mxu0 %v5995
        %v6333 = vpop.f32.mrb[0].mxu0
        %v6334 = vadd.f32 0.0, %v6333
        %v6335 = vpop.f32.mrb[0].mxu0
        %6336 = vmatprep.mubr.f32.mxu0 0.0
        %6337 = vmatmul.mubr.f32.gmra.mrb[0].mxu0 %v5996
        %v6338 = vpop.f32.mrb[0].mxu0
        %v6339 = vadd.f32 0.0, %v6338
        %v6340 = vpop.f32.mrb[0].mxu0
        %6341 = vmatprep.mubr.f32.mxu0 0.0
        %6342 = vmatmul.mubr.f32.gmra.mrb[0].mxu0 %v5997
        %v6343 = vpop.f32.mrb[0].mxu0
        %v6344 = vadd.f32 0.0, %v6343
        %v6345 = vpop.f32.mrb[0].mxu0
        %6346 = vmatprep.mubr.f32.mxu0 0.0
        %6347 = vmatmul.mubr.f32.gmra.mrb[0].mxu0 %v5998
        %v6348 = vpop.f32.mrb[0].mxu0
        %v6349 = vadd.f32 0.0, %v6348
        %v6350 = vpop.f32.mrb[0].mxu0
        %6351 = vmatprep.mubr.f32.mxu0 0.0
        %6352 = vmatmul.mubr.f32.gmra.mrb[0].mxu0 %v5999
        %v6353 = vpop.f32.mrb[0].mxu0
        %v6354 = vadd.f32 0.0, %v6353
        %v6355 = vpop.f32.mrb[0].mxu0
        %6356 = vmatprep.mubr.f32.mxu0 0.0
        %6357 = vmatmul.mubr.f32.gmra.mrb[0].mxu0 %v6000
        %v6358 = vpop.f32.mrb[0].mxu0
        %v6359 = vadd.f32 0.0, %v6358
        %v6360 = vpop.f32.mrb[0].mxu0
        %6361 = vmatprep.mubr.f32.mxu0 0.0
        %6362 = vmatmul.mubr.f32.gmra.mrb[0].mxu0 %v6001
        %v6363 = vpop.f32.mrb[0].mxu0
        %v6364 = vadd.f32 0.0, %v6363
        %v6365 = vpop.f32.mrb[0].mxu0
        %6366 = vmatprep.mubr.f32.mxu0 0.0
        %6367 = vmatmul.mubr.f32.gmra.mrb[0].mxu0 %v6002
        %v6368 = vpop.f32.mrb[0].mxu0
        %v6369 = vadd.f32 0.0, %v6368
        %v6370 = vpop.f32.mrb[0].mxu0
        %6371 = vmatprep.mubr.f32.mxu0 0.0
        %6372 = vmatmul.mubr.f32.gmra.mrb[0].mxu0 %v6003
        %v6373 = vpop.f32.mrb[0].mxu0
        %v6374 = vadd.f32 0.0, %v6373
        %v6375 = vpop.f32.mrb[0].mxu0
        %6376 = vmatprep.mubr.f32.mxu0 0.0
        %6377 = vmatmul.mubr.f32.gmra.mrb[0].mxu0 %v6004
        %v6378 = vpop.f32.mrb[0].mxu0
        %v6379 = vadd.f32 0.0, %v6378
        %v6380 = vpop.f32.mrb[0].mxu0
        %6381 = vmatprep.mubr.f32.mxu0 0.0
        %6382 = vmatmul.mubr.f32.gmra.mrb[0].mxu0 %v6005
        %v6383 = vpop.f32.mrb[0].mxu0
        %v6384 = vadd.f32 0.0, %v6383
        %v6385 = vpop.f32.mrb[0].mxu0
        %6386 = vmatprep.mubr.f32.mxu0 0.0
        %6387 = vmatmul.mubr.f32.gmra.mrb[0].mxu0 %v6006
        %v6388 = vpop.f32.mrb[0].mxu0
        %v6389 = vadd.f32 0.0, %v6388
        %v6390 = vpop.f32.mrb[0].mxu0
        %6391 = vmatprep.mubr.f32.mxu0 0.0
        %6392 = vmatmul.mubr.f32.gmra.mrb[0].mxu0 %v6007
        %v6393 = vpop.f32.mrb[0].mxu0
        %v6394 = vadd.f32 0.0, %v6393
        %v6395 = vpop.f32.mrb[0].mxu0
        %6396 = vmatprep.mubr.f32.mxu0 0.0
        %6397 = vmatmul.mubr.f32.gmra.mrb[0].mxu0 %v6008
        %v6398 = vpop.f32.mrb[0].mxu0
        %v6399 = vadd.f32 0.0, %v6398
        %v6400 = vpop.f32.mrb[0].mxu0
        %6401 = vmatprep.mubr.f32.mxu0 0.0
        %6402 = vmatmul.mubr.f32.gmra.mrb[0].mxu0 %v6009
        %v6403 = vpop.f32.mrb[0].mxu0
        %v6404 = vadd.f32 0.0, %v6403
        %v6405 = vpop.f32.mrb[0].mxu0
        %6406 = vmatprep.mubr.f32.mxu0 0.0
        %6407 = vmatmul.mubr.f32.gmra.mrb[0].mxu0 %v6010
        %v6408 = vpop.f32.mrb[0].mxu0
        %v6409 = vadd.f32 0.0, %v6408
        %v6410 = vpop.f32.mrb[0].mxu0
        %6411 = vdwg.mxu0
        %6428 = vrot.lane.b32.xlu0 %v6334, 32
        %v6429 = vpop.permute.xlu0 %6428
        %6430 = vrot.lane.b32.xlu0 %v6339, 32
        %v6431 = vpop.permute.xlu0 %6430
        %6432 = vrot.lane.b32.xlu0 %v6344, 32
        %v6433 = vpop.permute.xlu0 %6432
        %6434 = vrot.lane.b32.xlu0 %v6349, 32
        %v6435 = vpop.permute.xlu0 %6434
        %6436 = vrot.lane.b32.xlu0 %v6354, 32
        %v6437 = vpop.permute.xlu0 %6436
        %6438 = vrot.lane.b32.xlu0 %v6359, 32
        %v6439 = vpop.permute.xlu0 %6438
        %6440 = vrot.lane.b32.xlu0 %v6364, 32
        %v6441 = vpop.permute.xlu0 %6440
        %6442 = vrot.lane.b32.xlu0 %v6369, 32
        %v6443 = vpop.permute.xlu0 %6442
        %6444 = vrot.lane.b32.xlu0 %v6374, 32
        %v6445 = vpop.permute.xlu0 %6444
        %6446 = vrot.lane.b32.xlu0 %v6379, 32
        %v6447 = vpop.permute.xlu0 %6446
        %6448 = vrot.lane.b32.xlu0 %v6384, 32
        %v6449 = vpop.permute.xlu0 %6448
        %6450 = vrot.lane.b32.xlu0 %v6389, 32
        %v6451 = vpop.permute.xlu0 %6450
        %6452 = vrot.lane.b32.xlu0 %v6394, 32
        %v6453 = vpop.permute.xlu0 %6452
        %6454 = vrot.lane.b32.xlu0 %v6399, 32
        %v6455 = vpop.permute.xlu0 %6454
        %6456 = vrot.lane.b32.xlu0 %v6404, 32
        %v6457 = vpop.permute.xlu0 %6456
        %6458 = vrot.lane.b32.xlu0 %v6409, 32
        %v6459 = vpop.permute.xlu0 %6458
        %vm6476 = vcmask 392448
        %6477 = vst.msk [vmem:[#allocation2] sm:$0xff] %vm6476, %v6429
        %6478 = vst.msk [vmem:[#allocation2 + $0x8] sm:$0xff] %vm6476, %v6431
        %6479 = vst.msk [vmem:[#allocation2 + $0x10] sm:$0xff] %vm6476, %v6433
        %6480 = vst.msk [vmem:[#allocation2 + $0x18] sm:$0xff] %vm6476, %v6435
        %6481 = vst.msk [vmem:[#allocation2 + $0x20] sm:$0xff] %vm6476, %v6437
        %6482 = vst.msk [vmem:[#allocation2 + $0x28] sm:$0xff] %vm6476, %v6439
        %6483 = vst.msk [vmem:[#allocation2 + $0x30] sm:$0xff] %vm6476, %v6441
        %6484 = vst.msk [vmem:[#allocation2 + $0x38] sm:$0xff] %vm6476, %v6443
        %6485 = vst.msk [vmem:[#allocation2 + $0x40] sm:$0xff] %vm6476, %v6445
        %6486 = vst.msk [vmem:[#allocation2 + $0x48] sm:$0xff] %vm6476, %v6447
        %6487 = vst.msk [vmem:[#allocation2 + $0x50] sm:$0xff] %vm6476, %v6449
        %6488 = vst.msk [vmem:[#allocation2 + $0x58] sm:$0xff] %vm6476, %v6451
        %6489 = vst.msk [vmem:[#allocation2 + $0x60] sm:$0xff] %vm6476, %v6453
        %6490 = vst.msk [vmem:[#allocation2 + $0x68] sm:$0xff] %vm6476, %v6455
        %6491 = vst.msk [vmem:[#allocation2 + $0x70] sm:$0xff] %vm6476, %v6457
        %6492 = vst.msk [vmem:[#allocation2 + $0x78] sm:$0xff] %vm6476, %v6459
        %v6493 = vrot.slane %v1933, 3
        %v6494 = vrot.slane %v1934, 2
        %v6495 = vsel %vm2446, %v6494, %v6493
        %v6496 = vrot.slane %v1935, 1
        %v6497 = vsel %vm2449, %v6496, %v6495
        %v6498 = vsel %vm2452, %v1936, %v6497
        %v6499 = vrot.slane %v1937, 7
        %v6500 = vsel %vm2455, %v6499, %v6498
        %v6501 = vrot.slane %v1938, 6
        %v6502 = vsel %vm2458, %v6501, %v6500
        %v6503 = vrot.slane %v1939, 5
        %v6504 = vsel %vm2461, %v6503, %v6502
        %v6505 = vrot.slane %v1940, 4
        %v6506 = vsel %vm2464, %v6505, %v6504
        %v6507 = vrot.slane %v1941, 3
        %v6508 = vrot.slane %v1942, 2
        %v6509 = vsel %vm2446, %v6508, %v6507
        %v6510 = vrot.slane %v1943, 1
        %v6511 = vsel %vm2449, %v6510, %v6509
        %v6512 = vsel %vm2452, %v1944, %v6511
        %v6513 = vrot.slane %v1945, 7
        %v6514 = vsel %vm2455, %v6513, %v6512
        %v6515 = vrot.slane %v1946, 6
        %v6516 = vsel %vm2458, %v6515, %v6514
        %v6517 = vrot.slane %v1947, 5
        %v6518 = vsel %vm2461, %v6517, %v6516
        %v6519 = vrot.slane %v1948, 4
        %v6520 = vsel %vm2464, %v6519, %v6518
        %v6521 = vrot.slane %v1949, 3
        %v6522 = vrot.slane %v1950, 2
        %v6523 = vsel %vm2446, %v6522, %v6521
        %v6524 = vrot.slane %v1951, 1
        %v6525 = vsel %vm2449, %v6524, %v6523
        %v6526 = vsel %vm2452, %v1952, %v6525
        %v6527 = vrot.slane %v1953, 7
        %v6528 = vsel %vm2455, %v6527, %v6526
        %v6529 = vrot.slane %v1954, 6
        %v6530 = vsel %vm2458, %v6529, %v6528
        %v6531 = vrot.slane %v1955, 5
        %v6532 = vsel %vm2461, %v6531, %v6530
        %v6533 = vrot.slane %v1956, 4
        %v6534 = vsel %vm2464, %v6533, %v6532
        %v6535 = vrot.slane %v1957, 3
        %v6536 = vrot.slane %v1958, 2
        %v6537 = vsel %vm2446, %v6536, %v6535
        %v6538 = vrot.slane %v1959, 1
        %v6539 = vsel %vm2449, %v6538, %v6537
        %v6540 = vsel %vm2452, %v1960, %v6539
        %v6541 = vrot.slane %v1961, 7
        %v6542 = vsel %vm2455, %v6541, %v6540
        %v6543 = vrot.slane %v1962, 6
        %v6544 = vsel %vm2458, %v6543, %v6542
        %v6545 = vrot.slane %v1963, 5
        %v6546 = vsel %vm2461, %v6545, %v6544
        %v6547 = vrot.slane %v1964, 4
        %v6548 = vsel %vm2464, %v6547, %v6546
        %v6549 = vrot.slane %v1965, 3
        %v6550 = vrot.slane %v1966, 2
        %v6551 = vsel %vm2446, %v6550, %v6549
        %v6552 = vrot.slane %v1967, 1
        %v6553 = vsel %vm2449, %v6552, %v6551
        %v6554 = vsel %vm2452, %v1968, %v6553
        %v6555 = vrot.slane %v1969, 7
        %v6556 = vsel %vm2455, %v6555, %v6554
        %v6557 = vrot.slane %v1970, 6
        %v6558 = vsel %vm2458, %v6557, %v6556
        %v6559 = vrot.slane %v1971, 5
        %v6560 = vsel %vm2461, %v6559, %v6558
        %v6561 = vrot.slane %v1972, 4
        %v6562 = vsel %vm2464, %v6561, %v6560
        %v6563 = vrot.slane %v1973, 3
        %v6564 = vrot.slane %v1974, 2
        %v6565 = vsel %vm2446, %v6564, %v6563
        %v6566 = vrot.slane %v1975, 1
        %v6567 = vsel %vm2449, %v6566, %v6565
        %v6568 = vsel %vm2452, %v1976, %v6567
        %v6569 = vrot.slane %v1977, 7
        %v6570 = vsel %vm2455, %v6569, %v6568
        %v6571 = vrot.slane %v1978, 6
        %v6572 = vsel %vm2458, %v6571, %v6570
        %v6573 = vrot.slane %v1979, 5
        %v6574 = vsel %vm2461, %v6573, %v6572
        %v6575 = vrot.slane %v1980, 4
        %v6576 = vsel %vm2464, %v6575, %v6574
        %v6577 = vrot.slane %v1981, 3
        %v6578 = vrot.slane %v1982, 2
        %v6579 = vsel %vm2446, %v6578, %v6577
        %v6580 = vrot.slane %v1983, 1
        %v6581 = vsel %vm2449, %v6580, %v6579
        %v6582 = vsel %vm2452, %v1984, %v6581
        %v6583 = vrot.slane %v1985, 7
        %v6584 = vsel %vm2455, %v6583, %v6582
        %v6585 = vrot.slane %v1986, 6
        %v6586 = vsel %vm2458, %v6585, %v6584
        %v6587 = vrot.slane %v1987, 5
        %v6588 = vsel %vm2461, %v6587, %v6586
        %v6589 = vrot.slane %v1988, 4
        %v6590 = vsel %vm2464, %v6589, %v6588
        %v6591 = vrot.slane %v1989, 3
        %v6592 = vrot.slane %v1990, 2
        %v6593 = vsel %vm2446, %v6592, %v6591
        %v6594 = vrot.slane %v1991, 1
        %v6595 = vsel %vm2449, %v6594, %v6593
        %v6596 = vsel %vm2452, %v1992, %v6595
        %v6597 = vrot.slane %v1993, 7
        %v6598 = vsel %vm2455, %v6597, %v6596
        %v6599 = vrot.slane %v1994, 6
        %v6600 = vsel %vm2458, %v6599, %v6598
        %v6601 = vrot.slane %v1995, 5
        %v6602 = vsel %vm2461, %v6601, %v6600
        %v6603 = vrot.slane %v1996, 4
        %v6604 = vsel %vm2464, %v6603, %v6602
        %v6605 = vrot.slane %v1997, 3
        %v6606 = vrot.slane %v1998, 2
        %v6607 = vsel %vm2446, %v6606, %v6605
        %v6608 = vrot.slane %v1999, 1
        %v6609 = vsel %vm2449, %v6608, %v6607
        %v6610 = vsel %vm2452, %v2000, %v6609
        %v6611 = vrot.slane %v2001, 7
        %v6612 = vsel %vm2455, %v6611, %v6610
        %v6613 = vrot.slane %v2002, 6
        %v6614 = vsel %vm2458, %v6613, %v6612
        %v6615 = vrot.slane %v2003, 5
        %v6616 = vsel %vm2461, %v6615, %v6614
        %v6617 = vrot.slane %v2004, 4
        %v6618 = vsel %vm2464, %v6617, %v6616
        %v6619 = vrot.slane %v2005, 3
        %v6620 = vrot.slane %v2006, 2
        %v6621 = vsel %vm2446, %v6620, %v6619
        %v6622 = vrot.slane %v2007, 1
        %v6623 = vsel %vm2449, %v6622, %v6621
        %v6624 = vsel %vm2452, %v2008, %v6623
        %v6625 = vrot.slane %v2009, 7
        %v6626 = vsel %vm2455, %v6625, %v6624
        %v6627 = vrot.slane %v2010, 6
        %v6628 = vsel %vm2458, %v6627, %v6626
        %v6629 = vrot.slane %v2011, 5
        %v6630 = vsel %vm2461, %v6629, %v6628
        %v6631 = vrot.slane %v2012, 4
        %v6632 = vsel %vm2464, %v6631, %v6630
        %v6633 = vrot.slane %v2013, 3
        %v6634 = vrot.slane %v2014, 2
        %v6635 = vsel %vm2446, %v6634, %v6633
        %v6636 = vrot.slane %v2015, 1
        %v6637 = vsel %vm2449, %v6636, %v6635
        %v6638 = vsel %vm2452, %v2016, %v6637
        %v6639 = vrot.slane %v2017, 7
        %v6640 = vsel %vm2455, %v6639, %v6638
        %v6641 = vrot.slane %v2018, 6
        %v6642 = vsel %vm2458, %v6641, %v6640
        %v6643 = vrot.slane %v2019, 5
        %v6644 = vsel %vm2461, %v6643, %v6642
        %v6645 = vrot.slane %v2020, 4
        %v6646 = vsel %vm2464, %v6645, %v6644
        %v6647 = vrot.slane %v2021, 3
        %v6648 = vrot.slane %v2022, 2
        %v6649 = vsel %vm2446, %v6648, %v6647
        %v6650 = vrot.slane %v2023, 1
        %v6651 = vsel %vm2449, %v6650, %v6649
        %v6652 = vsel %vm2452, %v2024, %v6651
        %v6653 = vrot.slane %v2025, 7
        %v6654 = vsel %vm2455, %v6653, %v6652
        %v6655 = vrot.slane %v2026, 6
        %v6656 = vsel %vm2458, %v6655, %v6654
        %v6657 = vrot.slane %v2027, 5
        %v6658 = vsel %vm2461, %v6657, %v6656
        %v6659 = vrot.slane %v2028, 4
        %v6660 = vsel %vm2464, %v6659, %v6658
        %v6661 = vrot.slane %v2029, 3
        %v6662 = vrot.slane %v2030, 2
        %v6663 = vsel %vm2446, %v6662, %v6661
        %v6664 = vrot.slane %v2031, 1
        %v6665 = vsel %vm2449, %v6664, %v6663
        %v6666 = vsel %vm2452, %v2032, %v6665
        %v6667 = vrot.slane %v2033, 7
        %v6668 = vsel %vm2455, %v6667, %v6666
        %v6669 = vrot.slane %v2034, 6
        %v6670 = vsel %vm2458, %v6669, %v6668
        %v6671 = vrot.slane %v2035, 5
        %v6672 = vsel %vm2461, %v6671, %v6670
        %v6673 = vrot.slane %v2036, 4
        %v6674 = vsel %vm2464, %v6673, %v6672
        %v6675 = vrot.slane %v2037, 3
        %v6676 = vrot.slane %v2038, 2
        %v6677 = vsel %vm2446, %v6676, %v6675
        %v6678 = vrot.slane %v2039, 1
        %v6679 = vsel %vm2449, %v6678, %v6677
        %v6680 = vsel %vm2452, %v2040, %v6679
        %v6681 = vrot.slane %v2041, 7
        %v6682 = vsel %vm2455, %v6681, %v6680
        %v6683 = vrot.slane %v2042, 6
        %v6684 = vsel %vm2458, %v6683, %v6682
        %v6685 = vrot.slane %v2043, 5
        %v6686 = vsel %vm2461, %v6685, %v6684
        %v6687 = vrot.slane %v2044, 4
        %v6688 = vsel %vm2464, %v6687, %v6686
        %v6689 = vrot.slane %v2045, 3
        %v6690 = vrot.slane %v2046, 2
        %v6691 = vsel %vm2446, %v6690, %v6689
        %v6692 = vrot.slane %v2047, 1
        %v6693 = vsel %vm2449, %v6692, %v6691
        %v6694 = vsel %vm2452, %v2048, %v6693
        %v6695 = vrot.slane %v2049, 7
        %v6696 = vsel %vm2455, %v6695, %v6694
        %v6697 = vrot.slane %v2050, 6
        %v6698 = vsel %vm2458, %v6697, %v6696
        %v6699 = vrot.slane %v2051, 5
        %v6700 = vsel %vm2461, %v6699, %v6698
        %v6701 = vrot.slane %v2052, 4
        %v6702 = vsel %vm2464, %v6701, %v6700
        %v6703 = vrot.slane %v2053, 3
        %v6704 = vrot.slane %v2054, 2
        %v6705 = vsel %vm2446, %v6704, %v6703
        %v6706 = vrot.slane %v2055, 1
        %v6707 = vsel %vm2449, %v6706, %v6705
        %v6708 = vsel %vm2452, %v2056, %v6707
        %v6709 = vrot.slane %v2057, 7
        %v6710 = vsel %vm2455, %v6709, %v6708
        %v6711 = vrot.slane %v2058, 6
        %v6712 = vsel %vm2458, %v6711, %v6710
        %v6713 = vrot.slane %v2059, 5
        %v6714 = vsel %vm2461, %v6713, %v6712
        %v6715 = vrot.slane %v2060, 4
        %v6716 = vsel %vm2464, %v6715, %v6714
        %v6717 = vrot.slane %v2061, 3
        %v6718 = vrot.slane %v2062, 2
        %v6719 = vsel %vm2446, %v6718, %v6717
        %v6720 = vrot.slane %v2063, 1
        %v6721 = vsel %vm2449, %v6720, %v6719
        %v6722 = vsel %vm2452, %v2064, %v6721
        %v6723 = vrot.slane %v2065, 7
        %v6724 = vsel %vm2455, %v6723, %v6722
        %v6725 = vrot.slane %v2066, 6
        %v6726 = vsel %vm2458, %v6725, %v6724
        %v6727 = vrot.slane %v2067, 5
        %v6728 = vsel %vm2461, %v6727, %v6726
        %v6729 = vrot.slane %v2068, 4
        %v6730 = vsel %vm2464, %v6729, %v6728
        %v6731 = vrot.slane %v2069, 3
        %v6732 = vrot.slane %v2070, 2
        %v6733 = vsel %vm2446, %v6732, %v6731
        %v6734 = vrot.slane %v2071, 1
        %v6735 = vsel %vm2449, %v6734, %v6733
        %v6736 = vsel %vm2452, %v2072, %v6735
        %v6737 = vrot.slane %v2073, 7
        %v6738 = vsel %vm2455, %v6737, %v6736
        %v6739 = vrot.slane %v2074, 6
        %v6740 = vsel %vm2458, %v6739, %v6738
        %v6741 = vrot.slane %v2075, 5
        %v6742 = vsel %vm2461, %v6741, %v6740
        %v6743 = vrot.slane %v2076, 4
        %v6744 = vsel %vm2464, %v6743, %v6742
        %v6745 = vrot.slane %v2077, 3
        %v6746 = vrot.slane %v2078, 2
        %v6747 = vsel %vm2446, %v6746, %v6745
        %v6748 = vrot.slane %v2079, 1
        %v6749 = vsel %vm2449, %v6748, %v6747
        %v6750 = vsel %vm2452, %v2080, %v6749
        %v6751 = vrot.slane %v2081, 7
        %v6752 = vsel %vm2455, %v6751, %v6750
        %v6753 = vrot.slane %v2082, 6
        %v6754 = vsel %vm2458, %v6753, %v6752
        %v6755 = vrot.slane %v2083, 5
        %v6756 = vsel %vm2461, %v6755, %v6754
        %v6757 = vrot.slane %v2084, 4
        %v6758 = vsel %vm2464, %v6757, %v6756
        %v6759 = vrot.slane %v2085, 3
        %v6760 = vrot.slane %v2086, 2
        %v6761 = vsel %vm2446, %v6760, %v6759
        %v6762 = vrot.slane %v2087, 1
        %v6763 = vsel %vm2449, %v6762, %v6761
        %v6764 = vsel %vm2452, %v2088, %v6763
        %v6765 = vrot.slane %v2089, 7
        %v6766 = vsel %vm2455, %v6765, %v6764
        %v6767 = vrot.slane %v2090, 6
        %v6768 = vsel %vm2458, %v6767, %v6766
        %v6769 = vrot.slane %v2091, 5
        %v6770 = vsel %vm2461, %v6769, %v6768
        %v6771 = vrot.slane %v2092, 4
        %v6772 = vsel %vm2464, %v6771, %v6770
        %v6773 = vrot.slane %v2093, 3
        %v6774 = vrot.slane %v2094, 2
        %v6775 = vsel %vm2446, %v6774, %v6773
        %v6776 = vrot.slane %v2095, 1
        %v6777 = vsel %vm2449, %v6776, %v6775
        %v6778 = vsel %vm2452, %v2096, %v6777
        %v6779 = vrot.slane %v2097, 7
        %v6780 = vsel %vm2455, %v6779, %v6778
        %v6781 = vrot.slane %v2098, 6
        %v6782 = vsel %vm2458, %v6781, %v6780
        %v6783 = vrot.slane %v2099, 5
        %v6784 = vsel %vm2461, %v6783, %v6782
        %v6785 = vrot.slane %v2100, 4
        %v6786 = vsel %vm2464, %v6785, %v6784
        %v6787 = vrot.slane %v2101, 3
        %v6788 = vrot.slane %v2102, 2
        %v6789 = vsel %vm2446, %v6788, %v6787
        %v6790 = vrot.slane %v2103, 1
        %v6791 = vsel %vm2449, %v6790, %v6789
        %v6792 = vsel %vm2452, %v2104, %v6791
        %v6793 = vrot.slane %v2105, 7
        %v6794 = vsel %vm2455, %v6793, %v6792
        %v6795 = vrot.slane %v2106, 6
        %v6796 = vsel %vm2458, %v6795, %v6794
        %v6797 = vrot.slane %v2107, 5
        %v6798 = vsel %vm2461, %v6797, %v6796
        %v6799 = vrot.slane %v2108, 4
        %v6800 = vsel %vm2464, %v6799, %v6798
        %v6801 = vrot.slane %v2109, 3
        %v6802 = vrot.slane %v2110, 2
        %v6803 = vsel %vm2446, %v6802, %v6801
        %v6804 = vrot.slane %v2111, 1
        %v6805 = vsel %vm2449, %v6804, %v6803
        %v6806 = vsel %vm2452, %v2112, %v6805
        %v6807 = vrot.slane %v2113, 7
        %v6808 = vsel %vm2455, %v6807, %v6806
        %v6809 = vrot.slane %v2114, 6
        %v6810 = vsel %vm2458, %v6809, %v6808
        %v6811 = vrot.slane %v2115, 5
        %v6812 = vsel %vm2461, %v6811, %v6810
        %v6813 = vrot.slane %v2116, 4
        %v6814 = vsel %vm2464, %v6813, %v6812
        %v6815 = vrot.slane %v2117, 3
        %v6816 = vrot.slane %v2118, 2
        %v6817 = vsel %vm2446, %v6816, %v6815
        %v6818 = vrot.slane %v2119, 1
        %v6819 = vsel %vm2449, %v6818, %v6817
        %v6820 = vsel %vm2452, %v2120, %v6819
        %v6821 = vrot.slane %v2121, 7
        %v6822 = vsel %vm2455, %v6821, %v6820
        %v6823 = vrot.slane %v2122, 6
        %v6824 = vsel %vm2458, %v6823, %v6822
        %v6825 = vrot.slane %v2123, 5
        %v6826 = vsel %vm2461, %v6825, %v6824
        %v6827 = vrot.slane %v2124, 4
        %v6828 = vsel %vm2464, %v6827, %v6826
        %v6829 = vrot.slane %v2125, 3
        %v6830 = vrot.slane %v2126, 2
        %v6831 = vsel %vm2446, %v6830, %v6829
        %v6832 = vrot.slane %v2127, 1
        %v6833 = vsel %vm2449, %v6832, %v6831
        %v6834 = vsel %vm2452, %v2128, %v6833
        %v6835 = vrot.slane %v2129, 7
        %v6836 = vsel %vm2455, %v6835, %v6834
        %v6837 = vrot.slane %v2130, 6
        %v6838 = vsel %vm2458, %v6837, %v6836
        %v6839 = vrot.slane %v2131, 5
        %v6840 = vsel %vm2461, %v6839, %v6838
        %v6841 = vrot.slane %v2132, 4
        %v6842 = vsel %vm2464, %v6841, %v6840
        %v6843 = vrot.slane %v2133, 3
        %v6844 = vrot.slane %v2134, 2
        %v6845 = vsel %vm2446, %v6844, %v6843
        %v6846 = vrot.slane %v2135, 1
        %v6847 = vsel %vm2449, %v6846, %v6845
        %v6848 = vsel %vm2452, %v2136, %v6847
        %v6849 = vrot.slane %v2137, 7
        %v6850 = vsel %vm2455, %v6849, %v6848
        %v6851 = vrot.slane %v2138, 6
        %v6852 = vsel %vm2458, %v6851, %v6850
        %v6853 = vrot.slane %v2139, 5
        %v6854 = vsel %vm2461, %v6853, %v6852
        %v6855 = vrot.slane %v2140, 4
        %v6856 = vsel %vm2464, %v6855, %v6854
        %v6857 = vrot.slane %v2141, 3
        %v6858 = vrot.slane %v2142, 2
        %v6859 = vsel %vm2446, %v6858, %v6857
        %v6860 = vrot.slane %v2143, 1
        %v6861 = vsel %vm2449, %v6860, %v6859
        %v6862 = vsel %vm2452, %v2144, %v6861
        %v6863 = vrot.slane %v2145, 7
        %v6864 = vsel %vm2455, %v6863, %v6862
        %v6865 = vrot.slane %v2146, 6
        %v6866 = vsel %vm2458, %v6865, %v6864
        %v6867 = vrot.slane %v2147, 5
        %v6868 = vsel %vm2461, %v6867, %v6866
        %v6869 = vrot.slane %v2148, 4
        %v6870 = vsel %vm2464, %v6869, %v6868
        %v6871 = vrot.slane %v2149, 3
        %v6872 = vrot.slane %v2150, 2
        %v6873 = vsel %vm2446, %v6872, %v6871
        %v6874 = vrot.slane %v2151, 1
        %v6875 = vsel %vm2449, %v6874, %v6873
        %v6876 = vsel %vm2452, %v2152, %v6875
        %v6877 = vrot.slane %v2153, 7
        %v6878 = vsel %vm2455, %v6877, %v6876
        %v6879 = vrot.slane %v2154, 6
        %v6880 = vsel %vm2458, %v6879, %v6878
        %v6881 = vrot.slane %v2155, 5
        %v6882 = vsel %vm2461, %v6881, %v6880
        %v6883 = vrot.slane %v2156, 4
        %v6884 = vsel %vm2464, %v6883, %v6882
        %v6885 = vrot.slane %v2157, 3
        %v6886 = vrot.slane %v2158, 2
        %v6887 = vsel %vm2446, %v6886, %v6885
        %v6888 = vrot.slane %v2159, 1
        %v6889 = vsel %vm2449, %v6888, %v6887
        %v6890 = vsel %vm2452, %v2160, %v6889
        %v6891 = vrot.slane %v2161, 7
        %v6892 = vsel %vm2455, %v6891, %v6890
        %v6893 = vrot.slane %v2162, 6
        %v6894 = vsel %vm2458, %v6893, %v6892
        %v6895 = vrot.slane %v2163, 5
        %v6896 = vsel %vm2461, %v6895, %v6894
        %v6897 = vrot.slane %v2164, 4
        %v6898 = vsel %vm2464, %v6897, %v6896
        %v6899 = vrot.slane %v2165, 3
        %v6900 = vrot.slane %v2166, 2
        %v6901 = vsel %vm2446, %v6900, %v6899
        %v6902 = vrot.slane %v2167, 1
        %v6903 = vsel %vm2449, %v6902, %v6901
        %v6904 = vsel %vm2452, %v2168, %v6903
        %v6905 = vrot.slane %v2169, 7
        %v6906 = vsel %vm2455, %v6905, %v6904
        %v6907 = vrot.slane %v2170, 6
        %v6908 = vsel %vm2458, %v6907, %v6906
        %v6909 = vrot.slane %v2171, 5
        %v6910 = vsel %vm2461, %v6909, %v6908
        %v6911 = vrot.slane %v2172, 4
        %v6912 = vsel %vm2464, %v6911, %v6910
        %v6913 = vrot.slane %v2173, 3
        %v6914 = vrot.slane %v2174, 2
        %v6915 = vsel %vm2446, %v6914, %v6913
        %v6916 = vrot.slane %v2175, 1
        %v6917 = vsel %vm2449, %v6916, %v6915
        %v6918 = vsel %vm2452, %v2176, %v6917
        %v6919 = vrot.slane %v2177, 7
        %v6920 = vsel %vm2455, %v6919, %v6918
        %v6921 = vrot.slane %v2178, 6
        %v6922 = vsel %vm2458, %v6921, %v6920
        %v6923 = vrot.slane %v2179, 5
        %v6924 = vsel %vm2461, %v6923, %v6922
        %v6925 = vrot.slane %v2180, 4
        %v6926 = vsel %vm2464, %v6925, %v6924
        %v6927 = vrot.slane %v2181, 3
        %v6928 = vrot.slane %v2182, 2
        %v6929 = vsel %vm2446, %v6928, %v6927
        %v6930 = vrot.slane %v2183, 1
        %v6931 = vsel %vm2449, %v6930, %v6929
        %v6932 = vsel %vm2452, %v2184, %v6931
        %v6933 = vrot.slane %v2185, 7
        %v6934 = vsel %vm2455, %v6933, %v6932
        %v6935 = vrot.slane %v2186, 6
        %v6936 = vsel %vm2458, %v6935, %v6934
        %v6937 = vrot.slane %v2187, 5
        %v6938 = vsel %vm2461, %v6937, %v6936
        %v6939 = vrot.slane %v2188, 4
        %v6940 = vsel %vm2464, %v6939, %v6938
        %v6941 = vsel %vm3028, %v6506, 0
        %v6943 = vsel %vm3028, %v6520, 0
        %v6945 = vsel %vm3028, %v6534, 0
        %v6947 = vsel %vm3028, %v6548, 0
        %v6949 = vsel %vm3028, %v6562, 0
        %v6951 = vsel %vm3028, %v6576, 0
        %v6953 = vsel %vm3028, %v6590, 0
        %v6955 = vsel %vm3028, %v6604, 0
        %v6957 = vsel %vm3028, %v6618, 0
        %v6959 = vsel %vm3028, %v6632, 0
        %v6961 = vsel %vm3028, %v6646, 0
        %v6963 = vsel %vm3028, %v6660, 0
        %v6965 = vsel %vm3028, %v6674, 0
        %v6967 = vsel %vm3028, %v6688, 0
        %v6969 = vsel %vm3028, %v6702, 0
        %v6971 = vsel %vm3028, %v6716, 0
        %v6973 = vsel %vm3028, %v6730, 0
        %v6975 = vsel %vm3028, %v6744, 0
        %v6977 = vsel %vm3028, %v6758, 0
        %v6979 = vsel %vm3028, %v6772, 0
        %v6981 = vsel %vm3028, %v6786, 0
        %v6983 = vsel %vm3028, %v6800, 0
        %v6985 = vsel %vm3028, %v6814, 0
        %v6987 = vsel %vm3028, %v6828, 0
        %v6989 = vsel %vm3028, %v6842, 0
        %v6991 = vsel %vm3028, %v6856, 0
        %v6993 = vsel %vm3028, %v6870, 0
        %v6995 = vsel %vm3028, %v6884, 0
        %v6997 = vsel %vm3028, %v6898, 0
        %v6999 = vsel %vm3028, %v6912, 0
        %v7001 = vsel %vm3028, %v6926, 0
        %v7003 = vsel %vm3028, %v6940, 0
        %7005 = vmatprep.subr.mxu0 0.0
        %7006 = vmatpush1.xpose.msra.mxu0 %v6973
        %7007 = vmatprep.subr.mxu0 0.0
        %7008 = vmatpush1.xpose.msra.mxu0 %v6975
        %7009 = vmatprep.subr.mxu0 0.0
        %7010 = vmatpush1.xpose.msra.mxu0 %v6977
        %7011 = vmatprep.subr.mxu0 0.0
        %7012 = vmatpush1.xpose.msra.mxu0 %v6979
        %7013 = vmatprep.subr.mxu0 0.0
        %7014 = vmatpush1.xpose.msra.mxu0 %v6981
        %7015 = vmatprep.subr.mxu0 0.0
        %7016 = vmatpush1.xpose.msra.mxu0 %v6983
        %7017 = vmatprep.subr.mxu0 0.0
        %7018 = vmatpush1.xpose.msra.mxu0 %v6985
        %7019 = vmatprep.subr.mxu0 0.0
        %7020 = vmatpush1.xpose.msra.mxu0 %v6987
        %7021 = vmatprep.subr.mxu0 0.0
        %7022 = vmatpush1.xpose.msra.mxu0 %v6989
        %7023 = vmatprep.subr.mxu0 0.0
        %7024 = vmatpush1.xpose.msra.mxu0 %v6991
        %7025 = vmatprep.subr.mxu0 0.0
        %7026 = vmatpush1.xpose.msra.mxu0 %v6993
        %7027 = vmatprep.subr.mxu0 0.0
        %7028 = vmatpush1.xpose.msra.mxu0 %v6995
        %7029 = vmatprep.subr.mxu0 0.0
        %7030 = vmatpush1.xpose.msra.mxu0 %v6997
        %7031 = vmatprep.subr.mxu0 0.0
        %7032 = vmatpush1.xpose.msra.mxu0 %v6999
        %7033 = vmatprep.subr.mxu0 0.0
        %7034 = vmatpush1.xpose.msra.mxu0 %v7001
        %7035 = vmatprep.subr.mxu0 0.0
        %7036 = vmatpush1.xpose.msra.mxu0 %v7003
        %7037 = vmatprep.subr.mxu0 0.0
        %7038 = vmatpush1.xpose.msra.mxu0 0.0
        %7039 = vmatprep.subr.mxu0 0.0
        %7040 = vmatpush1.xpose.msra.mxu0 0.0
        %7041 = vmatprep.subr.mxu0 0.0
        %7042 = vmatpush1.xpose.msra.mxu0 0.0
        %7043 = vmatprep.subr.mxu0 0.0
        %7044 = vmatpush1.xpose.msra.mxu0 0.0
        %7045 = vmatprep.subr.mxu0 0.0
        %7046 = vmatpush1.xpose.msra.mxu0 0.0
        %7047 = vmatprep.subr.mxu0 0.0
        %7048 = vmatpush1.xpose.msra.mxu0 0.0
        %7049 = vmatprep.subr.mxu0 0.0
        %7050 = vmatpush1.xpose.msra.mxu0 0.0
        %7051 = vmatprep.subr.mxu0 0.0
        %7052 = vmatpush1.xpose.msra.mxu0 0.0
        %7053 = vmatprep.subr.mxu0 0.0
        %7054 = vmatpush1.xpose.msra.mxu0 0.0
        %7055 = vmatprep.subr.mxu0 0.0
        %7056 = vmatpush1.xpose.msra.mxu0 0.0
        %7057 = vmatprep.subr.mxu0 0.0
        %7058 = vmatpush1.xpose.msra.mxu0 0.0
        %7059 = vmatprep.subr.mxu0 0.0
        %7060 = vmatpush1.xpose.msra.mxu0 0.0
        %7061 = vmatprep.subr.mxu0 0.0
        %7062 = vmatpush1.xpose.msra.mxu0 0.0
        %7063 = vmatprep.subr.mxu0 0.0
        %7064 = vmatpush1.xpose.msra.mxu0 0.0
        %7065 = vmatprep.subr.mxu0 0.0
        %7066 = vmatpush1.xpose.msra.mxu0 0.0
        %7067 = vmatprep.subr.mxu0 0.0
        %7068 = vmatpush1.xpose.msra.mxu0 0.0
        %7069 = vmatprep.mubr.f32.mxu0 0.0
        %7070 = vmatmul.mubr.f32.gmra.mrb[0].mxu0 %v6941
        %v7071 = vpop.f32.mrb[0].mxu0
        %v7072 = vadd.f32 0.0, %v7071
        %v7073 = vpop.f32.mrb[0].mxu0
        %7074 = vmatprep.mubr.f32.mxu0 0.0
        %7075 = vmatmul.mubr.f32.gmra.mrb[0].mxu0 %v6943
        %v7076 = vpop.f32.mrb[0].mxu0
        %v7077 = vadd.f32 0.0, %v7076
        %v7078 = vpop.f32.mrb[0].mxu0
        %7079 = vmatprep.mubr.f32.mxu0 0.0
        %7080 = vmatmul.mubr.f32.gmra.mrb[0].mxu0 %v6945
        %v7081 = vpop.f32.mrb[0].mxu0
        %v7082 = vadd.f32 0.0, %v7081
        %v7083 = vpop.f32.mrb[0].mxu0
        %7084 = vmatprep.mubr.f32.mxu0 0.0
        %7085 = vmatmul.mubr.f32.gmra.mrb[0].mxu0 %v6947
        %v7086 = vpop.f32.mrb[0].mxu0
        %v7087 = vadd.f32 0.0, %v7086
        %v7088 = vpop.f32.mrb[0].mxu0
        %7089 = vmatprep.mubr.f32.mxu0 0.0
        %7090 = vmatmul.mubr.f32.gmra.mrb[0].mxu0 %v6949
        %v7091 = vpop.f32.mrb[0].mxu0
        %v7092 = vadd.f32 0.0, %v7091
        %v7093 = vpop.f32.mrb[0].mxu0
        %7094 = vmatprep.mubr.f32.mxu0 0.0
        %7095 = vmatmul.mubr.f32.gmra.mrb[0].mxu0 %v6951
        %v7096 = vpop.f32.mrb[0].mxu0
        %v7097 = vadd.f32 0.0, %v7096
        %v7098 = vpop.f32.mrb[0].mxu0
        %7099 = vmatprep.mubr.f32.mxu0 0.0
        %7100 = vmatmul.mubr.f32.gmra.mrb[0].mxu0 %v6953
        %v7101 = vpop.f32.mrb[0].mxu0
        %v7102 = vadd.f32 0.0, %v7101
        %v7103 = vpop.f32.mrb[0].mxu0
        %7104 = vmatprep.mubr.f32.mxu0 0.0
        %7105 = vmatmul.mubr.f32.gmra.mrb[0].mxu0 %v6955
        %v7106 = vpop.f32.mrb[0].mxu0
        %v7107 = vadd.f32 0.0, %v7106
        %v7108 = vpop.f32.mrb[0].mxu0
        %7109 = vmatprep.mubr.f32.mxu0 0.0
        %7110 = vmatmul.mubr.f32.gmra.mrb[0].mxu0 %v6957
        %v7111 = vpop.f32.mrb[0].mxu0
        %v7112 = vadd.f32 0.0, %v7111
        %v7113 = vpop.f32.mrb[0].mxu0
        %7114 = vmatprep.mubr.f32.mxu0 0.0
        %7115 = vmatmul.mubr.f32.gmra.mrb[0].mxu0 %v6959
        %v7116 = vpop.f32.mrb[0].mxu0
        %v7117 = vadd.f32 0.0, %v7116
        %v7118 = vpop.f32.mrb[0].mxu0
        %7119 = vmatprep.mubr.f32.mxu0 0.0
        %7120 = vmatmul.mubr.f32.gmra.mrb[0].mxu0 %v6961
        %v7121 = vpop.f32.mrb[0].mxu0
        %v7122 = vadd.f32 0.0, %v7121
        %v7123 = vpop.f32.mrb[0].mxu0
        %7124 = vmatprep.mubr.f32.mxu0 0.0
        %7125 = vmatmul.mubr.f32.gmra.mrb[0].mxu0 %v6963
        %v7126 = vpop.f32.mrb[0].mxu0
        %v7127 = vadd.f32 0.0, %v7126
        %v7128 = vpop.f32.mrb[0].mxu0
        %7129 = vmatprep.mubr.f32.mxu0 0.0
        %7130 = vmatmul.mubr.f32.gmra.mrb[0].mxu0 %v6965
        %v7131 = vpop.f32.mrb[0].mxu0
        %v7132 = vadd.f32 0.0, %v7131
        %v7133 = vpop.f32.mrb[0].mxu0
        %7134 = vmatprep.mubr.f32.mxu0 0.0
        %7135 = vmatmul.mubr.f32.gmra.mrb[0].mxu0 %v6967
        %v7136 = vpop.f32.mrb[0].mxu0
        %v7137 = vadd.f32 0.0, %v7136
        %v7138 = vpop.f32.mrb[0].mxu0
        %7139 = vmatprep.mubr.f32.mxu0 0.0
        %7140 = vmatmul.mubr.f32.gmra.mrb[0].mxu0 %v6969
        %v7141 = vpop.f32.mrb[0].mxu0
        %v7142 = vadd.f32 0.0, %v7141
        %v7143 = vpop.f32.mrb[0].mxu0
        %7144 = vmatprep.mubr.f32.mxu0 0.0
        %7145 = vmatmul.mubr.f32.gmra.mrb[0].mxu0 %v6971
        %v7146 = vpop.f32.mrb[0].mxu0
        %v7147 = vadd.f32 0.0, %v7146
        %v7148 = vpop.f32.mrb[0].mxu0
        %7149 = vdwg.mxu0
        %7150 = vmax.xlane.f32.xlu0 %v7072
        %v7151 = vpop.xlane.xlu0 %7150
        %7152 = vmax.xlane.f32.xlu0 %v7077
        %v7153 = vpop.xlane.xlu0 %7152
        %7154 = vmax.xlane.f32.xlu0 %v7082
        %v7155 = vpop.xlane.xlu0 %7154
        %7156 = vmax.xlane.f32.xlu0 %v7087
        %v7157 = vpop.xlane.xlu0 %7156
        %7158 = vmax.xlane.f32.xlu0 %v7092
        %v7159 = vpop.xlane.xlu0 %7158
        %7160 = vmax.xlane.f32.xlu0 %v7097
        %v7161 = vpop.xlane.xlu0 %7160
        %7162 = vmax.xlane.f32.xlu0 %v7102
        %v7163 = vpop.xlane.xlu0 %7162
        %7164 = vmax.xlane.f32.xlu0 %v7107
        %v7165 = vpop.xlane.xlu0 %7164
        %7166 = vmax.xlane.f32.xlu0 %v7112
        %v7167 = vpop.xlane.xlu0 %7166
        %7168 = vmax.xlane.f32.xlu0 %v7117
        %v7169 = vpop.xlane.xlu0 %7168
        %7170 = vmax.xlane.f32.xlu0 %v7122
        %v7171 = vpop.xlane.xlu0 %7170
        %7172 = vmax.xlane.f32.xlu0 %v7127
        %v7173 = vpop.xlane.xlu0 %7172
        %7174 = vmax.xlane.f32.xlu0 %v7132
        %v7175 = vpop.xlane.xlu0 %7174
        %7176 = vmax.xlane.f32.xlu0 %v7137
        %v7177 = vpop.xlane.xlu0 %7176
        %7178 = vmax.xlane.f32.xlu0 %v7142
        %v7179 = vpop.xlane.xlu0 %7178
        %7180 = vmax.xlane.f32.xlu0 %v7147
        %v7181 = vpop.xlane.xlu0 %7180
        %v7182 = vsub.f32 %v7072, %v7151
        %v7183 = vsub.f32 %v7077, %v7153
        %v7184 = vsub.f32 %v7082, %v7155
        %v7185 = vsub.f32 %v7087, %v7157
        %v7186 = vsub.f32 %v7092, %v7159
        %v7187 = vsub.f32 %v7097, %v7161
        %v7188 = vsub.f32 %v7102, %v7163
        %v7189 = vsub.f32 %v7107, %v7165
        %v7190 = vsub.f32 %v7112, %v7167
        %v7191 = vsub.f32 %v7117, %v7169
        %v7192 = vsub.f32 %v7122, %v7171
        %v7193 = vsub.f32 %v7127, %v7173
        %v7194 = vsub.f32 %v7132, %v7175
        %v7195 = vsub.f32 %v7137, %v7177
        %v7196 = vsub.f32 %v7142, %v7179
        %v7197 = vsub.f32 %v7147, %v7181
        %v7198 = vmul.f32 %v7182, 1.442695
        %v7199 = vpow.pop %v7198
        %v7200 = vmul.f32 %v7183, 1.442695
        %v7201 = vpow.pop %v7200
        %v7202 = vmul.f32 %v7184, 1.442695
        %v7203 = vpow.pop %v7202
        %v7204 = vmul.f32 %v7185, 1.442695
        %v7205 = vpow.pop %v7204
        %v7206 = vmul.f32 %v7186, 1.442695
        %v7207 = vpow.pop %v7206
        %v7208 = vmul.f32 %v7187, 1.442695
        %v7209 = vpow.pop %v7208
        %v7210 = vmul.f32 %v7188, 1.442695
        %v7211 = vpow.pop %v7210
        %v7212 = vmul.f32 %v7189, 1.442695
        %v7213 = vpow.pop %v7212
        %v7214 = vmul.f32 %v7190, 1.442695
        %v7215 = vpow.pop %v7214
        %v7216 = vmul.f32 %v7191, 1.442695
        %v7217 = vpow.pop %v7216
        %v7218 = vmul.f32 %v7192, 1.442695
        %v7219 = vpow.pop %v7218
        %v7220 = vmul.f32 %v7193, 1.442695
        %v7221 = vpow.pop %v7220
        %v7222 = vmul.f32 %v7194, 1.442695
        %v7223 = vpow.pop %v7222
        %v7224 = vmul.f32 %v7195, 1.442695
        %v7225 = vpow.pop %v7224
        %v7226 = vmul.f32 %v7196, 1.442695
        %v7227 = vpow.pop %v7226
        %v7228 = vmul.f32 %v7197, 1.442695
        %v7229 = vpow.pop %v7228
        %7230 = vadd.xlane.f32.xlu0 %v7199
        %v7231 = vpop.xlane.xlu0 %7230
        %7232 = vadd.xlane.f32.xlu0 %v7201
        %v7233 = vpop.xlane.xlu0 %7232
        %7234 = vadd.xlane.f32.xlu0 %v7203
        %v7235 = vpop.xlane.xlu0 %7234
        %7236 = vadd.xlane.f32.xlu0 %v7205
        %v7237 = vpop.xlane.xlu0 %7236
        %7238 = vadd.xlane.f32.xlu0 %v7207
        %v7239 = vpop.xlane.xlu0 %7238
        %7240 = vadd.xlane.f32.xlu0 %v7209
        %v7241 = vpop.xlane.xlu0 %7240
        %7242 = vadd.xlane.f32.xlu0 %v7211
        %v7243 = vpop.xlane.xlu0 %7242
        %7244 = vadd.xlane.f32.xlu0 %v7213
        %v7245 = vpop.xlane.xlu0 %7244
        %7246 = vadd.xlane.f32.xlu0 %v7215
        %v7247 = vpop.xlane.xlu0 %7246
        %7248 = vadd.xlane.f32.xlu0 %v7217
        %v7249 = vpop.xlane.xlu0 %7248
        %7250 = vadd.xlane.f32.xlu0 %v7219
        %v7251 = vpop.xlane.xlu0 %7250
        %7252 = vadd.xlane.f32.xlu0 %v7221
        %v7253 = vpop.xlane.xlu0 %7252
        %7254 = vadd.xlane.f32.xlu0 %v7223
        %v7255 = vpop.xlane.xlu0 %7254
        %7256 = vadd.xlane.f32.xlu0 %v7225
        %v7257 = vpop.xlane.xlu0 %7256
        %7258 = vadd.xlane.f32.xlu0 %v7227
        %v7259 = vpop.xlane.xlu0 %7258
        %7260 = vadd.xlane.f32.xlu0 %v7229
        %v7261 = vpop.xlane.xlu0 %7260
        %v7262 = vrcp.pop %v7231
        %v7263 = vrcp.pop %v7233
        %v7264 = vrcp.pop %v7235
        %v7265 = vrcp.pop %v7237
        %v7266 = vrcp.pop %v7239
        %v7267 = vrcp.pop %v7241
        %v7268 = vrcp.pop %v7243
        %v7269 = vrcp.pop %v7245
        %v7270 = vrcp.pop %v7247
        %v7271 = vrcp.pop %v7249
        %v7272 = vrcp.pop %v7251
        %v7273 = vrcp.pop %v7253
        %v7274 = vrcp.pop %v7255
        %v7275 = vrcp.pop %v7257
        %v7276 = vrcp.pop %v7259
        %v7277 = vrcp.pop %v7261
        %v7278 = vmul.f32 %v7199, %v7262
        %v7279 = vmul.f32 %v7201, %v7263
        %v7280 = vmul.f32 %v7203, %v7264
        %v7281 = vmul.f32 %v7205, %v7265
        %v7282 = vmul.f32 %v7207, %v7266
        %v7283 = vmul.f32 %v7209, %v7267
        %v7284 = vmul.f32 %v7211, %v7268
        %v7285 = vmul.f32 %v7213, %v7269
        %v7286 = vmul.f32 %v7215, %v7270
        %v7287 = vmul.f32 %v7217, %v7271
        %v7288 = vmul.f32 %v7219, %v7272
        %v7289 = vmul.f32 %v7221, %v7273
        %v7290 = vmul.f32 %v7223, %v7274
        %v7291 = vmul.f32 %v7225, %v7275
        %v7292 = vmul.f32 %v7227, %v7276
        %v7293 = vmul.f32 %v7229, %v7277
        %v7294 = vadd.f32 %v6011, %v7278
        %v7295 = vadd.f32 %v6012, %v7279
        %v7296 = vadd.f32 %v6013, %v7280
        %v7297 = vadd.f32 %v6014, %v7281
        %v7298 = vadd.f32 %v6015, %v7282
        %v7299 = vadd.f32 %v6016, %v7283
        %v7300 = vadd.f32 %v6017, %v7284
        %v7301 = vadd.f32 %v6018, %v7285
        %v7302 = vadd.f32 %v6019, %v7286
        %v7303 = vadd.f32 %v6020, %v7287
        %v7304 = vadd.f32 %v6021, %v7288
        %v7305 = vadd.f32 %v6022, %v7289
        %v7306 = vadd.f32 %v6023, %v7290
        %v7307 = vadd.f32 %v6024, %v7291
        %v7308 = vadd.f32 %v6025, %v7292
        %v7309 = vadd.f32 %v6026, %v7293
        %v7310 = vrot.slane %v2189, 3
        %v7311 = vrot.slane %v2190, 2
        %v7312 = vsel %vm2446, %v7311, %v7310
        %v7313 = vrot.slane %v2191, 1
        %v7314 = vsel %vm2449, %v7313, %v7312
        %v7315 = vsel %vm2452, %v2192, %v7314
        %v7316 = vrot.slane %v2193, 7
        %v7317 = vsel %vm2455, %v7316, %v7315
        %v7318 = vrot.slane %v2194, 6
        %v7319 = vsel %vm2458, %v7318, %v7317
        %v7320 = vrot.slane %v2195, 5
        %v7321 = vsel %vm2461, %v7320, %v7319
        %v7322 = vrot.slane %v2196, 4
        %v7323 = vsel %vm2464, %v7322, %v7321
        %v7324 = vrot.slane %v2197, 3
        %v7325 = vrot.slane %v2198, 2
        %v7326 = vsel %vm2446, %v7325, %v7324
        %v7327 = vrot.slane %v2199, 1
        %v7328 = vsel %vm2449, %v7327, %v7326
        %v7329 = vsel %vm2452, %v2200, %v7328
        %v7330 = vrot.slane %v2201, 7
        %v7331 = vsel %vm2455, %v7330, %v7329
        %v7332 = vrot.slane %v2202, 6
        %v7333 = vsel %vm2458, %v7332, %v7331
        %v7334 = vrot.slane %v2203, 5
        %v7335 = vsel %vm2461, %v7334, %v7333
        %v7336 = vrot.slane %v2204, 4
        %v7337 = vsel %vm2464, %v7336, %v7335
        %v7338 = vrot.slane %v2205, 3
        %v7339 = vrot.slane %v2206, 2
        %v7340 = vsel %vm2446, %v7339, %v7338
        %v7341 = vrot.slane %v2207, 1
        %v7342 = vsel %vm2449, %v7341, %v7340
        %v7343 = vsel %vm2452, %v2208, %v7342
        %v7344 = vrot.slane %v2209, 7
        %v7345 = vsel %vm2455, %v7344, %v7343
        %v7346 = vrot.slane %v2210, 6
        %v7347 = vsel %vm2458, %v7346, %v7345
        %v7348 = vrot.slane %v2211, 5
        %v7349 = vsel %vm2461, %v7348, %v7347
        %v7350 = vrot.slane %v2212, 4
        %v7351 = vsel %vm2464, %v7350, %v7349
        %v7352 = vrot.slane %v2213, 3
        %v7353 = vrot.slane %v2214, 2
        %v7354 = vsel %vm2446, %v7353, %v7352
        %v7355 = vrot.slane %v2215, 1
        %v7356 = vsel %vm2449, %v7355, %v7354
        %v7357 = vsel %vm2452, %v2216, %v7356
        %v7358 = vrot.slane %v2217, 7
        %v7359 = vsel %vm2455, %v7358, %v7357
        %v7360 = vrot.slane %v2218, 6
        %v7361 = vsel %vm2458, %v7360, %v7359
        %v7362 = vrot.slane %v2219, 5
        %v7363 = vsel %vm2461, %v7362, %v7361
        %v7364 = vrot.slane %v2220, 4
        %v7365 = vsel %vm2464, %v7364, %v7363
        %v7366 = vrot.slane %v2221, 3
        %v7367 = vrot.slane %v2222, 2
        %v7368 = vsel %vm2446, %v7367, %v7366
        %v7369 = vrot.slane %v2223, 1
        %v7370 = vsel %vm2449, %v7369, %v7368
        %v7371 = vsel %vm2452, %v2224, %v7370
        %v7372 = vrot.slane %v2225, 7
        %v7373 = vsel %vm2455, %v7372, %v7371
        %v7374 = vrot.slane %v2226, 6
        %v7375 = vsel %vm2458, %v7374, %v7373
        %v7376 = vrot.slane %v2227, 5
        %v7377 = vsel %vm2461, %v7376, %v7375
        %v7378 = vrot.slane %v2228, 4
        %v7379 = vsel %vm2464, %v7378, %v7377
        %v7380 = vrot.slane %v2229, 3
        %v7381 = vrot.slane %v2230, 2
        %v7382 = vsel %vm2446, %v7381, %v7380
        %v7383 = vrot.slane %v2231, 1
        %v7384 = vsel %vm2449, %v7383, %v7382
        %v7385 = vsel %vm2452, %v2232, %v7384
        %v7386 = vrot.slane %v2233, 7
        %v7387 = vsel %vm2455, %v7386, %v7385
        %v7388 = vrot.slane %v2234, 6
        %v7389 = vsel %vm2458, %v7388, %v7387
        %v7390 = vrot.slane %v2235, 5
        %v7391 = vsel %vm2461, %v7390, %v7389
        %v7392 = vrot.slane %v2236, 4
        %v7393 = vsel %vm2464, %v7392, %v7391
        %v7394 = vrot.slane %v2237, 3
        %v7395 = vrot.slane %v2238, 2
        %v7396 = vsel %vm2446, %v7395, %v7394
        %v7397 = vrot.slane %v2239, 1
        %v7398 = vsel %vm2449, %v7397, %v7396
        %v7399 = vsel %vm2452, %v2240, %v7398
        %v7400 = vrot.slane %v2241, 7
        %v7401 = vsel %vm2455, %v7400, %v7399
        %v7402 = vrot.slane %v2242, 6
        %v7403 = vsel %vm2458, %v7402, %v7401
        %v7404 = vrot.slane %v2243, 5
        %v7405 = vsel %vm2461, %v7404, %v7403
        %v7406 = vrot.slane %v2244, 4
        %v7407 = vsel %vm2464, %v7406, %v7405
        %v7408 = vrot.slane %v2245, 3
        %v7409 = vrot.slane %v2246, 2
        %v7410 = vsel %vm2446, %v7409, %v7408
        %v7411 = vrot.slane %v2247, 1
        %v7412 = vsel %vm2449, %v7411, %v7410
        %v7413 = vsel %vm2452, %v2248, %v7412
        %v7414 = vrot.slane %v2249, 7
        %v7415 = vsel %vm2455, %v7414, %v7413
        %v7416 = vrot.slane %v2250, 6
        %v7417 = vsel %vm2458, %v7416, %v7415
        %v7418 = vrot.slane %v2251, 5
        %v7419 = vsel %vm2461, %v7418, %v7417
        %v7420 = vrot.slane %v2252, 4
        %v7421 = vsel %vm2464, %v7420, %v7419
        %v7422 = vrot.slane %v2253, 3
        %v7423 = vrot.slane %v2254, 2
        %v7424 = vsel %vm2446, %v7423, %v7422
        %v7425 = vrot.slane %v2255, 1
        %v7426 = vsel %vm2449, %v7425, %v7424
        %v7427 = vsel %vm2452, %v2256, %v7426
        %v7428 = vrot.slane %v2257, 7
        %v7429 = vsel %vm2455, %v7428, %v7427
        %v7430 = vrot.slane %v2258, 6
        %v7431 = vsel %vm2458, %v7430, %v7429
        %v7432 = vrot.slane %v2259, 5
        %v7433 = vsel %vm2461, %v7432, %v7431
        %v7434 = vrot.slane %v2260, 4
        %v7435 = vsel %vm2464, %v7434, %v7433
        %v7436 = vrot.slane %v2261, 3
        %v7437 = vrot.slane %v2262, 2
        %v7438 = vsel %vm2446, %v7437, %v7436
        %v7439 = vrot.slane %v2263, 1
        %v7440 = vsel %vm2449, %v7439, %v7438
        %v7441 = vsel %vm2452, %v2264, %v7440
        %v7442 = vrot.slane %v2265, 7
        %v7443 = vsel %vm2455, %v7442, %v7441
        %v7444 = vrot.slane %v2266, 6
        %v7445 = vsel %vm2458, %v7444, %v7443
        %v7446 = vrot.slane %v2267, 5
        %v7447 = vsel %vm2461, %v7446, %v7445
        %v7448 = vrot.slane %v2268, 4
        %v7449 = vsel %vm2464, %v7448, %v7447
        %v7450 = vrot.slane %v2269, 3
        %v7451 = vrot.slane %v2270, 2
        %v7452 = vsel %vm2446, %v7451, %v7450
        %v7453 = vrot.slane %v2271, 1
        %v7454 = vsel %vm2449, %v7453, %v7452
        %v7455 = vsel %vm2452, %v2272, %v7454
        %v7456 = vrot.slane %v2273, 7
        %v7457 = vsel %vm2455, %v7456, %v7455
        %v7458 = vrot.slane %v2274, 6
        %v7459 = vsel %vm2458, %v7458, %v7457
        %v7460 = vrot.slane %v2275, 5
        %v7461 = vsel %vm2461, %v7460, %v7459
        %v7462 = vrot.slane %v2276, 4
        %v7463 = vsel %vm2464, %v7462, %v7461
        %v7464 = vrot.slane %v2277, 3
        %v7465 = vrot.slane %v2278, 2
        %v7466 = vsel %vm2446, %v7465, %v7464
        %v7467 = vrot.slane %v2279, 1
        %v7468 = vsel %vm2449, %v7467, %v7466
        %v7469 = vsel %vm2452, %v2280, %v7468
        %v7470 = vrot.slane %v2281, 7
        %v7471 = vsel %vm2455, %v7470, %v7469
        %v7472 = vrot.slane %v2282, 6
        %v7473 = vsel %vm2458, %v7472, %v7471
        %v7474 = vrot.slane %v2283, 5
        %v7475 = vsel %vm2461, %v7474, %v7473
        %v7476 = vrot.slane %v2284, 4
        %v7477 = vsel %vm2464, %v7476, %v7475
        %v7478 = vrot.slane %v2285, 3
        %v7479 = vrot.slane %v2286, 2
        %v7480 = vsel %vm2446, %v7479, %v7478
        %v7481 = vrot.slane %v2287, 1
        %v7482 = vsel %vm2449, %v7481, %v7480
        %v7483 = vsel %vm2452, %v2288, %v7482
        %v7484 = vrot.slane %v2289, 7
        %v7485 = vsel %vm2455, %v7484, %v7483
        %v7486 = vrot.slane %v2290, 6
        %v7487 = vsel %vm2458, %v7486, %v7485
        %v7488 = vrot.slane %v2291, 5
        %v7489 = vsel %vm2461, %v7488, %v7487
        %v7490 = vrot.slane %v2292, 4
        %v7491 = vsel %vm2464, %v7490, %v7489
        %v7492 = vrot.slane %v2293, 3
        %v7493 = vrot.slane %v2294, 2
        %v7494 = vsel %vm2446, %v7493, %v7492
        %v7495 = vrot.slane %v2295, 1
        %v7496 = vsel %vm2449, %v7495, %v7494
        %v7497 = vsel %vm2452, %v2296, %v7496
        %v7498 = vrot.slane %v2297, 7
        %v7499 = vsel %vm2455, %v7498, %v7497
        %v7500 = vrot.slane %v2298, 6
        %v7501 = vsel %vm2458, %v7500, %v7499
        %v7502 = vrot.slane %v2299, 5
        %v7503 = vsel %vm2461, %v7502, %v7501
        %v7504 = vrot.slane %v2300, 4
        %v7505 = vsel %vm2464, %v7504, %v7503
        %v7506 = vrot.slane %v2301, 3
        %v7507 = vrot.slane %v2302, 2
        %v7508 = vsel %vm2446, %v7507, %v7506
        %v7509 = vrot.slane %v2303, 1
        %v7510 = vsel %vm2449, %v7509, %v7508
        %v7511 = vsel %vm2452, %v2304, %v7510
        %v7512 = vrot.slane %v2305, 7
        %v7513 = vsel %vm2455, %v7512, %v7511
        %v7514 = vrot.slane %v2306, 6
        %v7515 = vsel %vm2458, %v7514, %v7513
        %v7516 = vrot.slane %v2307, 5
        %v7517 = vsel %vm2461, %v7516, %v7515
        %v7518 = vrot.slane %v2308, 4
        %v7519 = vsel %vm2464, %v7518, %v7517
        %v7520 = vrot.slane %v2309, 3
        %v7521 = vrot.slane %v2310, 2
        %v7522 = vsel %vm2446, %v7521, %v7520
        %v7523 = vrot.slane %v2311, 1
        %v7524 = vsel %vm2449, %v7523, %v7522
        %v7525 = vsel %vm2452, %v2312, %v7524
        %v7526 = vrot.slane %v2313, 7
        %v7527 = vsel %vm2455, %v7526, %v7525
        %v7528 = vrot.slane %v2314, 6
        %v7529 = vsel %vm2458, %v7528, %v7527
        %v7530 = vrot.slane %v2315, 5
        %v7531 = vsel %vm2461, %v7530, %v7529
        %v7532 = vrot.slane %v2316, 4
        %v7533 = vsel %vm2464, %v7532, %v7531
        %7550 = vmatprep.subr.mxu0 0.0
        %7551 = vmatpush1.msra.mxu0 %v7323
        %7552 = vmatprep.subr.mxu0 0.0
        %7553 = vmatpush1.msra.mxu0 %v7337
        %7554 = vmatprep.subr.mxu0 0.0
        %7555 = vmatpush1.msra.mxu0 %v7351
        %7556 = vmatprep.subr.mxu0 0.0
        %7557 = vmatpush1.msra.mxu0 %v7365
        %7558 = vmatprep.subr.mxu0 0.0
        %7559 = vmatpush1.msra.mxu0 %v7379
        %7560 = vmatprep.subr.mxu0 0.0
        %7561 = vmatpush1.msra.mxu0 %v7393
        %7562 = vmatprep.subr.mxu0 0.0
        %7563 = vmatpush1.msra.mxu0 %v7407
        %7564 = vmatprep.subr.mxu0 0.0
        %7565 = vmatpush1.msra.mxu0 %v7421
        %7566 = vmatprep.subr.mxu0 0.0
        %7567 = vmatpush1.msra.mxu0 %v7435
        %7568 = vmatprep.subr.mxu0 0.0
        %7569 = vmatpush1.msra.mxu0 %v7449
        %7570 = vmatprep.subr.mxu0 0.0
        %7571 = vmatpush1.msra.mxu0 %v7463
        %7572 = vmatprep.subr.mxu0 0.0
        %7573 = vmatpush1.msra.mxu0 %v7477
        %7574 = vmatprep.subr.mxu0 0.0
        %7575 = vmatpush1.msra.mxu0 %v7491
        %7576 = vmatprep.subr.mxu0 0.0
        %7577 = vmatpush1.msra.mxu0 %v7505
        %7578 = vmatprep.subr.mxu0 0.0
        %7579 = vmatpush1.msra.mxu0 %v7519
        %7580 = vmatprep.subr.mxu0 0.0
        %7581 = vmatpush1.msra.mxu0 %v7533
        %7582 = vmatprep.subr.mxu0 0.0
        %7583 = vmatpush1.msra.mxu0 0.0
        %7584 = vmatprep.subr.mxu0 0.0
        %7585 = vmatpush1.msra.mxu0 0.0
        %7586 = vmatprep.subr.mxu0 0.0
        %7587 = vmatpush1.msra.mxu0 0.0
        %7588 = vmatprep.subr.mxu0 0.0
        %7589 = vmatpush1.msra.mxu0 0.0
        %7590 = vmatprep.subr.mxu0 0.0
        %7591 = vmatpush1.msra.mxu0 0.0
        %7592 = vmatprep.subr.mxu0 0.0
        %7593 = vmatpush1.msra.mxu0 0.0
        %7594 = vmatprep.subr.mxu0 0.0
        %7595 = vmatpush1.msra.mxu0 0.0
        %7596 = vmatprep.subr.mxu0 0.0
        %7597 = vmatpush1.msra.mxu0 0.0
        %7598 = vmatprep.subr.mxu0 0.0
        %7599 = vmatpush1.msra.mxu0 0.0
        %7600 = vmatprep.subr.mxu0 0.0
        %7601 = vmatpush1.msra.mxu0 0.0
        %7602 = vmatprep.subr.mxu0 0.0
        %7603 = vmatpush1.msra.mxu0 0.0
        %7604 = vmatprep.subr.mxu0 0.0
        %7605 = vmatpush1.msra.mxu0 0.0
        %7606 = vmatprep.subr.mxu0 0.0
        %7607 = vmatpush1.msra.mxu0 0.0
        %7608 = vmatprep.subr.mxu0 0.0
        %7609 = vmatpush1.msra.mxu0 0.0
        %7610 = vmatprep.subr.mxu0 0.0
        %7611 = vmatpush1.msra.mxu0 0.0
        %7612 = vmatprep.subr.mxu0 0.0
        %7613 = vmatpush1.msra.mxu0 0.0
        %7614 = vmatprep.mubr.f32.mxu0 0.0
        %7615 = vmatmul.mubr.f32.gmra.mrb[0].mxu0 %v7278
        %v7616 = vpop.f32.mrb[0].mxu0
        %v7617 = vadd.f32 0.0, %v7616
        %v7618 = vpop.f32.mrb[0].mxu0
        %7619 = vmatprep.mubr.f32.mxu0 0.0
        %7620 = vmatmul.mubr.f32.gmra.mrb[0].mxu0 %v7279
        %v7621 = vpop.f32.mrb[0].mxu0
        %v7622 = vadd.f32 0.0, %v7621
        %v7623 = vpop.f32.mrb[0].mxu0
        %7624 = vmatprep.mubr.f32.mxu0 0.0
        %7625 = vmatmul.mubr.f32.gmra.mrb[0].mxu0 %v7280
        %v7626 = vpop.f32.mrb[0].mxu0
        %v7627 = vadd.f32 0.0, %v7626
        %v7628 = vpop.f32.mrb[0].mxu0
        %7629 = vmatprep.mubr.f32.mxu0 0.0
        %7630 = vmatmul.mubr.f32.gmra.mrb[0].mxu0 %v7281
        %v7631 = vpop.f32.mrb[0].mxu0
        %v7632 = vadd.f32 0.0, %v7631
        %v7633 = vpop.f32.mrb[0].mxu0
        %7634 = vmatprep.mubr.f32.mxu0 0.0
        %7635 = vmatmul.mubr.f32.gmra.mrb[0].mxu0 %v7282
        %v7636 = vpop.f32.mrb[0].mxu0
        %v7637 = vadd.f32 0.0, %v7636
        %v7638 = vpop.f32.mrb[0].mxu0
        %7639 = vmatprep.mubr.f32.mxu0 0.0
        %7640 = vmatmul.mubr.f32.gmra.mrb[0].mxu0 %v7283
        %v7641 = vpop.f32.mrb[0].mxu0
        %v7642 = vadd.f32 0.0, %v7641
        %v7643 = vpop.f32.mrb[0].mxu0
        %7644 = vmatprep.mubr.f32.mxu0 0.0
        %7645 = vmatmul.mubr.f32.gmra.mrb[0].mxu0 %v7284
        %v7646 = vpop.f32.mrb[0].mxu0
        %v7647 = vadd.f32 0.0, %v7646
        %v7648 = vpop.f32.mrb[0].mxu0
        %7649 = vmatprep.mubr.f32.mxu0 0.0
        %7650 = vmatmul.mubr.f32.gmra.mrb[0].mxu0 %v7285
        %v7651 = vpop.f32.mrb[0].mxu0
        %v7652 = vadd.f32 0.0, %v7651
        %v7653 = vpop.f32.mrb[0].mxu0
        %7654 = vmatprep.mubr.f32.mxu0 0.0
        %7655 = vmatmul.mubr.f32.gmra.mrb[0].mxu0 %v7286
        %v7656 = vpop.f32.mrb[0].mxu0
        %v7657 = vadd.f32 0.0, %v7656
        %v7658 = vpop.f32.mrb[0].mxu0
        %7659 = vmatprep.mubr.f32.mxu0 0.0
        %7660 = vmatmul.mubr.f32.gmra.mrb[0].mxu0 %v7287
        %v7661 = vpop.f32.mrb[0].mxu0
        %v7662 = vadd.f32 0.0, %v7661
        %v7663 = vpop.f32.mrb[0].mxu0
        %7664 = vmatprep.mubr.f32.mxu0 0.0
        %7665 = vmatmul.mubr.f32.gmra.mrb[0].mxu0 %v7288
        %v7666 = vpop.f32.mrb[0].mxu0
        %v7667 = vadd.f32 0.0, %v7666
        %v7668 = vpop.f32.mrb[0].mxu0
        %7669 = vmatprep.mubr.f32.mxu0 0.0
        %7670 = vmatmul.mubr.f32.gmra.mrb[0].mxu0 %v7289
        %v7671 = vpop.f32.mrb[0].mxu0
        %v7672 = vadd.f32 0.0, %v7671
        %v7673 = vpop.f32.mrb[0].mxu0
        %7674 = vmatprep.mubr.f32.mxu0 0.0
        %7675 = vmatmul.mubr.f32.gmra.mrb[0].mxu0 %v7290
        %v7676 = vpop.f32.mrb[0].mxu0
        %v7677 = vadd.f32 0.0, %v7676
        %v7678 = vpop.f32.mrb[0].mxu0
        %7679 = vmatprep.mubr.f32.mxu0 0.0
        %7680 = vmatmul.mubr.f32.gmra.mrb[0].mxu0 %v7291
        %v7681 = vpop.f32.mrb[0].mxu0
        %v7682 = vadd.f32 0.0, %v7681
        %v7683 = vpop.f32.mrb[0].mxu0
        %7684 = vmatprep.mubr.f32.mxu0 0.0
        %7685 = vmatmul.mubr.f32.gmra.mrb[0].mxu0 %v7292
        %v7686 = vpop.f32.mrb[0].mxu0
        %v7687 = vadd.f32 0.0, %v7686
        %v7688 = vpop.f32.mrb[0].mxu0
        %7689 = vmatprep.mubr.f32.mxu0 0.0
        %7690 = vmatmul.mubr.f32.gmra.mrb[0].mxu0 %v7293
        %v7691 = vpop.f32.mrb[0].mxu0
        %v7692 = vadd.f32 0.0, %v7691
        %v7693 = vpop.f32.mrb[0].mxu0
        %7694 = vdwg.mxu0
        %7711 = vrot.lane.b32.xlu0 %v7617, 48
        %v7712 = vpop.permute.xlu0 %7711
        %7713 = vrot.lane.b32.xlu0 %v7622, 48
        %v7714 = vpop.permute.xlu0 %7713
        %7715 = vrot.lane.b32.xlu0 %v7627, 48
        %v7716 = vpop.permute.xlu0 %7715
        %7717 = vrot.lane.b32.xlu0 %v7632, 48
        %v7718 = vpop.permute.xlu0 %7717
        %7719 = vrot.lane.b32.xlu0 %v7637, 48
        %v7720 = vpop.permute.xlu0 %7719
        %7721 = vrot.lane.b32.xlu0 %v7642, 48
        %v7722 = vpop.permute.xlu0 %7721
        %7723 = vrot.lane.b32.xlu0 %v7647, 48
        %v7724 = vpop.permute.xlu0 %7723
        %7725 = vrot.lane.b32.xlu0 %v7652, 48
        %v7726 = vpop.permute.xlu0 %7725
        %7727 = vrot.lane.b32.xlu0 %v7657, 48
        %v7728 = vpop.permute.xlu0 %7727
        %7729 = vrot.lane.b32.xlu0 %v7662, 48
        %v7730 = vpop.permute.xlu0 %7729
        %7731 = vrot.lane.b32.xlu0 %v7667, 48
        %v7732 = vpop.permute.xlu0 %7731
        %7733 = vrot.lane.b32.xlu0 %v7672, 48
        %v7734 = vpop.permute.xlu0 %7733
        %7735 = vrot.lane.b32.xlu0 %v7677, 48
        %v7736 = vpop.permute.xlu0 %7735
        %7737 = vrot.lane.b32.xlu0 %v7682, 48
        %v7738 = vpop.permute.xlu0 %7737
        %7739 = vrot.lane.b32.xlu0 %v7687, 48
        %v7740 = vpop.permute.xlu0 %7739
        %7741 = vrot.lane.b32.xlu0 %v7692, 48
        %v7742 = vpop.permute.xlu0 %7741
        %vm7759 = vcmask 523648
        %7760 = vst.msk [vmem:[#allocation2] sm:$0xff] %vm7759, %v7712
        %7761 = vst.msk [vmem:[#allocation2 + $0x8] sm:$0xff] %vm7759, %v7714
        %7762 = vst.msk [vmem:[#allocation2 + $0x10] sm:$0xff] %vm7759, %v7716
        %7763 = vst.msk [vmem:[#allocation2 + $0x18] sm:$0xff] %vm7759, %v7718
        %7764 = vst.msk [vmem:[#allocation2 + $0x20] sm:$0xff] %vm7759, %v7720
        %7765 = vst.msk [vmem:[#allocation2 + $0x28] sm:$0xff] %vm7759, %v7722
        %7766 = vst.msk [vmem:[#allocation2 + $0x30] sm:$0xff] %vm7759, %v7724
        %7767 = vst.msk [vmem:[#allocation2 + $0x38] sm:$0xff] %vm7759, %v7726
        %7768 = vst.msk [vmem:[#allocation2 + $0x40] sm:$0xff] %vm7759, %v7728
        %7769 = vst.msk [vmem:[#allocation2 + $0x48] sm:$0xff] %vm7759, %v7730
        %7770 = vst.msk [vmem:[#allocation2 + $0x50] sm:$0xff] %vm7759, %v7732
        %7771 = vst.msk [vmem:[#allocation2 + $0x58] sm:$0xff] %vm7759, %v7734
        %7772 = vst.msk [vmem:[#allocation2 + $0x60] sm:$0xff] %vm7759, %v7736
        %7773 = vst.msk [vmem:[#allocation2 + $0x68] sm:$0xff] %vm7759, %v7738
        %7774 = vst.msk [vmem:[#allocation2 + $0x70] sm:$0xff] %vm7759, %v7740
        %7775 = vst.msk [vmem:[#allocation2 + $0x78] sm:$0xff] %vm7759, %v7742
        %v7776 = vld [vmem:[#allocation2] sm:$0xff]
        %v7777 = vld [vmem:[#allocation2 + $0x8] sm:$0xff]
        %v7778 = vld [vmem:[#allocation2 + $0x10] sm:$0xff]
        %v7779 = vld [vmem:[#allocation2 + $0x18] sm:$0xff]
        %v7780 = vld [vmem:[#allocation2 + $0x20] sm:$0xff]
        %v7781 = vld [vmem:[#allocation2 + $0x28] sm:$0xff]
        %v7782 = vld [vmem:[#allocation2 + $0x30] sm:$0xff]
        %v7783 = vld [vmem:[#allocation2 + $0x38] sm:$0xff]
        %v7784 = vld [vmem:[#allocation2 + $0x40] sm:$0xff]
        %v7785 = vld [vmem:[#allocation2 + $0x48] sm:$0xff]
        %v7786 = vld [vmem:[#allocation2 + $0x50] sm:$0xff]
        %v7787 = vld [vmem:[#allocation2 + $0x58] sm:$0xff]
        %v7788 = vld [vmem:[#allocation2 + $0x60] sm:$0xff]
        %v7789 = vld [vmem:[#allocation2 + $0x68] sm:$0xff]
        %v7790 = vld [vmem:[#allocation2 + $0x70] sm:$0xff]
        %v7791 = vld [vmem:[#allocation2 + $0x78] sm:$0xff]
        %vm7792 = vcmask 523264
        %7793 = vst.msk [vmem:[%s1930] sm:$0xff] %vm7792, %v7776
        %7794 = vst.msk [vmem:[%s1930 + $0x8] sm:$0xff] %vm7792, %v7777
        %7795 = vst.msk [vmem:[%s1930 + $0x10] sm:$0xff] %vm7792, %v7778
        %7796 = vst.msk [vmem:[%s1930 + $0x18] sm:$0xff] %vm7792, %v7779
        %7797 = vst.msk [vmem:[%s1930 + $0x20] sm:$0xff] %vm7792, %v7780
        %7798 = vst.msk [vmem:[%s1930 + $0x28] sm:$0xff] %vm7792, %v7781
        %7799 = vst.msk [vmem:[%s1930 + $0x30] sm:$0xff] %vm7792, %v7782
        %7800 = vst.msk [vmem:[%s1930 + $0x38] sm:$0xff] %vm7792, %v7783
        %7801 = vst.msk [vmem:[%s1930 + $0x40] sm:$0xff] %vm7792, %v7784
        %7802 = vst.msk [vmem:[%s1930 + $0x48] sm:$0xff] %vm7792, %v7785
        %7803 = vst.msk [vmem:[%s1930 + $0x50] sm:$0xff] %vm7792, %v7786
        %7804 = vst.msk [vmem:[%s1930 + $0x58] sm:$0xff] %vm7792, %v7787
        %7805 = vst.msk [vmem:[%s1930 + $0x60] sm:$0xff] %vm7792, %v7788
        %7806 = vst.msk [vmem:[%s1930 + $0x68] sm:$0xff] %vm7792, %v7789
        %7807 = vst.msk [vmem:[%s1930 + $0x70] sm:$0xff] %vm7792, %v7790
        %7808 = vst.msk [vmem:[%s1930 + $0x78] sm:$0xff] %vm7792, %v7791
        %v7809 = vmul.f32 %v7294, 0.25
        %v7810 = vmul.f32 %v7295, 0.25
        %v7811 = vmul.f32 %v7296, 0.25
        %v7812 = vmul.f32 %v7297, 0.25
        %v7813 = vmul.f32 %v7298, 0.25
        %v7814 = vmul.f32 %v7299, 0.25
        %v7815 = vmul.f32 %v7300, 0.25
        %v7816 = vmul.f32 %v7301, 0.25
        %v7817 = vmul.f32 %v7302, 0.25
        %v7818 = vmul.f32 %v7303, 0.25
        %v7819 = vmul.f32 %v7304, 0.25
        %v7820 = vmul.f32 %v7305, 0.25
        %v7821 = vmul.f32 %v7306, 0.25
        %v7822 = vmul.f32 %v7307, 0.25
        %v7823 = vmul.f32 %v7308, 0.25
        %v7824 = vmul.f32 %v7309, 0.25
        %7825 = vst [vmem:[%s1920] sm:$0xff] %v7809
        %7826 = vst [vmem:[%s1920 + $0x8] sm:$0xff] %v7810
        %7827 = vst [vmem:[%s1920 + $0x10] sm:$0xff] %v7811
        %7828 = vst [vmem:[%s1920 + $0x18] sm:$0xff] %v7812
        %7829 = vst [vmem:[%s1920 + $0x20] sm:$0xff] %v7813
        %7830 = vst [vmem:[%s1920 + $0x28] sm:$0xff] %v7814
        %7831 = vst [vmem:[%s1920 + $0x30] sm:$0xff] %v7815
        %7832 = vst [vmem:[%s1920 + $0x38] sm:$0xff] %v7816
        %7833 = vst [vmem:[%s1920 + $0x40] sm:$0xff] %v7817
        %7834 = vst [vmem:[%s1920 + $0x48] sm:$0xff] %v7818
        %7835 = vst [vmem:[%s1920 + $0x50] sm:$0xff] %v7819
        %7836 = vst [vmem:[%s1920 + $0x58] sm:$0xff] %v7820
        %7837 = vst [vmem:[%s1920 + $0x60] sm:$0xff] %v7821
        %7838 = vst [vmem:[%s1920 + $0x68] sm:$0xff] %v7822
        %7839 = vst [vmem:[%s1920 + $0x70] sm:$0xff] %v7823
        %7840 = vst [vmem:[%s1920 + $0x78] sm:$0xff] %v7824
        %s7841 = smul.u32 16, %s24
        %p7842 = scmp.lt.s32.totalorder %s23, 1
        %s7843 = scalar_select %p7842, %s23, 1
        %p7844 = scmp.lt.s32.totalorder %s7841, 15
        %s7845 = scalar_select %p7844, %s7841, 15
        %s7846 = smul.addr %s7843, 16
        %s7847 = sadd.s32 %s7845, %s7846
        %s7848 = smul.addr %s7847, 8
        %s7849 = scalar_lea.vmem %s3, %s7848
        %s7850 = sand.u32 %s149, 1
        %s7851 = scalar_lea.sflag [#allocation7], %s7850
        %s7852 = sand.u32 %s149, 1
        %s7853 = smul.addr %s7852, 128
        %s7854 = scalar_lea.vmem [#allocation6], %s7853
        // Predicated region
        $region156: #{multihead_self_attention.4} parent=142 // pred_check
          %p7855 = pneg %p131
        $region157: #{multihead_self_attention.4} parent=142 // pred_check_branch
          %7857 = sbr.rel (%p7855) target = $region159
        $region158: #{multihead_self_attention.4} parent=142 // pred_region
          %s7858 = smul.u32 16, %s24
        $region159: #{multihead_self_attention.4} parent=142 // pred_fallthru
          _
        // Predicated region
        $region160: #{multihead_self_attention.4} parent=142 // pred_check
          %p7859 = pneg %p159
        $region161: #{multihead_self_attention.4} parent=142 // pred_check_branch
          %7861 = sbr.rel (%p7859) target = $region163
        $region162: #{multihead_self_attention.4} parent=142 // pred_region
          %s7862 = smul.u32 16, %s24
          %s7864 = ssub.s32 2048, 2048
          %7865 = vsyncadd %s7851, %s7864
          %s7866 = smul.addr %s23, 16
          %s7867 = sadd.s32 %s7862, %s7866
          %s7868 = smul.addr %s7867, 128
          %s7869 = scalar_lea.hbm %s4, %s7868
          %s7870 = sshll.u32 %s7854, 4
          %s7871 = int_to_ptr.vmem [resolvable:$true] %s7870
          %7876 = dma.vmem_to_hbm [thread:$0]  %s7871, 2048, %s7869, %s7851, 128, 128, 8
        $region163: #{multihead_self_attention.4} parent=142 // pred_fallthru
          _
      $region143: #{multihead_self_attention.4} parent=5 // pred_fallthru
        _
      %p7877 = scmp.le.s32.totalorder 2, %s14
      // Predicated region
      $region164: #{multihead_self_attention.4} parent=5 // pred_check
        %p7878 = pneg %p7877
      $region165: #{multihead_self_attention.4} parent=5 // pred_check_branch
        %7880 = sbr.rel (%p7878) target = $region167
      $region166: #{multihead_self_attention.4} parent=5 // pred_region
        %s7881 = ssub.s32 %s14, 2
        // Predicated region
        $region168: #{multihead_self_attention.4} parent=166 // pred_check
          %p7882 = pneg %p137
        $region169: #{multihead_self_attention.4} parent=166 // pred_check_branch
          %7884 = sbr.rel (%p7882) target = $region171
        $region170: #{multihead_self_attention.4} parent=166 // pred_region
          %s7885 = smul.u32 16, %s26
          %p7886 = scmp.lt.s32.totalorder %s25, 1
          %s7887 = scalar_select %p7886, %s25, 1
          %p7888 = scmp.lt.s32.totalorder %s7885, 15
          %s7889 = scalar_select %p7888, %s7885, 15
          %s7890 = smul.addr %s7887, 16
          %s7891 = sadd.s32 %s7889, %s7890
          %s7892 = smul.addr %s7891, 8
          %s7893 = scalar_lea.vmem %s3, %s7892
        $region171: #{multihead_self_attention.4} parent=166 // pred_fallthru
          _
        // Predicated region
        $region172: #{multihead_self_attention.4} parent=166 // pred_check
          %p7894 = pneg %p165
        $region173: #{multihead_self_attention.4} parent=166 // pred_check_branch
          %7896 = sbr.rel (%p7894) target = $region175
        $region174: #{multihead_self_attention.4} parent=166 // pred_region
          %s7897 = sand.u32 %s150, 1
          %s7898 = scalar_lea.sflag [#allocation7], %s7897
          %s7899 = sand.u32 %s150, 1
          %s7900 = smul.addr %s7899, 128
          %s7901 = scalar_lea.vmem [#allocation6], %s7900
          %7902 = dma.done %s7898, 2048
        $region175: #{multihead_self_attention.4} parent=166 // pred_fallthru
          _
      $region167: #{multihead_self_attention.4} parent=5 // pred_fallthru
        _
    $region6: #{multihead_self_attention.4} parent=1 // loop_footer
      %s18 = sadd.s32 1, %s14
    $region7: #{multihead_self_attention.4} parent=1 // loop_footer_branch
      %13 = sbr.rel target = $region3
    $region8: #{multihead_self_attention.4} parent=1 // loop_exit
      _
    %7903 = vsyncpa [#allocation7], 1
    %s7904 = scalar_lea.sflag [#allocation7], 1
    %7905 = vsyncpa %s7904, 1

</llo_original>
